<compile_context>
chip_gen: v6e
topology: v6e:2x2x1
jax: 0.10.0
libtpu: 0.0.40
codegen_flags: <defaults>
</compile_context>

<pallas_src>
import jax
import jax.numpy as jnp
from jax.experimental import pallas as pl
from jax.experimental.pallas import tpu as pltpu

_HEADS = 3
_F_IN = 373
_F_PAD = 384      # 373 padded up to the next multiple of 128


# --------------------------------------------------------------------------
# Fused Pallas kernel
# --------------------------------------------------------------------------

def _bf(v):
    return v.astype(jnp.bfloat16)


def _gcn_block(a_hat_bf, h, w, b, scale, shift):
    # BN( ReLU( A_hat @ (H @ W) + b ) ), BN folded to scale/shift.
    xw = jnp.dot(_bf(h), w[...], preferred_element_type=jnp.float32)
    agg = jnp.dot(a_hat_bf, _bf(xw), preferred_element_type=jnp.float32) + b[...]
    return jnp.maximum(agg, 0.0) * scale[...] + shift[...]


def _gat_block(h, maskb, w, aproj, b, scale, shift, out_c):
    # W x for all heads with one matmul; then ALL 2*H attention scores with a
    # single MXU matmul against a block-structured (H*C, 128) projection:
    #   sc[:, h]       = a_src_h . (W x)_h
    #   sc[:, HEADS+h] = a_dst_h . (W x)_h
    xp = jnp.dot(_bf(h), w[...], preferred_element_type=jnp.float32)     # (N, H*C)
    xpb = _bf(xp)
    sc = jnp.dot(xpb, aproj[...], preferred_element_type=jnp.float32)    # (N, 128)
    sc_t = sc.T            # ONE transpose per layer (hoisted out of head loop)
    heads = []
    for hh in range(_HEADS):
        lo = hh * out_c
        xh = xpb[:, lo:lo + out_c]                           # (N, C) bf16
        # e[i, j] = a_dst.x_i + a_src.x_j
        logits = sc[:, _HEADS + hh:_HEADS + hh + 1] + sc_t[hh:hh + 1, :]
        logits = jnp.maximum(logits, 0.2 * logits) + maskb   # LeakyReLU(0.2)+mask
        m = jnp.max(logits, axis=-1, keepdims=True)
        p = jnp.exp(logits - m)
        attn = p * pl.reciprocal(jnp.sum(p, axis=-1, keepdims=True), approx=True)
        heads.append(jnp.dot(_bf(attn), xh, preferred_element_type=jnp.float32))
    out = jnp.concatenate(heads, axis=-1) + b[...]           # (N, H*C), no scratch
    return jnp.maximum(out, 0.0) * scale[...] + shift[...]


def _fused_forward_kernel(
        a_hat_ref, mask_ref, onehot_ref, x_ref,
        gw1, gb1, gs1, gt1, gw2, gb2, gs2, gt2, gw3, gb3, gs3, gt3,
        aw1, ap1, ab1, as1, at1,
        aw2, ap2, ab2, as2, at2,
        aw3, ap3, ab3, as3, at3,
        fw1g, fw1a, fb1, fw2, fb2, fw3, fb3,
        o_ref):
    a_hat = _bf(a_hat_ref[...])
    onehot = _bf(onehot_ref[...])
    x = x_ref[...]
    # Additive attention-mask bias (0 on edges/self-loops, -1e30 elsewhere),
    # computed once and reused by all three GAT layers.
    # NOTE: relies on every row having >=1 unmasked entry (self-loops in A+I).
    maskb = (mask_ref[...] - 1.0) * 1e30

    # ---- GCN branch (all intermediates stay in VMEM/vregs) ----
    hg = _gcn_block(a_hat, x, gw1, gb1, gs1, gt1)
    hg = _gcn_block(a_hat, hg, gw2, gb2, gs2, gt2)
    hg = _gcn_block(a_hat, hg, gw3, gb3, gs3, gt3)
    xg = jnp.dot(onehot, _bf(hg), preferred_element_type=jnp.float32)     # (G, 128)

    # ---- GAT branch ----
    ha = _gat_block(x, maskb, aw1, ap1, ab1, as1, at1, 256)
    ha = _gat_block(ha, maskb, aw2, ap2, ab2, as2, at2, 128)
    ha = _gat_block(ha, maskb, aw3, ap3, ab3, as3, at3, 128)
    yg = jnp.dot(onehot, _bf(ha), preferred_element_type=jnp.float32)     # (G, 384)

    # ---- MLP head: cat((xg, yg), 1) @ W1 folded into two matmuls ----
    h1 = jnp.maximum(
        jnp.dot(_bf(xg), fw1g[...], preferred_element_type=jnp.float32)
        + jnp.dot(_bf(yg), fw1a[...], preferred_element_type=jnp.float32)
        + fb1[...], 0.0)
    # eval-mode dropout (p=0.2) is identity
    h2 = jnp.maximum(jnp.dot(_bf(h1), fw2[...],
                             preferred_element_type=jnp.float32) + fb2[...], 0.0)
    h3 = jnp.maximum(jnp.dot(_bf(h2), fw3[...],
                             preferred_element_type=jnp.float32) + fb3[...], 0.0)
    o_ref[...] = h3                                                       # (G, 128)


# --------------------------------------------------------------------------
# Wrappers
# --------------------------------------------------------------------------

def prepare_params(P):
    """One-time weight preprocessing: padding, BN folding layout, fc1 split,
    the per-layer GAT attention projections, and bf16 cast of matmul weights."""

    def row(v):
        return v.reshape(1, -1)

    def pad_rows(w, rows):
        return jnp.pad(w, ((0, rows - w.shape[0]), (0, 0)))

    def attn_proj(a_src, a_dst, out_c):
        # Column h = a_src of head h (rows h*C:(h+1)*C), column HEADS+h = a_dst;
        # padded to 128 lanes so the score matmul output is lane-dense.
        ap = jnp.zeros((_HEADS * out_c, 128), jnp.float32)
        for hh in range(_HEADS):
            ap = ap.at[hh * out_c:(hh + 1) * out_c, hh].set(a_src[hh])
            ap = ap.at[hh * out_c:(hh + 1) * out_c, _HEADS + hh].set(a_dst[hh])
        return _bf(ap)

    gw1, gb1 = P["gcn1"]; gs1, gt1 = P["bn01"]
    gw2, gb2 = P["gcn2"]; gs2, gt2 = P["bn02"]
    gw3, gb3 = P["gcn3"]; gs3, gt3 = P["bn03"]
    aw1, a1s, a1d, ab1 = P["gat1"]; as1, at1 = P["bn11"]
    aw2, a2s, a2d, ab2 = P["gat2"]; as2, at2 = P["bn12"]
    aw3, a3s, a3d, ab3 = P["gat3"]; as3, at3 = P["bn13"]
    fw1, fb1 = P["fc1"]; fw2, fb2 = P["fc2"]; fw3, fb3 = P["fc3"]

    return (
        # GCN branch (input dim zero-padded 373 -> 384)
        _bf(pad_rows(gw1, _F_PAD)), row(gb1), row(gs1), row(gt1),
        _bf(gw2), row(gb2), row(gs2), row(gt2),
        _bf(gw3), row(gb3), row(gs3), row(gt3),
        # GAT branch
        _bf(pad_rows(aw1, _F_PAD)), attn_proj(a1s, a1d, 256), row(ab1), row(as1), row(at1),
        _bf(aw2), attn_proj(a2s, a2d, 128), row(ab2), row(as2), row(at2),
        _bf(aw3), attn_proj(a3s, a3d, 128), row(ab3), row(as3), row(at3),
        # MLP head: fc1 split along the concat boundary, fc2/fc3 lane-padded
        _bf(fw1[:128, :]), _bf(fw1[128:, :]), row(fb1),
        _bf(jnp.pad(fw2, ((0, 0), (0, 128 - fw2.shape[1])))),
        row(jnp.pad(fb2, (0, 128 - fb2.shape[0]))),
        _bf(jnp.pad(fw3, ((0, 128 - fw3.shape[0]), (0, 128 - fw3.shape[1])))),
        row(jnp.pad(fb3, (0, 128 - fb3.shape[0]))),
    )


@jax.jit
def forward_pallas(x_pad, a_hat, mask, onehot, prepped):
    """x_pad: (B, N, 384) pre-padded; a_hat/mask: (B, N, N); onehot: (B, G, N)."""
    B, N, _ = x_pad.shape
    G = onehot.shape[1]
    vmem = pltpu.MemorySpace.VMEM

    def stream_spec(a):           # per-batch-element block, double-buffered
        nd = a.ndim
        return pl.BlockSpec((None,) + tuple(a.shape[1:]),
                            lambda b, _n=nd: (b,) + (0,) * (_n - 1),
                            memory_space=vmem)

    def resident_spec(a):         # constant block index -> DMA once, stays in VMEM
        nd = a.ndim
        return pl.BlockSpec(tuple(a.shape), lambda b, _n=nd: (0,) * _n,
                            memory_space=vmem)

    in_specs = ([stream_spec(a_hat), stream_spec(mask),
                 stream_spec(onehot), stream_spec(x_pad)]
                + [resident_spec(w) for w in prepped])
    out_spec = pl.BlockSpec((None, G, 128), lambda b: (b, 0, 0), memory_space=vmem)

    # Advisory cost estimate (FLOPs of all matmuls, exp count, HBM bytes).
    def mm(m, k, n):
        return 2 * m * k * n
    flops_one = (
        mm(N, _F_PAD, 256) + mm(N, N, 256)
        + mm(N, 256, 128) + mm(N, N, 128)
        + mm(N, 128, 128) + mm(N, N, 128)
        + mm(N, _F_PAD, 768) + mm(N, 768, 128) + 3 * mm(N, N, 256)
        + mm(N, 768, 384) + mm(N, 384, 128) + 3 * mm(N, N, 128)
        + mm(N, 384, 384) + mm(N, 384, 128) + 3 * mm(N, N, 128)
        + mm(G, N, 128) + mm(G, N, 384)
        + mm(G, 128, 256) + mm(G, 384, 256) + mm(G, 256, 128) + mm(G, 128, 128))
    bytes_accessed = int(
        sum(a.size * a.dtype.itemsize for a in (a_hat, mask, onehot, x_pad))
        + sum(w.size * w.dtype.itemsize for w in prepped)
        + B * G * 128 * 4)
    cost = pl.CostEstimate(flops=int(B * flops_one),
                           transcendentals=int(B * 3 * _HEADS * N * N),
                           bytes_accessed=bytes_accessed)

    out = pl.pallas_call(
        _fused_forward_kernel,
        out_shape=jax.ShapeDtypeStruct((B, G, 128), jnp.float32),
        grid=(B,),
        in_specs=in_specs,
        out_specs=out_spec,
        compiler_params=pltpu.CompilerParams(
            dimension_semantics=("parallel",),          # v7x: shard batch over 2 TCs
            vmem_limit_bytes=32 * 1024 * 1024),
        cost_estimate=cost,
    )(a_hat, mask, onehot, x_pad, *prepped)
    return out[:, :, 0]     # fc3 output lives in lane 0; lanes 1..127 are padding


# --------------------------------------------------------------------------
# Pure-JAX reference (matches the PyTorch eval-mode forward).
# `cast` lets the same code serve as the f32 reference (identity) and as a
# precision-matched reference mirroring the kernel's bf16 operand casts.
# --------------------------------------------------------------------------

def _mm(a, b, cast):
    return jnp.dot(cast(a), cast(b), preferred_element_type=jnp.float32)


def _gcn_ref(a_hat, x, w, b, scale, shift, cast):
    h = jnp.maximum(_mm(a_hat, _mm(x, w, cast), cast) + b[None, :], 0.0)
    return h * scale[None, :] + shift[None, :]


def _gat_ref(x, mask, w, a_src, a_dst, b, scale, shift, heads, out_c, cast):
    xp = _mm(x, w, cast)
    outs = []
    for hh in range(heads):
        xh = xp[:, hh * out_c:(hh + 1) * out_c]
        xh_c = cast(xh).astype(jnp.float32)
        a_s = jnp.sum(xh_c * cast(a_src[hh])[None, :].astype(jnp.float32), axis=-1)
        a_d = jnp.sum(xh_c * cast(a_dst[hh])[None, :].astype(jnp.float32), axis=-1)
        logits = a_d[:, None] + a_s[None, :]
        logits = jnp.where(logits >= 0.0, logits, 0.2 * logits)
        logits = jnp.where(mask > 0.0, logits, -1e30)
        attn = jax.nn.softmax(logits, axis=-1)
        outs.append(_mm(attn, xh, cast))
    out = jnp.concatenate(outs, axis=-1) + b[None, :]
    return jnp.maximum(out, 0.0) * scale[None, :] + shift[None, :]


def forward_ref(x, a_hat, mask, onehot, P, cast=lambda v: v):
    h = _gcn_ref(a_hat, x, *P["gcn1"], *P["bn01"], cast)
    h = _gcn_ref(a_hat, h, *P["gcn2"], *P["bn02"], cast)
    h = _gcn_ref(a_hat, h, *P["gcn3"], *P["bn03"], cast)
    xg = _mm(onehot, h, cast)
    y = _gat_ref(x, mask, *P["gat1"], *P["bn11"], 3, 256, cast)
    y = _gat_ref(y, mask, *P["gat2"], *P["bn12"], 3, 128, cast)
    y = _gat_ref(y, mask, *P["gat3"], *P["bn13"], 3, 128, cast)
    yg = _mm(onehot, y, cast)
    cr = jnp.concatenate([xg, yg], axis=1)
    w1, b1 = P["fc1"]; w2, b2 = P["fc2"]; w3, b3 = P["fc3"]
    h = jnp.maximum(_mm(cr, w1, cast) + b1[None, :], 0.0)
    h = jnp.maximum(_mm(h, w2, cast) + b2[None, :], 0.0)
    h = jnp.maximum(_mm(h, w3, cast) + b3[None, :], 0.0)
    return h.reshape(-1)


# --------------------------------------------------------------------------
# Deterministic parameter / graph construction
# --------------------------------------------------------------------------

def init_params(key):
    keys = iter(jax.random.split(key, 64))

    def nk():
        return next(keys)

    def dense(fi, fo):
        w = jax.random.normal(nk(), (fi, fo), jnp.float32) / jnp.sqrt(float(fi))
        b = 0.05 * jax.random.normal(nk(), (fo,), jnp.float32)
        return w, b

    def bn_affine(c):
        gamma = jax.random.uniform(nk(), (c,), jnp.float32, 0.8, 1.2)
        beta = 0.1 * jax.random.normal(nk(), (c,), jnp.float32)
        mean = 0.1 * jax.random.normal(nk(), (c,), jnp.float32)
        var = jax.random.uniform(nk(), (c,), jnp.float32, 0.5, 1.5)
        scale = gamma * jax.lax.rsqrt(var + 1e-5)   # eval-mode BN folded
        shift = beta - mean * scale
        return scale, shift

    def gat(fi, fo, heads):
        w = jax.random.normal(nk(), (fi, heads * fo), jnp.float32) / jnp.sqrt(float(fi))
        a_src = 0.1 * jax.random.normal(nk(), (heads, fo), jnp.float32)
        a_dst = 0.1 * jax.random.normal(nk(), (heads, fo), jnp.float32)
        b = 0.05 * jax.random.normal(nk(), (heads * fo,), jnp.float32)
        return w, a_src, a_dst, b

    P = {}
    P["gcn1"] = dense(373, 256); P["bn01"] = bn_affine(256)
    P["gcn2"] = dense(256, 128); P["bn02"] = bn_affine(128)
    P["gcn3"] = dense(128, 128); P["bn03"] = bn_affine(128)
    P["gat1"] = gat(373, 256, 3); P["bn11"] = bn_affine(256 * 3)
    P["gat2"] = gat(256 * 3, 128, 3); P["bn12"] = bn_affine(128 * 3)
    P["gat3"] = gat(128 * 3, 128, 3); P["bn13"] = bn_affine(128 * 3)
    P["fc1"] = dense(128 * 4, 256)
    P["fc2"] = dense(256, 64)
    P["fc3"] = dense(64, 1)
    return P


def make_graph(key, n_graphs, nodes_per_graph, edges_per_graph):
    n = n_graphs * nodes_per_graph
    keys = jax.random.split(key, 2 * n_graphs)
    srcs, dsts = [], []
    for g in range(n_graphs):
        s = jax.random.randint(keys[2 * g], (edges_per_graph,), 0, nodes_per_graph)
        d = jax.random.randint(keys[2 * g + 1], (edges_per_graph,), 0, nodes_per_graph)
        srcs.append(s + g * nodes_per_graph)
        dsts.append(d + g * nodes_per_graph)
    src = jnp.concatenate(srcs)
    dst = jnp.concatenate(dsts)
    # undirected edges; A[target, source] = 1
    src_u = jnp.concatenate([src, dst])
    dst_u = jnp.concatenate([dst, src])
    adj = jnp.zeros((n, n), jnp.float32).at[dst_u, src_u].set(1.0)
    adj_sl = jnp.clip(adj + jnp.eye(n, dtype=jnp.float32), 0.0, 1.0)  # + self loops
    deg = adj_sl.sum(axis=1)
    dinv = jax.lax.rsqrt(deg)
    a_hat = dinv[:, None] * adj_sl * dinv[None, :]   # D^{-1/2}(A+I)D^{-1/2}
    mask = adj_sl                                    # GAT attention mask
    batch = jnp.repeat(jnp.arange(n_graphs), nodes_per_graph)
    onehot = (batch[None, :] == jnp.arange(n_graphs)[:, None]).astype(jnp.float32)
    return a_hat, mask, onehot


# --------------------------------------------------------------------------

if __name__ == "__main__":
    key = jax.random.PRNGKey(0)
    k_x, k_g, k_p = jax.random.split(key, 3)

    B = 4                       # batch of independent graph-sets (grid axis)
    N_GRAPHS, NODES_PER_GRAPH = 2, 8
    N = N_GRAPHS * NODES_PER_GRAPH

    x = jax.random.normal(k_x, (B, N, _F_IN), jnp.float32)
    graphs = [make_graph(jax.random.fold_in(k_g, b), N_GRAPHS, NODES_PER_GRAPH, 12)
              for b in range(B)]
    a_hat = jnp.stack([g[0] for g in graphs])
    mask = jnp.stack([g[1] for g in graphs])
    onehot = jnp.stack([g[2] for g in graphs])

    params = init_params(k_p)
    prepped = prepare_params(params)

    # One-time pad outside jit (no per-call pad op / HBM copy).
    x_pad = jnp.pad(x, ((0, 0), (0, 0), (0, _F_PAD - _F_IN)))

    out = forward_pallas(x_pad, a_hat, mask, onehot, prepped)     # (B, N_GRAPHS)
    out = jax.block_until_ready(out)
    assert out.shape == (B, N_GRAPHS), out.shape

    bf16c = lambda v: v.astype(jnp.bfloat16)
    for b in range(B):
        ref_bf = forward_ref(x[b], a_hat[b], mask[b], onehot[b], params, cast=bf16c)
        ref_f32 = forward_ref(x[b], a_hat[b], mask[b], onehot[b], params)
        if not jnp.allclose(out[b], ref_bf, rtol=3e-2, atol=3e-2):
            raise AssertionError(f"[b={b}] pallas={out[b]} bf16-matched ref={ref_bf}")
        if not jnp.allclose(out[b], ref_f32, rtol=1.5e-1, atol=1.5e-1):
            raise AssertionError(f"[b={b}] pallas={out[b]} f32 ref={ref_f32}")
    print("KERNEL_OK")
</pallas_src>

<mosaic_0001>
module attributes {stable_mosaic.version = 11 : i64} {
  func.func @_fused_forward_kernel(%arg0: i32, %arg1: memref<1x16x16xf32, #tpu.memory_space<vmem>>, %arg2: memref<1x16x16xf32, #tpu.memory_space<vmem>>, %arg3: memref<1x2x16xf32, #tpu.memory_space<vmem>>, %arg4: memref<1x16x384xf32, #tpu.memory_space<vmem>>, %arg5: memref<384x256xbf16, #tpu.memory_space<vmem>>, %arg6: memref<1x256xf32, #tpu.memory_space<vmem>>, %arg7: memref<1x256xf32, #tpu.memory_space<vmem>>, %arg8: memref<1x256xf32, #tpu.memory_space<vmem>>, %arg9: memref<256x128xbf16, #tpu.memory_space<vmem>>, %arg10: memref<1x128xf32, #tpu.memory_space<vmem>>, %arg11: memref<1x128xf32, #tpu.memory_space<vmem>>, %arg12: memref<1x128xf32, #tpu.memory_space<vmem>>, %arg13: memref<128x128xbf16, #tpu.memory_space<vmem>>, %arg14: memref<1x128xf32, #tpu.memory_space<vmem>>, %arg15: memref<1x128xf32, #tpu.memory_space<vmem>>, %arg16: memref<1x128xf32, #tpu.memory_space<vmem>>, %arg17: memref<384x768xbf16, #tpu.memory_space<vmem>>, %arg18: memref<768x128xbf16, #tpu.memory_space<vmem>>, %arg19: memref<1x768xf32, #tpu.memory_space<vmem>>, %arg20: memref<1x768xf32, #tpu.memory_space<vmem>>, %arg21: memref<1x768xf32, #tpu.memory_space<vmem>>, %arg22: memref<768x384xbf16, #tpu.memory_space<vmem>>, %arg23: memref<384x128xbf16, #tpu.memory_space<vmem>>, %arg24: memref<1x384xf32, #tpu.memory_space<vmem>>, %arg25: memref<1x384xf32, #tpu.memory_space<vmem>>, %arg26: memref<1x384xf32, #tpu.memory_space<vmem>>, %arg27: memref<384x384xbf16, #tpu.memory_space<vmem>>, %arg28: memref<384x128xbf16, #tpu.memory_space<vmem>>, %arg29: memref<1x384xf32, #tpu.memory_space<vmem>>, %arg30: memref<1x384xf32, #tpu.memory_space<vmem>>, %arg31: memref<1x384xf32, #tpu.memory_space<vmem>>, %arg32: memref<128x256xbf16, #tpu.memory_space<vmem>>, %arg33: memref<384x256xbf16, #tpu.memory_space<vmem>>, %arg34: memref<1x256xf32, #tpu.memory_space<vmem>>, %arg35: memref<256x128xbf16, #tpu.memory_space<vmem>>, %arg36: memref<1x128xf32, #tpu.memory_space<vmem>>, %arg37: memref<128x128xbf16, #tpu.memory_space<vmem>>, %arg38: memref<1x128xf32, #tpu.memory_space<vmem>>, %arg39: memref<1x2x128xf32, #tpu.memory_space<vmem>>) attributes {dimension_semantics = [#tpu.dimension_semantics<parallel>], iteration_bounds = array<i64: 4>, scalar_prefetch = 0 : i64, scratch_operands = 0 : i64, tpu.core_type = #tpu.core_type<tc>, window_params = [{transform_indices = @transform_0, window_bounds = array<i64: 1, 16, 16>}, {transform_indices = @transform_1, window_bounds = array<i64: 1, 16, 16>}, {transform_indices = @transform_2, window_bounds = array<i64: 1, 2, 16>}, {transform_indices = @transform_3, window_bounds = array<i64: 1, 16, 384>}, {pipeline_mode = #tpu.pipeline_mode<synchronous>, transform_indices = @transform_4, window_bounds = array<i64: 384, 256>}, {pipeline_mode = #tpu.pipeline_mode<synchronous>, transform_indices = @transform_5, window_bounds = array<i64: 1, 256>}, {pipeline_mode = #tpu.pipeline_mode<synchronous>, transform_indices = @transform_6, window_bounds = array<i64: 1, 256>}, {pipeline_mode = #tpu.pipeline_mode<synchronous>, transform_indices = @transform_7, window_bounds = array<i64: 1, 256>}, {pipeline_mode = #tpu.pipeline_mode<synchronous>, transform_indices = @transform_8, window_bounds = array<i64: 256, 128>}, {pipeline_mode = #tpu.pipeline_mode<synchronous>, transform_indices = @transform_9, window_bounds = array<i64: 1, 128>}, {pipeline_mode = #tpu.pipeline_mode<synchronous>, transform_indices = @transform_10, window_bounds = array<i64: 1, 128>}, {pipeline_mode = #tpu.pipeline_mode<synchronous>, transform_indices = @transform_11, window_bounds = array<i64: 1, 128>}, {pipeline_mode = #tpu.pipeline_mode<synchronous>, transform_indices = @transform_12, window_bounds = array<i64: 128, 128>}, {pipeline_mode = #tpu.pipeline_mode<synchronous>, transform_indices = @transform_13, window_bounds = array<i64: 1, 128>}, {pipeline_mode = #tpu.pipeline_mode<synchronous>, transform_indices = @transform_14, window_bounds = array<i64: 1, 128>}, {pipeline_mode = #tpu.pipeline_mode<synchronous>, transform_indices = @transform_15, window_bounds = array<i64: 1, 128>}, {pipeline_mode = #tpu.pipeline_mode<synchronous>, transform_indices = @transform_16, window_bounds = array<i64: 384, 768>}, {pipeline_mode = #tpu.pipeline_mode<synchronous>, transform_indices = @transform_17, window_bounds = array<i64: 768, 128>}, {pipeline_mode = #tpu.pipeline_mode<synchronous>, transform_indices = @transform_18, window_bounds = array<i64: 1, 768>}, {pipeline_mode = #tpu.pipeline_mode<synchronous>, transform_indices = @transform_19, window_bounds = array<i64: 1, 768>}, {pipeline_mode = #tpu.pipeline_mode<synchronous>, transform_indices = @transform_20, window_bounds = array<i64: 1, 768>}, {pipeline_mode = #tpu.pipeline_mode<synchronous>, transform_indices = @transform_21, window_bounds = array<i64: 768, 384>}, {pipeline_mode = #tpu.pipeline_mode<synchronous>, transform_indices = @transform_22, window_bounds = array<i64: 384, 128>}, {pipeline_mode = #tpu.pipeline_mode<synchronous>, transform_indices = @transform_23, window_bounds = array<i64: 1, 384>}, {pipeline_mode = #tpu.pipeline_mode<synchronous>, transform_indices = @transform_24, window_bounds = array<i64: 1, 384>}, {pipeline_mode = #tpu.pipeline_mode<synchronous>, transform_indices = @transform_25, window_bounds = array<i64: 1, 384>}, {pipeline_mode = #tpu.pipeline_mode<synchronous>, transform_indices = @transform_26, window_bounds = array<i64: 384, 384>}, {pipeline_mode = #tpu.pipeline_mode<synchronous>, transform_indices = @transform_27, window_bounds = array<i64: 384, 128>}, {pipeline_mode = #tpu.pipeline_mode<synchronous>, transform_indices = @transform_28, window_bounds = array<i64: 1, 384>}, {pipeline_mode = #tpu.pipeline_mode<synchronous>, transform_indices = @transform_29, window_bounds = array<i64: 1, 384>}, {pipeline_mode = #tpu.pipeline_mode<synchronous>, transform_indices = @transform_30, window_bounds = array<i64: 1, 384>}, {pipeline_mode = #tpu.pipeline_mode<synchronous>, transform_indices = @transform_31, window_bounds = array<i64: 128, 256>}, {pipeline_mode = #tpu.pipeline_mode<synchronous>, transform_indices = @transform_32, window_bounds = array<i64: 384, 256>}, {pipeline_mode = #tpu.pipeline_mode<synchronous>, transform_indices = @transform_33, window_bounds = array<i64: 1, 256>}, {pipeline_mode = #tpu.pipeline_mode<synchronous>, transform_indices = @transform_34, window_bounds = array<i64: 256, 128>}, {pipeline_mode = #tpu.pipeline_mode<synchronous>, transform_indices = @transform_35, window_bounds = array<i64: 1, 128>}, {pipeline_mode = #tpu.pipeline_mode<synchronous>, transform_indices = @transform_36, window_bounds = array<i64: 128, 128>}, {pipeline_mode = #tpu.pipeline_mode<synchronous>, transform_indices = @transform_37, window_bounds = array<i64: 1, 128>}, {transform_indices = @transform_38, window_bounds = array<i64: 1, 2, 128>}]} {
    %c0 = arith.constant 0 : index
    %c0_0 = arith.constant 0 : index
    %c0_1 = arith.constant 0 : index
    %0 = vector.load %arg1[%c0, %c0_0, %c0_1] : memref<1x16x16xf32, #tpu.memory_space<vmem>>, vector<1x16x16xf32>
    %1 = vector.shape_cast %0 : vector<1x16x16xf32> to vector<16x16xf32>
    %2 = arith.truncf %1 : vector<16x16xf32> to vector<16x16xbf16>
    %c0_2 = arith.constant 0 : index
    %c0_3 = arith.constant 0 : index
    %c0_4 = arith.constant 0 : index
    %3 = vector.load %arg3[%c0_2, %c0_3, %c0_4] : memref<1x2x16xf32, #tpu.memory_space<vmem>>, vector<1x2x16xf32>
    %4 = vector.shape_cast %3 : vector<1x2x16xf32> to vector<2x16xf32>
    %5 = arith.truncf %4 : vector<2x16xf32> to vector<2x16xbf16>
    %c0_5 = arith.constant 0 : index
    %c0_6 = arith.constant 0 : index
    %c0_7 = arith.constant 0 : index
    %6 = vector.load %arg4[%c0_5, %c0_6, %c0_7] : memref<1x16x384xf32, #tpu.memory_space<vmem>>, vector<1x16x384xf32>
    %7 = vector.shape_cast %6 : vector<1x16x384xf32> to vector<16x384xf32>
    %c0_8 = arith.constant 0 : index
    %c0_9 = arith.constant 0 : index
    %c0_10 = arith.constant 0 : index
    %8 = vector.load %arg2[%c0_8, %c0_9, %c0_10] : memref<1x16x16xf32, #tpu.memory_space<vmem>>, vector<1x16x16xf32>
    %9 = vector.shape_cast %8 : vector<1x16x16xf32> to vector<16x16xf32>
    %cst = arith.constant 1.000000e+00 : f32
    %10 = vector.broadcast %cst : f32 to vector<16x16xf32>
    %11 = arith.subf %9, %10 : vector<16x16xf32>
    %cst_11 = arith.constant 1.000000e+30 : f32
    %12 = vector.broadcast %cst_11 : f32 to vector<16x16xf32>
    %13 = arith.mulf %11, %12 : vector<16x16xf32>
    %14 = arith.truncf %7 : vector<16x384xf32> to vector<16x384xbf16>
    %c0_12 = arith.constant 0 : index
    %c0_13 = arith.constant 0 : index
    %15 = vector.load %arg5[%c0_12, %c0_13] : memref<384x256xbf16, #tpu.memory_space<vmem>>, vector<384x256xbf16>
    %cst_14 = arith.constant dense<0.000000e+00> : vector<16x256xf32>
    %16 = tpu.matmul %14, %15, %cst_14 {dimension_numbers = #tpu.dot_dimension_numbers<[1], [0], [0], [1], [0, 0, 1, 1], [], []>} : vector<16x384xbf16>, vector<384x256xbf16>, vector<16x256xf32> -> vector<16x256xf32>
    %17 = arith.truncf %16 : vector<16x256xf32> to vector<16x256xbf16>
    %cst_15 = arith.constant dense<0.000000e+00> : vector<16x256xf32>
    %18 = tpu.matmul %2, %17, %cst_15 {dimension_numbers = #tpu.dot_dimension_numbers<[1], [0], [0], [1], [0, 0, 1, 1], [], []>} : vector<16x16xbf16>, vector<16x256xbf16>, vector<16x256xf32> -> vector<16x256xf32>
    %c0_16 = arith.constant 0 : index
    %c0_17 = arith.constant 0 : index
    %19 = vector.load %arg6[%c0_16, %c0_17] : memref<1x256xf32, #tpu.memory_space<vmem>>, vector<1x256xf32>
    %20 = vector.broadcast %19 : vector<1x256xf32> to vector<16x256xf32>
    %21 = arith.addf %18, %20 : vector<16x256xf32>
    %cst_18 = arith.constant 0.000000e+00 : f32
    %22 = vector.broadcast %cst_18 : f32 to vector<16x256xf32>
    %23 = arith.maximumf %21, %22 : vector<16x256xf32>
    %c0_19 = arith.constant 0 : index
    %c0_20 = arith.constant 0 : index
    %24 = vector.load %arg7[%c0_19, %c0_20] : memref<1x256xf32, #tpu.memory_space<vmem>>, vector<1x256xf32>
    %25 = vector.broadcast %24 : vector<1x256xf32> to vector<16x256xf32>
    %26 = arith.mulf %23, %25 : vector<16x256xf32>
    %c0_21 = arith.constant 0 : index
    %c0_22 = arith.constant 0 : index
    %27 = vector.load %arg8[%c0_21, %c0_22] : memref<1x256xf32, #tpu.memory_space<vmem>>, vector<1x256xf32>
    %28 = vector.broadcast %27 : vector<1x256xf32> to vector<16x256xf32>
    %29 = arith.addf %26, %28 : vector<16x256xf32>
    %30 = arith.truncf %29 : vector<16x256xf32> to vector<16x256xbf16>
    %c0_23 = arith.constant 0 : index
    %c0_24 = arith.constant 0 : index
    %31 = vector.load %arg9[%c0_23, %c0_24] : memref<256x128xbf16, #tpu.memory_space<vmem>>, vector<256x128xbf16>
    %cst_25 = arith.constant dense<0.000000e+00> : vector<16x128xf32>
    %32 = tpu.matmul %30, %31, %cst_25 {dimension_numbers = #tpu.dot_dimension_numbers<[1], [0], [0], [1], [0, 0, 1, 1], [], []>} : vector<16x256xbf16>, vector<256x128xbf16>, vector<16x128xf32> -> vector<16x128xf32>
    %33 = arith.truncf %32 : vector<16x128xf32> to vector<16x128xbf16>
    %cst_26 = arith.constant dense<0.000000e+00> : vector<16x128xf32>
    %34 = tpu.matmul %2, %33, %cst_26 {dimension_numbers = #tpu.dot_dimension_numbers<[1], [0], [0], [1], [0, 0, 1, 1], [], []>} : vector<16x16xbf16>, vector<16x128xbf16>, vector<16x128xf32> -> vector<16x128xf32>
    %c0_27 = arith.constant 0 : index
    %c0_28 = arith.constant 0 : index
    %35 = vector.load %arg10[%c0_27, %c0_28] : memref<1x128xf32, #tpu.memory_space<vmem>>, vector<1x128xf32>
    %36 = vector.broadcast %35 : vector<1x128xf32> to vector<16x128xf32>
    %37 = arith.addf %34, %36 : vector<16x128xf32>
    %cst_29 = arith.constant 0.000000e+00 : f32
    %38 = vector.broadcast %cst_29 : f32 to vector<16x128xf32>
    %39 = arith.maximumf %37, %38 : vector<16x128xf32>
    %c0_30 = arith.constant 0 : index
    %c0_31 = arith.constant 0 : index
    %40 = vector.load %arg11[%c0_30, %c0_31] : memref<1x128xf32, #tpu.memory_space<vmem>>, vector<1x128xf32>
    %41 = vector.broadcast %40 : vector<1x128xf32> to vector<16x128xf32>
    %42 = arith.mulf %39, %41 : vector<16x128xf32>
    %c0_32 = arith.constant 0 : index
    %c0_33 = arith.constant 0 : index
    %43 = vector.load %arg12[%c0_32, %c0_33] : memref<1x128xf32, #tpu.memory_space<vmem>>, vector<1x128xf32>
    %44 = vector.broadcast %43 : vector<1x128xf32> to vector<16x128xf32>
    %45 = arith.addf %42, %44 : vector<16x128xf32>
    %46 = arith.truncf %45 : vector<16x128xf32> to vector<16x128xbf16>
    %c0_34 = arith.constant 0 : index
    %c0_35 = arith.constant 0 : index
    %47 = vector.load %arg13[%c0_34, %c0_35] : memref<128x128xbf16, #tpu.memory_space<vmem>>, vector<128x128xbf16>
    %cst_36 = arith.constant dense<0.000000e+00> : vector<16x128xf32>
    %48 = tpu.matmul %46, %47, %cst_36 {dimension_numbers = #tpu.dot_dimension_numbers<[1], [0], [0], [1], [0, 0, 1, 1], [], []>} : vector<16x128xbf16>, vector<128x128xbf16>, vector<16x128xf32> -> vector<16x128xf32>
    %49 = arith.truncf %48 : vector<16x128xf32> to vector<16x128xbf16>
    %cst_37 = arith.constant dense<0.000000e+00> : vector<16x128xf32>
    %50 = tpu.matmul %2, %49, %cst_37 {dimension_numbers = #tpu.dot_dimension_numbers<[1], [0], [0], [1], [0, 0, 1, 1], [], []>} : vector<16x16xbf16>, vector<16x128xbf16>, vector<16x128xf32> -> vector<16x128xf32>
    %c0_38 = arith.constant 0 : index
    %c0_39 = arith.constant 0 : index
    %51 = vector.load %arg14[%c0_38, %c0_39] : memref<1x128xf32, #tpu.memory_space<vmem>>, vector<1x128xf32>
    %52 = vector.broadcast %51 : vector<1x128xf32> to vector<16x128xf32>
    %53 = arith.addf %50, %52 : vector<16x128xf32>
    %cst_40 = arith.constant 0.000000e+00 : f32
    %54 = vector.broadcast %cst_40 : f32 to vector<16x128xf32>
    %55 = arith.maximumf %53, %54 : vector<16x128xf32>
    %c0_41 = arith.constant 0 : index
    %c0_42 = arith.constant 0 : index
    %56 = vector.load %arg15[%c0_41, %c0_42] : memref<1x128xf32, #tpu.memory_space<vmem>>, vector<1x128xf32>
    %57 = vector.broadcast %56 : vector<1x128xf32> to vector<16x128xf32>
    %58 = arith.mulf %55, %57 : vector<16x128xf32>
    %c0_43 = arith.constant 0 : index
    %c0_44 = arith.constant 0 : index
    %59 = vector.load %arg16[%c0_43, %c0_44] : memref<1x128xf32, #tpu.memory_space<vmem>>, vector<1x128xf32>
    %60 = vector.broadcast %59 : vector<1x128xf32> to vector<16x128xf32>
    %61 = arith.addf %58, %60 : vector<16x128xf32>
    %62 = arith.truncf %61 : vector<16x128xf32> to vector<16x128xbf16>
    %cst_45 = arith.constant dense<0.000000e+00> : vector<2x128xf32>
    %63 = tpu.matmul %5, %62, %cst_45 {dimension_numbers = #tpu.dot_dimension_numbers<[1], [0], [0], [1], [0, 0, 1, 1], [], []>} : vector<2x16xbf16>, vector<16x128xbf16>, vector<2x128xf32> -> vector<2x128xf32>
    %64 = arith.truncf %7 : vector<16x384xf32> to vector<16x384xbf16>
    %c0_46 = arith.constant 0 : index
    %c0_47 = arith.constant 0 : index
    %65 = vector.load %arg17[%c0_46, %c0_47] : memref<384x768xbf16, #tpu.memory_space<vmem>>, vector<384x768xbf16>
    %cst_48 = arith.constant dense<0.000000e+00> : vector<16x768xf32>
    %66 = tpu.matmul %64, %65, %cst_48 {dimension_numbers = #tpu.dot_dimension_numbers<[1], [0], [0], [1], [0, 0, 1, 1], [], []>} : vector<16x384xbf16>, vector<384x768xbf16>, vector<16x768xf32> -> vector<16x768xf32>
    %67 = arith.truncf %66 : vector<16x768xf32> to vector<16x768xbf16>
    %c0_49 = arith.constant 0 : index
    %c0_50 = arith.constant 0 : index
    %68 = vector.load %arg18[%c0_49, %c0_50] : memref<768x128xbf16, #tpu.memory_space<vmem>>, vector<768x128xbf16>
    %cst_51 = arith.constant dense<0.000000e+00> : vector<16x128xf32>
    %69 = tpu.matmul %67, %68, %cst_51 {dimension_numbers = #tpu.dot_dimension_numbers<[1], [0], [0], [1], [0, 0, 1, 1], [], []>} : vector<16x768xbf16>, vector<768x128xbf16>, vector<16x128xf32> -> vector<16x128xf32>
    %70 = tpu.transpose %69, [1, 0] : vector<16x128xf32> -> vector<128x16xf32>
    %71 = vector.extract_strided_slice %67 {offsets = [0, 0], sizes = [16, 256], strides = [1, 1]} : vector<16x768xbf16> to vector<16x256xbf16>
    %72 = vector.extract_strided_slice %69 {offsets = [0, 3], sizes = [16, 1], strides = [1, 1]} : vector<16x128xf32> to vector<16x1xf32>
    %73 = vector.extract_strided_slice %70 {offsets = [0, 0], sizes = [1, 16], strides = [1, 1]} : vector<128x16xf32> to vector<1x16xf32>
    %74 = vector.broadcast %72 : vector<16x1xf32> to vector<16x16xf32>
    %75 = vector.broadcast %73 : vector<1x16xf32> to vector<16x16xf32>
    %76 = arith.addf %74, %75 : vector<16x16xf32>
    %cst_52 = arith.constant 2.000000e-01 : f32
    %77 = vector.broadcast %cst_52 : f32 to vector<16x16xf32>
    %78 = arith.mulf %77, %76 : vector<16x16xf32>
    %79 = arith.maximumf %76, %78 : vector<16x16xf32>
    %80 = arith.addf %79, %13 : vector<16x16xf32>
    %cst_53 = arith.constant dense<0xFF800000> : vector<16xf32>
    %81 = vector.multi_reduction <maximumf>, %80, %cst_53 [1] : vector<16x16xf32> to vector<16xf32>
    %82 = vector.shape_cast %81 : vector<16xf32> to vector<16x1xf32>
    %83 = vector.broadcast %82 : vector<16x1xf32> to vector<16x16xf32>
    %84 = arith.subf %80, %83 : vector<16x16xf32>
    %85 = math.exp %84 : vector<16x16xf32>
    %cst_54 = arith.constant dense<0.000000e+00> : vector<16xf32>
    %86 = vector.multi_reduction <add>, %85, %cst_54 [1] : vector<16x16xf32> to vector<16xf32>
    %87 = vector.shape_cast %86 : vector<16xf32> to vector<16x1xf32>
    %88 = tpu.reciprocal %87 {approx = true} : vector<16x1xf32> -> vector<16x1xf32>
    %89 = vector.broadcast %88 : vector<16x1xf32> to vector<16x16xf32>
    %90 = arith.mulf %85, %89 : vector<16x16xf32>
    %91 = arith.truncf %90 : vector<16x16xf32> to vector<16x16xbf16>
    %cst_55 = arith.constant dense<0.000000e+00> : vector<16x256xf32>
    %92 = tpu.matmul %91, %71, %cst_55 {dimension_numbers = #tpu.dot_dimension_numbers<[1], [0], [0], [1], [0, 0, 1, 1], [], []>} : vector<16x16xbf16>, vector<16x256xbf16>, vector<16x256xf32> -> vector<16x256xf32>
    %93 = vector.extract_strided_slice %67 {offsets = [0, 256], sizes = [16, 256], strides = [1, 1]} : vector<16x768xbf16> to vector<16x256xbf16>
    %94 = vector.extract_strided_slice %69 {offsets = [0, 4], sizes = [16, 1], strides = [1, 1]} : vector<16x128xf32> to vector<16x1xf32>
    %95 = vector.extract_strided_slice %70 {offsets = [1, 0], sizes = [1, 16], strides = [1, 1]} : vector<128x16xf32> to vector<1x16xf32>
    %96 = vector.broadcast %94 : vector<16x1xf32> to vector<16x16xf32>
    %97 = vector.broadcast %95 : vector<1x16xf32> to vector<16x16xf32>
    %98 = arith.addf %96, %97 : vector<16x16xf32>
    %cst_56 = arith.constant 2.000000e-01 : f32
    %99 = vector.broadcast %cst_56 : f32 to vector<16x16xf32>
    %100 = arith.mulf %99, %98 : vector<16x16xf32>
    %101 = arith.maximumf %98, %100 : vector<16x16xf32>
    %102 = arith.addf %101, %13 : vector<16x16xf32>
    %cst_57 = arith.constant dense<0xFF800000> : vector<16xf32>
    %103 = vector.multi_reduction <maximumf>, %102, %cst_57 [1] : vector<16x16xf32> to vector<16xf32>
    %104 = vector.shape_cast %103 : vector<16xf32> to vector<16x1xf32>
    %105 = vector.broadcast %104 : vector<16x1xf32> to vector<16x16xf32>
    %106 = arith.subf %102, %105 : vector<16x16xf32>
    %107 = math.exp %106 : vector<16x16xf32>
    %cst_58 = arith.constant dense<0.000000e+00> : vector<16xf32>
    %108 = vector.multi_reduction <add>, %107, %cst_58 [1] : vector<16x16xf32> to vector<16xf32>
    %109 = vector.shape_cast %108 : vector<16xf32> to vector<16x1xf32>
    %110 = tpu.reciprocal %109 {approx = true} : vector<16x1xf32> -> vector<16x1xf32>
    %111 = vector.broadcast %110 : vector<16x1xf32> to vector<16x16xf32>
    %112 = arith.mulf %107, %111 : vector<16x16xf32>
    %113 = arith.truncf %112 : vector<16x16xf32> to vector<16x16xbf16>
    %cst_59 = arith.constant dense<0.000000e+00> : vector<16x256xf32>
    %114 = tpu.matmul %113, %93, %cst_59 {dimension_numbers = #tpu.dot_dimension_numbers<[1], [0], [0], [1], [0, 0, 1, 1], [], []>} : vector<16x16xbf16>, vector<16x256xbf16>, vector<16x256xf32> -> vector<16x256xf32>
    %115 = vector.extract_strided_slice %67 {offsets = [0, 512], sizes = [16, 256], strides = [1, 1]} : vector<16x768xbf16> to vector<16x256xbf16>
    %116 = vector.extract_strided_slice %69 {offsets = [0, 5], sizes = [16, 1], strides = [1, 1]} : vector<16x128xf32> to vector<16x1xf32>
    %117 = vector.extract_strided_slice %70 {offsets = [2, 0], sizes = [1, 16], strides = [1, 1]} : vector<128x16xf32> to vector<1x16xf32>
    %118 = vector.broadcast %116 : vector<16x1xf32> to vector<16x16xf32>
    %119 = vector.broadcast %117 : vector<1x16xf32> to vector<16x16xf32>
    %120 = arith.addf %118, %119 : vector<16x16xf32>
    %cst_60 = arith.constant 2.000000e-01 : f32
    %121 = vector.broadcast %cst_60 : f32 to vector<16x16xf32>
    %122 = arith.mulf %121, %120 : vector<16x16xf32>
    %123 = arith.maximumf %120, %122 : vector<16x16xf32>
    %124 = arith.addf %123, %13 : vector<16x16xf32>
    %cst_61 = arith.constant dense<0xFF800000> : vector<16xf32>
    %125 = vector.multi_reduction <maximumf>, %124, %cst_61 [1] : vector<16x16xf32> to vector<16xf32>
    %126 = vector.shape_cast %125 : vector<16xf32> to vector<16x1xf32>
    %127 = vector.broadcast %126 : vector<16x1xf32> to vector<16x16xf32>
    %128 = arith.subf %124, %127 : vector<16x16xf32>
    %129 = math.exp %128 : vector<16x16xf32>
    %cst_62 = arith.constant dense<0.000000e+00> : vector<16xf32>
    %130 = vector.multi_reduction <add>, %129, %cst_62 [1] : vector<16x16xf32> to vector<16xf32>
    %131 = vector.shape_cast %130 : vector<16xf32> to vector<16x1xf32>
    %132 = tpu.reciprocal %131 {approx = true} : vector<16x1xf32> -> vector<16x1xf32>
    %133 = vector.broadcast %132 : vector<16x1xf32> to vector<16x16xf32>
    %134 = arith.mulf %129, %133 : vector<16x16xf32>
    %135 = arith.truncf %134 : vector<16x16xf32> to vector<16x16xbf16>
    %cst_63 = arith.constant dense<0.000000e+00> : vector<16x256xf32>
    %136 = tpu.matmul %135, %115, %cst_63 {dimension_numbers = #tpu.dot_dimension_numbers<[1], [0], [0], [1], [0, 0, 1, 1], [], []>} : vector<16x16xbf16>, vector<16x256xbf16>, vector<16x256xf32> -> vector<16x256xf32>
    %137 = tpu.concatenate %92, %114, %136 in 1 : vector<16x256xf32>, vector<16x256xf32>, vector<16x256xf32> -> vector<16x768xf32>
    %c0_64 = arith.constant 0 : index
    %c0_65 = arith.constant 0 : index
    %138 = vector.load %arg19[%c0_64, %c0_65] : memref<1x768xf32, #tpu.memory_space<vmem>>, vector<1x768xf32>
    %139 = vector.broadcast %138 : vector<1x768xf32> to vector<16x768xf32>
    %140 = arith.addf %137, %139 : vector<16x768xf32>
    %cst_66 = arith.constant 0.000000e+00 : f32
    %141 = vector.broadcast %cst_66 : f32 to vector<16x768xf32>
    %142 = arith.maximumf %140, %141 : vector<16x768xf32>
    %c0_67 = arith.constant 0 : index
    %c0_68 = arith.constant 0 : index
    %143 = vector.load %arg20[%c0_67, %c0_68] : memref<1x768xf32, #tpu.memory_space<vmem>>, vector<1x768xf32>
    %144 = vector.broadcast %143 : vector<1x768xf32> to vector<16x768xf32>
    %145 = arith.mulf %142, %144 : vector<16x768xf32>
    %c0_69 = arith.constant 0 : index
    %c0_70 = arith.constant 0 : index
    %146 = vector.load %arg21[%c0_69, %c0_70] : memref<1x768xf32, #tpu.memory_space<vmem>>, vector<1x768xf32>
    %147 = vector.broadcast %146 : vector<1x768xf32> to vector<16x768xf32>
    %148 = arith.addf %145, %147 : vector<16x768xf32>
    %149 = arith.truncf %148 : vector<16x768xf32> to vector<16x768xbf16>
    %c0_71 = arith.constant 0 : index
    %c0_72 = arith.constant 0 : index
    %150 = vector.load %arg22[%c0_71, %c0_72] : memref<768x384xbf16, #tpu.memory_space<vmem>>, vector<768x384xbf16>
    %cst_73 = arith.constant dense<0.000000e+00> : vector<16x384xf32>
    %151 = tpu.matmul %149, %150, %cst_73 {dimension_numbers = #tpu.dot_dimension_numbers<[1], [0], [0], [1], [0, 0, 1, 1], [], []>} : vector<16x768xbf16>, vector<768x384xbf16>, vector<16x384xf32> -> vector<16x384xf32>
    %152 = arith.truncf %151 : vector<16x384xf32> to vector<16x384xbf16>
    %c0_74 = arith.constant 0 : index
    %c0_75 = arith.constant 0 : index
    %153 = vector.load %arg23[%c0_74, %c0_75] : memref<384x128xbf16, #tpu.memory_space<vmem>>, vector<384x128xbf16>
    %cst_76 = arith.constant dense<0.000000e+00> : vector<16x128xf32>
    %154 = tpu.matmul %152, %153, %cst_76 {dimension_numbers = #tpu.dot_dimension_numbers<[1], [0], [0], [1], [0, 0, 1, 1], [], []>} : vector<16x384xbf16>, vector<384x128xbf16>, vector<16x128xf32> -> vector<16x128xf32>
    %155 = tpu.transpose %154, [1, 0] : vector<16x128xf32> -> vector<128x16xf32>
    %156 = vector.extract_strided_slice %152 {offsets = [0, 0], sizes = [16, 128], strides = [1, 1]} : vector<16x384xbf16> to vector<16x128xbf16>
    %157 = vector.extract_strided_slice %154 {offsets = [0, 3], sizes = [16, 1], strides = [1, 1]} : vector<16x128xf32> to vector<16x1xf32>
    %158 = vector.extract_strided_slice %155 {offsets = [0, 0], sizes = [1, 16], strides = [1, 1]} : vector<128x16xf32> to vector<1x16xf32>
    %159 = vector.broadcast %157 : vector<16x1xf32> to vector<16x16xf32>
    %160 = vector.broadcast %158 : vector<1x16xf32> to vector<16x16xf32>
    %161 = arith.addf %159, %160 : vector<16x16xf32>
    %cst_77 = arith.constant 2.000000e-01 : f32
    %162 = vector.broadcast %cst_77 : f32 to vector<16x16xf32>
    %163 = arith.mulf %162, %161 : vector<16x16xf32>
    %164 = arith.maximumf %161, %163 : vector<16x16xf32>
    %165 = arith.addf %164, %13 : vector<16x16xf32>
    %cst_78 = arith.constant dense<0xFF800000> : vector<16xf32>
    %166 = vector.multi_reduction <maximumf>, %165, %cst_78 [1] : vector<16x16xf32> to vector<16xf32>
    %167 = vector.shape_cast %166 : vector<16xf32> to vector<16x1xf32>
    %168 = vector.broadcast %167 : vector<16x1xf32> to vector<16x16xf32>
    %169 = arith.subf %165, %168 : vector<16x16xf32>
    %170 = math.exp %169 : vector<16x16xf32>
    %cst_79 = arith.constant dense<0.000000e+00> : vector<16xf32>
    %171 = vector.multi_reduction <add>, %170, %cst_79 [1] : vector<16x16xf32> to vector<16xf32>
    %172 = vector.shape_cast %171 : vector<16xf32> to vector<16x1xf32>
    %173 = tpu.reciprocal %172 {approx = true} : vector<16x1xf32> -> vector<16x1xf32>
    %174 = vector.broadcast %173 : vector<16x1xf32> to vector<16x16xf32>
    %175 = arith.mulf %170, %174 : vector<16x16xf32>
    %176 = arith.truncf %175 : vector<16x16xf32> to vector<16x16xbf16>
    %cst_80 = arith.constant dense<0.000000e+00> : vector<16x128xf32>
    %177 = tpu.matmul %176, %156, %cst_80 {dimension_numbers = #tpu.dot_dimension_numbers<[1], [0], [0], [1], [0, 0, 1, 1], [], []>} : vector<16x16xbf16>, vector<16x128xbf16>, vector<16x128xf32> -> vector<16x128xf32>
    %178 = vector.extract_strided_slice %152 {offsets = [0, 128], sizes = [16, 128], strides = [1, 1]} : vector<16x384xbf16> to vector<16x128xbf16>
    %179 = vector.extract_strided_slice %154 {offsets = [0, 4], sizes = [16, 1], strides = [1, 1]} : vector<16x128xf32> to vector<16x1xf32>
    %180 = vector.extract_strided_slice %155 {offsets = [1, 0], sizes = [1, 16], strides = [1, 1]} : vector<128x16xf32> to vector<1x16xf32>
    %181 = vector.broadcast %179 : vector<16x1xf32> to vector<16x16xf32>
    %182 = vector.broadcast %180 : vector<1x16xf32> to vector<16x16xf32>
    %183 = arith.addf %181, %182 : vector<16x16xf32>
    %cst_81 = arith.constant 2.000000e-01 : f32
    %184 = vector.broadcast %cst_81 : f32 to vector<16x16xf32>
    %185 = arith.mulf %184, %183 : vector<16x16xf32>
    %186 = arith.maximumf %183, %185 : vector<16x16xf32>
    %187 = arith.addf %186, %13 : vector<16x16xf32>
    %cst_82 = arith.constant dense<0xFF800000> : vector<16xf32>
    %188 = vector.multi_reduction <maximumf>, %187, %cst_82 [1] : vector<16x16xf32> to vector<16xf32>
    %189 = vector.shape_cast %188 : vector<16xf32> to vector<16x1xf32>
    %190 = vector.broadcast %189 : vector<16x1xf32> to vector<16x16xf32>
    %191 = arith.subf %187, %190 : vector<16x16xf32>
    %192 = math.exp %191 : vector<16x16xf32>
    %cst_83 = arith.constant dense<0.000000e+00> : vector<16xf32>
    %193 = vector.multi_reduction <add>, %192, %cst_83 [1] : vector<16x16xf32> to vector<16xf32>
    %194 = vector.shape_cast %193 : vector<16xf32> to vector<16x1xf32>
    %195 = tpu.reciprocal %194 {approx = true} : vector<16x1xf32> -> vector<16x1xf32>
    %196 = vector.broadcast %195 : vector<16x1xf32> to vector<16x16xf32>
    %197 = arith.mulf %192, %196 : vector<16x16xf32>
    %198 = arith.truncf %197 : vector<16x16xf32> to vector<16x16xbf16>
    %cst_84 = arith.constant dense<0.000000e+00> : vector<16x128xf32>
    %199 = tpu.matmul %198, %178, %cst_84 {dimension_numbers = #tpu.dot_dimension_numbers<[1], [0], [0], [1], [0, 0, 1, 1], [], []>} : vector<16x16xbf16>, vector<16x128xbf16>, vector<16x128xf32> -> vector<16x128xf32>
    %200 = vector.extract_strided_slice %152 {offsets = [0, 256], sizes = [16, 128], strides = [1, 1]} : vector<16x384xbf16> to vector<16x128xbf16>
    %201 = vector.extract_strided_slice %154 {offsets = [0, 5], sizes = [16, 1], strides = [1, 1]} : vector<16x128xf32> to vector<16x1xf32>
    %202 = vector.extract_strided_slice %155 {offsets = [2, 0], sizes = [1, 16], strides = [1, 1]} : vector<128x16xf32> to vector<1x16xf32>
    %203 = vector.broadcast %201 : vector<16x1xf32> to vector<16x16xf32>
    %204 = vector.broadcast %202 : vector<1x16xf32> to vector<16x16xf32>
    %205 = arith.addf %203, %204 : vector<16x16xf32>
    %cst_85 = arith.constant 2.000000e-01 : f32
    %206 = vector.broadcast %cst_85 : f32 to vector<16x16xf32>
    %207 = arith.mulf %206, %205 : vector<16x16xf32>
    %208 = arith.maximumf %205, %207 : vector<16x16xf32>
    %209 = arith.addf %208, %13 : vector<16x16xf32>
    %cst_86 = arith.constant dense<0xFF800000> : vector<16xf32>
    %210 = vector.multi_reduction <maximumf>, %209, %cst_86 [1] : vector<16x16xf32> to vector<16xf32>
    %211 = vector.shape_cast %210 : vector<16xf32> to vector<16x1xf32>
    %212 = vector.broadcast %211 : vector<16x1xf32> to vector<16x16xf32>
    %213 = arith.subf %209, %212 : vector<16x16xf32>
    %214 = math.exp %213 : vector<16x16xf32>
    %cst_87 = arith.constant dense<0.000000e+00> : vector<16xf32>
    %215 = vector.multi_reduction <add>, %214, %cst_87 [1] : vector<16x16xf32> to vector<16xf32>
    %216 = vector.shape_cast %215 : vector<16xf32> to vector<16x1xf32>
    %217 = tpu.reciprocal %216 {approx = true} : vector<16x1xf32> -> vector<16x1xf32>
    %218 = vector.broadcast %217 : vector<16x1xf32> to vector<16x16xf32>
    %219 = arith.mulf %214, %218 : vector<16x16xf32>
    %220 = arith.truncf %219 : vector<16x16xf32> to vector<16x16xbf16>
    %cst_88 = arith.constant dense<0.000000e+00> : vector<16x128xf32>
    %221 = tpu.matmul %220, %200, %cst_88 {dimension_numbers = #tpu.dot_dimension_numbers<[1], [0], [0], [1], [0, 0, 1, 1], [], []>} : vector<16x16xbf16>, vector<16x128xbf16>, vector<16x128xf32> -> vector<16x128xf32>
    %222 = tpu.concatenate %177, %199, %221 in 1 : vector<16x128xf32>, vector<16x128xf32>, vector<16x128xf32> -> vector<16x384xf32>
    %c0_89 = arith.constant 0 : index
    %c0_90 = arith.constant 0 : index
    %223 = vector.load %arg24[%c0_89, %c0_90] : memref<1x384xf32, #tpu.memory_space<vmem>>, vector<1x384xf32>
    %224 = vector.broadcast %223 : vector<1x384xf32> to vector<16x384xf32>
    %225 = arith.addf %222, %224 : vector<16x384xf32>
    %cst_91 = arith.constant 0.000000e+00 : f32
    %226 = vector.broadcast %cst_91 : f32 to vector<16x384xf32>
    %227 = arith.maximumf %225, %226 : vector<16x384xf32>
    %c0_92 = arith.constant 0 : index
    %c0_93 = arith.constant 0 : index
    %228 = vector.load %arg25[%c0_92, %c0_93] : memref<1x384xf32, #tpu.memory_space<vmem>>, vector<1x384xf32>
    %229 = vector.broadcast %228 : vector<1x384xf32> to vector<16x384xf32>
    %230 = arith.mulf %227, %229 : vector<16x384xf32>
    %c0_94 = arith.constant 0 : index
    %c0_95 = arith.constant 0 : index
    %231 = vector.load %arg26[%c0_94, %c0_95] : memref<1x384xf32, #tpu.memory_space<vmem>>, vector<1x384xf32>
    %232 = vector.broadcast %231 : vector<1x384xf32> to vector<16x384xf32>
    %233 = arith.addf %230, %232 : vector<16x384xf32>
    %234 = arith.truncf %233 : vector<16x384xf32> to vector<16x384xbf16>
    %c0_96 = arith.constant 0 : index
    %c0_97 = arith.constant 0 : index
    %235 = vector.load %arg27[%c0_96, %c0_97] : memref<384x384xbf16, #tpu.memory_space<vmem>>, vector<384x384xbf16>
    %cst_98 = arith.constant dense<0.000000e+00> : vector<16x384xf32>
    %236 = tpu.matmul %234, %235, %cst_98 {dimension_numbers = #tpu.dot_dimension_numbers<[1], [0], [0], [1], [0, 0, 1, 1], [], []>} : vector<16x384xbf16>, vector<384x384xbf16>, vector<16x384xf32> -> vector<16x384xf32>
    %237 = arith.truncf %236 : vector<16x384xf32> to vector<16x384xbf16>
    %c0_99 = arith.constant 0 : index
    %c0_100 = arith.constant 0 : index
    %238 = vector.load %arg28[%c0_99, %c0_100] : memref<384x128xbf16, #tpu.memory_space<vmem>>, vector<384x128xbf16>
    %cst_101 = arith.constant dense<0.000000e+00> : vector<16x128xf32>
    %239 = tpu.matmul %237, %238, %cst_101 {dimension_numbers = #tpu.dot_dimension_numbers<[1], [0], [0], [1], [0, 0, 1, 1], [], []>} : vector<16x384xbf16>, vector<384x128xbf16>, vector<16x128xf32> -> vector<16x128xf32>
    %240 = tpu.transpose %239, [1, 0] : vector<16x128xf32> -> vector<128x16xf32>
    %241 = vector.extract_strided_slice %237 {offsets = [0, 0], sizes = [16, 128], strides = [1, 1]} : vector<16x384xbf16> to vector<16x128xbf16>
    %242 = vector.extract_strided_slice %239 {offsets = [0, 3], sizes = [16, 1], strides = [1, 1]} : vector<16x128xf32> to vector<16x1xf32>
    %243 = vector.extract_strided_slice %240 {offsets = [0, 0], sizes = [1, 16], strides = [1, 1]} : vector<128x16xf32> to vector<1x16xf32>
    %244 = vector.broadcast %242 : vector<16x1xf32> to vector<16x16xf32>
    %245 = vector.broadcast %243 : vector<1x16xf32> to vector<16x16xf32>
    %246 = arith.addf %244, %245 : vector<16x16xf32>
    %cst_102 = arith.constant 2.000000e-01 : f32
    %247 = vector.broadcast %cst_102 : f32 to vector<16x16xf32>
    %248 = arith.mulf %247, %246 : vector<16x16xf32>
    %249 = arith.maximumf %246, %248 : vector<16x16xf32>
    %250 = arith.addf %249, %13 : vector<16x16xf32>
    %cst_103 = arith.constant dense<0xFF800000> : vector<16xf32>
    %251 = vector.multi_reduction <maximumf>, %250, %cst_103 [1] : vector<16x16xf32> to vector<16xf32>
    %252 = vector.shape_cast %251 : vector<16xf32> to vector<16x1xf32>
    %253 = vector.broadcast %252 : vector<16x1xf32> to vector<16x16xf32>
    %254 = arith.subf %250, %253 : vector<16x16xf32>
    %255 = math.exp %254 : vector<16x16xf32>
    %cst_104 = arith.constant dense<0.000000e+00> : vector<16xf32>
    %256 = vector.multi_reduction <add>, %255, %cst_104 [1] : vector<16x16xf32> to vector<16xf32>
    %257 = vector.shape_cast %256 : vector<16xf32> to vector<16x1xf32>
    %258 = tpu.reciprocal %257 {approx = true} : vector<16x1xf32> -> vector<16x1xf32>
    %259 = vector.broadcast %258 : vector<16x1xf32> to vector<16x16xf32>
    %260 = arith.mulf %255, %259 : vector<16x16xf32>
    %261 = arith.truncf %260 : vector<16x16xf32> to vector<16x16xbf16>
    %cst_105 = arith.constant dense<0.000000e+00> : vector<16x128xf32>
    %262 = tpu.matmul %261, %241, %cst_105 {dimension_numbers = #tpu.dot_dimension_numbers<[1], [0], [0], [1], [0, 0, 1, 1], [], []>} : vector<16x16xbf16>, vector<16x128xbf16>, vector<16x128xf32> -> vector<16x128xf32>
    %263 = vector.extract_strided_slice %237 {offsets = [0, 128], sizes = [16, 128], strides = [1, 1]} : vector<16x384xbf16> to vector<16x128xbf16>
    %264 = vector.extract_strided_slice %239 {offsets = [0, 4], sizes = [16, 1], strides = [1, 1]} : vector<16x128xf32> to vector<16x1xf32>
    %265 = vector.extract_strided_slice %240 {offsets = [1, 0], sizes = [1, 16], strides = [1, 1]} : vector<128x16xf32> to vector<1x16xf32>
    %266 = vector.broadcast %264 : vector<16x1xf32> to vector<16x16xf32>
    %267 = vector.broadcast %265 : vector<1x16xf32> to vector<16x16xf32>
    %268 = arith.addf %266, %267 : vector<16x16xf32>
    %cst_106 = arith.constant 2.000000e-01 : f32
    %269 = vector.broadcast %cst_106 : f32 to vector<16x16xf32>
    %270 = arith.mulf %269, %268 : vector<16x16xf32>
    %271 = arith.maximumf %268, %270 : vector<16x16xf32>
    %272 = arith.addf %271, %13 : vector<16x16xf32>
    %cst_107 = arith.constant dense<0xFF800000> : vector<16xf32>
    %273 = vector.multi_reduction <maximumf>, %272, %cst_107 [1] : vector<16x16xf32> to vector<16xf32>
    %274 = vector.shape_cast %273 : vector<16xf32> to vector<16x1xf32>
    %275 = vector.broadcast %274 : vector<16x1xf32> to vector<16x16xf32>
    %276 = arith.subf %272, %275 : vector<16x16xf32>
    %277 = math.exp %276 : vector<16x16xf32>
    %cst_108 = arith.constant dense<0.000000e+00> : vector<16xf32>
    %278 = vector.multi_reduction <add>, %277, %cst_108 [1] : vector<16x16xf32> to vector<16xf32>
    %279 = vector.shape_cast %278 : vector<16xf32> to vector<16x1xf32>
    %280 = tpu.reciprocal %279 {approx = true} : vector<16x1xf32> -> vector<16x1xf32>
    %281 = vector.broadcast %280 : vector<16x1xf32> to vector<16x16xf32>
    %282 = arith.mulf %277, %281 : vector<16x16xf32>
    %283 = arith.truncf %282 : vector<16x16xf32> to vector<16x16xbf16>
    %cst_109 = arith.constant dense<0.000000e+00> : vector<16x128xf32>
    %284 = tpu.matmul %283, %263, %cst_109 {dimension_numbers = #tpu.dot_dimension_numbers<[1], [0], [0], [1], [0, 0, 1, 1], [], []>} : vector<16x16xbf16>, vector<16x128xbf16>, vector<16x128xf32> -> vector<16x128xf32>
    %285 = vector.extract_strided_slice %237 {offsets = [0, 256], sizes = [16, 128], strides = [1, 1]} : vector<16x384xbf16> to vector<16x128xbf16>
    %286 = vector.extract_strided_slice %239 {offsets = [0, 5], sizes = [16, 1], strides = [1, 1]} : vector<16x128xf32> to vector<16x1xf32>
    %287 = vector.extract_strided_slice %240 {offsets = [2, 0], sizes = [1, 16], strides = [1, 1]} : vector<128x16xf32> to vector<1x16xf32>
    %288 = vector.broadcast %286 : vector<16x1xf32> to vector<16x16xf32>
    %289 = vector.broadcast %287 : vector<1x16xf32> to vector<16x16xf32>
    %290 = arith.addf %288, %289 : vector<16x16xf32>
    %cst_110 = arith.constant 2.000000e-01 : f32
    %291 = vector.broadcast %cst_110 : f32 to vector<16x16xf32>
    %292 = arith.mulf %291, %290 : vector<16x16xf32>
    %293 = arith.maximumf %290, %292 : vector<16x16xf32>
    %294 = arith.addf %293, %13 : vector<16x16xf32>
    %cst_111 = arith.constant dense<0xFF800000> : vector<16xf32>
    %295 = vector.multi_reduction <maximumf>, %294, %cst_111 [1] : vector<16x16xf32> to vector<16xf32>
    %296 = vector.shape_cast %295 : vector<16xf32> to vector<16x1xf32>
    %297 = vector.broadcast %296 : vector<16x1xf32> to vector<16x16xf32>
    %298 = arith.subf %294, %297 : vector<16x16xf32>
    %299 = math.exp %298 : vector<16x16xf32>
    %cst_112 = arith.constant dense<0.000000e+00> : vector<16xf32>
    %300 = vector.multi_reduction <add>, %299, %cst_112 [1] : vector<16x16xf32> to vector<16xf32>
    %301 = vector.shape_cast %300 : vector<16xf32> to vector<16x1xf32>
    %302 = tpu.reciprocal %301 {approx = true} : vector<16x1xf32> -> vector<16x1xf32>
    %303 = vector.broadcast %302 : vector<16x1xf32> to vector<16x16xf32>
    %304 = arith.mulf %299, %303 : vector<16x16xf32>
    %305 = arith.truncf %304 : vector<16x16xf32> to vector<16x16xbf16>
    %cst_113 = arith.constant dense<0.000000e+00> : vector<16x128xf32>
    %306 = tpu.matmul %305, %285, %cst_113 {dimension_numbers = #tpu.dot_dimension_numbers<[1], [0], [0], [1], [0, 0, 1, 1], [], []>} : vector<16x16xbf16>, vector<16x128xbf16>, vector<16x128xf32> -> vector<16x128xf32>
    %307 = tpu.concatenate %262, %284, %306 in 1 : vector<16x128xf32>, vector<16x128xf32>, vector<16x128xf32> -> vector<16x384xf32>
    %c0_114 = arith.constant 0 : index
    %c0_115 = arith.constant 0 : index
    %308 = vector.load %arg29[%c0_114, %c0_115] : memref<1x384xf32, #tpu.memory_space<vmem>>, vector<1x384xf32>
    %309 = vector.broadcast %308 : vector<1x384xf32> to vector<16x384xf32>
    %310 = arith.addf %307, %309 : vector<16x384xf32>
    %cst_116 = arith.constant 0.000000e+00 : f32
    %311 = vector.broadcast %cst_116 : f32 to vector<16x384xf32>
    %312 = arith.maximumf %310, %311 : vector<16x384xf32>
    %c0_117 = arith.constant 0 : index
    %c0_118 = arith.constant 0 : index
    %313 = vector.load %arg30[%c0_117, %c0_118] : memref<1x384xf32, #tpu.memory_space<vmem>>, vector<1x384xf32>
    %314 = vector.broadcast %313 : vector<1x384xf32> to vector<16x384xf32>
    %315 = arith.mulf %312, %314 : vector<16x384xf32>
    %c0_119 = arith.constant 0 : index
    %c0_120 = arith.constant 0 : index
    %316 = vector.load %arg31[%c0_119, %c0_120] : memref<1x384xf32, #tpu.memory_space<vmem>>, vector<1x384xf32>
    %317 = vector.broadcast %316 : vector<1x384xf32> to vector<16x384xf32>
    %318 = arith.addf %315, %317 : vector<16x384xf32>
    %319 = arith.truncf %318 : vector<16x384xf32> to vector<16x384xbf16>
    %cst_121 = arith.constant dense<0.000000e+00> : vector<2x384xf32>
    %320 = tpu.matmul %5, %319, %cst_121 {dimension_numbers = #tpu.dot_dimension_numbers<[1], [0], [0], [1], [0, 0, 1, 1], [], []>} : vector<2x16xbf16>, vector<16x384xbf16>, vector<2x384xf32> -> vector<2x384xf32>
    %321 = arith.truncf %63 : vector<2x128xf32> to vector<2x128xbf16>
    %c0_122 = arith.constant 0 : index
    %c0_123 = arith.constant 0 : index
    %322 = vector.load %arg32[%c0_122, %c0_123] : memref<128x256xbf16, #tpu.memory_space<vmem>>, vector<128x256xbf16>
    %cst_124 = arith.constant dense<0.000000e+00> : vector<2x256xf32>
    %323 = tpu.matmul %321, %322, %cst_124 {dimension_numbers = #tpu.dot_dimension_numbers<[1], [0], [0], [1], [0, 0, 1, 1], [], []>} : vector<2x128xbf16>, vector<128x256xbf16>, vector<2x256xf32> -> vector<2x256xf32>
    %324 = arith.truncf %320 : vector<2x384xf32> to vector<2x384xbf16>
    %c0_125 = arith.constant 0 : index
    %c0_126 = arith.constant 0 : index
    %325 = vector.load %arg33[%c0_125, %c0_126] : memref<384x256xbf16, #tpu.memory_space<vmem>>, vector<384x256xbf16>
    %cst_127 = arith.constant dense<0.000000e+00> : vector<2x256xf32>
    %326 = tpu.matmul %324, %325, %cst_127 {dimension_numbers = #tpu.dot_dimension_numbers<[1], [0], [0], [1], [0, 0, 1, 1], [], []>} : vector<2x384xbf16>, vector<384x256xbf16>, vector<2x256xf32> -> vector<2x256xf32>
    %327 = arith.addf %323, %326 : vector<2x256xf32>
    %c0_128 = arith.constant 0 : index
    %c0_129 = arith.constant 0 : index
    %328 = vector.load %arg34[%c0_128, %c0_129] : memref<1x256xf32, #tpu.memory_space<vmem>>, vector<1x256xf32>
    %329 = vector.broadcast %328 : vector<1x256xf32> to vector<2x256xf32>
    %330 = arith.addf %327, %329 : vector<2x256xf32>
    %cst_130 = arith.constant 0.000000e+00 : f32
    %331 = vector.broadcast %cst_130 : f32 to vector<2x256xf32>
    %332 = arith.maximumf %330, %331 : vector<2x256xf32>
    %333 = arith.truncf %332 : vector<2x256xf32> to vector<2x256xbf16>
    %c0_131 = arith.constant 0 : index
    %c0_132 = arith.constant 0 : index
    %334 = vector.load %arg35[%c0_131, %c0_132] : memref<256x128xbf16, #tpu.memory_space<vmem>>, vector<256x128xbf16>
    %cst_133 = arith.constant dense<0.000000e+00> : vector<2x128xf32>
    %335 = tpu.matmul %333, %334, %cst_133 {dimension_numbers = #tpu.dot_dimension_numbers<[1], [0], [0], [1], [0, 0, 1, 1], [], []>} : vector<2x256xbf16>, vector<256x128xbf16>, vector<2x128xf32> -> vector<2x128xf32>
    %c0_134 = arith.constant 0 : index
    %c0_135 = arith.constant 0 : index
    %336 = vector.load %arg36[%c0_134, %c0_135] : memref<1x128xf32, #tpu.memory_space<vmem>>, vector<1x128xf32>
    %337 = vector.broadcast %336 : vector<1x128xf32> to vector<2x128xf32>
    %338 = arith.addf %335, %337 : vector<2x128xf32>
    %cst_136 = arith.constant 0.000000e+00 : f32
    %339 = vector.broadcast %cst_136 : f32 to vector<2x128xf32>
    %340 = arith.maximumf %338, %339 : vector<2x128xf32>
    %341 = arith.truncf %340 : vector<2x128xf32> to vector<2x128xbf16>
    %c0_137 = arith.constant 0 : index
    %c0_138 = arith.constant 0 : index
    %342 = vector.load %arg37[%c0_137, %c0_138] : memref<128x128xbf16, #tpu.memory_space<vmem>>, vector<128x128xbf16>
    %cst_139 = arith.constant dense<0.000000e+00> : vector<2x128xf32>
    %343 = tpu.matmul %341, %342, %cst_139 {dimension_numbers = #tpu.dot_dimension_numbers<[1], [0], [0], [1], [0, 0, 1, 1], [], []>} : vector<2x128xbf16>, vector<128x128xbf16>, vector<2x128xf32> -> vector<2x128xf32>
    %c0_140 = arith.constant 0 : index
    %c0_141 = arith.constant 0 : index
    %344 = vector.load %arg38[%c0_140, %c0_141] : memref<1x128xf32, #tpu.memory_space<vmem>>, vector<1x128xf32>
    %345 = vector.broadcast %344 : vector<1x128xf32> to vector<2x128xf32>
    %346 = arith.addf %343, %345 : vector<2x128xf32>
    %cst_142 = arith.constant 0.000000e+00 : f32
    %347 = vector.broadcast %cst_142 : f32 to vector<2x128xf32>
    %348 = arith.maximumf %346, %347 : vector<2x128xf32>
    %c0_143 = arith.constant 0 : index
    %c0_144 = arith.constant 0 : index
    %c0_145 = arith.constant 0 : index
    %349 = vector.load %arg39[%c0_143, %c0_144, %c0_145] : memref<1x2x128xf32, #tpu.memory_space<vmem>>, vector<1x2x128xf32>
    %350 = vector.shape_cast %349 : vector<1x2x128xf32> to vector<2x128xf32>
    %351 = vector.shape_cast %348 : vector<2x128xf32> to vector<1x2x128xf32>
    tpu.vector_store %arg39[%c0_143, %c0_144, %c0_145], %351 {strides = array<i32>} : memref<1x2x128xf32, #tpu.memory_space<vmem>>, vector<1x2x128xf32>,
    return
  }
  func.func @transform_0(%arg0: i32) -> (i32, i32, i32) {
    %c0_i32 = arith.constant 0 : i32
    %c0_i32_0 = arith.constant 0 : i32
    %c0_i32_1 = arith.constant 0 : i32
    return %arg0, %c0_i32, %c0_i32_0 : i32, i32, i32
  }
  func.func @transform_1(%arg0: i32) -> (i32, i32, i32) {
    %c0_i32 = arith.constant 0 : i32
    %c0_i32_0 = arith.constant 0 : i32
    %c0_i32_1 = arith.constant 0 : i32
    return %arg0, %c0_i32, %c0_i32_0 : i32, i32, i32
  }
  func.func @transform_2(%arg0: i32) -> (i32, i32, i32) {
    %c0_i32 = arith.constant 0 : i32
    %c0_i32_0 = arith.constant 0 : i32
    %c0_i32_1 = arith.constant 0 : i32
    return %arg0, %c0_i32, %c0_i32_0 : i32, i32, i32
  }
  func.func @transform_3(%arg0: i32) -> (i32, i32, i32) {
    %c0_i32 = arith.constant 0 : i32
    %c0_i32_0 = arith.constant 0 : i32
    %c0_i32_1 = arith.constant 0 : i32
    return %arg0, %c0_i32, %c0_i32_0 : i32, i32, i32
  }
  func.func @transform_4(%arg0: i32) -> (i32, i32) {
    %c0_i32 = arith.constant 0 : i32
    %c0_i32_0 = arith.constant 0 : i32
    %c0_i32_1 = arith.constant 0 : i32
    return %c0_i32, %c0_i32_0 : i32, i32
  }
  func.func @transform_5(%arg0: i32) -> (i32, i32) {
    %c0_i32 = arith.constant 0 : i32
    %c0_i32_0 = arith.constant 0 : i32
    %c0_i32_1 = arith.constant 0 : i32
    return %c0_i32, %c0_i32_0 : i32, i32
  }
  func.func @transform_6(%arg0: i32) -> (i32, i32) {
    %c0_i32 = arith.constant 0 : i32
    %c0_i32_0 = arith.constant 0 : i32
    %c0_i32_1 = arith.constant 0 : i32
    return %c0_i32, %c0_i32_0 : i32, i32
  }
  func.func @transform_7(%arg0: i32) -> (i32, i32) {
    %c0_i32 = arith.constant 0 : i32
    %c0_i32_0 = arith.constant 0 : i32
    %c0_i32_1 = arith.constant 0 : i32
    return %c0_i32, %c0_i32_0 : i32, i32
  }
  func.func @transform_8(%arg0: i32) -> (i32, i32) {
    %c0_i32 = arith.constant 0 : i32
    %c0_i32_0 = arith.constant 0 : i32
    %c0_i32_1 = arith.constant 0 : i32
    return %c0_i32, %c0_i32_0 : i32, i32
  }
  func.func @transform_9(%arg0: i32) -> (i32, i32) {
    %c0_i32 = arith.constant 0 : i32
    %c0_i32_0 = arith.constant 0 : i32
    %c0_i32_1 = arith.constant 0 : i32
    return %c0_i32, %c0_i32_0 : i32, i32
  }
  func.func @transform_10(%arg0: i32) -> (i32, i32) {
    %c0_i32 = arith.constant 0 : i32
    %c0_i32_0 = arith.constant 0 : i32
    %c0_i32_1 = arith.constant 0 : i32
    return %c0_i32, %c0_i32_0 : i32, i32
  }
  func.func @transform_11(%arg0: i32) -> (i32, i32) {
    %c0_i32 = arith.constant 0 : i32
    %c0_i32_0 = arith.constant 0 : i32
    %c0_i32_1 = arith.constant 0 : i32
    return %c0_i32, %c0_i32_0 : i32, i32
  }
  func.func @transform_12(%arg0: i32) -> (i32, i32) {
    %c0_i32 = arith.constant 0 : i32
    %c0_i32_0 = arith.constant 0 : i32
    %c0_i32_1 = arith.constant 0 : i32
    return %c0_i32, %c0_i32_0 : i32, i32
  }
  func.func @transform_13(%arg0: i32) -> (i32, i32) {
    %c0_i32 = arith.constant 0 : i32
    %c0_i32_0 = arith.constant 0 : i32
    %c0_i32_1 = arith.constant 0 : i32
    return %c0_i32, %c0_i32_0 : i32, i32
  }
  func.func @transform_14(%arg0: i32) -> (i32, i32) {
    %c0_i32 = arith.constant 0 : i32
    %c0_i32_0 = arith.constant 0 : i32
    %c0_i32_1 = arith.constant 0 : i32
    return %c0_i32, %c0_i32_0 : i32, i32
  }
  func.func @transform_15(%arg0: i32) -> (i32, i32) {
    %c0_i32 = arith.constant 0 : i32
    %c0_i32_0 = arith.constant 0 : i32
    %c0_i32_1 = arith.constant 0 : i32
    return %c0_i32, %c0_i32_0 : i32, i32
  }
  func.func @transform_16(%arg0: i32) -> (i32, i32) {
    %c0_i32 = arith.constant 0 : i32
    %c0_i32_0 = arith.constant 0 : i32
    %c0_i32_1 = arith.constant 0 : i32
    return %c0_i32, %c0_i32_0 : i32, i32
  }
  func.func @transform_17(%arg0: i32) -> (i32, i32) {
    %c0_i32 = arith.constant 0 : i32
    %c0_i32_0 = arith.constant 0 : i32
    %c0_i32_1 = arith.constant 0 : i32
    return %c0_i32, %c0_i32_0 : i32, i32
  }
  func.func @transform_18(%arg0: i32) -> (i32, i32) {
    %c0_i32 = arith.constant 0 : i32
    %c0_i32_0 = arith.constant 0 : i32
    %c0_i32_1 = arith.constant 0 : i32
    return %c0_i32, %c0_i32_0 : i32, i32
  }
  func.func @transform_19(%arg0: i32) -> (i32, i32) {
    %c0_i32 = arith.constant 0 : i32
    %c0_i32_0 = arith.constant 0 : i32
    %c0_i32_1 = arith.constant 0 : i32
    return %c0_i32, %c0_i32_0 : i32, i32
  }
  func.func @transform_20(%arg0: i32) -> (i32, i32) {
    %c0_i32 = arith.constant 0 : i32
    %c0_i32_0 = arith.constant 0 : i32
    %c0_i32_1 = arith.constant 0 : i32
    return %c0_i32, %c0_i32_0 : i32, i32
  }
  func.func @transform_21(%arg0: i32) -> (i32, i32) {
    %c0_i32 = arith.constant 0 : i32
    %c0_i32_0 = arith.constant 0 : i32
    %c0_i32_1 = arith.constant 0 : i32
    return %c0_i32, %c0_i32_0 : i32, i32
  }
  func.func @transform_22(%arg0: i32) -> (i32, i32) {
    %c0_i32 = arith.constant 0 : i32
    %c0_i32_0 = arith.constant 0 : i32
    %c0_i32_1 = arith.constant 0 : i32
    return %c0_i32, %c0_i32_0 : i32, i32
  }
  func.func @transform_23(%arg0: i32) -> (i32, i32) {
    %c0_i32 = arith.constant 0 : i32
    %c0_i32_0 = arith.constant 0 : i32
    %c0_i32_1 = arith.constant 0 : i32
    return %c0_i32, %c0_i32_0 : i32, i32
  }
  func.func @transform_24(%arg0: i32) -> (i32, i32) {
    %c0_i32 = arith.constant 0 : i32
    %c0_i32_0 = arith.constant 0 : i32
    %c0_i32_1 = arith.constant 0 : i32
    return %c0_i32, %c0_i32_0 : i32, i32
  }
  func.func @transform_25(%arg0: i32) -> (i32, i32) {
    %c0_i32 = arith.constant 0 : i32
    %c0_i32_0 = arith.constant 0 : i32
    %c0_i32_1 = arith.constant 0 : i32
    return %c0_i32, %c0_i32_0 : i32, i32
  }
  func.func @transform_26(%arg0: i32) -> (i32, i32) {
    %c0_i32 = arith.constant 0 : i32
    %c0_i32_0 = arith.constant 0 : i32
    %c0_i32_1 = arith.constant 0 : i32
    return %c0_i32, %c0_i32_0 : i32, i32
  }
  func.func @transform_27(%arg0: i32) -> (i32, i32) {
    %c0_i32 = arith.constant 0 : i32
    %c0_i32_0 = arith.constant 0 : i32
    %c0_i32_1 = arith.constant 0 : i32
    return %c0_i32, %c0_i32_0 : i32, i32
  }
  func.func @transform_28(%arg0: i32) -> (i32, i32) {
    %c0_i32 = arith.constant 0 : i32
    %c0_i32_0 = arith.constant 0 : i32
    %c0_i32_1 = arith.constant 0 : i32
    return %c0_i32, %c0_i32_0 : i32, i32
  }
  func.func @transform_29(%arg0: i32) -> (i32, i32) {
    %c0_i32 = arith.constant 0 : i32
    %c0_i32_0 = arith.constant 0 : i32
    %c0_i32_1 = arith.constant 0 : i32
    return %c0_i32, %c0_i32_0 : i32, i32
  }
  func.func @transform_30(%arg0: i32) -> (i32, i32) {
    %c0_i32 = arith.constant 0 : i32
    %c0_i32_0 = arith.constant 0 : i32
    %c0_i32_1 = arith.constant 0 : i32
    return %c0_i32, %c0_i32_0 : i32, i32
  }
  func.func @transform_31(%arg0: i32) -> (i32, i32) {
    %c0_i32 = arith.constant 0 : i32
    %c0_i32_0 = arith.constant 0 : i32
    %c0_i32_1 = arith.constant 0 : i32
    return %c0_i32, %c0_i32_0 : i32, i32
  }
  func.func @transform_32(%arg0: i32) -> (i32, i32) {
    %c0_i32 = arith.constant 0 : i32
    %c0_i32_0 = arith.constant 0 : i32
    %c0_i32_1 = arith.constant 0 : i32
    return %c0_i32, %c0_i32_0 : i32, i32
  }
  func.func @transform_33(%arg0: i32) -> (i32, i32) {
    %c0_i32 = arith.constant 0 : i32
    %c0_i32_0 = arith.constant 0 : i32
    %c0_i32_1 = arith.constant 0 : i32
    return %c0_i32, %c0_i32_0 : i32, i32
  }
  func.func @transform_34(%arg0: i32) -> (i32, i32) {
    %c0_i32 = arith.constant 0 : i32
    %c0_i32_0 = arith.constant 0 : i32
    %c0_i32_1 = arith.constant 0 : i32
    return %c0_i32, %c0_i32_0 : i32, i32
  }
  func.func @transform_35(%arg0: i32) -> (i32, i32) {
    %c0_i32 = arith.constant 0 : i32
    %c0_i32_0 = arith.constant 0 : i32
    %c0_i32_1 = arith.constant 0 : i32
    return %c0_i32, %c0_i32_0 : i32, i32
  }
  func.func @transform_36(%arg0: i32) -> (i32, i32) {
    %c0_i32 = arith.constant 0 : i32
    %c0_i32_0 = arith.constant 0 : i32
    %c0_i32_1 = arith.constant 0 : i32
    return %c0_i32, %c0_i32_0 : i32, i32
  }
  func.func @transform_37(%arg0: i32) -> (i32, i32) {
    %c0_i32 = arith.constant 0 : i32
    %c0_i32_0 = arith.constant 0 : i32
    %c0_i32_1 = arith.constant 0 : i32
    return %c0_i32, %c0_i32_0 : i32, i32
  }
  func.func @transform_38(%arg0: i32) -> (i32, i32, i32) {
    %c0_i32 = arith.constant 0 : i32
    %c0_i32_0 = arith.constant 0 : i32
    %c0_i32_1 = arith.constant 0 : i32
    return %arg0, %c0_i32, %c0_i32_0 : i32, i32, i32
  }
}

</mosaic_0001>

<llo_original>
// kernel: forward_pallas.1
$region0: #{forward_pallas.1}
  #allocation0 [shape = 'u32[]', space=smem, size = 0x4, offset = 0x4, fixed_abs, tag = 'smem constant byte address 0x4 - core index']
  #allocation1 [shape = 'u32[144,128]{1,0:T(1,128)}', space=vmem, size = 0x12000, scoped, tag = 'internal scratch']
  %s0 = inlined_call_operand.smem [shape: u32[39], index: -1, kind: input, shape index: {}]
  %s1 = sld [smem:[%s0]]
  %s2 = scalar_lea.smem %s0, 1
  %s3 = sld [smem:[%s2]]
  %s4 = scalar_lea.smem %s0, 2
  %s5 = sld [smem:[%s4]]
  %s6 = scalar_lea.smem %s0, 3
  %s7 = sld [smem:[%s6]]
  %s8 = scalar_lea.smem %s0, 4
  %s9 = sld [smem:[%s8]]
  %s10 = scalar_lea.smem %s0, 5
  %s11 = sld [smem:[%s10]]
  %s12 = scalar_lea.smem %s0, 6
  %s13 = sld [smem:[%s12]]
  %s14 = scalar_lea.smem %s0, 7
  %s15 = sld [smem:[%s14]]
  %s16 = scalar_lea.smem %s0, 8
  %s17 = sld [smem:[%s16]]
  %s18 = scalar_lea.smem %s0, 9
  %s19 = sld [smem:[%s18]]
  %s20 = scalar_lea.smem %s0, 10
  %s21 = sld [smem:[%s20]]
  %s22 = scalar_lea.smem %s0, 11
  %s23 = sld [smem:[%s22]]
  %s24 = scalar_lea.smem %s0, 12
  %s25 = sld [smem:[%s24]]
  %s26 = scalar_lea.smem %s0, 13
  %s27 = sld [smem:[%s26]]
  %s28 = scalar_lea.smem %s0, 14
  %s29 = sld [smem:[%s28]]
  %s30 = scalar_lea.smem %s0, 15
  %s31 = sld [smem:[%s30]]
  %s32 = scalar_lea.smem %s0, 16
  %s33 = sld [smem:[%s32]]
  %s34 = scalar_lea.smem %s0, 17
  %s35 = sld [smem:[%s34]]
  %s36 = scalar_lea.smem %s0, 18
  %s37 = sld [smem:[%s36]]
  %s38 = scalar_lea.smem %s0, 19
  %s39 = sld [smem:[%s38]]
  %s40 = scalar_lea.smem %s0, 20
  %s41 = sld [smem:[%s40]]
  %s42 = scalar_lea.smem %s0, 21
  %s43 = sld [smem:[%s42]]
  %s44 = scalar_lea.smem %s0, 22
  %s45 = sld [smem:[%s44]]
  %s46 = scalar_lea.smem %s0, 23
  %s47 = sld [smem:[%s46]]
  %s48 = scalar_lea.smem %s0, 24
  %s49 = sld [smem:[%s48]]
  %s50 = scalar_lea.smem %s0, 25
  %s51 = sld [smem:[%s50]]
  %s52 = scalar_lea.smem %s0, 26
  %s53 = sld [smem:[%s52]]
  %s54 = scalar_lea.smem %s0, 27
  %s55 = sld [smem:[%s54]]
  %s56 = scalar_lea.smem %s0, 28
  %s57 = sld [smem:[%s56]]
  %s58 = scalar_lea.smem %s0, 29
  %s59 = sld [smem:[%s58]]
  %s60 = scalar_lea.smem %s0, 30
  %s61 = sld [smem:[%s60]]
  %s62 = scalar_lea.smem %s0, 31
  %s63 = sld [smem:[%s62]]
  %s64 = scalar_lea.smem %s0, 32
  %s65 = sld [smem:[%s64]]
  %s66 = scalar_lea.smem %s0, 33
  %s67 = sld [smem:[%s66]]
  %s68 = scalar_lea.smem %s0, 34
  %s69 = sld [smem:[%s68]]
  %s70 = scalar_lea.smem %s0, 35
  %s71 = sld [smem:[%s70]]
  %s72 = scalar_lea.smem %s0, 36
  %s73 = sld [smem:[%s72]]
  %s74 = scalar_lea.smem %s0, 37
  %s75 = sld [smem:[%s74]]
  %s76 = scalar_lea.smem %s0, 38
  %s77 = sld [smem:[%s76]]
  %s78 = sld [smem:[#allocation0]]
  $region325: #{forward_pallas.1} parent=0
    _
  %s80 = ssub.s32 1, %s78
  %s81 = scalar_select 0, %s80, %s78
  $region1: #{forward_pallas.1} parent=0
    #allocation2 [shape = 'u8[16384]{0}', space=vmem, size = 0x4000, scoped, tag = 'input window, operand 0']
    #allocation3 [shape = 's32[2]{0}', space=sflag, size = 0x8, scoped, tag = 'scoped memory for forward_pallas.1']
    #allocation4 [shape = 'u8[16384]{0}', space=vmem, size = 0x4000, scoped, tag = 'input window, operand 1']
    #allocation5 [shape = 's32[2]{0}', space=sflag, size = 0x8, scoped, tag = 'scoped memory for forward_pallas.1']
    #allocation6 [shape = 'u8[2048]{0}', space=vmem, size = 0x800, scoped, tag = 'input window, operand 2']
    #allocation7 [shape = 'u8[49152]{0}', space=vmem, size = 0xc000, scoped, tag = 'input window, operand 3']
    #allocation8 [shape = 's32[2]{0}', space=sflag, size = 0x8, scoped, tag = 'scoped memory for forward_pallas.1']
    #allocation9 [shape = 'u8[196608]{0}', space=vmem, size = 0x30000, scoped, tag = 'input window, operand 4, single buffered']
    #allocation10 [shape = 'u8[1024]{0}', space=vmem, size = 0x400, scoped, tag = 'input window, operand 5, single buffered']
    #allocation11 [shape = 's32[1]{0}', space=sflag, size = 0x4, scoped, tag = 'scoped memory for forward_pallas.1']
    #allocation12 [shape = 'u8[1024]{0}', space=vmem, size = 0x400, scoped, tag = 'input window, operand 6, single buffered']
    #allocation13 [shape = 'u8[1024]{0}', space=vmem, size = 0x400, scoped, tag = 'input window, operand 7, single buffered']
    #allocation14 [shape = 's32[1]{0}', space=sflag, size = 0x4, scoped, tag = 'scoped memory for forward_pallas.1']
    #allocation15 [shape = 'u8[65536]{0}', space=vmem, size = 0x10000, scoped, tag = 'input window, operand 8, single buffered']
    #allocation16 [shape = 'u8[512]{0}', space=vmem, size = 0x400, scoped, tag = 'input window, operand 10, single buffered']
    #allocation17 [shape = 's32[1]{0}', space=sflag, size = 0x4, scoped, tag = 'scoped memory for forward_pallas.1']
    #allocation18 [shape = 'u8[512]{0}', space=vmem, size = 0x400, scoped, tag = 'input window, operand 11, single buffered']
    #allocation19 [shape = 'u8[32768]{0}', space=vmem, size = 0x8000, scoped, tag = 'input window, operand 12, single buffered']
    #allocation20 [shape = 's32[1]{0}', space=sflag, size = 0x4, scoped, tag = 'scoped memory for forward_pallas.1']
    #allocation21 [shape = 'u8[512]{0}', space=vmem, size = 0x400, scoped, tag = 'input window, operand 13, single buffered']
    #allocation22 [shape = 'u8[512]{0}', space=vmem, size = 0x400, scoped, tag = 'input window, operand 14, single buffered']
    #allocation23 [shape = 's32[1]{0}', space=sflag, size = 0x4, scoped, tag = 'scoped memory for forward_pallas.1']
    #allocation24 [shape = 'u8[512]{0}', space=vmem, size = 0x400, scoped, tag = 'input window, operand 15, single buffered']
    #allocation25 [shape = 'u8[589824]{0}', space=vmem, size = 0x90000, scoped, tag = 'input window, operand 16, single buffered']
    #allocation26 [shape = 's32[1]{0}', space=sflag, size = 0x4, scoped, tag = 'scoped memory for forward_pallas.1']
    #allocation27 [shape = 'u8[196608]{0}', space=vmem, size = 0x30000, scoped, tag = 'input window, operand 17, single buffered']
    #allocation28 [shape = 'u8[3072]{0}', space=vmem, size = 0xc00, scoped, tag = 'input window, operand 18, single buffered']
    #allocation29 [shape = 's32[1]{0}', space=sflag, size = 0x4, scoped, tag = 'scoped memory for forward_pallas.1']
    #allocation30 [shape = 'u8[3072]{0}', space=vmem, size = 0xc00, scoped, tag = 'input window, operand 19, single buffered']
    #allocation31 [shape = 'u8[3072]{0}', space=vmem, size = 0xc00, scoped, tag = 'input window, operand 20, single buffered']
    #allocation32 [shape = 's32[1]{0}', space=sflag, size = 0x4, scoped, tag = 'scoped memory for forward_pallas.1']
    #allocation33 [shape = 'u8[589824]{0}', space=vmem, size = 0x90000, scoped, tag = 'input window, operand 21, single buffered']
    #allocation34 [shape = 'u8[98304]{0}', space=vmem, size = 0x18000, scoped, tag = 'input window, operand 22, single buffered']
    #allocation35 [shape = 's32[1]{0}', space=sflag, size = 0x4, scoped, tag = 'scoped memory for forward_pallas.1']
    #allocation36 [shape = 'u8[1536]{0}', space=vmem, size = 0x800, scoped, tag = 'input window, operand 23, single buffered']
    #allocation37 [shape = 'u8[1536]{0}', space=vmem, size = 0x800, scoped, tag = 'input window, operand 24, single buffered']
    #allocation38 [shape = 's32[1]{0}', space=sflag, size = 0x4, scoped, tag = 'scoped memory for forward_pallas.1']
    #allocation39 [shape = 'u8[1536]{0}', space=vmem, size = 0x800, scoped, tag = 'input window, operand 25, single buffered']
    #allocation40 [shape = 'u8[294912]{0}', space=vmem, size = 0x48000, scoped, tag = 'input window, operand 26, single buffered']
    #allocation41 [shape = 's32[1]{0}', space=sflag, size = 0x4, scoped, tag = 'scoped memory for forward_pallas.1']
    #allocation42 [shape = 'u8[98304]{0}', space=vmem, size = 0x18000, scoped, tag = 'input window, operand 27, single buffered']
    #allocation43 [shape = 'u8[1536]{0}', space=vmem, size = 0x800, scoped, tag = 'input window, operand 28, single buffered']
    #allocation44 [shape = 's32[1]{0}', space=sflag, size = 0x4, scoped, tag = 'scoped memory for forward_pallas.1']
    #allocation45 [shape = 'u8[1536]{0}', space=vmem, size = 0x800, scoped, tag = 'input window, operand 29, single buffered']
    #allocation46 [shape = 'u8[1536]{0}', space=vmem, size = 0x800, scoped, tag = 'input window, operand 30, single buffered']
    #allocation47 [shape = 's32[1]{0}', space=sflag, size = 0x4, scoped, tag = 'scoped memory for forward_pallas.1']
    #allocation48 [shape = 'u8[65536]{0}', space=vmem, size = 0x10000, scoped, tag = 'input window, operand 31, single buffered']
    #allocation49 [shape = 'u8[196608]{0}', space=vmem, size = 0x30000, scoped, tag = 'input window, operand 32, single buffered']
    #allocation50 [shape = 's32[1]{0}', space=sflag, size = 0x4, scoped, tag = 'scoped memory for forward_pallas.1']
    #allocation51 [shape = 'u8[1024]{0}', space=vmem, size = 0x400, scoped, tag = 'input window, operand 33, single buffered']
    #allocation52 [shape = 'u8[65536]{0}', space=vmem, size = 0x10000, scoped, tag = 'input window, operand 34, single buffered']
    #allocation53 [shape = 's32[1]{0}', space=sflag, size = 0x4, scoped, tag = 'scoped memory for forward_pallas.1']
    #allocation54 [shape = 'u8[512]{0}', space=vmem, size = 0x400, scoped, tag = 'input window, operand 35, single buffered']
    %82 = vsyncpa [#allocation3], 0
    %s83 = scalar_lea.sflag [#allocation3], 1
    %84 = vsyncpa %s83, 0
    %85 = vsyncpa [#allocation5], 0
    %s86 = scalar_lea.sflag [#allocation5], 1
    %87 = vsyncpa %s86, 0
    %88 = vsyncpa [#allocation8], 0
    %s89 = scalar_lea.sflag [#allocation8], 1
    %90 = vsyncpa %s89, 0
    %91 = vsyncpa [#allocation11], 0
    %92 = vsyncpa [#allocation14], 0
    %93 = vsyncpa [#allocation17], 0
    %94 = vsyncpa [#allocation20], 0
    %95 = vsyncpa [#allocation23], 0
    %96 = vsyncpa [#allocation26], 0
    %97 = vsyncpa [#allocation29], 0
    %98 = vsyncpa [#allocation32], 0
    %99 = vsyncpa [#allocation35], 0
    %100 = vsyncpa [#allocation38], 0
    %101 = vsyncpa [#allocation41], 0
    %102 = vsyncpa [#allocation44], 0
    %103 = vsyncpa [#allocation47], 0
    %104 = vsyncpa [#allocation50], 0
    %105 = vsyncpa [#allocation53], 0
    loop: start=0, step=1, limit=6
    $region2: #{forward_pallas.1} parent=1 // loop_pre_header
      _
    $region3: #{forward_pallas.1} parent=1 // loop_header
      %s107 = sphi 0, %s111
      %p108 = scmp.ge.s32.totalorder %s107, 6
      %s117 = sphi 0, %s119
      %s120 = sphi 0, %s117
      %s121 = sphi 0, %s120
      %s137 = sphi 0, %s121
      %s143 = sphi 0, %s145
      %s146 = sphi 0, %s143
      %s147 = sphi 0, %s146
      %s163 = sphi 0, %s147
      %s169 = sphi 0, %s171
      %s172 = sphi 0, %s169
      %s173 = sphi 0, %s172
      %s189 = sphi 0, %s173
      %s195 = sphi 0, %s197
      %s198 = sphi 0, %s195
      %s199 = sphi 0, %s198
      %s215 = sphi 0, %s199
      %s219 = sphi 0, %s219
      %s221 = sphi 0, %s219
      %s222 = sphi 0, %s221
      %s236 = sphi 0, %s222
      %s240 = sphi 0, %s240
      %s242 = sphi 0, %s240
      %s243 = sphi 0, %s242
      %s257 = sphi 0, %s243
      %s261 = sphi 0, %s261
      %s263 = sphi 0, %s261
      %s264 = sphi 0, %s263
      %s278 = sphi 0, %s264
      %s282 = sphi 0, %s282
      %s284 = sphi 0, %s282
      %s285 = sphi 0, %s284
      %s299 = sphi 0, %s285
      %s303 = sphi 0, %s303
      %s305 = sphi 0, %s303
      %s306 = sphi 0, %s305
      %s320 = sphi 0, %s306
      %s324 = sphi 0, %s324
      %s326 = sphi 0, %s324
      %s327 = sphi 0, %s326
      %s341 = sphi 0, %s327
      %s345 = sphi 0, %s345
      %s347 = sphi 0, %s345
      %s348 = sphi 0, %s347
      %s362 = sphi 0, %s348
      %s366 = sphi 0, %s366
      %s368 = sphi 0, %s366
      %s369 = sphi 0, %s368
      %s383 = sphi 0, %s369
      %s387 = sphi 0, %s387
      %s389 = sphi 0, %s387
      %s390 = sphi 0, %s389
      %s404 = sphi 0, %s390
      %s408 = sphi 0, %s408
      %s410 = sphi 0, %s408
      %s411 = sphi 0, %s410
      %s425 = sphi 0, %s411
      %s429 = sphi 0, %s429
      %s431 = sphi 0, %s429
      %s432 = sphi 0, %s431
      %s446 = sphi 0, %s432
      %s450 = sphi 0, %s450
      %s452 = sphi 0, %s450
      %s453 = sphi 0, %s452
      %s467 = sphi 0, %s453
      %s471 = sphi 0, %s471
      %s473 = sphi 0, %s471
      %s474 = sphi 0, %s473
      %s488 = sphi 0, %s474
      %s492 = sphi 0, %s492
      %s494 = sphi 0, %s492
      %s495 = sphi 0, %s494
      %s509 = sphi 0, %s495
      %s513 = sphi 0, %s513
      %s515 = sphi 0, %s513
      %s516 = sphi 0, %s515
      %s530 = sphi 0, %s516
      %s534 = sphi 0, %s534
      %s536 = sphi 0, %s534
      %s537 = sphi 0, %s536
      %s551 = sphi 0, %s537
      %s555 = sphi 0, %s555
      %s557 = sphi 0, %s555
      %s558 = sphi 0, %s557
      %s572 = sphi 0, %s558
      %s576 = sphi 0, %s576
      %s578 = sphi 0, %s576
      %s579 = sphi 0, %s578
      %s593 = sphi 0, %s579
      %s597 = sphi 0, %s597
      %s599 = sphi 0, %s597
      %s600 = sphi 0, %s599
      %s614 = sphi 0, %s600
      %s618 = sphi 0, %s618
      %s620 = sphi 0, %s618
      %s621 = sphi 0, %s620
      %s635 = sphi 0, %s621
      %s639 = sphi 0, %s639
      %s641 = sphi 0, %s639
      %s642 = sphi 0, %s641
      %s656 = sphi 0, %s642
      %s660 = sphi 0, %s660
      %s662 = sphi 0, %s660
      %s663 = sphi 0, %s662
      %s677 = sphi 0, %s663
      %s681 = sphi 0, %s681
      %s683 = sphi 0, %s681
      %s684 = sphi 0, %s683
      %s698 = sphi 0, %s684
      %s702 = sphi 0, %s702
      %s704 = sphi 0, %s702
      %s705 = sphi 0, %s704
      %s719 = sphi 0, %s705
      %s723 = sphi 0, %s723
      %s725 = sphi 0, %s723
      %s726 = sphi 0, %s725
      %s740 = sphi 0, %s726
      %s744 = sphi 0, %s744
      %s746 = sphi 0, %s744
      %s747 = sphi 0, %s746
      %s761 = sphi 0, %s747
      %s765 = sphi 0, %s765
      %s767 = sphi 0, %s765
      %s768 = sphi 0, %s767
      %s782 = sphi 0, %s768
      %s786 = sphi 0, %s786
      %s788 = sphi 0, %s786
      %s789 = sphi 0, %s788
      %s803 = sphi 0, %s789
      %s807 = sphi 0, %s807
      %s809 = sphi 0, %s807
      %s810 = sphi 0, %s809
      %s824 = sphi 0, %s810
      %s828 = sphi 0, %s828
      %s830 = sphi 0, %s828
      %s831 = sphi 0, %s830
      %s845 = sphi 0, %s831
      %s849 = sphi 0, %s849
      %s851 = sphi 0, %s849
      %s852 = sphi 0, %s851
      %s866 = sphi 0, %s852
      %s870 = sphi 0, %s870
      %s872 = sphi 0, %s870
      %s873 = sphi 0, %s872
      %s887 = sphi 0, %s873
      %s891 = sphi 0, %s891
      %s893 = sphi 0, %s891
      %s894 = sphi 0, %s893
      %s908 = sphi 0, %s894
      %s912 = sphi 0, %s912
      %s914 = sphi 0, %s912
      %s915 = sphi 0, %s914
      %s929 = sphi 0, %s915
      %s935 = sphi 0, %s937
      %s938 = sphi 0, %s935
      %s939 = sphi 0, %s938
      %s955 = sphi 0, %s939
    $region4: #{forward_pallas.1} parent=1 // loop_header_branch
      %110 = sbr.rel (%p108) target = $region8
    $region5: #{forward_pallas.1} parent=1 // loop_body
      %s112 = ssub.s32 %s107, 1
      %s113 = ssub.s32 %s107, 2
      %s114 = sadd.s32 %s107, 1
      %s115 = ssub.s32 %s107, %s114
      %p116 = scmp.eq.s32.totalorder %s115, 0
      %s118 = sadd.s32 %s117, 1
      %s119 = scalar_select %p116, %s117, %s118
      %p122 = pneg %p116
      %p123 = scmp.eq.s32.totalorder %s107, 3
      %p124 = por %p122, %p123
      %p125 = scmp.ne.s32.totalorder %s117, %s120
      %p126 = scmp.eq.s32.totalorder %s107, 0
      %p127 = por %p125, %p126
      %p128 = scmp.ne.s32.totalorder %s117, %s120
      %p129 = scmp.eq.s32.totalorder %s112, 3
      %p130 = por %p128, %p129
      %p131 = scmp.ne.s32.totalorder %s120, %s121
      %p132 = scmp.eq.s32.totalorder %s112, 0
      %p133 = por %p131, %p132
      %p134 = scmp.ne.s32.totalorder %s120, %s121
      %p135 = scmp.eq.s32.totalorder %s113, 3
      %p136 = por %p134, %p135
      %p138 = scmp.ne.s32.totalorder %s121, %s137
      %p139 = scmp.eq.s32.totalorder %s113, 0
      %p140 = por %p138, %p139
      %s141 = ssub.s32 %s107, %s114
      %p142 = scmp.eq.s32.totalorder %s141, 0
      %s144 = sadd.s32 %s143, 1
      %s145 = scalar_select %p142, %s143, %s144
      %p148 = pneg %p142
      %p149 = scmp.eq.s32.totalorder %s107, 3
      %p150 = por %p148, %p149
      %p151 = scmp.ne.s32.totalorder %s143, %s146
      %p152 = scmp.eq.s32.totalorder %s107, 0
      %p153 = por %p151, %p152
      %p154 = scmp.ne.s32.totalorder %s143, %s146
      %p155 = scmp.eq.s32.totalorder %s112, 3
      %p156 = por %p154, %p155
      %p157 = scmp.ne.s32.totalorder %s146, %s147
      %p158 = scmp.eq.s32.totalorder %s112, 0
      %p159 = por %p157, %p158
      %p160 = scmp.ne.s32.totalorder %s146, %s147
      %p161 = scmp.eq.s32.totalorder %s113, 3
      %p162 = por %p160, %p161
      %p164 = scmp.ne.s32.totalorder %s147, %s163
      %p165 = scmp.eq.s32.totalorder %s113, 0
      %p166 = por %p164, %p165
      %s167 = ssub.s32 %s107, %s114
      %p168 = scmp.eq.s32.totalorder %s167, 0
      %s170 = sadd.s32 %s169, 1
      %s171 = scalar_select %p168, %s169, %s170
      %p174 = pneg %p168
      %p175 = scmp.eq.s32.totalorder %s107, 3
      %p176 = por %p174, %p175
      %p177 = scmp.ne.s32.totalorder %s169, %s172
      %p178 = scmp.eq.s32.totalorder %s107, 0
      %p179 = por %p177, %p178
      %p180 = scmp.ne.s32.totalorder %s169, %s172
      %p181 = scmp.eq.s32.totalorder %s112, 3
      %p182 = por %p180, %p181
      %p183 = scmp.ne.s32.totalorder %s172, %s173
      %p184 = scmp.eq.s32.totalorder %s112, 0
      %p185 = por %p183, %p184
      %p186 = scmp.ne.s32.totalorder %s172, %s173
      %p187 = scmp.eq.s32.totalorder %s113, 3
      %p188 = por %p186, %p187
      %p190 = scmp.ne.s32.totalorder %s173, %s189
      %p191 = scmp.eq.s32.totalorder %s113, 0
      %p192 = por %p190, %p191
      %s193 = ssub.s32 %s107, %s114
      %p194 = scmp.eq.s32.totalorder %s193, 0
      %s196 = sadd.s32 %s195, 1
      %s197 = scalar_select %p194, %s195, %s196
      %p200 = pneg %p194
      %p201 = scmp.eq.s32.totalorder %s107, 3
      %p202 = por %p200, %p201
      %p203 = scmp.ne.s32.totalorder %s195, %s198
      %p204 = scmp.eq.s32.totalorder %s107, 0
      %p205 = por %p203, %p204
      %p206 = scmp.ne.s32.totalorder %s195, %s198
      %p207 = scmp.eq.s32.totalorder %s112, 3
      %p208 = por %p206, %p207
      %p209 = scmp.ne.s32.totalorder %s198, %s199
      %p210 = scmp.eq.s32.totalorder %s112, 0
      %p211 = por %p209, %p210
      %p212 = scmp.ne.s32.totalorder %s198, %s199
      %p213 = scmp.eq.s32.totalorder %s113, 3
      %p214 = por %p212, %p213
      %p216 = scmp.ne.s32.totalorder %s199, %s215
      %p217 = scmp.eq.s32.totalorder %s113, 0
      %p218 = por %p216, %p217
      %s220 = sadd.s32 %s219, 1
      %p223 = scmp.eq.s32.totalorder %s107, 3
      %p224 = scmp.ne.s32.totalorder %s219, %s221
      %p225 = scmp.eq.s32.totalorder %s107, 0
      %p226 = por %p224, %p225
      %p227 = scmp.ne.s32.totalorder %s219, %s221
      %p228 = scmp.eq.s32.totalorder %s112, 3
      %p229 = por %p227, %p228
      %p230 = scmp.ne.s32.totalorder %s221, %s222
      %p231 = scmp.eq.s32.totalorder %s112, 0
      %p232 = por %p230, %p231
      %p233 = scmp.ne.s32.totalorder %s221, %s222
      %p234 = scmp.eq.s32.totalorder %s113, 3
      %p235 = por %p233, %p234
      %p237 = scmp.ne.s32.totalorder %s222, %s236
      %p238 = scmp.eq.s32.totalorder %s113, 0
      %p239 = por %p237, %p238
      %s241 = sadd.s32 %s240, 1
      %p244 = scmp.eq.s32.totalorder %s107, 3
      %p245 = scmp.ne.s32.totalorder %s240, %s242
      %p246 = scmp.eq.s32.totalorder %s107, 0
      %p247 = por %p245, %p246
      %p248 = scmp.ne.s32.totalorder %s240, %s242
      %p249 = scmp.eq.s32.totalorder %s112, 3
      %p250 = por %p248, %p249
      %p251 = scmp.ne.s32.totalorder %s242, %s243
      %p252 = scmp.eq.s32.totalorder %s112, 0
      %p253 = por %p251, %p252
      %p254 = scmp.ne.s32.totalorder %s242, %s243
      %p255 = scmp.eq.s32.totalorder %s113, 3
      %p256 = por %p254, %p255
      %p258 = scmp.ne.s32.totalorder %s243, %s257
      %p259 = scmp.eq.s32.totalorder %s113, 0
      %p260 = por %p258, %p259
      %s262 = sadd.s32 %s261, 1
      %p265 = scmp.eq.s32.totalorder %s107, 3
      %p266 = scmp.ne.s32.totalorder %s261, %s263
      %p267 = scmp.eq.s32.totalorder %s107, 0
      %p268 = por %p266, %p267
      %p269 = scmp.ne.s32.totalorder %s261, %s263
      %p270 = scmp.eq.s32.totalorder %s112, 3
      %p271 = por %p269, %p270
      %p272 = scmp.ne.s32.totalorder %s263, %s264
      %p273 = scmp.eq.s32.totalorder %s112, 0
      %p274 = por %p272, %p273
      %p275 = scmp.ne.s32.totalorder %s263, %s264
      %p276 = scmp.eq.s32.totalorder %s113, 3
      %p277 = por %p275, %p276
      %p279 = scmp.ne.s32.totalorder %s264, %s278
      %p280 = scmp.eq.s32.totalorder %s113, 0
      %p281 = por %p279, %p280
      %s283 = sadd.s32 %s282, 1
      %p286 = scmp.eq.s32.totalorder %s107, 3
      %p287 = scmp.ne.s32.totalorder %s282, %s284
      %p288 = scmp.eq.s32.totalorder %s107, 0
      %p289 = por %p287, %p288
      %p290 = scmp.ne.s32.totalorder %s282, %s284
      %p291 = scmp.eq.s32.totalorder %s112, 3
      %p292 = por %p290, %p291
      %p293 = scmp.ne.s32.totalorder %s284, %s285
      %p294 = scmp.eq.s32.totalorder %s112, 0
      %p295 = por %p293, %p294
      %p296 = scmp.ne.s32.totalorder %s284, %s285
      %p297 = scmp.eq.s32.totalorder %s113, 3
      %p298 = por %p296, %p297
      %p300 = scmp.ne.s32.totalorder %s285, %s299
      %p301 = scmp.eq.s32.totalorder %s113, 0
      %p302 = por %p300, %p301
      %s304 = sadd.s32 %s303, 1
      %p307 = scmp.eq.s32.totalorder %s107, 3
      %p308 = scmp.ne.s32.totalorder %s303, %s305
      %p309 = scmp.eq.s32.totalorder %s107, 0
      %p310 = por %p308, %p309
      %p311 = scmp.ne.s32.totalorder %s303, %s305
      %p312 = scmp.eq.s32.totalorder %s112, 3
      %p313 = por %p311, %p312
      %p314 = scmp.ne.s32.totalorder %s305, %s306
      %p315 = scmp.eq.s32.totalorder %s112, 0
      %p316 = por %p314, %p315
      %p317 = scmp.ne.s32.totalorder %s305, %s306
      %p318 = scmp.eq.s32.totalorder %s113, 3
      %p319 = por %p317, %p318
      %p321 = scmp.ne.s32.totalorder %s306, %s320
      %p322 = scmp.eq.s32.totalorder %s113, 0
      %p323 = por %p321, %p322
      %s325 = sadd.s32 %s324, 1
      %p328 = scmp.eq.s32.totalorder %s107, 3
      %p329 = scmp.ne.s32.totalorder %s324, %s326
      %p330 = scmp.eq.s32.totalorder %s107, 0
      %p331 = por %p329, %p330
      %p332 = scmp.ne.s32.totalorder %s324, %s326
      %p333 = scmp.eq.s32.totalorder %s112, 3
      %p334 = por %p332, %p333
      %p335 = scmp.ne.s32.totalorder %s326, %s327
      %p336 = scmp.eq.s32.totalorder %s112, 0
      %p337 = por %p335, %p336
      %p338 = scmp.ne.s32.totalorder %s326, %s327
      %p339 = scmp.eq.s32.totalorder %s113, 3
      %p340 = por %p338, %p339
      %p342 = scmp.ne.s32.totalorder %s327, %s341
      %p343 = scmp.eq.s32.totalorder %s113, 0
      %p344 = por %p342, %p343
      %s346 = sadd.s32 %s345, 1
      %p349 = scmp.eq.s32.totalorder %s107, 3
      %p350 = scmp.ne.s32.totalorder %s345, %s347
      %p351 = scmp.eq.s32.totalorder %s107, 0
      %p352 = por %p350, %p351
      %p353 = scmp.ne.s32.totalorder %s345, %s347
      %p354 = scmp.eq.s32.totalorder %s112, 3
      %p355 = por %p353, %p354
      %p356 = scmp.ne.s32.totalorder %s347, %s348
      %p357 = scmp.eq.s32.totalorder %s112, 0
      %p358 = por %p356, %p357
      %p359 = scmp.ne.s32.totalorder %s347, %s348
      %p360 = scmp.eq.s32.totalorder %s113, 3
      %p361 = por %p359, %p360
      %p363 = scmp.ne.s32.totalorder %s348, %s362
      %p364 = scmp.eq.s32.totalorder %s113, 0
      %p365 = por %p363, %p364
      %s367 = sadd.s32 %s366, 1
      %p370 = scmp.eq.s32.totalorder %s107, 3
      %p371 = scmp.ne.s32.totalorder %s366, %s368
      %p372 = scmp.eq.s32.totalorder %s107, 0
      %p373 = por %p371, %p372
      %p374 = scmp.ne.s32.totalorder %s366, %s368
      %p375 = scmp.eq.s32.totalorder %s112, 3
      %p376 = por %p374, %p375
      %p377 = scmp.ne.s32.totalorder %s368, %s369
      %p378 = scmp.eq.s32.totalorder %s112, 0
      %p379 = por %p377, %p378
      %p380 = scmp.ne.s32.totalorder %s368, %s369
      %p381 = scmp.eq.s32.totalorder %s113, 3
      %p382 = por %p380, %p381
      %p384 = scmp.ne.s32.totalorder %s369, %s383
      %p385 = scmp.eq.s32.totalorder %s113, 0
      %p386 = por %p384, %p385
      %s388 = sadd.s32 %s387, 1
      %p391 = scmp.eq.s32.totalorder %s107, 3
      %p392 = scmp.ne.s32.totalorder %s387, %s389
      %p393 = scmp.eq.s32.totalorder %s107, 0
      %p394 = por %p392, %p393
      %p395 = scmp.ne.s32.totalorder %s387, %s389
      %p396 = scmp.eq.s32.totalorder %s112, 3
      %p397 = por %p395, %p396
      %p398 = scmp.ne.s32.totalorder %s389, %s390
      %p399 = scmp.eq.s32.totalorder %s112, 0
      %p400 = por %p398, %p399
      %p401 = scmp.ne.s32.totalorder %s389, %s390
      %p402 = scmp.eq.s32.totalorder %s113, 3
      %p403 = por %p401, %p402
      %p405 = scmp.ne.s32.totalorder %s390, %s404
      %p406 = scmp.eq.s32.totalorder %s113, 0
      %p407 = por %p405, %p406
      %s409 = sadd.s32 %s408, 1
      %p412 = scmp.eq.s32.totalorder %s107, 3
      %p413 = scmp.ne.s32.totalorder %s408, %s410
      %p414 = scmp.eq.s32.totalorder %s107, 0
      %p415 = por %p413, %p414
      %p416 = scmp.ne.s32.totalorder %s408, %s410
      %p417 = scmp.eq.s32.totalorder %s112, 3
      %p418 = por %p416, %p417
      %p419 = scmp.ne.s32.totalorder %s410, %s411
      %p420 = scmp.eq.s32.totalorder %s112, 0
      %p421 = por %p419, %p420
      %p422 = scmp.ne.s32.totalorder %s410, %s411
      %p423 = scmp.eq.s32.totalorder %s113, 3
      %p424 = por %p422, %p423
      %p426 = scmp.ne.s32.totalorder %s411, %s425
      %p427 = scmp.eq.s32.totalorder %s113, 0
      %p428 = por %p426, %p427
      %s430 = sadd.s32 %s429, 1
      %p433 = scmp.eq.s32.totalorder %s107, 3
      %p434 = scmp.ne.s32.totalorder %s429, %s431
      %p435 = scmp.eq.s32.totalorder %s107, 0
      %p436 = por %p434, %p435
      %p437 = scmp.ne.s32.totalorder %s429, %s431
      %p438 = scmp.eq.s32.totalorder %s112, 3
      %p439 = por %p437, %p438
      %p440 = scmp.ne.s32.totalorder %s431, %s432
      %p441 = scmp.eq.s32.totalorder %s112, 0
      %p442 = por %p440, %p441
      %p443 = scmp.ne.s32.totalorder %s431, %s432
      %p444 = scmp.eq.s32.totalorder %s113, 3
      %p445 = por %p443, %p444
      %p447 = scmp.ne.s32.totalorder %s432, %s446
      %p448 = scmp.eq.s32.totalorder %s113, 0
      %p449 = por %p447, %p448
      %s451 = sadd.s32 %s450, 1
      %p454 = scmp.eq.s32.totalorder %s107, 3
      %p455 = scmp.ne.s32.totalorder %s450, %s452
      %p456 = scmp.eq.s32.totalorder %s107, 0
      %p457 = por %p455, %p456
      %p458 = scmp.ne.s32.totalorder %s450, %s452
      %p459 = scmp.eq.s32.totalorder %s112, 3
      %p460 = por %p458, %p459
      %p461 = scmp.ne.s32.totalorder %s452, %s453
      %p462 = scmp.eq.s32.totalorder %s112, 0
      %p463 = por %p461, %p462
      %p464 = scmp.ne.s32.totalorder %s452, %s453
      %p465 = scmp.eq.s32.totalorder %s113, 3
      %p466 = por %p464, %p465
      %p468 = scmp.ne.s32.totalorder %s453, %s467
      %p469 = scmp.eq.s32.totalorder %s113, 0
      %p470 = por %p468, %p469
      %s472 = sadd.s32 %s471, 1
      %p475 = scmp.eq.s32.totalorder %s107, 3
      %p476 = scmp.ne.s32.totalorder %s471, %s473
      %p477 = scmp.eq.s32.totalorder %s107, 0
      %p478 = por %p476, %p477
      %p479 = scmp.ne.s32.totalorder %s471, %s473
      %p480 = scmp.eq.s32.totalorder %s112, 3
      %p481 = por %p479, %p480
      %p482 = scmp.ne.s32.totalorder %s473, %s474
      %p483 = scmp.eq.s32.totalorder %s112, 0
      %p484 = por %p482, %p483
      %p485 = scmp.ne.s32.totalorder %s473, %s474
      %p486 = scmp.eq.s32.totalorder %s113, 3
      %p487 = por %p485, %p486
      %p489 = scmp.ne.s32.totalorder %s474, %s488
      %p490 = scmp.eq.s32.totalorder %s113, 0
      %p491 = por %p489, %p490
      %s493 = sadd.s32 %s492, 1
      %p496 = scmp.eq.s32.totalorder %s107, 3
      %p497 = scmp.ne.s32.totalorder %s492, %s494
      %p498 = scmp.eq.s32.totalorder %s107, 0
      %p499 = por %p497, %p498
      %p500 = scmp.ne.s32.totalorder %s492, %s494
      %p501 = scmp.eq.s32.totalorder %s112, 3
      %p502 = por %p500, %p501
      %p503 = scmp.ne.s32.totalorder %s494, %s495
      %p504 = scmp.eq.s32.totalorder %s112, 0
      %p505 = por %p503, %p504
      %p506 = scmp.ne.s32.totalorder %s494, %s495
      %p507 = scmp.eq.s32.totalorder %s113, 3
      %p508 = por %p506, %p507
      %p510 = scmp.ne.s32.totalorder %s495, %s509
      %p511 = scmp.eq.s32.totalorder %s113, 0
      %p512 = por %p510, %p511
      %s514 = sadd.s32 %s513, 1
      %p517 = scmp.eq.s32.totalorder %s107, 3
      %p518 = scmp.ne.s32.totalorder %s513, %s515
      %p519 = scmp.eq.s32.totalorder %s107, 0
      %p520 = por %p518, %p519
      %p521 = scmp.ne.s32.totalorder %s513, %s515
      %p522 = scmp.eq.s32.totalorder %s112, 3
      %p523 = por %p521, %p522
      %p524 = scmp.ne.s32.totalorder %s515, %s516
      %p525 = scmp.eq.s32.totalorder %s112, 0
      %p526 = por %p524, %p525
      %p527 = scmp.ne.s32.totalorder %s515, %s516
      %p528 = scmp.eq.s32.totalorder %s113, 3
      %p529 = por %p527, %p528
      %p531 = scmp.ne.s32.totalorder %s516, %s530
      %p532 = scmp.eq.s32.totalorder %s113, 0
      %p533 = por %p531, %p532
      %s535 = sadd.s32 %s534, 1
      %p538 = scmp.eq.s32.totalorder %s107, 3
      %p539 = scmp.ne.s32.totalorder %s534, %s536
      %p540 = scmp.eq.s32.totalorder %s107, 0
      %p541 = por %p539, %p540
      %p542 = scmp.ne.s32.totalorder %s534, %s536
      %p543 = scmp.eq.s32.totalorder %s112, 3
      %p544 = por %p542, %p543
      %p545 = scmp.ne.s32.totalorder %s536, %s537
      %p546 = scmp.eq.s32.totalorder %s112, 0
      %p547 = por %p545, %p546
      %p548 = scmp.ne.s32.totalorder %s536, %s537
      %p549 = scmp.eq.s32.totalorder %s113, 3
      %p550 = por %p548, %p549
      %p552 = scmp.ne.s32.totalorder %s537, %s551
      %p553 = scmp.eq.s32.totalorder %s113, 0
      %p554 = por %p552, %p553
      %s556 = sadd.s32 %s555, 1
      %p559 = scmp.eq.s32.totalorder %s107, 3
      %p560 = scmp.ne.s32.totalorder %s555, %s557
      %p561 = scmp.eq.s32.totalorder %s107, 0
      %p562 = por %p560, %p561
      %p563 = scmp.ne.s32.totalorder %s555, %s557
      %p564 = scmp.eq.s32.totalorder %s112, 3
      %p565 = por %p563, %p564
      %p566 = scmp.ne.s32.totalorder %s557, %s558
      %p567 = scmp.eq.s32.totalorder %s112, 0
      %p568 = por %p566, %p567
      %p569 = scmp.ne.s32.totalorder %s557, %s558
      %p570 = scmp.eq.s32.totalorder %s113, 3
      %p571 = por %p569, %p570
      %p573 = scmp.ne.s32.totalorder %s558, %s572
      %p574 = scmp.eq.s32.totalorder %s113, 0
      %p575 = por %p573, %p574
      %s577 = sadd.s32 %s576, 1
      %p580 = scmp.eq.s32.totalorder %s107, 3
      %p581 = scmp.ne.s32.totalorder %s576, %s578
      %p582 = scmp.eq.s32.totalorder %s107, 0
      %p583 = por %p581, %p582
      %p584 = scmp.ne.s32.totalorder %s576, %s578
      %p585 = scmp.eq.s32.totalorder %s112, 3
      %p586 = por %p584, %p585
      %p587 = scmp.ne.s32.totalorder %s578, %s579
      %p588 = scmp.eq.s32.totalorder %s112, 0
      %p589 = por %p587, %p588
      %p590 = scmp.ne.s32.totalorder %s578, %s579
      %p591 = scmp.eq.s32.totalorder %s113, 3
      %p592 = por %p590, %p591
      %p594 = scmp.ne.s32.totalorder %s579, %s593
      %p595 = scmp.eq.s32.totalorder %s113, 0
      %p596 = por %p594, %p595
      %s598 = sadd.s32 %s597, 1
      %p601 = scmp.eq.s32.totalorder %s107, 3
      %p602 = scmp.ne.s32.totalorder %s597, %s599
      %p603 = scmp.eq.s32.totalorder %s107, 0
      %p604 = por %p602, %p603
      %p605 = scmp.ne.s32.totalorder %s597, %s599
      %p606 = scmp.eq.s32.totalorder %s112, 3
      %p607 = por %p605, %p606
      %p608 = scmp.ne.s32.totalorder %s599, %s600
      %p609 = scmp.eq.s32.totalorder %s112, 0
      %p610 = por %p608, %p609
      %p611 = scmp.ne.s32.totalorder %s599, %s600
      %p612 = scmp.eq.s32.totalorder %s113, 3
      %p613 = por %p611, %p612
      %p615 = scmp.ne.s32.totalorder %s600, %s614
      %p616 = scmp.eq.s32.totalorder %s113, 0
      %p617 = por %p615, %p616
      %s619 = sadd.s32 %s618, 1
      %p622 = scmp.eq.s32.totalorder %s107, 3
      %p623 = scmp.ne.s32.totalorder %s618, %s620
      %p624 = scmp.eq.s32.totalorder %s107, 0
      %p625 = por %p623, %p624
      %p626 = scmp.ne.s32.totalorder %s618, %s620
      %p627 = scmp.eq.s32.totalorder %s112, 3
      %p628 = por %p626, %p627
      %p629 = scmp.ne.s32.totalorder %s620, %s621
      %p630 = scmp.eq.s32.totalorder %s112, 0
      %p631 = por %p629, %p630
      %p632 = scmp.ne.s32.totalorder %s620, %s621
      %p633 = scmp.eq.s32.totalorder %s113, 3
      %p634 = por %p632, %p633
      %p636 = scmp.ne.s32.totalorder %s621, %s635
      %p637 = scmp.eq.s32.totalorder %s113, 0
      %p638 = por %p636, %p637
      %s640 = sadd.s32 %s639, 1
      %p643 = scmp.eq.s32.totalorder %s107, 3
      %p644 = scmp.ne.s32.totalorder %s639, %s641
      %p645 = scmp.eq.s32.totalorder %s107, 0
      %p646 = por %p644, %p645
      %p647 = scmp.ne.s32.totalorder %s639, %s641
      %p648 = scmp.eq.s32.totalorder %s112, 3
      %p649 = por %p647, %p648
      %p650 = scmp.ne.s32.totalorder %s641, %s642
      %p651 = scmp.eq.s32.totalorder %s112, 0
      %p652 = por %p650, %p651
      %p653 = scmp.ne.s32.totalorder %s641, %s642
      %p654 = scmp.eq.s32.totalorder %s113, 3
      %p655 = por %p653, %p654
      %p657 = scmp.ne.s32.totalorder %s642, %s656
      %p658 = scmp.eq.s32.totalorder %s113, 0
      %p659 = por %p657, %p658
      %s661 = sadd.s32 %s660, 1
      %p664 = scmp.eq.s32.totalorder %s107, 3
      %p665 = scmp.ne.s32.totalorder %s660, %s662
      %p666 = scmp.eq.s32.totalorder %s107, 0
      %p667 = por %p665, %p666
      %p668 = scmp.ne.s32.totalorder %s660, %s662
      %p669 = scmp.eq.s32.totalorder %s112, 3
      %p670 = por %p668, %p669
      %p671 = scmp.ne.s32.totalorder %s662, %s663
      %p672 = scmp.eq.s32.totalorder %s112, 0
      %p673 = por %p671, %p672
      %p674 = scmp.ne.s32.totalorder %s662, %s663
      %p675 = scmp.eq.s32.totalorder %s113, 3
      %p676 = por %p674, %p675
      %p678 = scmp.ne.s32.totalorder %s663, %s677
      %p679 = scmp.eq.s32.totalorder %s113, 0
      %p680 = por %p678, %p679
      %s682 = sadd.s32 %s681, 1
      %p685 = scmp.eq.s32.totalorder %s107, 3
      %p686 = scmp.ne.s32.totalorder %s681, %s683
      %p687 = scmp.eq.s32.totalorder %s107, 0
      %p688 = por %p686, %p687
      %p689 = scmp.ne.s32.totalorder %s681, %s683
      %p690 = scmp.eq.s32.totalorder %s112, 3
      %p691 = por %p689, %p690
      %p692 = scmp.ne.s32.totalorder %s683, %s684
      %p693 = scmp.eq.s32.totalorder %s112, 0
      %p694 = por %p692, %p693
      %p695 = scmp.ne.s32.totalorder %s683, %s684
      %p696 = scmp.eq.s32.totalorder %s113, 3
      %p697 = por %p695, %p696
      %p699 = scmp.ne.s32.totalorder %s684, %s698
      %p700 = scmp.eq.s32.totalorder %s113, 0
      %p701 = por %p699, %p700
      %s703 = sadd.s32 %s702, 1
      %p706 = scmp.eq.s32.totalorder %s107, 3
      %p707 = scmp.ne.s32.totalorder %s702, %s704
      %p708 = scmp.eq.s32.totalorder %s107, 0
      %p709 = por %p707, %p708
      %p710 = scmp.ne.s32.totalorder %s702, %s704
      %p711 = scmp.eq.s32.totalorder %s112, 3
      %p712 = por %p710, %p711
      %p713 = scmp.ne.s32.totalorder %s704, %s705
      %p714 = scmp.eq.s32.totalorder %s112, 0
      %p715 = por %p713, %p714
      %p716 = scmp.ne.s32.totalorder %s704, %s705
      %p717 = scmp.eq.s32.totalorder %s113, 3
      %p718 = por %p716, %p717
      %p720 = scmp.ne.s32.totalorder %s705, %s719
      %p721 = scmp.eq.s32.totalorder %s113, 0
      %p722 = por %p720, %p721
      %s724 = sadd.s32 %s723, 1
      %p727 = scmp.eq.s32.totalorder %s107, 3
      %p728 = scmp.ne.s32.totalorder %s723, %s725
      %p729 = scmp.eq.s32.totalorder %s107, 0
      %p730 = por %p728, %p729
      %p731 = scmp.ne.s32.totalorder %s723, %s725
      %p732 = scmp.eq.s32.totalorder %s112, 3
      %p733 = por %p731, %p732
      %p734 = scmp.ne.s32.totalorder %s725, %s726
      %p735 = scmp.eq.s32.totalorder %s112, 0
      %p736 = por %p734, %p735
      %p737 = scmp.ne.s32.totalorder %s725, %s726
      %p738 = scmp.eq.s32.totalorder %s113, 3
      %p739 = por %p737, %p738
      %p741 = scmp.ne.s32.totalorder %s726, %s740
      %p742 = scmp.eq.s32.totalorder %s113, 0
      %p743 = por %p741, %p742
      %s745 = sadd.s32 %s744, 1
      %p748 = scmp.eq.s32.totalorder %s107, 3
      %p749 = scmp.ne.s32.totalorder %s744, %s746
      %p750 = scmp.eq.s32.totalorder %s107, 0
      %p751 = por %p749, %p750
      %p752 = scmp.ne.s32.totalorder %s744, %s746
      %p753 = scmp.eq.s32.totalorder %s112, 3
      %p754 = por %p752, %p753
      %p755 = scmp.ne.s32.totalorder %s746, %s747
      %p756 = scmp.eq.s32.totalorder %s112, 0
      %p757 = por %p755, %p756
      %p758 = scmp.ne.s32.totalorder %s746, %s747
      %p759 = scmp.eq.s32.totalorder %s113, 3
      %p760 = por %p758, %p759
      %p762 = scmp.ne.s32.totalorder %s747, %s761
      %p763 = scmp.eq.s32.totalorder %s113, 0
      %p764 = por %p762, %p763
      %s766 = sadd.s32 %s765, 1
      %p769 = scmp.eq.s32.totalorder %s107, 3
      %p770 = scmp.ne.s32.totalorder %s765, %s767
      %p771 = scmp.eq.s32.totalorder %s107, 0
      %p772 = por %p770, %p771
      %p773 = scmp.ne.s32.totalorder %s765, %s767
      %p774 = scmp.eq.s32.totalorder %s112, 3
      %p775 = por %p773, %p774
      %p776 = scmp.ne.s32.totalorder %s767, %s768
      %p777 = scmp.eq.s32.totalorder %s112, 0
      %p778 = por %p776, %p777
      %p779 = scmp.ne.s32.totalorder %s767, %s768
      %p780 = scmp.eq.s32.totalorder %s113, 3
      %p781 = por %p779, %p780
      %p783 = scmp.ne.s32.totalorder %s768, %s782
      %p784 = scmp.eq.s32.totalorder %s113, 0
      %p785 = por %p783, %p784
      %s787 = sadd.s32 %s786, 1
      %p790 = scmp.eq.s32.totalorder %s107, 3
      %p791 = scmp.ne.s32.totalorder %s786, %s788
      %p792 = scmp.eq.s32.totalorder %s107, 0
      %p793 = por %p791, %p792
      %p794 = scmp.ne.s32.totalorder %s786, %s788
      %p795 = scmp.eq.s32.totalorder %s112, 3
      %p796 = por %p794, %p795
      %p797 = scmp.ne.s32.totalorder %s788, %s789
      %p798 = scmp.eq.s32.totalorder %s112, 0
      %p799 = por %p797, %p798
      %p800 = scmp.ne.s32.totalorder %s788, %s789
      %p801 = scmp.eq.s32.totalorder %s113, 3
      %p802 = por %p800, %p801
      %p804 = scmp.ne.s32.totalorder %s789, %s803
      %p805 = scmp.eq.s32.totalorder %s113, 0
      %p806 = por %p804, %p805
      %s808 = sadd.s32 %s807, 1
      %p811 = scmp.eq.s32.totalorder %s107, 3
      %p812 = scmp.ne.s32.totalorder %s807, %s809
      %p813 = scmp.eq.s32.totalorder %s107, 0
      %p814 = por %p812, %p813
      %p815 = scmp.ne.s32.totalorder %s807, %s809
      %p816 = scmp.eq.s32.totalorder %s112, 3
      %p817 = por %p815, %p816
      %p818 = scmp.ne.s32.totalorder %s809, %s810
      %p819 = scmp.eq.s32.totalorder %s112, 0
      %p820 = por %p818, %p819
      %p821 = scmp.ne.s32.totalorder %s809, %s810
      %p822 = scmp.eq.s32.totalorder %s113, 3
      %p823 = por %p821, %p822
      %p825 = scmp.ne.s32.totalorder %s810, %s824
      %p826 = scmp.eq.s32.totalorder %s113, 0
      %p827 = por %p825, %p826
      %s829 = sadd.s32 %s828, 1
      %p832 = scmp.eq.s32.totalorder %s107, 3
      %p833 = scmp.ne.s32.totalorder %s828, %s830
      %p834 = scmp.eq.s32.totalorder %s107, 0
      %p835 = por %p833, %p834
      %p836 = scmp.ne.s32.totalorder %s828, %s830
      %p837 = scmp.eq.s32.totalorder %s112, 3
      %p838 = por %p836, %p837
      %p839 = scmp.ne.s32.totalorder %s830, %s831
      %p840 = scmp.eq.s32.totalorder %s112, 0
      %p841 = por %p839, %p840
      %p842 = scmp.ne.s32.totalorder %s830, %s831
      %p843 = scmp.eq.s32.totalorder %s113, 3
      %p844 = por %p842, %p843
      %p846 = scmp.ne.s32.totalorder %s831, %s845
      %p847 = scmp.eq.s32.totalorder %s113, 0
      %p848 = por %p846, %p847
      %s850 = sadd.s32 %s849, 1
      %p853 = scmp.eq.s32.totalorder %s107, 3
      %p854 = scmp.ne.s32.totalorder %s849, %s851
      %p855 = scmp.eq.s32.totalorder %s107, 0
      %p856 = por %p854, %p855
      %p857 = scmp.ne.s32.totalorder %s849, %s851
      %p858 = scmp.eq.s32.totalorder %s112, 3
      %p859 = por %p857, %p858
      %p860 = scmp.ne.s32.totalorder %s851, %s852
      %p861 = scmp.eq.s32.totalorder %s112, 0
      %p862 = por %p860, %p861
      %p863 = scmp.ne.s32.totalorder %s851, %s852
      %p864 = scmp.eq.s32.totalorder %s113, 3
      %p865 = por %p863, %p864
      %p867 = scmp.ne.s32.totalorder %s852, %s866
      %p868 = scmp.eq.s32.totalorder %s113, 0
      %p869 = por %p867, %p868
      %s871 = sadd.s32 %s870, 1
      %p874 = scmp.eq.s32.totalorder %s107, 3
      %p875 = scmp.ne.s32.totalorder %s870, %s872
      %p876 = scmp.eq.s32.totalorder %s107, 0
      %p877 = por %p875, %p876
      %p878 = scmp.ne.s32.totalorder %s870, %s872
      %p879 = scmp.eq.s32.totalorder %s112, 3
      %p880 = por %p878, %p879
      %p881 = scmp.ne.s32.totalorder %s872, %s873
      %p882 = scmp.eq.s32.totalorder %s112, 0
      %p883 = por %p881, %p882
      %p884 = scmp.ne.s32.totalorder %s872, %s873
      %p885 = scmp.eq.s32.totalorder %s113, 3
      %p886 = por %p884, %p885
      %p888 = scmp.ne.s32.totalorder %s873, %s887
      %p889 = scmp.eq.s32.totalorder %s113, 0
      %p890 = por %p888, %p889
      %s892 = sadd.s32 %s891, 1
      %p895 = scmp.eq.s32.totalorder %s107, 3
      %p896 = scmp.ne.s32.totalorder %s891, %s893
      %p897 = scmp.eq.s32.totalorder %s107, 0
      %p898 = por %p896, %p897
      %p899 = scmp.ne.s32.totalorder %s891, %s893
      %p900 = scmp.eq.s32.totalorder %s112, 3
      %p901 = por %p899, %p900
      %p902 = scmp.ne.s32.totalorder %s893, %s894
      %p903 = scmp.eq.s32.totalorder %s112, 0
      %p904 = por %p902, %p903
      %p905 = scmp.ne.s32.totalorder %s893, %s894
      %p906 = scmp.eq.s32.totalorder %s113, 3
      %p907 = por %p905, %p906
      %p909 = scmp.ne.s32.totalorder %s894, %s908
      %p910 = scmp.eq.s32.totalorder %s113, 0
      %p911 = por %p909, %p910
      %s913 = sadd.s32 %s912, 1
      %p916 = scmp.eq.s32.totalorder %s107, 3
      %p917 = scmp.ne.s32.totalorder %s912, %s914
      %p918 = scmp.eq.s32.totalorder %s107, 0
      %p919 = por %p917, %p918
      %p920 = scmp.ne.s32.totalorder %s912, %s914
      %p921 = scmp.eq.s32.totalorder %s112, 3
      %p922 = por %p920, %p921
      %p923 = scmp.ne.s32.totalorder %s914, %s915
      %p924 = scmp.eq.s32.totalorder %s112, 0
      %p925 = por %p923, %p924
      %p926 = scmp.ne.s32.totalorder %s914, %s915
      %p927 = scmp.eq.s32.totalorder %s113, 3
      %p928 = por %p926, %p927
      %p930 = scmp.ne.s32.totalorder %s915, %s929
      %p931 = scmp.eq.s32.totalorder %s113, 0
      %p932 = por %p930, %p931
      %s933 = ssub.s32 %s107, %s114
      %p934 = scmp.eq.s32.totalorder %s933, 0
      %s936 = sadd.s32 %s935, 1
      %s937 = scalar_select %p934, %s935, %s936
      %p940 = pneg %p934
      %p941 = scmp.eq.s32.totalorder %s107, 3
      %p942 = por %p940, %p941
      %p943 = scmp.ne.s32.totalorder %s935, %s938
      %p944 = scmp.eq.s32.totalorder %s107, 0
      %p945 = por %p943, %p944
      %p946 = scmp.ne.s32.totalorder %s935, %s938
      %p947 = scmp.eq.s32.totalorder %s112, 3
      %p948 = por %p946, %p947
      %p949 = scmp.ne.s32.totalorder %s938, %s939
      %p950 = scmp.eq.s32.totalorder %s112, 0
      %p951 = por %p949, %p950
      %p952 = scmp.ne.s32.totalorder %s938, %s939
      %p953 = scmp.eq.s32.totalorder %s113, 3
      %p954 = por %p952, %p953
      %p956 = scmp.ne.s32.totalorder %s939, %s955
      %p957 = scmp.eq.s32.totalorder %s113, 0
      %p958 = por %p956, %p957
      %p959 = scmp.le.s32.totalorder 1, %s107
      %p960 = scmp.lt.s32.totalorder %s107, 5
      %p961 = pnand %p959, %p960
      %p962 = pneg %p961
      // Predicated region
      $region9: #{forward_pallas.1} parent=5 // pred_check
        _
      $region10: #{forward_pallas.1} parent=5 // pred_check_branch
        %964 = sbr.rel (%p961) target = $region12
      $region11: #{forward_pallas.1} parent=5 // pred_region
        %s965 = ssub.s32 %s107, 1
        // Predicated region
        $region13: #{forward_pallas.1} parent=11 // pred_check
          %p966 = pneg %p232
        $region14: #{forward_pallas.1} parent=11 // pred_check_branch
          %968 = sbr.rel (%p966) target = $region16
        $region15: #{forward_pallas.1} parent=11 // pred_region
          %s970 = ssub.s32 6144, 6144
          %971 = vsyncadd [#allocation8], %s970
          %s972 = sshll.u32 [#allocation9], 4
          %s973 = int_to_ptr.vmem [resolvable:$true] %s972
          %978 = dma.hbm_to_vmem [thread:$0]  %s9, 6144, %s973, [#allocation8], 128, 128, 8
        $region16: #{forward_pallas.1} parent=11 // pred_fallthru
          _
        // Predicated region
        $region17: #{forward_pallas.1} parent=11 // pred_check
          %p979 = pneg %p253
        $region18: #{forward_pallas.1} parent=11 // pred_check_branch
          %981 = sbr.rel (%p979) target = $region20
        $region19: #{forward_pallas.1} parent=11 // pred_region
          %s983 = ssub.s32 32, 32
          %984 = vsyncadd [#allocation11], %s983
          %s986 = sshll.u32 [#allocation10], 4
          %s987 = int_to_ptr.vmem [resolvable:$true] %s986
          %989 = dma.hbm_to_vmem [thread:$0]  %s11, 32, %s987, [#allocation11]
        $region20: #{forward_pallas.1} parent=11 // pred_fallthru
          _
        // Predicated region
        $region21: #{forward_pallas.1} parent=11 // pred_check
          %p990 = pneg %p274
        $region22: #{forward_pallas.1} parent=11 // pred_check_branch
          %992 = sbr.rel (%p990) target = $region24
        $region23: #{forward_pallas.1} parent=11 // pred_region
          %s994 = ssub.s32 32, 32
          %995 = vsyncadd [#allocation11], %s994
          %s997 = sshll.u32 [#allocation12], 4
          %s998 = int_to_ptr.vmem [resolvable:$true] %s997
          %1000 = dma.hbm_to_vmem [thread:$0]  %s13, 32, %s998, [#allocation11]
        $region24: #{forward_pallas.1} parent=11 // pred_fallthru
          _
        // Predicated region
        $region25: #{forward_pallas.1} parent=11 // pred_check
          %p1001 = pneg %p295
        $region26: #{forward_pallas.1} parent=11 // pred_check_branch
          %1003 = sbr.rel (%p1001) target = $region28
        $region27: #{forward_pallas.1} parent=11 // pred_region
          %s1005 = ssub.s32 32, 32
          %1006 = vsyncadd [#allocation14], %s1005
          %s1008 = sshll.u32 [#allocation13], 4
          %s1009 = int_to_ptr.vmem [resolvable:$true] %s1008
          %1011 = dma.hbm_to_vmem [thread:$0]  %s15, 32, %s1009, [#allocation14]
        $region28: #{forward_pallas.1} parent=11 // pred_fallthru
          _
        // Predicated region
        $region29: #{forward_pallas.1} parent=11 // pred_check
          %p1012 = pneg %p316
        $region30: #{forward_pallas.1} parent=11 // pred_check_branch
          %1014 = sbr.rel (%p1012) target = $region32
        $region31: #{forward_pallas.1} parent=11 // pred_region
          %s1016 = ssub.s32 2048, 2048
          %1017 = vsyncadd [#allocation14], %s1016
          %s1018 = sshll.u32 [#allocation15], 4
          %s1019 = int_to_ptr.vmem [resolvable:$true] %s1018
          %1024 = dma.hbm_to_vmem [thread:$0]  %s17, 2048, %s1019, [#allocation14], 64, 64, 4
        $region32: #{forward_pallas.1} parent=11 // pred_fallthru
          _
        // Predicated region
        $region33: #{forward_pallas.1} parent=11 // pred_check
          %p1025 = pneg %p337
        $region34: #{forward_pallas.1} parent=11 // pred_check_branch
          %1027 = sbr.rel (%p1025) target = $region36
        $region35: #{forward_pallas.1} parent=11 // pred_region
          _
        $region36: #{forward_pallas.1} parent=11 // pred_fallthru
          _
        // Predicated region
        $region37: #{forward_pallas.1} parent=11 // pred_check
          %p1028 = pneg %p358
        $region38: #{forward_pallas.1} parent=11 // pred_check_branch
          %1030 = sbr.rel (%p1028) target = $region40
        $region39: #{forward_pallas.1} parent=11 // pred_region
          %s1032 = ssub.s32 16, 16
          %1033 = vsyncadd [#allocation17], %s1032
          %s1035 = sshll.u32 [#allocation16], 4
          %s1036 = int_to_ptr.vmem [resolvable:$true] %s1035
          %1038 = dma.hbm_to_vmem [thread:$0]  %s21, 16, %s1036, [#allocation17]
        $region40: #{forward_pallas.1} parent=11 // pred_fallthru
          _
        // Predicated region
        $region41: #{forward_pallas.1} parent=11 // pred_check
          %p1039 = pneg %p379
        $region42: #{forward_pallas.1} parent=11 // pred_check_branch
          %1041 = sbr.rel (%p1039) target = $region44
        $region43: #{forward_pallas.1} parent=11 // pred_region
          %s1043 = ssub.s32 16, 16
          %1044 = vsyncadd [#allocation17], %s1043
          %s1046 = sshll.u32 [#allocation18], 4
          %s1047 = int_to_ptr.vmem [resolvable:$true] %s1046
          %1049 = dma.hbm_to_vmem [thread:$0]  %s23, 16, %s1047, [#allocation17]
        $region44: #{forward_pallas.1} parent=11 // pred_fallthru
          _
        // Predicated region
        $region45: #{forward_pallas.1} parent=11 // pred_check
          %p1050 = pneg %p400
        $region46: #{forward_pallas.1} parent=11 // pred_check_branch
          %1052 = sbr.rel (%p1050) target = $region48
        $region47: #{forward_pallas.1} parent=11 // pred_region
          %s1054 = ssub.s32 1024, 1024
          %1055 = vsyncadd [#allocation20], %s1054
          %s1056 = sshll.u32 [#allocation19], 4
          %s1057 = int_to_ptr.vmem [resolvable:$true] %s1056
          %1062 = dma.hbm_to_vmem [thread:$0]  %s25, 1024, %s1057, [#allocation20], 64, 64, 4
        $region48: #{forward_pallas.1} parent=11 // pred_fallthru
          _
        // Predicated region
        $region49: #{forward_pallas.1} parent=11 // pred_check
          %p1063 = pneg %p421
        $region50: #{forward_pallas.1} parent=11 // pred_check_branch
          %1065 = sbr.rel (%p1063) target = $region52
        $region51: #{forward_pallas.1} parent=11 // pred_region
          %s1067 = ssub.s32 16, 16
          %1068 = vsyncadd [#allocation20], %s1067
          %s1070 = sshll.u32 [#allocation21], 4
          %s1071 = int_to_ptr.vmem [resolvable:$true] %s1070
          %1073 = dma.hbm_to_vmem [thread:$0]  %s27, 16, %s1071, [#allocation20]
        $region52: #{forward_pallas.1} parent=11 // pred_fallthru
          _
        // Predicated region
        $region53: #{forward_pallas.1} parent=11 // pred_check
          %p1074 = pneg %p442
        $region54: #{forward_pallas.1} parent=11 // pred_check_branch
          %1076 = sbr.rel (%p1074) target = $region56
        $region55: #{forward_pallas.1} parent=11 // pred_region
          %s1078 = ssub.s32 16, 16
          %1079 = vsyncadd [#allocation23], %s1078
          %s1081 = sshll.u32 [#allocation22], 4
          %s1082 = int_to_ptr.vmem [resolvable:$true] %s1081
          %1084 = dma.hbm_to_vmem [thread:$0]  %s29, 16, %s1082, [#allocation23]
        $region56: #{forward_pallas.1} parent=11 // pred_fallthru
          _
        // Predicated region
        $region57: #{forward_pallas.1} parent=11 // pred_check
          %p1085 = pneg %p463
        $region58: #{forward_pallas.1} parent=11 // pred_check_branch
          %1087 = sbr.rel (%p1085) target = $region60
        $region59: #{forward_pallas.1} parent=11 // pred_region
          %s1089 = ssub.s32 16, 16
          %1090 = vsyncadd [#allocation23], %s1089
          %s1092 = sshll.u32 [#allocation24], 4
          %s1093 = int_to_ptr.vmem [resolvable:$true] %s1092
          %1095 = dma.hbm_to_vmem [thread:$0]  %s31, 16, %s1093, [#allocation23]
        $region60: #{forward_pallas.1} parent=11 // pred_fallthru
          _
        // Predicated region
        $region61: #{forward_pallas.1} parent=11 // pred_check
          %p1096 = pneg %p484
        $region62: #{forward_pallas.1} parent=11 // pred_check_branch
          %1098 = sbr.rel (%p1096) target = $region64
        $region63: #{forward_pallas.1} parent=11 // pred_region
          %s1100 = ssub.s32 18432, 18432
          %1101 = vsyncadd [#allocation26], %s1100
          %s1102 = sshll.u32 [#allocation25], 4
          %s1103 = int_to_ptr.vmem [resolvable:$true] %s1102
          %1108 = dma.hbm_to_vmem [thread:$0]  %s33, 18432, %s1103, [#allocation26], 384, 384, 24
        $region64: #{forward_pallas.1} parent=11 // pred_fallthru
          _
        // Predicated region
        $region65: #{forward_pallas.1} parent=11 // pred_check
          %p1109 = pneg %p505
        $region66: #{forward_pallas.1} parent=11 // pred_check_branch
          %1111 = sbr.rel (%p1109) target = $region68
        $region67: #{forward_pallas.1} parent=11 // pred_region
          %s1113 = ssub.s32 6144, 6144
          %1114 = vsyncadd [#allocation26], %s1113
          %s1115 = sshll.u32 [#allocation27], 4
          %s1116 = int_to_ptr.vmem [resolvable:$true] %s1115
          %1121 = dma.hbm_to_vmem [thread:$0]  %s35, 6144, %s1116, [#allocation26], 64, 64, 4
        $region68: #{forward_pallas.1} parent=11 // pred_fallthru
          _
        // Predicated region
        $region69: #{forward_pallas.1} parent=11 // pred_check
          %p1122 = pneg %p526
        $region70: #{forward_pallas.1} parent=11 // pred_check_branch
          %1124 = sbr.rel (%p1122) target = $region72
        $region71: #{forward_pallas.1} parent=11 // pred_region
          %s1126 = ssub.s32 96, 96
          %1127 = vsyncadd [#allocation29], %s1126
          %s1129 = sshll.u32 [#allocation28], 4
          %s1130 = int_to_ptr.vmem [resolvable:$true] %s1129
          %1132 = dma.hbm_to_vmem [thread:$0]  %s37, 96, %s1130, [#allocation29]
        $region72: #{forward_pallas.1} parent=11 // pred_fallthru
          _
        // Predicated region
        $region73: #{forward_pallas.1} parent=11 // pred_check
          %p1133 = pneg %p547
        $region74: #{forward_pallas.1} parent=11 // pred_check_branch
          %1135 = sbr.rel (%p1133) target = $region76
        $region75: #{forward_pallas.1} parent=11 // pred_region
          %s1137 = ssub.s32 96, 96
          %1138 = vsyncadd [#allocation29], %s1137
          %s1140 = sshll.u32 [#allocation30], 4
          %s1141 = int_to_ptr.vmem [resolvable:$true] %s1140
          %1143 = dma.hbm_to_vmem [thread:$0]  %s39, 96, %s1141, [#allocation29]
        $region76: #{forward_pallas.1} parent=11 // pred_fallthru
          _
        // Predicated region
        $region77: #{forward_pallas.1} parent=11 // pred_check
          %p1144 = pneg %p568
        $region78: #{forward_pallas.1} parent=11 // pred_check_branch
          %1146 = sbr.rel (%p1144) target = $region80
        $region79: #{forward_pallas.1} parent=11 // pred_region
          %s1148 = ssub.s32 96, 96
          %1149 = vsyncadd [#allocation32], %s1148
          %s1151 = sshll.u32 [#allocation31], 4
          %s1152 = int_to_ptr.vmem [resolvable:$true] %s1151
          %1154 = dma.hbm_to_vmem [thread:$0]  %s41, 96, %s1152, [#allocation32]
        $region80: #{forward_pallas.1} parent=11 // pred_fallthru
          _
        // Predicated region
        $region81: #{forward_pallas.1} parent=11 // pred_check
          %p1155 = pneg %p589
        $region82: #{forward_pallas.1} parent=11 // pred_check_branch
          %1157 = sbr.rel (%p1155) target = $region84
        $region83: #{forward_pallas.1} parent=11 // pred_region
          %s1159 = ssub.s32 18432, 18432
          %1160 = vsyncadd [#allocation32], %s1159
          %s1161 = sshll.u32 [#allocation33], 4
          %s1162 = int_to_ptr.vmem [resolvable:$true] %s1161
          %1167 = dma.hbm_to_vmem [thread:$0]  %s43, 18432, %s1162, [#allocation32], 192, 192, 12
        $region84: #{forward_pallas.1} parent=11 // pred_fallthru
          _
        // Predicated region
        $region85: #{forward_pallas.1} parent=11 // pred_check
          %p1168 = pneg %p610
        $region86: #{forward_pallas.1} parent=11 // pred_check_branch
          %1170 = sbr.rel (%p1168) target = $region88
        $region87: #{forward_pallas.1} parent=11 // pred_region
          %s1172 = ssub.s32 3072, 3072
          %1173 = vsyncadd [#allocation35], %s1172
          %s1174 = sshll.u32 [#allocation34], 4
          %s1175 = int_to_ptr.vmem [resolvable:$true] %s1174
          %1180 = dma.hbm_to_vmem [thread:$0]  %s45, 3072, %s1175, [#allocation35], 64, 64, 4
        $region88: #{forward_pallas.1} parent=11 // pred_fallthru
          _
        // Predicated region
        $region89: #{forward_pallas.1} parent=11 // pred_check
          %p1181 = pneg %p631
        $region90: #{forward_pallas.1} parent=11 // pred_check_branch
          %1183 = sbr.rel (%p1181) target = $region92
        $region91: #{forward_pallas.1} parent=11 // pred_region
          %s1185 = ssub.s32 48, 48
          %1186 = vsyncadd [#allocation35], %s1185
          %s1188 = sshll.u32 [#allocation36], 4
          %s1189 = int_to_ptr.vmem [resolvable:$true] %s1188
          %1191 = dma.hbm_to_vmem [thread:$0]  %s47, 48, %s1189, [#allocation35]
        $region92: #{forward_pallas.1} parent=11 // pred_fallthru
          _
        // Predicated region
        $region93: #{forward_pallas.1} parent=11 // pred_check
          %p1192 = pneg %p652
        $region94: #{forward_pallas.1} parent=11 // pred_check_branch
          %1194 = sbr.rel (%p1192) target = $region96
        $region95: #{forward_pallas.1} parent=11 // pred_region
          %s1196 = ssub.s32 48, 48
          %1197 = vsyncadd [#allocation38], %s1196
          %s1199 = sshll.u32 [#allocation37], 4
          %s1200 = int_to_ptr.vmem [resolvable:$true] %s1199
          %1202 = dma.hbm_to_vmem [thread:$0]  %s49, 48, %s1200, [#allocation38]
        $region96: #{forward_pallas.1} parent=11 // pred_fallthru
          _
        // Predicated region
        $region97: #{forward_pallas.1} parent=11 // pred_check
          %p1203 = pneg %p673
        $region98: #{forward_pallas.1} parent=11 // pred_check_branch
          %1205 = sbr.rel (%p1203) target = $region100
        $region99: #{forward_pallas.1} parent=11 // pred_region
          %s1207 = ssub.s32 48, 48
          %1208 = vsyncadd [#allocation38], %s1207
          %s1210 = sshll.u32 [#allocation39], 4
          %s1211 = int_to_ptr.vmem [resolvable:$true] %s1210
          %1213 = dma.hbm_to_vmem [thread:$0]  %s51, 48, %s1211, [#allocation38]
        $region100: #{forward_pallas.1} parent=11 // pred_fallthru
          _
        // Predicated region
        $region101: #{forward_pallas.1} parent=11 // pred_check
          %p1214 = pneg %p694
        $region102: #{forward_pallas.1} parent=11 // pred_check_branch
          %1216 = sbr.rel (%p1214) target = $region104
        $region103: #{forward_pallas.1} parent=11 // pred_region
          %s1218 = ssub.s32 9216, 9216
          %1219 = vsyncadd [#allocation41], %s1218
          %s1220 = sshll.u32 [#allocation40], 4
          %s1221 = int_to_ptr.vmem [resolvable:$true] %s1220
          %1226 = dma.hbm_to_vmem [thread:$0]  %s53, 9216, %s1221, [#allocation41], 192, 192, 12
        $region104: #{forward_pallas.1} parent=11 // pred_fallthru
          _
        // Predicated region
        $region105: #{forward_pallas.1} parent=11 // pred_check
          %p1227 = pneg %p715
        $region106: #{forward_pallas.1} parent=11 // pred_check_branch
          %1229 = sbr.rel (%p1227) target = $region108
        $region107: #{forward_pallas.1} parent=11 // pred_region
          %s1231 = ssub.s32 3072, 3072
          %1232 = vsyncadd [#allocation41], %s1231
          %s1233 = sshll.u32 [#allocation42], 4
          %s1234 = int_to_ptr.vmem [resolvable:$true] %s1233
          %1239 = dma.hbm_to_vmem [thread:$0]  %s55, 3072, %s1234, [#allocation41], 64, 64, 4
        $region108: #{forward_pallas.1} parent=11 // pred_fallthru
          _
        // Predicated region
        $region109: #{forward_pallas.1} parent=11 // pred_check
          %p1240 = pneg %p736
        $region110: #{forward_pallas.1} parent=11 // pred_check_branch
          %1242 = sbr.rel (%p1240) target = $region112
        $region111: #{forward_pallas.1} parent=11 // pred_region
          %s1244 = ssub.s32 48, 48
          %1245 = vsyncadd [#allocation44], %s1244
          %s1247 = sshll.u32 [#allocation43], 4
          %s1248 = int_to_ptr.vmem [resolvable:$true] %s1247
          %1250 = dma.hbm_to_vmem [thread:$0]  %s57, 48, %s1248, [#allocation44]
        $region112: #{forward_pallas.1} parent=11 // pred_fallthru
          _
        // Predicated region
        $region113: #{forward_pallas.1} parent=11 // pred_check
          %p1251 = pneg %p757
        $region114: #{forward_pallas.1} parent=11 // pred_check_branch
          %1253 = sbr.rel (%p1251) target = $region116
        $region115: #{forward_pallas.1} parent=11 // pred_region
          %s1255 = ssub.s32 48, 48
          %1256 = vsyncadd [#allocation44], %s1255
          %s1258 = sshll.u32 [#allocation45], 4
          %s1259 = int_to_ptr.vmem [resolvable:$true] %s1258
          %1261 = dma.hbm_to_vmem [thread:$0]  %s59, 48, %s1259, [#allocation44]
        $region116: #{forward_pallas.1} parent=11 // pred_fallthru
          _
        // Predicated region
        $region117: #{forward_pallas.1} parent=11 // pred_check
          %p1262 = pneg %p778
        $region118: #{forward_pallas.1} parent=11 // pred_check_branch
          %1264 = sbr.rel (%p1262) target = $region120
        $region119: #{forward_pallas.1} parent=11 // pred_region
          %s1266 = ssub.s32 48, 48
          %1267 = vsyncadd [#allocation47], %s1266
          %s1269 = sshll.u32 [#allocation46], 4
          %s1270 = int_to_ptr.vmem [resolvable:$true] %s1269
          %1272 = dma.hbm_to_vmem [thread:$0]  %s61, 48, %s1270, [#allocation47]
        $region120: #{forward_pallas.1} parent=11 // pred_fallthru
          _
        // Predicated region
        $region121: #{forward_pallas.1} parent=11 // pred_check
          %p1273 = pneg %p799
        $region122: #{forward_pallas.1} parent=11 // pred_check_branch
          %1275 = sbr.rel (%p1273) target = $region124
        $region123: #{forward_pallas.1} parent=11 // pred_region
          %s1277 = ssub.s32 2048, 2048
          %1278 = vsyncadd [#allocation47], %s1277
          %s1279 = sshll.u32 [#allocation48], 4
          %s1280 = int_to_ptr.vmem [resolvable:$true] %s1279
          %1285 = dma.hbm_to_vmem [thread:$0]  %s63, 2048, %s1280, [#allocation47], 128, 128, 8
        $region124: #{forward_pallas.1} parent=11 // pred_fallthru
          _
        // Predicated region
        $region125: #{forward_pallas.1} parent=11 // pred_check
          %p1286 = pneg %p820
        $region126: #{forward_pallas.1} parent=11 // pred_check_branch
          %1288 = sbr.rel (%p1286) target = $region128
        $region127: #{forward_pallas.1} parent=11 // pred_region
          %s1290 = ssub.s32 6144, 6144
          %1291 = vsyncadd [#allocation50], %s1290
          %s1292 = sshll.u32 [#allocation49], 4
          %s1293 = int_to_ptr.vmem [resolvable:$true] %s1292
          %1298 = dma.hbm_to_vmem [thread:$0]  %s65, 6144, %s1293, [#allocation50], 128, 128, 8
        $region128: #{forward_pallas.1} parent=11 // pred_fallthru
          _
        // Predicated region
        $region129: #{forward_pallas.1} parent=11 // pred_check
          %p1299 = pneg %p841
        $region130: #{forward_pallas.1} parent=11 // pred_check_branch
          %1301 = sbr.rel (%p1299) target = $region132
        $region131: #{forward_pallas.1} parent=11 // pred_region
          %s1303 = ssub.s32 32, 32
          %1304 = vsyncadd [#allocation50], %s1303
          %s1306 = sshll.u32 [#allocation51], 4
          %s1307 = int_to_ptr.vmem [resolvable:$true] %s1306
          %1309 = dma.hbm_to_vmem [thread:$0]  %s67, 32, %s1307, [#allocation50]
        $region132: #{forward_pallas.1} parent=11 // pred_fallthru
          _
        // Predicated region
        $region133: #{forward_pallas.1} parent=11 // pred_check
          %p1310 = pneg %p862
        $region134: #{forward_pallas.1} parent=11 // pred_check_branch
          %1312 = sbr.rel (%p1310) target = $region136
        $region135: #{forward_pallas.1} parent=11 // pred_region
          %s1314 = ssub.s32 2048, 2048
          %1315 = vsyncadd [#allocation53], %s1314
          %s1316 = sshll.u32 [#allocation52], 4
          %s1317 = int_to_ptr.vmem [resolvable:$true] %s1316
          %1322 = dma.hbm_to_vmem [thread:$0]  %s69, 2048, %s1317, [#allocation53], 64, 64, 4
        $region136: #{forward_pallas.1} parent=11 // pred_fallthru
          _
        // Predicated region
        $region137: #{forward_pallas.1} parent=11 // pred_check
          %p1323 = pneg %p883
        $region138: #{forward_pallas.1} parent=11 // pred_check_branch
          %1325 = sbr.rel (%p1323) target = $region140
        $region139: #{forward_pallas.1} parent=11 // pred_region
          %s1327 = ssub.s32 16, 16
          %1328 = vsyncadd [#allocation53], %s1327
          %s1330 = sshll.u32 [#allocation54], 4
          %s1331 = int_to_ptr.vmem [resolvable:$true] %s1330
          %1333 = dma.hbm_to_vmem [thread:$0]  %s71, 16, %s1331, [#allocation53]
        $region140: #{forward_pallas.1} parent=11 // pred_fallthru
          _
        // Predicated region
        $region141: #{forward_pallas.1} parent=11 // pred_check
          %p1334 = pneg %p904
        $region142: #{forward_pallas.1} parent=11 // pred_check_branch
          %1336 = sbr.rel (%p1334) target = $region144
        $region143: #{forward_pallas.1} parent=11 // pred_region
          _
        $region144: #{forward_pallas.1} parent=11 // pred_fallthru
          _
        // Predicated region
        $region145: #{forward_pallas.1} parent=11 // pred_check
          %p1337 = pneg %p925
        $region146: #{forward_pallas.1} parent=11 // pred_check_branch
          %1339 = sbr.rel (%p1337) target = $region148
        $region147: #{forward_pallas.1} parent=11 // pred_region
          _
        $region148: #{forward_pallas.1} parent=11 // pred_fallthru
          _
      $region12: #{forward_pallas.1} parent=5 // pred_fallthru
        _
      %p1340 = scmp.lt.s32.totalorder %s107, 4
      // Predicated region
      $region149: #{forward_pallas.1} parent=5 // pred_check
        %p1341 = pneg %p1340
      $region150: #{forward_pallas.1} parent=5 // pred_check_branch
        %1343 = sbr.rel (%p1341) target = $region152
      $region151: #{forward_pallas.1} parent=5 // pred_region
        // Predicated region
        $region153: #{forward_pallas.1} parent=151 // pred_check
          %p1344 = pneg %p127
        $region154: #{forward_pallas.1} parent=151 // pred_check_branch
          %1346 = sbr.rel (%p1344) target = $region156
        $region155: #{forward_pallas.1} parent=151 // pred_region
          %s1347 = sand.u32 %s117, 1
          %s1348 = scalar_lea.sflag [#allocation3], %s1347
          %s1349 = sand.u32 %s117, 1
          %s1350 = smul.addr %s1349, 16
          %s1351 = scalar_lea.vmem [#allocation2], %s1350
          %s1353 = ssub.s32 256, 256
          %1354 = vsyncadd %s1348, %s1353
          %s1355 = smul.addr %s107, 2
          %s1356 = smul.addr %s1355, 128
          %s1357 = scalar_lea.hbm %s1, %s1356
          %s1358 = sshll.u32 %s1351, 4
          %s1359 = int_to_ptr.vmem [resolvable:$true] %s1358
          %1364 = dma.hbm_to_vmem [thread:$0]  %s1357, 256, %s1359, %s1348, 128, 128, 8
        $region156: #{forward_pallas.1} parent=151 // pred_fallthru
          _
        // Predicated region
        $region157: #{forward_pallas.1} parent=151 // pred_check
          %p1365 = pneg %p153
        $region158: #{forward_pallas.1} parent=151 // pred_check_branch
          %1367 = sbr.rel (%p1365) target = $region160
        $region159: #{forward_pallas.1} parent=151 // pred_region
          %s1368 = sand.u32 %s107, 1
          %s1369 = scalar_lea.sflag [#allocation5], %s1368
          %s1370 = sand.u32 %s143, 1
          %s1371 = smul.addr %s1370, 16
          %s1372 = scalar_lea.vmem [#allocation4], %s1371
          %s1374 = ssub.s32 256, 256
          %1375 = vsyncadd %s1369, %s1374
          %s1376 = smul.addr %s107, 2
          %s1377 = smul.addr %s1376, 128
          %s1378 = scalar_lea.hbm %s3, %s1377
          %s1379 = sshll.u32 %s1372, 4
          %s1380 = int_to_ptr.vmem [resolvable:$true] %s1379
          %1385 = dma.hbm_to_vmem [thread:$0]  %s1378, 256, %s1380, %s1369, 128, 128, 8
        $region160: #{forward_pallas.1} parent=151 // pred_fallthru
          _
        // Predicated region
        $region161: #{forward_pallas.1} parent=151 // pred_check
          %p1386 = pneg %p179
        $region162: #{forward_pallas.1} parent=151 // pred_check_branch
          %1388 = sbr.rel (%p1386) target = $region164
        $region163: #{forward_pallas.1} parent=151 // pred_region
          %s1389 = sand.u32 %s107, 1
          %s1390 = scalar_lea.sflag [#allocation5], %s1389
          %s1391 = sand.u32 %s169, 1
          %s1392 = smul.addr %s1391, 2
          %s1393 = scalar_lea.vmem [#allocation6], %s1392
          %s1395 = ssub.s32 32, 32
          %1396 = vsyncadd %s1390, %s1395
          %s1397 = smul.addr %s107, 32
          %s1398 = scalar_lea.hbm %s5, %s1397
          %s1400 = sshll.u32 %s1393, 4
          %s1401 = int_to_ptr.vmem [resolvable:$true] %s1400
          %1403 = dma.hbm_to_vmem [thread:$0]  %s1398, 32, %s1401, %s1390
        $region164: #{forward_pallas.1} parent=151 // pred_fallthru
          _
        // Predicated region
        $region165: #{forward_pallas.1} parent=151 // pred_check
          %p1404 = pneg %p205
        $region166: #{forward_pallas.1} parent=151 // pred_check_branch
          %1406 = sbr.rel (%p1404) target = $region168
        $region167: #{forward_pallas.1} parent=151 // pred_region
          %s1407 = sand.u32 %s107, 1
          %s1408 = scalar_lea.sflag [#allocation8], %s1407
          %s1409 = sand.u32 %s195, 1
          %s1410 = smul.addr %s1409, 48
          %s1411 = scalar_lea.vmem [#allocation7], %s1410
          %s1413 = ssub.s32 768, 768
          %1414 = vsyncadd %s1408, %s1413
          %s1415 = smul.addr %s107, 6
          %s1416 = smul.addr %s1415, 128
          %s1417 = scalar_lea.hbm %s7, %s1416
          %s1418 = sshll.u32 %s1411, 4
          %s1419 = int_to_ptr.vmem [resolvable:$true] %s1418
          %1424 = dma.hbm_to_vmem [thread:$0]  %s1417, 768, %s1419, %s1408, 384, 384, 24
        $region168: #{forward_pallas.1} parent=151 // pred_fallthru
          _
      $region152: #{forward_pallas.1} parent=5 // pred_fallthru
        _
      %p1425 = scmp.le.s32.totalorder 1, %s107
      %p1426 = scmp.lt.s32.totalorder %s107, 5
      %p1427 = pnand %p1425, %p1426
      %p1428 = pneg %p1427
      // Predicated region
      $region169: #{forward_pallas.1} parent=5 // pred_check
        _
      $region170: #{forward_pallas.1} parent=5 // pred_check_branch
        %1430 = sbr.rel (%p1427) target = $region172
      $region171: #{forward_pallas.1} parent=5 // pred_region
        %s1431 = ssub.s32 %s107, 1
        %s1432 = sand.u32 %s120, 1
        %s1433 = scalar_lea.sflag [#allocation3], %s1432
        %s1434 = sand.u32 %s120, 1
        %s1435 = smul.addr %s1434, 16
        %s1436 = scalar_lea.vmem [#allocation2], %s1435
        // Predicated region
        $region173: #{forward_pallas.1} parent=171 // pred_check
          %p1437 = pneg %p133
        $region174: #{forward_pallas.1} parent=171 // pred_check_branch
          %1439 = sbr.rel (%p1437) target = $region176
        $region175: #{forward_pallas.1} parent=171 // pred_region
          %1440 = dma.done %s1433, 256
        $region176: #{forward_pallas.1} parent=171 // pred_fallthru
          _
        %s1441 = sand.u32 %s112, 1
        %s1442 = scalar_lea.sflag [#allocation5], %s1441
        %s1443 = sand.u32 %s146, 1
        %s1444 = smul.addr %s1443, 16
        %s1445 = scalar_lea.vmem [#allocation4], %s1444
        // Predicated region
        $region177: #{forward_pallas.1} parent=171 // pred_check
          %p1446 = pneg %p159
        $region178: #{forward_pallas.1} parent=171 // pred_check_branch
          %1448 = sbr.rel (%p1446) target = $region180
        $region179: #{forward_pallas.1} parent=171 // pred_region
          %1449 = dma.done %s1442, 256
        $region180: #{forward_pallas.1} parent=171 // pred_fallthru
          _
        %s1450 = sand.u32 %s112, 1
        %s1451 = scalar_lea.sflag [#allocation5], %s1450
        %s1452 = sand.u32 %s172, 1
        %s1453 = smul.addr %s1452, 2
        %s1454 = scalar_lea.vmem [#allocation6], %s1453
        // Predicated region
        $region181: #{forward_pallas.1} parent=171 // pred_check
          %p1455 = pneg %p185
        $region182: #{forward_pallas.1} parent=171 // pred_check_branch
          %1457 = sbr.rel (%p1455) target = $region184
        $region183: #{forward_pallas.1} parent=171 // pred_region
          %1458 = dma.done %s1451, 32
        $region184: #{forward_pallas.1} parent=171 // pred_fallthru
          _
        %s1459 = sand.u32 %s112, 1
        %s1460 = scalar_lea.sflag [#allocation8], %s1459
        %s1461 = sand.u32 %s198, 1
        %s1462 = smul.addr %s1461, 48
        %s1463 = scalar_lea.vmem [#allocation7], %s1462
        // Predicated region
        $region185: #{forward_pallas.1} parent=171 // pred_check
          %p1464 = pneg %p211
        $region186: #{forward_pallas.1} parent=171 // pred_check_branch
          %1466 = sbr.rel (%p1464) target = $region188
        $region187: #{forward_pallas.1} parent=171 // pred_region
          %1467 = dma.done %s1460, 768
        $region188: #{forward_pallas.1} parent=171 // pred_fallthru
          _
        // Predicated region
        $region189: #{forward_pallas.1} parent=171 // pred_check
          %p1468 = pneg %p232
        $region190: #{forward_pallas.1} parent=171 // pred_check_branch
          %1470 = sbr.rel (%p1468) target = $region192
        $region191: #{forward_pallas.1} parent=171 // pred_region
          %1471 = dma.done [#allocation8], 6144
        $region192: #{forward_pallas.1} parent=171 // pred_fallthru
          _
        // Predicated region
        $region193: #{forward_pallas.1} parent=171 // pred_check
          %p1472 = pneg %p253
        $region194: #{forward_pallas.1} parent=171 // pred_check_branch
          %1474 = sbr.rel (%p1472) target = $region196
        $region195: #{forward_pallas.1} parent=171 // pred_region
          %1475 = dma.done [#allocation11], 32
        $region196: #{forward_pallas.1} parent=171 // pred_fallthru
          _
        // Predicated region
        $region197: #{forward_pallas.1} parent=171 // pred_check
          %p1476 = pneg %p274
        $region198: #{forward_pallas.1} parent=171 // pred_check_branch
          %1478 = sbr.rel (%p1476) target = $region200
        $region199: #{forward_pallas.1} parent=171 // pred_region
          %1479 = dma.done [#allocation11], 32
        $region200: #{forward_pallas.1} parent=171 // pred_fallthru
          _
        // Predicated region
        $region201: #{forward_pallas.1} parent=171 // pred_check
          %p1480 = pneg %p295
        $region202: #{forward_pallas.1} parent=171 // pred_check_branch
          %1482 = sbr.rel (%p1480) target = $region204
        $region203: #{forward_pallas.1} parent=171 // pred_region
          %1483 = dma.done [#allocation14], 32
        $region204: #{forward_pallas.1} parent=171 // pred_fallthru
          _
        // Predicated region
        $region205: #{forward_pallas.1} parent=171 // pred_check
          %p1484 = pneg %p316
        $region206: #{forward_pallas.1} parent=171 // pred_check_branch
          %1486 = sbr.rel (%p1484) target = $region208
        $region207: #{forward_pallas.1} parent=171 // pred_region
          %1487 = dma.done [#allocation14], 2048
        $region208: #{forward_pallas.1} parent=171 // pred_fallthru
          _
        // Predicated region
        $region209: #{forward_pallas.1} parent=171 // pred_check
          %p1488 = pneg %p358
        $region210: #{forward_pallas.1} parent=171 // pred_check_branch
          %1490 = sbr.rel (%p1488) target = $region212
        $region211: #{forward_pallas.1} parent=171 // pred_region
          %1491 = dma.done [#allocation17], 16
        $region212: #{forward_pallas.1} parent=171 // pred_fallthru
          _
        // Predicated region
        $region213: #{forward_pallas.1} parent=171 // pred_check
          %p1492 = pneg %p379
        $region214: #{forward_pallas.1} parent=171 // pred_check_branch
          %1494 = sbr.rel (%p1492) target = $region216
        $region215: #{forward_pallas.1} parent=171 // pred_region
          %1495 = dma.done [#allocation17], 16
        $region216: #{forward_pallas.1} parent=171 // pred_fallthru
          _
        // Predicated region
        $region217: #{forward_pallas.1} parent=171 // pred_check
          %p1496 = pneg %p400
        $region218: #{forward_pallas.1} parent=171 // pred_check_branch
          %1498 = sbr.rel (%p1496) target = $region220
        $region219: #{forward_pallas.1} parent=171 // pred_region
          %1499 = dma.done [#allocation20], 1024
        $region220: #{forward_pallas.1} parent=171 // pred_fallthru
          _
        // Predicated region
        $region221: #{forward_pallas.1} parent=171 // pred_check
          %p1500 = pneg %p421
        $region222: #{forward_pallas.1} parent=171 // pred_check_branch
          %1502 = sbr.rel (%p1500) target = $region224
        $region223: #{forward_pallas.1} parent=171 // pred_region
          %1503 = dma.done [#allocation20], 16
        $region224: #{forward_pallas.1} parent=171 // pred_fallthru
          _
        // Predicated region
        $region225: #{forward_pallas.1} parent=171 // pred_check
          %p1504 = pneg %p442
        $region226: #{forward_pallas.1} parent=171 // pred_check_branch
          %1506 = sbr.rel (%p1504) target = $region228
        $region227: #{forward_pallas.1} parent=171 // pred_region
          %1507 = dma.done [#allocation23], 16
        $region228: #{forward_pallas.1} parent=171 // pred_fallthru
          _
        // Predicated region
        $region229: #{forward_pallas.1} parent=171 // pred_check
          %p1508 = pneg %p463
        $region230: #{forward_pallas.1} parent=171 // pred_check_branch
          %1510 = sbr.rel (%p1508) target = $region232
        $region231: #{forward_pallas.1} parent=171 // pred_region
          %1511 = dma.done [#allocation23], 16
        $region232: #{forward_pallas.1} parent=171 // pred_fallthru
          _
        // Predicated region
        $region233: #{forward_pallas.1} parent=171 // pred_check
          %p1512 = pneg %p484
        $region234: #{forward_pallas.1} parent=171 // pred_check_branch
          %1514 = sbr.rel (%p1512) target = $region236
        $region235: #{forward_pallas.1} parent=171 // pred_region
          %1515 = dma.done [#allocation26], 18432
        $region236: #{forward_pallas.1} parent=171 // pred_fallthru
          _
        // Predicated region
        $region237: #{forward_pallas.1} parent=171 // pred_check
          %p1516 = pneg %p505
        $region238: #{forward_pallas.1} parent=171 // pred_check_branch
          %1518 = sbr.rel (%p1516) target = $region240
        $region239: #{forward_pallas.1} parent=171 // pred_region
          %1519 = dma.done [#allocation26], 6144
        $region240: #{forward_pallas.1} parent=171 // pred_fallthru
          _
        // Predicated region
        $region241: #{forward_pallas.1} parent=171 // pred_check
          %p1520 = pneg %p526
        $region242: #{forward_pallas.1} parent=171 // pred_check_branch
          %1522 = sbr.rel (%p1520) target = $region244
        $region243: #{forward_pallas.1} parent=171 // pred_region
          %1523 = dma.done [#allocation29], 96
        $region244: #{forward_pallas.1} parent=171 // pred_fallthru
          _
        // Predicated region
        $region245: #{forward_pallas.1} parent=171 // pred_check
          %p1524 = pneg %p547
        $region246: #{forward_pallas.1} parent=171 // pred_check_branch
          %1526 = sbr.rel (%p1524) target = $region248
        $region247: #{forward_pallas.1} parent=171 // pred_region
          %1527 = dma.done [#allocation29], 96
        $region248: #{forward_pallas.1} parent=171 // pred_fallthru
          _
        // Predicated region
        $region249: #{forward_pallas.1} parent=171 // pred_check
          %p1528 = pneg %p568
        $region250: #{forward_pallas.1} parent=171 // pred_check_branch
          %1530 = sbr.rel (%p1528) target = $region252
        $region251: #{forward_pallas.1} parent=171 // pred_region
          %1531 = dma.done [#allocation32], 96
        $region252: #{forward_pallas.1} parent=171 // pred_fallthru
          _
        // Predicated region
        $region253: #{forward_pallas.1} parent=171 // pred_check
          %p1532 = pneg %p589
        $region254: #{forward_pallas.1} parent=171 // pred_check_branch
          %1534 = sbr.rel (%p1532) target = $region256
        $region255: #{forward_pallas.1} parent=171 // pred_region
          %1535 = dma.done [#allocation32], 18432
        $region256: #{forward_pallas.1} parent=171 // pred_fallthru
          _
        // Predicated region
        $region257: #{forward_pallas.1} parent=171 // pred_check
          %p1536 = pneg %p610
        $region258: #{forward_pallas.1} parent=171 // pred_check_branch
          %1538 = sbr.rel (%p1536) target = $region260
        $region259: #{forward_pallas.1} parent=171 // pred_region
          %1539 = dma.done [#allocation35], 3072
        $region260: #{forward_pallas.1} parent=171 // pred_fallthru
          _
        // Predicated region
        $region261: #{forward_pallas.1} parent=171 // pred_check
          %p1540 = pneg %p631
        $region262: #{forward_pallas.1} parent=171 // pred_check_branch
          %1542 = sbr.rel (%p1540) target = $region264
        $region263: #{forward_pallas.1} parent=171 // pred_region
          %1543 = dma.done [#allocation35], 48
        $region264: #{forward_pallas.1} parent=171 // pred_fallthru
          _
        // Predicated region
        $region265: #{forward_pallas.1} parent=171 // pred_check
          %p1544 = pneg %p652
        $region266: #{forward_pallas.1} parent=171 // pred_check_branch
          %1546 = sbr.rel (%p1544) target = $region268
        $region267: #{forward_pallas.1} parent=171 // pred_region
          %1547 = dma.done [#allocation38], 48
        $region268: #{forward_pallas.1} parent=171 // pred_fallthru
          _
        // Predicated region
        $region269: #{forward_pallas.1} parent=171 // pred_check
          %p1548 = pneg %p673
        $region270: #{forward_pallas.1} parent=171 // pred_check_branch
          %1550 = sbr.rel (%p1548) target = $region272
        $region271: #{forward_pallas.1} parent=171 // pred_region
          %1551 = dma.done [#allocation38], 48
        $region272: #{forward_pallas.1} parent=171 // pred_fallthru
          _
        // Predicated region
        $region273: #{forward_pallas.1} parent=171 // pred_check
          %p1552 = pneg %p694
        $region274: #{forward_pallas.1} parent=171 // pred_check_branch
          %1554 = sbr.rel (%p1552) target = $region276
        $region275: #{forward_pallas.1} parent=171 // pred_region
          %1555 = dma.done [#allocation41], 9216
        $region276: #{forward_pallas.1} parent=171 // pred_fallthru
          _
        // Predicated region
        $region277: #{forward_pallas.1} parent=171 // pred_check
          %p1556 = pneg %p715
        $region278: #{forward_pallas.1} parent=171 // pred_check_branch
          %1558 = sbr.rel (%p1556) target = $region280
        $region279: #{forward_pallas.1} parent=171 // pred_region
          %1559 = dma.done [#allocation41], 3072
        $region280: #{forward_pallas.1} parent=171 // pred_fallthru
          _
        // Predicated region
        $region281: #{forward_pallas.1} parent=171 // pred_check
          %p1560 = pneg %p736
        $region282: #{forward_pallas.1} parent=171 // pred_check_branch
          %1562 = sbr.rel (%p1560) target = $region284
        $region283: #{forward_pallas.1} parent=171 // pred_region
          %1563 = dma.done [#allocation44], 48
        $region284: #{forward_pallas.1} parent=171 // pred_fallthru
          _
        // Predicated region
        $region285: #{forward_pallas.1} parent=171 // pred_check
          %p1564 = pneg %p757
        $region286: #{forward_pallas.1} parent=171 // pred_check_branch
          %1566 = sbr.rel (%p1564) target = $region288
        $region287: #{forward_pallas.1} parent=171 // pred_region
          %1567 = dma.done [#allocation44], 48
        $region288: #{forward_pallas.1} parent=171 // pred_fallthru
          _
        // Predicated region
        $region289: #{forward_pallas.1} parent=171 // pred_check
          %p1568 = pneg %p778
        $region290: #{forward_pallas.1} parent=171 // pred_check_branch
          %1570 = sbr.rel (%p1568) target = $region292
        $region291: #{forward_pallas.1} parent=171 // pred_region
          %1571 = dma.done [#allocation47], 48
        $region292: #{forward_pallas.1} parent=171 // pred_fallthru
          _
        // Predicated region
        $region293: #{forward_pallas.1} parent=171 // pred_check
          %p1572 = pneg %p799
        $region294: #{forward_pallas.1} parent=171 // pred_check_branch
          %1574 = sbr.rel (%p1572) target = $region296
        $region295: #{forward_pallas.1} parent=171 // pred_region
          %1575 = dma.done [#allocation47], 2048
        $region296: #{forward_pallas.1} parent=171 // pred_fallthru
          _
        // Predicated region
        $region297: #{forward_pallas.1} parent=171 // pred_check
          %p1576 = pneg %p820
        $region298: #{forward_pallas.1} parent=171 // pred_check_branch
          %1578 = sbr.rel (%p1576) target = $region300
        $region299: #{forward_pallas.1} parent=171 // pred_region
          %1579 = dma.done [#allocation50], 6144
        $region300: #{forward_pallas.1} parent=171 // pred_fallthru
          _
        // Predicated region
        $region301: #{forward_pallas.1} parent=171 // pred_check
          %p1580 = pneg %p841
        $region302: #{forward_pallas.1} parent=171 // pred_check_branch
          %1582 = sbr.rel (%p1580) target = $region304
        $region303: #{forward_pallas.1} parent=171 // pred_region
          %1583 = dma.done [#allocation50], 32
        $region304: #{forward_pallas.1} parent=171 // pred_fallthru
          _
        // Predicated region
        $region305: #{forward_pallas.1} parent=171 // pred_check
          %p1584 = pneg %p862
        $region306: #{forward_pallas.1} parent=171 // pred_check_branch
          %1586 = sbr.rel (%p1584) target = $region308
        $region307: #{forward_pallas.1} parent=171 // pred_region
          %1587 = dma.done [#allocation53], 2048
        $region308: #{forward_pallas.1} parent=171 // pred_fallthru
          _
        // Predicated region
        $region309: #{forward_pallas.1} parent=171 // pred_check
          %p1588 = pneg %p883
        $region310: #{forward_pallas.1} parent=171 // pred_check_branch
          %1590 = sbr.rel (%p1588) target = $region312
        $region311: #{forward_pallas.1} parent=171 // pred_region
          %1591 = dma.done [#allocation53], 16
        $region312: #{forward_pallas.1} parent=171 // pred_fallthru
          _
        %s1592 = sand.u32 %s120, 1
        %s1593 = scalar_lea.sflag [#allocation3], %s1592
        %s1594 = sand.u32 %s120, 1
        %s1595 = smul.addr %s1594, 16
        %s1596 = scalar_lea.vmem [#allocation2], %s1595
        %p1597 = pneg %p133
        %p1598 = pneg %p130
        %s1599 = sand.u32 %s112, 1
        %s1600 = scalar_lea.sflag [#allocation5], %s1599
        %s1601 = sand.u32 %s146, 1
        %s1602 = smul.addr %s1601, 16
        %s1603 = scalar_lea.vmem [#allocation4], %s1602
        %p1604 = pneg %p159
        %p1605 = pneg %p156
        %s1606 = sand.u32 %s112, 1
        %s1607 = scalar_lea.sflag [#allocation5], %s1606
        %s1608 = sand.u32 %s172, 1
        %s1609 = smul.addr %s1608, 2
        %s1610 = scalar_lea.vmem [#allocation6], %s1609
        %p1611 = pneg %p185
        %p1612 = pneg %p182
        %s1613 = sand.u32 %s112, 1
        %s1614 = scalar_lea.sflag [#allocation8], %s1613
        %s1615 = sand.u32 %s198, 1
        %s1616 = smul.addr %s1615, 48
        %s1617 = scalar_lea.vmem [#allocation7], %s1616
        %p1618 = pneg %p211
        %p1619 = pneg %p208
        %p1620 = pneg %p232
        %p1621 = pneg %p229
        %p1622 = pneg %p253
        %p1623 = pneg %p250
        %p1624 = pneg %p274
        %p1625 = pneg %p271
        %p1626 = pneg %p295
        %p1627 = pneg %p292
        %p1628 = pneg %p316
        %p1629 = pneg %p313
        %p1630 = pneg %p337
        %p1631 = pneg %p334
        %p1632 = pneg %p358
        %p1633 = pneg %p355
        %p1634 = pneg %p379
        %p1635 = pneg %p376
        %p1636 = pneg %p400
        %p1637 = pneg %p397
        %p1638 = pneg %p421
        %p1639 = pneg %p418
        %p1640 = pneg %p442
        %p1641 = pneg %p439
        %p1642 = pneg %p463
        %p1643 = pneg %p460
        %p1644 = pneg %p484
        %p1645 = pneg %p481
        %p1646 = pneg %p505
        %p1647 = pneg %p502
        %p1648 = pneg %p526
        %p1649 = pneg %p523
        %p1650 = pneg %p547
        %p1651 = pneg %p544
        %p1652 = pneg %p568
        %p1653 = pneg %p565
        %p1654 = pneg %p589
        %p1655 = pneg %p586
        %p1656 = pneg %p610
        %p1657 = pneg %p607
        %p1658 = pneg %p631
        %p1659 = pneg %p628
        %p1660 = pneg %p652
        %p1661 = pneg %p649
        %p1662 = pneg %p673
        %p1663 = pneg %p670
        %p1664 = pneg %p694
        %p1665 = pneg %p691
        %p1666 = pneg %p715
        %p1667 = pneg %p712
        %p1668 = pneg %p736
        %p1669 = pneg %p733
        %p1670 = pneg %p757
        %p1671 = pneg %p754
        %p1672 = pneg %p778
        %p1673 = pneg %p775
        %p1674 = pneg %p799
        %p1675 = pneg %p796
        %p1676 = pneg %p820
        %p1677 = pneg %p817
        %p1678 = pneg %p841
        %p1679 = pneg %p838
        %p1680 = pneg %p862
        %p1681 = pneg %p859
        %p1682 = pneg %p883
        %p1683 = pneg %p880
        %p1684 = pneg %p904
        %p1685 = pneg %p901
        %p1686 = pneg %p925
        %p1687 = pneg %p922
        %p1688 = pneg %p951
        %p1689 = pneg %p948
        %p1690 = scmp.lt.s32.totalorder %s112, 3
        %s1691 = scalar_select %p1690, %s112, 3
        %s1692 = smul.addr %s1691, 2
        %s1693 = scalar_lea.vmem %s77, %s1692
        %p1694 = scmp.lt.s32.totalorder %s112, 3
        %s1695 = scalar_select %p1694, %s112, 3
        %s1696 = smul.addr %s1695, 2
        %s1697 = scalar_lea.vmem %s77, %s1696
        %v1699 = vld [vmem:[%s1436] sm:$0xff]
        %v1700 = vld [vmem:[%s1436 + $0x8] sm:$0xff]
        %v1701 = vpack.c.bf16 %v1700, %v1699
        %v1702 = vld [vmem:[%s1454] sm:$0x3]
        %v1703 = vpack.c.bf16 %v1702, %v1702
        %v1704 = vld [vmem:[%s1463] sm:$0xff]
        %v1705 = vld [vmem:[%s1463 + $0x8] sm:$0xff]
        %v1706 = vld [vmem:[%s1463 + $0x10] sm:$0xff]
        %v1707 = vld [vmem:[%s1463 + $0x18] sm:$0xff]
        %v1708 = vld [vmem:[%s1463 + $0x20] sm:$0xff]
        %v1709 = vld [vmem:[%s1463 + $0x28] sm:$0xff]
        %v1710 = vld [vmem:[%s1445] sm:$0xff]
        %v1711 = vld [vmem:[%s1445 + $0x8] sm:$0xff]
        %v1712 = vsub.f32 %v1710, 1.0
        %v1713 = vsub.f32 %v1711, 1.0
        %v1714 = vmul.f32 %v1712, 1e+30
        %v1715 = vmul.f32 %v1713, 1e+30
        %v1716 = vpack.c.bf16 %v1707, %v1704
        %v1717 = vpack.c.bf16 %v1708, %v1705
        %v1718 = vpack.c.bf16 %v1709, %v1706
        %v1719 = vld [vmem:[#allocation9] sm:$0xff]
        %v1720 = vld [vmem:[#allocation9 + $0x8] sm:$0xff]
        %v1721 = vld [vmem:[#allocation9 + $0x10] sm:$0xff]
        %v1722 = vld [vmem:[#allocation9 + $0x18] sm:$0xff]
        %v1723 = vld [vmem:[#allocation9 + $0x20] sm:$0xff]
        %v1724 = vld [vmem:[#allocation9 + $0x28] sm:$0xff]
        %v1725 = vld [vmem:[#allocation9 + $0x30] sm:$0xff]
        %v1726 = vld [vmem:[#allocation9 + $0x38] sm:$0xff]
        %v1727 = vld [vmem:[#allocation9 + $0x40] sm:$0xff]
        %v1728 = vld [vmem:[#allocation9 + $0x48] sm:$0xff]
        %v1729 = vld [vmem:[#allocation9 + $0x50] sm:$0xff]
        %v1730 = vld [vmem:[#allocation9 + $0x58] sm:$0xff]
        %v1731 = vld [vmem:[#allocation9 + $0x60] sm:$0xff]
        %v1732 = vld [vmem:[#allocation9 + $0x68] sm:$0xff]
        %v1733 = vld [vmem:[#allocation9 + $0x70] sm:$0xff]
        %v1734 = vld [vmem:[#allocation9 + $0x78] sm:$0xff]
        %v1735 = vld [vmem:[#allocation9 + $0x80] sm:$0xff]
        %v1736 = vld [vmem:[#allocation9 + $0x88] sm:$0xff]
        %v1737 = vld [vmem:[#allocation9 + $0x90] sm:$0xff]
        %v1738 = vld [vmem:[#allocation9 + $0x98] sm:$0xff]
        %v1739 = vld [vmem:[#allocation9 + $0xa0] sm:$0xff]
        %v1740 = vld [vmem:[#allocation9 + $0xa8] sm:$0xff]
        %v1741 = vld [vmem:[#allocation9 + $0xb0] sm:$0xff]
        %v1742 = vld [vmem:[#allocation9 + $0xb8] sm:$0xff]
        %v1743 = vld [vmem:[#allocation9 + $0xc0] sm:$0xff]
        %v1744 = vld [vmem:[#allocation9 + $0xc8] sm:$0xff]
        %v1745 = vld [vmem:[#allocation9 + $0xd0] sm:$0xff]
        %v1746 = vld [vmem:[#allocation9 + $0xd8] sm:$0xff]
        %v1747 = vld [vmem:[#allocation9 + $0xe0] sm:$0xff]
        %v1748 = vld [vmem:[#allocation9 + $0xe8] sm:$0xff]
        %v1749 = vld [vmem:[#allocation9 + $0xf0] sm:$0xff]
        %v1750 = vld [vmem:[#allocation9 + $0xf8] sm:$0xff]
        %v1751 = vld [vmem:[#allocation9 + $0x100] sm:$0xff]
        %v1752 = vld [vmem:[#allocation9 + $0x108] sm:$0xff]
        %v1753 = vld [vmem:[#allocation9 + $0x110] sm:$0xff]
        %v1754 = vld [vmem:[#allocation9 + $0x118] sm:$0xff]
        %v1755 = vld [vmem:[#allocation9 + $0x120] sm:$0xff]
        %v1756 = vld [vmem:[#allocation9 + $0x128] sm:$0xff]
        %v1757 = vld [vmem:[#allocation9 + $0x130] sm:$0xff]
        %v1758 = vld [vmem:[#allocation9 + $0x138] sm:$0xff]
        %v1759 = vld [vmem:[#allocation9 + $0x140] sm:$0xff]
        %v1760 = vld [vmem:[#allocation9 + $0x148] sm:$0xff]
        %v1761 = vld [vmem:[#allocation9 + $0x150] sm:$0xff]
        %v1762 = vld [vmem:[#allocation9 + $0x158] sm:$0xff]
        %v1763 = vld [vmem:[#allocation9 + $0x160] sm:$0xff]
        %v1764 = vld [vmem:[#allocation9 + $0x168] sm:$0xff]
        %v1765 = vld [vmem:[#allocation9 + $0x170] sm:$0xff]
        %v1766 = vld [vmem:[#allocation9 + $0x178] sm:$0xff]
        %v1815 = vunpack.c.l.b16 %v1719
        %v1816 = vunpack.c.h.b16 %v1719
        %v1817 = vunpack.c.l.b16 %v1720
        %v1818 = vunpack.c.h.b16 %v1720
        %v1819 = vunpack.c.l.b16 %v1721
        %v1820 = vunpack.c.h.b16 %v1721
        %v1821 = vunpack.c.l.b16 %v1722
        %v1822 = vunpack.c.h.b16 %v1722
        %v1823 = vunpack.c.l.b16 %v1723
        %v1824 = vunpack.c.h.b16 %v1723
        %v1825 = vunpack.c.l.b16 %v1724
        %v1826 = vunpack.c.h.b16 %v1724
        %v1827 = vunpack.c.l.b16 %v1725
        %v1828 = vunpack.c.h.b16 %v1725
        %v1829 = vunpack.c.l.b16 %v1726
        %v1830 = vunpack.c.h.b16 %v1726
        %v1831 = vunpack.c.l.b16 %v1727
        %v1832 = vunpack.c.h.b16 %v1727
        %v1833 = vunpack.c.l.b16 %v1728
        %v1834 = vunpack.c.h.b16 %v1728
        %v1835 = vunpack.c.l.b16 %v1729
        %v1836 = vunpack.c.h.b16 %v1729
        %v1837 = vunpack.c.l.b16 %v1730
        %v1838 = vunpack.c.h.b16 %v1730
        %v1839 = vunpack.c.l.b16 %v1731
        %v1840 = vunpack.c.h.b16 %v1731
        %v1841 = vunpack.c.l.b16 %v1732
        %v1842 = vunpack.c.h.b16 %v1732
        %v1843 = vunpack.c.l.b16 %v1733
        %v1844 = vunpack.c.h.b16 %v1733
        %v1845 = vunpack.c.l.b16 %v1734
        %v1846 = vunpack.c.h.b16 %v1734
        %v1847 = vunpack.c.l.b16 %v1735
        %v1848 = vunpack.c.h.b16 %v1735
        %v1849 = vunpack.c.l.b16 %v1736
        %v1850 = vunpack.c.h.b16 %v1736
        %v1851 = vunpack.c.l.b16 %v1737
        %v1852 = vunpack.c.h.b16 %v1737
        %v1853 = vunpack.c.l.b16 %v1738
        %v1854 = vunpack.c.h.b16 %v1738
        %v1855 = vunpack.c.l.b16 %v1739
        %v1856 = vunpack.c.h.b16 %v1739
        %v1857 = vunpack.c.l.b16 %v1740
        %v1858 = vunpack.c.h.b16 %v1740
        %v1859 = vunpack.c.l.b16 %v1741
        %v1860 = vunpack.c.h.b16 %v1741
        %v1861 = vunpack.c.l.b16 %v1742
        %v1862 = vunpack.c.h.b16 %v1742
        %v1863 = vunpack.c.l.b16 %v1743
        %v1864 = vunpack.c.h.b16 %v1743
        %v1865 = vunpack.c.l.b16 %v1744
        %v1866 = vunpack.c.h.b16 %v1744
        %v1867 = vunpack.c.l.b16 %v1745
        %v1868 = vunpack.c.h.b16 %v1745
        %v1869 = vunpack.c.l.b16 %v1746
        %v1870 = vunpack.c.h.b16 %v1746
        %v1871 = vunpack.c.l.b16 %v1747
        %v1872 = vunpack.c.h.b16 %v1747
        %v1873 = vunpack.c.l.b16 %v1748
        %v1874 = vunpack.c.h.b16 %v1748
        %v1875 = vunpack.c.l.b16 %v1749
        %v1876 = vunpack.c.h.b16 %v1749
        %v1877 = vunpack.c.l.b16 %v1750
        %v1878 = vunpack.c.h.b16 %v1750
        %v1879 = vunpack.c.l.b16 %v1751
        %v1880 = vunpack.c.h.b16 %v1751
        %v1881 = vunpack.c.l.b16 %v1752
        %v1882 = vunpack.c.h.b16 %v1752
        %v1883 = vunpack.c.l.b16 %v1753
        %v1884 = vunpack.c.h.b16 %v1753
        %v1885 = vunpack.c.l.b16 %v1754
        %v1886 = vunpack.c.h.b16 %v1754
        %v1887 = vunpack.c.l.b16 %v1755
        %v1888 = vunpack.c.h.b16 %v1755
        %v1889 = vunpack.c.l.b16 %v1756
        %v1890 = vunpack.c.h.b16 %v1756
        %v1891 = vunpack.c.l.b16 %v1757
        %v1892 = vunpack.c.h.b16 %v1757
        %v1893 = vunpack.c.l.b16 %v1758
        %v1894 = vunpack.c.h.b16 %v1758
        %v1895 = vunpack.c.l.b16 %v1759
        %v1896 = vunpack.c.h.b16 %v1759
        %v1897 = vunpack.c.l.b16 %v1760
        %v1898 = vunpack.c.h.b16 %v1760
        %v1899 = vunpack.c.l.b16 %v1761
        %v1900 = vunpack.c.h.b16 %v1761
        %v1901 = vunpack.c.l.b16 %v1762
        %v1902 = vunpack.c.h.b16 %v1762
        %v1903 = vunpack.c.l.b16 %v1763
        %v1904 = vunpack.c.h.b16 %v1763
        %v1905 = vunpack.c.l.b16 %v1764
        %v1906 = vunpack.c.h.b16 %v1764
        %v1907 = vunpack.c.l.b16 %v1765
        %v1908 = vunpack.c.h.b16 %v1765
        %v1909 = vunpack.c.l.b16 %v1766
        %v1910 = vunpack.c.h.b16 %v1766
        %v1911 = vpack.c.b16 %v1817, %v1815
        %v1912 = vpack.c.b16 %v1818, %v1816
        %v1913 = vpack.c.b16 %v1821, %v1819
        %v1914 = vpack.c.b16 %v1822, %v1820
        %v1915 = vpack.c.b16 %v1825, %v1823
        %v1916 = vpack.c.b16 %v1826, %v1824
        %v1917 = vpack.c.b16 %v1829, %v1827
        %v1918 = vpack.c.b16 %v1830, %v1828
        %v1919 = vpack.c.b16 %v1833, %v1831
        %v1920 = vpack.c.b16 %v1834, %v1832
        %v1921 = vpack.c.b16 %v1837, %v1835
        %v1922 = vpack.c.b16 %v1838, %v1836
        %v1923 = vpack.c.b16 %v1841, %v1839
        %v1924 = vpack.c.b16 %v1842, %v1840
        %v1925 = vpack.c.b16 %v1845, %v1843
        %v1926 = vpack.c.b16 %v1846, %v1844
        %v1927 = vpack.c.b16 %v1849, %v1847
        %v1928 = vpack.c.b16 %v1850, %v1848
        %v1929 = vpack.c.b16 %v1853, %v1851
        %v1930 = vpack.c.b16 %v1854, %v1852
        %v1931 = vpack.c.b16 %v1857, %v1855
        %v1932 = vpack.c.b16 %v1858, %v1856
        %v1933 = vpack.c.b16 %v1861, %v1859
        %v1934 = vpack.c.b16 %v1862, %v1860
        %v1935 = vpack.c.b16 %v1865, %v1863
        %v1936 = vpack.c.b16 %v1866, %v1864
        %v1937 = vpack.c.b16 %v1869, %v1867
        %v1938 = vpack.c.b16 %v1870, %v1868
        %v1939 = vpack.c.b16 %v1873, %v1871
        %v1940 = vpack.c.b16 %v1874, %v1872
        %v1941 = vpack.c.b16 %v1877, %v1875
        %v1942 = vpack.c.b16 %v1878, %v1876
        %v1943 = vpack.c.b16 %v1881, %v1879
        %v1944 = vpack.c.b16 %v1882, %v1880
        %v1945 = vpack.c.b16 %v1885, %v1883
        %v1946 = vpack.c.b16 %v1886, %v1884
        %v1947 = vpack.c.b16 %v1889, %v1887
        %v1948 = vpack.c.b16 %v1890, %v1888
        %v1949 = vpack.c.b16 %v1893, %v1891
        %v1950 = vpack.c.b16 %v1894, %v1892
        %v1951 = vpack.c.b16 %v1897, %v1895
        %v1952 = vpack.c.b16 %v1898, %v1896
        %v1953 = vpack.c.b16 %v1901, %v1899
        %v1954 = vpack.c.b16 %v1902, %v1900
        %v1955 = vpack.c.b16 %v1905, %v1903
        %v1956 = vpack.c.b16 %v1906, %v1904
        %v1957 = vpack.c.b16 %v1909, %v1907
        %v1958 = vpack.c.b16 %v1910, %v1908
        %2007 = vmatprep.subr.bf16.mxu0 %v1926
        %2008 = vmatpush1.bf16.msra.mxu0 %v1925
        %2009 = vmatprep.subr.bf16.mxu0 %v1924
        %2010 = vmatpush1.bf16.msra.mxu0 %v1923
        %2011 = vmatprep.subr.bf16.mxu0 %v1922
        %2012 = vmatpush1.bf16.msra.mxu0 %v1921
        %2013 = vmatprep.subr.bf16.mxu0 %v1920
        %2014 = vmatpush1.bf16.msra.mxu0 %v1919
        %2015 = vmatprep.subr.bf16.mxu0 %v1918
        %2016 = vmatpush1.bf16.msra.mxu0 %v1917
        %2017 = vmatprep.subr.bf16.mxu0 %v1916
        %2018 = vmatpush1.bf16.msra.mxu0 %v1915
        %2019 = vmatprep.subr.bf16.mxu0 %v1914
        %2020 = vmatpush1.bf16.msra.mxu0 %v1913
        %2021 = vmatprep.subr.bf16.mxu0 %v1912
        %2022 = vmatpush1.bf16.msra.mxu0 %v1911
        %2023 = vmatprep.subr.bf16.mxu0 %v1942
        %2024 = vmatpush2.bf16.msra.mxu0 %v1941
        %2025 = vmatprep.subr.bf16.mxu0 %v1940
        %2026 = vmatpush2.bf16.msra.mxu0 %v1939
        %2027 = vmatprep.subr.bf16.mxu0 %v1938
        %2028 = vmatpush2.bf16.msra.mxu0 %v1937
        %2029 = vmatprep.subr.bf16.mxu0 %v1936
        %2030 = vmatpush2.bf16.msra.mxu0 %v1935
        %2031 = vmatprep.subr.bf16.mxu0 %v1934
        %2032 = vmatpush2.bf16.msra.mxu0 %v1933
        %2033 = vmatprep.subr.bf16.mxu0 %v1932
        %2034 = vmatpush2.bf16.msra.mxu0 %v1931
        %2035 = vmatprep.subr.bf16.mxu0 %v1930
        %2036 = vmatpush2.bf16.msra.mxu0 %v1929
        %2037 = vmatprep.subr.bf16.mxu0 %v1928
        %2038 = vmatpush2.bf16.msra.mxu0 %v1927
        %2039 = vmatprep.mubr.bf16.mxu0 %v1717
        %2040 = vmatmul.mubr.bf16.gmra.mxu0 %v1716
        %v2041 = vpop.f32.mrf.mxu0
        %v2042 = vadd.f32 0.0, %v2041
        %v2043 = vpop.f32.mrf.mxu0
        %v2044 = vadd.f32 0.0, %v2043
        %v2045 = vpop.f32.mrf.mxu0
        %v2046 = vadd.f32 0.0, %v2045
        %v2047 = vpop.f32.mrf.mxu0
        %v2048 = vadd.f32 0.0, %v2047
        %2049 = vdwg.mxu0
        %2050 = vmatprep.subr.bf16.mxu0 %v1958
        %2051 = vmatpush1.bf16.msra.mxu0 %v1957
        %2052 = vmatprep.subr.bf16.mxu0 %v1956
        %2053 = vmatpush1.bf16.msra.mxu0 %v1955
        %2054 = vmatprep.subr.bf16.mxu0 %v1954
        %2055 = vmatpush1.bf16.msra.mxu0 %v1953
        %2056 = vmatprep.subr.bf16.mxu0 %v1952
        %2057 = vmatpush1.bf16.msra.mxu0 %v1951
        %2058 = vmatprep.subr.bf16.mxu0 %v1950
        %2059 = vmatpush1.bf16.msra.mxu0 %v1949
        %2060 = vmatprep.subr.bf16.mxu0 %v1948
        %2061 = vmatpush1.bf16.msra.mxu0 %v1947
        %2062 = vmatprep.subr.bf16.mxu0 %v1946
        %2063 = vmatpush1.bf16.msra.mxu0 %v1945
        %2064 = vmatprep.subr.bf16.mxu0 %v1944
        %2065 = vmatpush1.bf16.msra.mxu0 %v1943
        %2066 = vmatprep.subr.bf16.mxu0 0
        %2067 = vmatpush2.bf16.msra.mxu0 0
        %2068 = vmatprep.subr.bf16.mxu0 0
        %2069 = vmatpush2.bf16.msra.mxu0 0
        %2070 = vmatprep.subr.bf16.mxu0 0
        %2071 = vmatpush2.bf16.msra.mxu0 0
        %2072 = vmatprep.subr.bf16.mxu0 0
        %2073 = vmatpush2.bf16.msra.mxu0 0
        %2074 = vmatprep.subr.bf16.mxu0 0
        %2075 = vmatpush2.bf16.msra.mxu0 0
        %2076 = vmatprep.subr.bf16.mxu0 0
        %2077 = vmatpush2.bf16.msra.mxu0 0
        %2078 = vmatprep.subr.bf16.mxu0 0
        %2079 = vmatpush2.bf16.msra.mxu0 0
        %2080 = vmatprep.subr.bf16.mxu0 0
        %2081 = vmatpush2.bf16.msra.mxu0 0
        %2082 = vmatprep.mubr.bf16.mxu0 0
        %2083 = vmatmul.mubr.bf16.gmra.mxu0 %v1718
        %v2084 = vpop.f32.mrf.mxu0
        %v2085 = vadd.f32 %v2042, %v2084
        %v2086 = vpop.f32.mrf.mxu0
        %v2087 = vadd.f32 %v2044, %v2086
        %v2088 = vpop.f32.mrf.mxu0
        %v2089 = vadd.f32 %v2046, %v2088
        %v2090 = vpop.f32.mrf.mxu0
        %v2091 = vadd.f32 %v2048, %v2090
        %2092 = vdwg.mxu0
        %v2093 = vpack.c.bf16 %v2089, %v2085
        %v2094 = vpack.c.bf16 %v2091, %v2087
        %v2095 = vld [vmem:[#allocation10] sm:$0x3]
        %v2097 = vlaneseq
        %v2098 = vshrl.u32 %v2097, 7
        %v2099 = vsub.s32 0, %v2098
        %v2100 = vrot.slane %v2095, %v2099
        %v2101 = vlaneseq
        %v2102 = vshrl.u32 %v2101, 7
        %v2103 = vsub.s32 1, %v2102
        %v2104 = vrot.slane %v2095, %v2103
        %vm2107 = vcmask 130048
        %v2109 = vsel %vm2107, %v1701, 0
        %2111 = vmatprep.subr.bf16.mxu0 0
        %2112 = vmatpush1.bf16.msra.mxu0 0
        %2113 = vmatprep.subr.bf16.mxu0 0
        %2114 = vmatpush1.bf16.msra.mxu0 0
        %2115 = vmatprep.subr.bf16.mxu0 0
        %2116 = vmatpush1.bf16.msra.mxu0 0
        %2117 = vmatprep.subr.bf16.mxu0 0
        %2118 = vmatpush1.bf16.msra.mxu0 0
        %2119 = vmatprep.subr.bf16.mxu0 0
        %2120 = vmatpush1.bf16.msra.mxu0 0
        %2121 = vmatprep.subr.bf16.mxu0 0
        %2122 = vmatpush1.bf16.msra.mxu0 0
        %2123 = vmatprep.subr.bf16.mxu0 0
        %2124 = vmatpush1.bf16.msra.mxu0 0
        %2125 = vmatprep.subr.bf16.mxu0 %v2094
        %2126 = vmatpush1.bf16.msra.mxu0 %v2093
        %2127 = vmatprep.subr.bf16.mxu0 0
        %2128 = vmatpush2.bf16.msra.mxu0 0
        %2129 = vmatprep.subr.bf16.mxu0 0
        %2130 = vmatpush2.bf16.msra.mxu0 0
        %2131 = vmatprep.subr.bf16.mxu0 0
        %2132 = vmatpush2.bf16.msra.mxu0 0
        %2133 = vmatprep.subr.bf16.mxu0 0
        %2134 = vmatpush2.bf16.msra.mxu0 0
        %2135 = vmatprep.subr.bf16.mxu0 0
        %2136 = vmatpush2.bf16.msra.mxu0 0
        %2137 = vmatprep.subr.bf16.mxu0 0
        %2138 = vmatpush2.bf16.msra.mxu0 0
        %2139 = vmatprep.subr.bf16.mxu0 0
        %2140 = vmatpush2.bf16.msra.mxu0 0
        %2141 = vmatprep.subr.bf16.mxu0 0
        %2142 = vmatpush2.bf16.msra.mxu0 0
        %2143 = vmatprep.mubr.bf16.mxu0 0
        %2144 = vmatmul.mubr.bf16.gmra.mxu0 %v2109
        %v2145 = vpop.f32.mrf.mxu0
        %v2146 = vadd.f32 %v2100, %v2145
        %v2147 = vpop.f32.mrf.mxu0
        %v2148 = vadd.f32 %v2104, %v2147
        %v2149 = vpop.f32.mrf.mxu0
        %v2150 = vadd.f32 %v2100, %v2149
        %v2151 = vpop.f32.mrf.mxu0
        %v2152 = vadd.f32 %v2104, %v2151
        %2153 = vdwg.mxu0
        %v2154 = vmax.f32 %v2146, 0.0
        %v2155 = vmax.f32 %v2148, 0.0
        %v2156 = vmax.f32 %v2150, 0.0
        %v2157 = vmax.f32 %v2152, 0.0
        %v2158 = vld [vmem:[#allocation12] sm:$0x3]
        %v2160 = vlaneseq
        %v2161 = vshrl.u32 %v2160, 7
        %v2162 = vsub.s32 0, %v2161
        %v2163 = vrot.slane %v2158, %v2162
        %v2164 = vlaneseq
        %v2165 = vshrl.u32 %v2164, 7
        %v2166 = vsub.s32 1, %v2165
        %v2167 = vrot.slane %v2158, %v2166
        %v2170 = vmul.f32 %v2154, %v2163
        %v2171 = vmul.f32 %v2155, %v2167
        %v2172 = vmul.f32 %v2156, %v2163
        %v2173 = vmul.f32 %v2157, %v2167
        %v2174 = vld [vmem:[#allocation13] sm:$0x3]
        %v2176 = vlaneseq
        %v2177 = vshrl.u32 %v2176, 7
        %v2178 = vsub.s32 0, %v2177
        %v2179 = vrot.slane %v2174, %v2178
        %v2180 = vlaneseq
        %v2181 = vshrl.u32 %v2180, 7
        %v2182 = vsub.s32 1, %v2181
        %v2183 = vrot.slane %v2174, %v2182
        %v2186 = vadd.f32 %v2170, %v2179
        %v2187 = vadd.f32 %v2171, %v2183
        %v2188 = vadd.f32 %v2172, %v2179
        %v2189 = vadd.f32 %v2173, %v2183
        %v2190 = vpack.c.bf16 %v2188, %v2186
        %v2191 = vpack.c.bf16 %v2189, %v2187
        %v2192 = vld [vmem:[#allocation15] sm:$0xf]
        %v2193 = vld [vmem:[#allocation15 + $0x4] sm:$0xf]
        %v2194 = vld [vmem:[#allocation15 + $0x8] sm:$0xf]
        %v2195 = vld [vmem:[#allocation15 + $0xc] sm:$0xf]
        %v2196 = vld [vmem:[#allocation15 + $0x10] sm:$0xf]
        %v2197 = vld [vmem:[#allocation15 + $0x14] sm:$0xf]
        %v2198 = vld [vmem:[#allocation15 + $0x18] sm:$0xf]
        %v2199 = vld [vmem:[#allocation15 + $0x1c] sm:$0xf]
        %v2200 = vld [vmem:[#allocation15 + $0x20] sm:$0xf]
        %v2201 = vld [vmem:[#allocation15 + $0x24] sm:$0xf]
        %v2202 = vld [vmem:[#allocation15 + $0x28] sm:$0xf]
        %v2203 = vld [vmem:[#allocation15 + $0x2c] sm:$0xf]
        %v2204 = vld [vmem:[#allocation15 + $0x30] sm:$0xf]
        %v2205 = vld [vmem:[#allocation15 + $0x34] sm:$0xf]
        %v2206 = vld [vmem:[#allocation15 + $0x38] sm:$0xf]
        %v2207 = vld [vmem:[#allocation15 + $0x3c] sm:$0xf]
        %v2208 = vld [vmem:[#allocation15 + $0x40] sm:$0xf]
        %v2209 = vld [vmem:[#allocation15 + $0x44] sm:$0xf]
        %v2210 = vld [vmem:[#allocation15 + $0x48] sm:$0xf]
        %v2211 = vld [vmem:[#allocation15 + $0x4c] sm:$0xf]
        %v2212 = vld [vmem:[#allocation15 + $0x50] sm:$0xf]
        %v2213 = vld [vmem:[#allocation15 + $0x54] sm:$0xf]
        %v2214 = vld [vmem:[#allocation15 + $0x58] sm:$0xf]
        %v2215 = vld [vmem:[#allocation15 + $0x5c] sm:$0xf]
        %v2216 = vld [vmem:[#allocation15 + $0x60] sm:$0xf]
        %v2217 = vld [vmem:[#allocation15 + $0x64] sm:$0xf]
        %v2218 = vld [vmem:[#allocation15 + $0x68] sm:$0xf]
        %v2219 = vld [vmem:[#allocation15 + $0x6c] sm:$0xf]
        %v2220 = vld [vmem:[#allocation15 + $0x70] sm:$0xf]
        %v2221 = vld [vmem:[#allocation15 + $0x74] sm:$0xf]
        %v2222 = vld [vmem:[#allocation15 + $0x78] sm:$0xf]
        %v2223 = vld [vmem:[#allocation15 + $0x7c] sm:$0xf]
        %v2256 = vunpack.c.l.b16 %v2192
        %v2257 = vunpack.c.l.b16 %v2193
        %v2258 = vunpack.c.l.b16 %v2194
        %v2259 = vunpack.c.l.b16 %v2195
        %v2260 = vunpack.c.l.b16 %v2196
        %v2261 = vunpack.c.l.b16 %v2197
        %v2262 = vunpack.c.l.b16 %v2198
        %v2263 = vunpack.c.l.b16 %v2199
        %v2264 = vunpack.c.l.b16 %v2200
        %v2265 = vunpack.c.l.b16 %v2201
        %v2266 = vunpack.c.l.b16 %v2202
        %v2267 = vunpack.c.l.b16 %v2203
        %v2268 = vunpack.c.l.b16 %v2204
        %v2269 = vunpack.c.l.b16 %v2205
        %v2270 = vunpack.c.l.b16 %v2206
        %v2271 = vunpack.c.l.b16 %v2207
        %v2272 = vunpack.c.l.b16 %v2208
        %v2273 = vunpack.c.l.b16 %v2209
        %v2274 = vunpack.c.l.b16 %v2210
        %v2275 = vunpack.c.l.b16 %v2211
        %v2276 = vunpack.c.l.b16 %v2212
        %v2277 = vunpack.c.l.b16 %v2213
        %v2278 = vunpack.c.l.b16 %v2214
        %v2279 = vunpack.c.l.b16 %v2215
        %v2280 = vunpack.c.l.b16 %v2216
        %v2281 = vunpack.c.l.b16 %v2217
        %v2282 = vunpack.c.l.b16 %v2218
        %v2283 = vunpack.c.l.b16 %v2219
        %v2284 = vunpack.c.l.b16 %v2220
        %v2285 = vunpack.c.l.b16 %v2221
        %v2286 = vunpack.c.l.b16 %v2222
        %v2287 = vunpack.c.l.b16 %v2223
        %v2288 = vpack.c.b16 %v2257, %v2256
        %v2289 = vpack.c.b16 %v2259, %v2258
        %v2290 = vpack.c.b16 %v2261, %v2260
        %v2291 = vpack.c.b16 %v2263, %v2262
        %v2292 = vpack.c.b16 %v2265, %v2264
        %v2293 = vpack.c.b16 %v2267, %v2266
        %v2294 = vpack.c.b16 %v2269, %v2268
        %v2295 = vpack.c.b16 %v2271, %v2270
        %v2296 = vpack.c.b16 %v2273, %v2272
        %v2297 = vpack.c.b16 %v2275, %v2274
        %v2298 = vpack.c.b16 %v2277, %v2276
        %v2299 = vpack.c.b16 %v2279, %v2278
        %v2300 = vpack.c.b16 %v2281, %v2280
        %v2301 = vpack.c.b16 %v2283, %v2282
        %v2302 = vpack.c.b16 %v2285, %v2284
        %v2303 = vpack.c.b16 %v2287, %v2286
        %2320 = vmatprep.subr.bf16.mxu0 0
        %2321 = vmatpush1.bf16.msra.mxu0 %v2295
        %2322 = vmatprep.subr.bf16.mxu0 0
        %2323 = vmatpush1.bf16.msra.mxu0 %v2294
        %2324 = vmatprep.subr.bf16.mxu0 0
        %2325 = vmatpush1.bf16.msra.mxu0 %v2293
        %2326 = vmatprep.subr.bf16.mxu0 0
        %2327 = vmatpush1.bf16.msra.mxu0 %v2292
        %2328 = vmatprep.subr.bf16.mxu0 0
        %2329 = vmatpush1.bf16.msra.mxu0 %v2291
        %2330 = vmatprep.subr.bf16.mxu0 0
        %2331 = vmatpush1.bf16.msra.mxu0 %v2290
        %2332 = vmatprep.subr.bf16.mxu0 0
        %2333 = vmatpush1.bf16.msra.mxu0 %v2289
        %2334 = vmatprep.subr.bf16.mxu0 0
        %2335 = vmatpush1.bf16.msra.mxu0 %v2288
        %2336 = vmatprep.subr.bf16.mxu0 0
        %2337 = vmatpush2.bf16.msra.mxu0 %v2303
        %2338 = vmatprep.subr.bf16.mxu0 0
        %2339 = vmatpush2.bf16.msra.mxu0 %v2302
        %2340 = vmatprep.subr.bf16.mxu0 0
        %2341 = vmatpush2.bf16.msra.mxu0 %v2301
        %2342 = vmatprep.subr.bf16.mxu0 0
        %2343 = vmatpush2.bf16.msra.mxu0 %v2300
        %2344 = vmatprep.subr.bf16.mxu0 0
        %2345 = vmatpush2.bf16.msra.mxu0 %v2299
        %2346 = vmatprep.subr.bf16.mxu0 0
        %2347 = vmatpush2.bf16.msra.mxu0 %v2298
        %2348 = vmatprep.subr.bf16.mxu0 0
        %2349 = vmatpush2.bf16.msra.mxu0 %v2297
        %2350 = vmatprep.subr.bf16.mxu0 0
        %2351 = vmatpush2.bf16.msra.mxu0 %v2296
        %2352 = vmatprep.mubr.bf16.mxu0 %v2191
        %2353 = vmatmul.mubr.bf16.gmra.mxu0 %v2190
        %v2354 = vpop.f32.mrf.mxu0
        %v2355 = vadd.f32 0.0, %v2354
        %v2356 = vpop.f32.mrf.mxu0
        %v2357 = vpop.f32.mrf.mxu0
        %v2358 = vadd.f32 0.0, %v2357
        %v2359 = vpop.f32.mrf.mxu0
        %2360 = vdwg.mxu0
        %v2361 = vpack.c.bf16 %v2358, %v2355
        %v2362 = vld [vmem:[%s19] sm:$0x1]
        %v2364 = vlaneseq
        %v2365 = vshrl.u32 %v2364, 7
        %v2366 = vsub.s32 0, %v2365
        %v2367 = vrot.slane %v2362, %v2366
        %2369 = vmatprep.subr.bf16.mxu0 0
        %2370 = vmatpush1.bf16.msra.mxu0 0
        %2371 = vmatprep.subr.bf16.mxu0 0
        %2372 = vmatpush1.bf16.msra.mxu0 0
        %2373 = vmatprep.subr.bf16.mxu0 0
        %2374 = vmatpush1.bf16.msra.mxu0 0
        %2375 = vmatprep.subr.bf16.mxu0 0
        %2376 = vmatpush1.bf16.msra.mxu0 0
        %2377 = vmatprep.subr.bf16.mxu0 0
        %2378 = vmatpush1.bf16.msra.mxu0 0
        %2379 = vmatprep.subr.bf16.mxu0 0
        %2380 = vmatpush1.bf16.msra.mxu0 0
        %2381 = vmatprep.subr.bf16.mxu0 0
        %2382 = vmatpush1.bf16.msra.mxu0 0
        %2383 = vmatprep.subr.bf16.mxu0 0
        %2384 = vmatpush1.bf16.msra.mxu0 %v2361
        %2385 = vmatprep.subr.bf16.mxu0 0
        %2386 = vmatpush2.bf16.msra.mxu0 0
        %2387 = vmatprep.subr.bf16.mxu0 0
        %2388 = vmatpush2.bf16.msra.mxu0 0
        %2389 = vmatprep.subr.bf16.mxu0 0
        %2390 = vmatpush2.bf16.msra.mxu0 0
        %2391 = vmatprep.subr.bf16.mxu0 0
        %2392 = vmatpush2.bf16.msra.mxu0 0
        %2393 = vmatprep.subr.bf16.mxu0 0
        %2394 = vmatpush2.bf16.msra.mxu0 0
        %2395 = vmatprep.subr.bf16.mxu0 0
        %2396 = vmatpush2.bf16.msra.mxu0 0
        %2397 = vmatprep.subr.bf16.mxu0 0
        %2398 = vmatpush2.bf16.msra.mxu0 0
        %2399 = vmatprep.subr.bf16.mxu0 0
        %2400 = vmatpush2.bf16.msra.mxu0 0
        %2401 = vmatprep.mubr.bf16.mxu0 0
        %2402 = vmatmul.mubr.bf16.gmra.mxu0 %v2109
        %v2403 = vpop.f32.mrf.mxu0
        %v2404 = vadd.f32 %v2367, %v2403
        %v2405 = vpop.f32.mrf.mxu0
        %v2406 = vpop.f32.mrf.mxu0
        %v2407 = vadd.f32 %v2367, %v2406
        %v2408 = vpop.f32.mrf.mxu0
        %2409 = vdwg.mxu0
        %v2410 = vmax.f32 %v2404, 0.0
        %v2411 = vmax.f32 %v2407, 0.0
        %v2412 = vld [vmem:[#allocation16] sm:$0x1]
        %v2414 = vlaneseq
        %v2415 = vshrl.u32 %v2414, 7
        %v2416 = vsub.s32 0, %v2415
        %v2417 = vrot.slane %v2412, %v2416
        %v2419 = vmul.f32 %v2410, %v2417
        %v2420 = vmul.f32 %v2411, %v2417
        %v2421 = vld [vmem:[#allocation18] sm:$0x1]
        %v2423 = vlaneseq
        %v2424 = vshrl.u32 %v2423, 7
        %v2425 = vsub.s32 0, %v2424
        %v2426 = vrot.slane %v2421, %v2425
        %v2428 = vadd.f32 %v2419, %v2426
        %v2429 = vadd.f32 %v2420, %v2426
        %v2430 = vpack.c.bf16 %v2429, %v2428
        %v2431 = vld [vmem:[#allocation19] sm:$0xf]
        %v2432 = vld [vmem:[#allocation19 + $0x4] sm:$0xf]
        %v2433 = vld [vmem:[#allocation19 + $0x8] sm:$0xf]
        %v2434 = vld [vmem:[#allocation19 + $0xc] sm:$0xf]
        %v2435 = vld [vmem:[#allocation19 + $0x10] sm:$0xf]
        %v2436 = vld [vmem:[#allocation19 + $0x14] sm:$0xf]
        %v2437 = vld [vmem:[#allocation19 + $0x18] sm:$0xf]
        %v2438 = vld [vmem:[#allocation19 + $0x1c] sm:$0xf]
        %v2439 = vld [vmem:[#allocation19 + $0x20] sm:$0xf]
        %v2440 = vld [vmem:[#allocation19 + $0x24] sm:$0xf]
        %v2441 = vld [vmem:[#allocation19 + $0x28] sm:$0xf]
        %v2442 = vld [vmem:[#allocation19 + $0x2c] sm:$0xf]
        %v2443 = vld [vmem:[#allocation19 + $0x30] sm:$0xf]
        %v2444 = vld [vmem:[#allocation19 + $0x34] sm:$0xf]
        %v2445 = vld [vmem:[#allocation19 + $0x38] sm:$0xf]
        %v2446 = vld [vmem:[#allocation19 + $0x3c] sm:$0xf]
        %v2463 = vunpack.c.l.b16 %v2431
        %v2464 = vunpack.c.l.b16 %v2432
        %v2465 = vunpack.c.l.b16 %v2433
        %v2466 = vunpack.c.l.b16 %v2434
        %v2467 = vunpack.c.l.b16 %v2435
        %v2468 = vunpack.c.l.b16 %v2436
        %v2469 = vunpack.c.l.b16 %v2437
        %v2470 = vunpack.c.l.b16 %v2438
        %v2471 = vunpack.c.l.b16 %v2439
        %v2472 = vunpack.c.l.b16 %v2440
        %v2473 = vunpack.c.l.b16 %v2441
        %v2474 = vunpack.c.l.b16 %v2442
        %v2475 = vunpack.c.l.b16 %v2443
        %v2476 = vunpack.c.l.b16 %v2444
        %v2477 = vunpack.c.l.b16 %v2445
        %v2478 = vunpack.c.l.b16 %v2446
        %v2479 = vpack.c.b16 %v2464, %v2463
        %v2480 = vpack.c.b16 %v2466, %v2465
        %v2481 = vpack.c.b16 %v2468, %v2467
        %v2482 = vpack.c.b16 %v2470, %v2469
        %v2483 = vpack.c.b16 %v2472, %v2471
        %v2484 = vpack.c.b16 %v2474, %v2473
        %v2485 = vpack.c.b16 %v2476, %v2475
        %v2486 = vpack.c.b16 %v2478, %v2477
        %2495 = vmatprep.subr.bf16.mxu0 0
        %2496 = vmatpush1.bf16.msra.mxu0 %v2486
        %2497 = vmatprep.subr.bf16.mxu0 0
        %2498 = vmatpush1.bf16.msra.mxu0 %v2485
        %2499 = vmatprep.subr.bf16.mxu0 0
        %2500 = vmatpush1.bf16.msra.mxu0 %v2484
        %2501 = vmatprep.subr.bf16.mxu0 0
        %2502 = vmatpush1.bf16.msra.mxu0 %v2483
        %2503 = vmatprep.subr.bf16.mxu0 0
        %2504 = vmatpush1.bf16.msra.mxu0 %v2482
        %2505 = vmatprep.subr.bf16.mxu0 0
        %2506 = vmatpush1.bf16.msra.mxu0 %v2481
        %2507 = vmatprep.subr.bf16.mxu0 0
        %2508 = vmatpush1.bf16.msra.mxu0 %v2480
        %2509 = vmatprep.subr.bf16.mxu0 0
        %2510 = vmatpush1.bf16.msra.mxu0 %v2479
        %2511 = vmatprep.subr.bf16.mxu0 0
        %2512 = vmatpush2.bf16.msra.mxu0 0
        %2513 = vmatprep.subr.bf16.mxu0 0
        %2514 = vmatpush2.bf16.msra.mxu0 0
        %2515 = vmatprep.subr.bf16.mxu0 0
        %2516 = vmatpush2.bf16.msra.mxu0 0
        %2517 = vmatprep.subr.bf16.mxu0 0
        %2518 = vmatpush2.bf16.msra.mxu0 0
        %2519 = vmatprep.subr.bf16.mxu0 0
        %2520 = vmatpush2.bf16.msra.mxu0 0
        %2521 = vmatprep.subr.bf16.mxu0 0
        %2522 = vmatpush2.bf16.msra.mxu0 0
        %2523 = vmatprep.subr.bf16.mxu0 0
        %2524 = vmatpush2.bf16.msra.mxu0 0
        %2525 = vmatprep.subr.bf16.mxu0 0
        %2526 = vmatpush2.bf16.msra.mxu0 0
        %2527 = vmatprep.mubr.bf16.mxu0 0
        %2528 = vmatmul.mubr.bf16.gmra.mxu0 %v2430
        %v2529 = vpop.f32.mrf.mxu0
        %v2530 = vadd.f32 0.0, %v2529
        %v2531 = vpop.f32.mrf.mxu0
        %v2532 = vpop.f32.mrf.mxu0
        %v2533 = vadd.f32 0.0, %v2532
        %v2534 = vpop.f32.mrf.mxu0
        %2535 = vdwg.mxu0
        %v2536 = vpack.c.bf16 %v2533, %v2530
        %v2537 = vld [vmem:[#allocation21] sm:$0x1]
        %v2539 = vlaneseq
        %v2540 = vshrl.u32 %v2539, 7
        %v2541 = vsub.s32 0, %v2540
        %v2542 = vrot.slane %v2537, %v2541
        %2544 = vmatprep.subr.bf16.mxu0 0
        %2545 = vmatpush1.bf16.msra.mxu0 0
        %2546 = vmatprep.subr.bf16.mxu0 0
        %2547 = vmatpush1.bf16.msra.mxu0 0
        %2548 = vmatprep.subr.bf16.mxu0 0
        %2549 = vmatpush1.bf16.msra.mxu0 0
        %2550 = vmatprep.subr.bf16.mxu0 0
        %2551 = vmatpush1.bf16.msra.mxu0 0
        %2552 = vmatprep.subr.bf16.mxu0 0
        %2553 = vmatpush1.bf16.msra.mxu0 0
        %2554 = vmatprep.subr.bf16.mxu0 0
        %2555 = vmatpush1.bf16.msra.mxu0 0
        %2556 = vmatprep.subr.bf16.mxu0 0
        %2557 = vmatpush1.bf16.msra.mxu0 0
        %2558 = vmatprep.subr.bf16.mxu0 0
        %2559 = vmatpush1.bf16.msra.mxu0 %v2536
        %2560 = vmatprep.subr.bf16.mxu0 0
        %2561 = vmatpush2.bf16.msra.mxu0 0
        %2562 = vmatprep.subr.bf16.mxu0 0
        %2563 = vmatpush2.bf16.msra.mxu0 0
        %2564 = vmatprep.subr.bf16.mxu0 0
        %2565 = vmatpush2.bf16.msra.mxu0 0
        %2566 = vmatprep.subr.bf16.mxu0 0
        %2567 = vmatpush2.bf16.msra.mxu0 0
        %2568 = vmatprep.subr.bf16.mxu0 0
        %2569 = vmatpush2.bf16.msra.mxu0 0
        %2570 = vmatprep.subr.bf16.mxu0 0
        %2571 = vmatpush2.bf16.msra.mxu0 0
        %2572 = vmatprep.subr.bf16.mxu0 0
        %2573 = vmatpush2.bf16.msra.mxu0 0
        %2574 = vmatprep.subr.bf16.mxu0 0
        %2575 = vmatpush2.bf16.msra.mxu0 0
        %2576 = vmatprep.mubr.bf16.mxu0 0
        %2577 = vmatmul.mubr.bf16.gmra.mxu0 %v2109
        %v2578 = vpop.f32.mrf.mxu0
        %v2579 = vadd.f32 %v2542, %v2578
        %v2580 = vpop.f32.mrf.mxu0
        %v2581 = vpop.f32.mrf.mxu0
        %v2582 = vadd.f32 %v2542, %v2581
        %v2583 = vpop.f32.mrf.mxu0
        %2584 = vdwg.mxu0
        %v2585 = vmax.f32 %v2579, 0.0
        %v2586 = vmax.f32 %v2582, 0.0
        %v2587 = vld [vmem:[#allocation22] sm:$0x1]
        %v2589 = vlaneseq
        %v2590 = vshrl.u32 %v2589, 7
        %v2591 = vsub.s32 0, %v2590
        %v2592 = vrot.slane %v2587, %v2591
        %v2594 = vmul.f32 %v2585, %v2592
        %v2595 = vmul.f32 %v2586, %v2592
        %v2596 = vld [vmem:[#allocation24] sm:$0x1]
        %v2598 = vlaneseq
        %v2599 = vshrl.u32 %v2598, 7
        %v2600 = vsub.s32 0, %v2599
        %v2601 = vrot.slane %v2596, %v2600
        %v2603 = vadd.f32 %v2594, %v2601
        %v2604 = vadd.f32 %v2595, %v2601
        %v2605 = vpack.c.bf16 %v2604, %v2603
        %v2607 = vsel %vm2107, %v1703, 0
        %2609 = vmatprep.subr.bf16.mxu0 0
        %2610 = vmatpush1.bf16.msra.mxu0 0
        %2611 = vmatprep.subr.bf16.mxu0 0
        %2612 = vmatpush1.bf16.msra.mxu0 0
        %2613 = vmatprep.subr.bf16.mxu0 0
        %2614 = vmatpush1.bf16.msra.mxu0 0
        %2615 = vmatprep.subr.bf16.mxu0 0
        %2616 = vmatpush1.bf16.msra.mxu0 0
        %2617 = vmatprep.subr.bf16.mxu0 0
        %2618 = vmatpush1.bf16.msra.mxu0 0
        %2619 = vmatprep.subr.bf16.mxu0 0
        %2620 = vmatpush1.bf16.msra.mxu0 0
        %2621 = vmatprep.subr.bf16.mxu0 0
        %2622 = vmatpush1.bf16.msra.mxu0 0
        %2623 = vmatprep.subr.bf16.mxu0 0
        %2624 = vmatpush1.bf16.msra.mxu0 %v2605
        %2625 = vmatprep.subr.bf16.mxu0 0
        %2626 = vmatpush2.bf16.msra.mxu0 0
        %2627 = vmatprep.subr.bf16.mxu0 0
        %2628 = vmatpush2.bf16.msra.mxu0 0
        %2629 = vmatprep.subr.bf16.mxu0 0
        %2630 = vmatpush2.bf16.msra.mxu0 0
        %2631 = vmatprep.subr.bf16.mxu0 0
        %2632 = vmatpush2.bf16.msra.mxu0 0
        %2633 = vmatprep.subr.bf16.mxu0 0
        %2634 = vmatpush2.bf16.msra.mxu0 0
        %2635 = vmatprep.subr.bf16.mxu0 0
        %2636 = vmatpush2.bf16.msra.mxu0 0
        %2637 = vmatprep.subr.bf16.mxu0 0
        %2638 = vmatpush2.bf16.msra.mxu0 0
        %2639 = vmatprep.subr.bf16.mxu0 0
        %2640 = vmatpush2.bf16.msra.mxu0 0
        %2641 = vmatprep.mubr.bf16.mxu0 0
        %2642 = vmatmul.mubr.bf16.gmra.mxu0 %v2607
        %v2643 = vpop.f32.mrf.mxu0
        %v2644 = vadd.f32 0.0, %v2643
        %v2645 = vpop.f32.mrf.mxu0
        %v2646 = vpop.f32.mrf.mxu0
        %v2647 = vpop.f32.mrf.mxu0
        %2648 = vdwg.mxu0
        %v2649 = vld [vmem:[#allocation25] sm:$0xff]
        %v2650 = vld [vmem:[#allocation25 + $0x8] sm:$0xff]
        %v2651 = vld [vmem:[#allocation25 + $0x10] sm:$0xff]
        %v2652 = vld [vmem:[#allocation25 + $0x18] sm:$0xff]
        %v2653 = vld [vmem:[#allocation25 + $0x20] sm:$0xff]
        %v2654 = vld [vmem:[#allocation25 + $0x28] sm:$0xff]
        %v2655 = vld [vmem:[#allocation25 + $0x30] sm:$0xff]
        %v2656 = vld [vmem:[#allocation25 + $0x38] sm:$0xff]
        %v2657 = vld [vmem:[#allocation25 + $0x40] sm:$0xff]
        %v2658 = vld [vmem:[#allocation25 + $0x48] sm:$0xff]
        %v2659 = vld [vmem:[#allocation25 + $0x50] sm:$0xff]
        %v2660 = vld [vmem:[#allocation25 + $0x58] sm:$0xff]
        %v2661 = vld [vmem:[#allocation25 + $0x60] sm:$0xff]
        %v2662 = vld [vmem:[#allocation25 + $0x68] sm:$0xff]
        %v2663 = vld [vmem:[#allocation25 + $0x70] sm:$0xff]
        %v2664 = vld [vmem:[#allocation25 + $0x78] sm:$0xff]
        %v2665 = vld [vmem:[#allocation25 + $0x80] sm:$0xff]
        %v2666 = vld [vmem:[#allocation25 + $0x88] sm:$0xff]
        %v2667 = vld [vmem:[#allocation25 + $0x90] sm:$0xff]
        %v2668 = vld [vmem:[#allocation25 + $0x98] sm:$0xff]
        %v2669 = vld [vmem:[#allocation25 + $0xa0] sm:$0xff]
        %v2670 = vld [vmem:[#allocation25 + $0xa8] sm:$0xff]
        %v2671 = vld [vmem:[#allocation25 + $0xb0] sm:$0xff]
        %v2672 = vld [vmem:[#allocation25 + $0xb8] sm:$0xff]
        %v2673 = vld [vmem:[#allocation25 + $0xc0] sm:$0xff]
        %v2674 = vld [vmem:[#allocation25 + $0xc8] sm:$0xff]
        %v2675 = vld [vmem:[#allocation25 + $0xd0] sm:$0xff]
        %v2676 = vld [vmem:[#allocation25 + $0xd8] sm:$0xff]
        %v2677 = vld [vmem:[#allocation25 + $0xe0] sm:$0xff]
        %v2678 = vld [vmem:[#allocation25 + $0xe8] sm:$0xff]
        %v2679 = vld [vmem:[#allocation25 + $0xf0] sm:$0xff]
        %v2680 = vld [vmem:[#allocation25 + $0xf8] sm:$0xff]
        %v2681 = vld [vmem:[#allocation25 + $0x100] sm:$0xff]
        %v2682 = vld [vmem:[#allocation25 + $0x108] sm:$0xff]
        %v2683 = vld [vmem:[#allocation25 + $0x110] sm:$0xff]
        %v2684 = vld [vmem:[#allocation25 + $0x118] sm:$0xff]
        %v2685 = vld [vmem:[#allocation25 + $0x120] sm:$0xff]
        %v2686 = vld [vmem:[#allocation25 + $0x128] sm:$0xff]
        %v2687 = vld [vmem:[#allocation25 + $0x130] sm:$0xff]
        %v2688 = vld [vmem:[#allocation25 + $0x138] sm:$0xff]
        %v2689 = vld [vmem:[#allocation25 + $0x140] sm:$0xff]
        %v2690 = vld [vmem:[#allocation25 + $0x148] sm:$0xff]
        %v2691 = vld [vmem:[#allocation25 + $0x150] sm:$0xff]
        %v2692 = vld [vmem:[#allocation25 + $0x158] sm:$0xff]
        %v2693 = vld [vmem:[#allocation25 + $0x160] sm:$0xff]
        %v2694 = vld [vmem:[#allocation25 + $0x168] sm:$0xff]
        %v2695 = vld [vmem:[#allocation25 + $0x170] sm:$0xff]
        %v2696 = vld [vmem:[#allocation25 + $0x178] sm:$0xff]
        %v2697 = vld [vmem:[#allocation25 + $0x180] sm:$0xff]
        %v2698 = vld [vmem:[#allocation25 + $0x188] sm:$0xff]
        %v2699 = vld [vmem:[#allocation25 + $0x190] sm:$0xff]
        %v2700 = vld [vmem:[#allocation25 + $0x198] sm:$0xff]
        %v2701 = vld [vmem:[#allocation25 + $0x1a0] sm:$0xff]
        %v2702 = vld [vmem:[#allocation25 + $0x1a8] sm:$0xff]
        %v2703 = vld [vmem:[#allocation25 + $0x1b0] sm:$0xff]
        %v2704 = vld [vmem:[#allocation25 + $0x1b8] sm:$0xff]
        %v2705 = vld [vmem:[#allocation25 + $0x1c0] sm:$0xff]
        %v2706 = vld [vmem:[#allocation25 + $0x1c8] sm:$0xff]
        %v2707 = vld [vmem:[#allocation25 + $0x1d0] sm:$0xff]
        %v2708 = vld [vmem:[#allocation25 + $0x1d8] sm:$0xff]
        %v2709 = vld [vmem:[#allocation25 + $0x1e0] sm:$0xff]
        %v2710 = vld [vmem:[#allocation25 + $0x1e8] sm:$0xff]
        %v2711 = vld [vmem:[#allocation25 + $0x1f0] sm:$0xff]
        %v2712 = vld [vmem:[#allocation25 + $0x1f8] sm:$0xff]
        %v2713 = vld [vmem:[#allocation25 + $0x200] sm:$0xff]
        %v2714 = vld [vmem:[#allocation25 + $0x208] sm:$0xff]
        %v2715 = vld [vmem:[#allocation25 + $0x210] sm:$0xff]
        %v2716 = vld [vmem:[#allocation25 + $0x218] sm:$0xff]
        %v2717 = vld [vmem:[#allocation25 + $0x220] sm:$0xff]
        %v2718 = vld [vmem:[#allocation25 + $0x228] sm:$0xff]
        %v2719 = vld [vmem:[#allocation25 + $0x230] sm:$0xff]
        %v2720 = vld [vmem:[#allocation25 + $0x238] sm:$0xff]
        %v2721 = vld [vmem:[#allocation25 + $0x240] sm:$0xff]
        %v2722 = vld [vmem:[#allocation25 + $0x248] sm:$0xff]
        %v2723 = vld [vmem:[#allocation25 + $0x250] sm:$0xff]
        %v2724 = vld [vmem:[#allocation25 + $0x258] sm:$0xff]
        %v2725 = vld [vmem:[#allocation25 + $0x260] sm:$0xff]
        %v2726 = vld [vmem:[#allocation25 + $0x268] sm:$0xff]
        %v2727 = vld [vmem:[#allocation25 + $0x270] sm:$0xff]
        %v2728 = vld [vmem:[#allocation25 + $0x278] sm:$0xff]
        %v2729 = vld [vmem:[#allocation25 + $0x280] sm:$0xff]
        %v2730 = vld [vmem:[#allocation25 + $0x288] sm:$0xff]
        %v2731 = vld [vmem:[#allocation25 + $0x290] sm:$0xff]
        %v2732 = vld [vmem:[#allocation25 + $0x298] sm:$0xff]
        %v2733 = vld [vmem:[#allocation25 + $0x2a0] sm:$0xff]
        %v2734 = vld [vmem:[#allocation25 + $0x2a8] sm:$0xff]
        %v2735 = vld [vmem:[#allocation25 + $0x2b0] sm:$0xff]
        %v2736 = vld [vmem:[#allocation25 + $0x2b8] sm:$0xff]
        %v2737 = vld [vmem:[#allocation25 + $0x2c0] sm:$0xff]
        %v2738 = vld [vmem:[#allocation25 + $0x2c8] sm:$0xff]
        %v2739 = vld [vmem:[#allocation25 + $0x2d0] sm:$0xff]
        %v2740 = vld [vmem:[#allocation25 + $0x2d8] sm:$0xff]
        %v2741 = vld [vmem:[#allocation25 + $0x2e0] sm:$0xff]
        %v2742 = vld [vmem:[#allocation25 + $0x2e8] sm:$0xff]
        %v2743 = vld [vmem:[#allocation25 + $0x2f0] sm:$0xff]
        %v2744 = vld [vmem:[#allocation25 + $0x2f8] sm:$0xff]
        %v2745 = vld [vmem:[#allocation25 + $0x300] sm:$0xff]
        %v2746 = vld [vmem:[#allocation25 + $0x308] sm:$0xff]
        %v2747 = vld [vmem:[#allocation25 + $0x310] sm:$0xff]
        %v2748 = vld [vmem:[#allocation25 + $0x318] sm:$0xff]
        %v2749 = vld [vmem:[#allocation25 + $0x320] sm:$0xff]
        %v2750 = vld [vmem:[#allocation25 + $0x328] sm:$0xff]
        %v2751 = vld [vmem:[#allocation25 + $0x330] sm:$0xff]
        %v2752 = vld [vmem:[#allocation25 + $0x338] sm:$0xff]
        %v2753 = vld [vmem:[#allocation25 + $0x340] sm:$0xff]
        %v2754 = vld [vmem:[#allocation25 + $0x348] sm:$0xff]
        %v2755 = vld [vmem:[#allocation25 + $0x350] sm:$0xff]
        %v2756 = vld [vmem:[#allocation25 + $0x358] sm:$0xff]
        %v2757 = vld [vmem:[#allocation25 + $0x360] sm:$0xff]
        %v2758 = vld [vmem:[#allocation25 + $0x368] sm:$0xff]
        %v2759 = vld [vmem:[#allocation25 + $0x370] sm:$0xff]
        %v2760 = vld [vmem:[#allocation25 + $0x378] sm:$0xff]
        %v2761 = vld [vmem:[#allocation25 + $0x380] sm:$0xff]
        %v2762 = vld [vmem:[#allocation25 + $0x388] sm:$0xff]
        %v2763 = vld [vmem:[#allocation25 + $0x390] sm:$0xff]
        %v2764 = vld [vmem:[#allocation25 + $0x398] sm:$0xff]
        %v2765 = vld [vmem:[#allocation25 + $0x3a0] sm:$0xff]
        %v2766 = vld [vmem:[#allocation25 + $0x3a8] sm:$0xff]
        %v2767 = vld [vmem:[#allocation25 + $0x3b0] sm:$0xff]
        %v2768 = vld [vmem:[#allocation25 + $0x3b8] sm:$0xff]
        %v2769 = vld [vmem:[#allocation25 + $0x3c0] sm:$0xff]
        %v2770 = vld [vmem:[#allocation25 + $0x3c8] sm:$0xff]
        %v2771 = vld [vmem:[#allocation25 + $0x3d0] sm:$0xff]
        %v2772 = vld [vmem:[#allocation25 + $0x3d8] sm:$0xff]
        %v2773 = vld [vmem:[#allocation25 + $0x3e0] sm:$0xff]
        %v2774 = vld [vmem:[#allocation25 + $0x3e8] sm:$0xff]
        %v2775 = vld [vmem:[#allocation25 + $0x3f0] sm:$0xff]
        %v2776 = vld [vmem:[#allocation25 + $0x3f8] sm:$0xff]
        %v2777 = vld [vmem:[#allocation25 + $0x400] sm:$0xff]
        %v2778 = vld [vmem:[#allocation25 + $0x408] sm:$0xff]
        %v2779 = vld [vmem:[#allocation25 + $0x410] sm:$0xff]
        %v2780 = vld [vmem:[#allocation25 + $0x418] sm:$0xff]
        %v2781 = vld [vmem:[#allocation25 + $0x420] sm:$0xff]
        %v2782 = vld [vmem:[#allocation25 + $0x428] sm:$0xff]
        %v2783 = vld [vmem:[#allocation25 + $0x430] sm:$0xff]
        %v2784 = vld [vmem:[#allocation25 + $0x438] sm:$0xff]
        %v2785 = vld [vmem:[#allocation25 + $0x440] sm:$0xff]
        %v2786 = vld [vmem:[#allocation25 + $0x448] sm:$0xff]
        %v2787 = vld [vmem:[#allocation25 + $0x450] sm:$0xff]
        %v2788 = vld [vmem:[#allocation25 + $0x458] sm:$0xff]
        %v2789 = vld [vmem:[#allocation25 + $0x460] sm:$0xff]
        %v2790 = vld [vmem:[#allocation25 + $0x468] sm:$0xff]
        %v2791 = vld [vmem:[#allocation25 + $0x470] sm:$0xff]
        %v2792 = vld [vmem:[#allocation25 + $0x478] sm:$0xff]
        %v2937 = vunpack.c.l.b16 %v2649
        %v2938 = vunpack.c.h.b16 %v2649
        %v2939 = vunpack.c.l.b16 %v2650
        %v2940 = vunpack.c.h.b16 %v2650
        %v2941 = vunpack.c.l.b16 %v2651
        %v2942 = vunpack.c.h.b16 %v2651
        %v2943 = vunpack.c.l.b16 %v2652
        %v2944 = vunpack.c.h.b16 %v2652
        %v2945 = vunpack.c.l.b16 %v2653
        %v2946 = vunpack.c.h.b16 %v2653
        %v2947 = vunpack.c.l.b16 %v2654
        %v2948 = vunpack.c.h.b16 %v2654
        %v2949 = vunpack.c.l.b16 %v2655
        %v2950 = vunpack.c.h.b16 %v2655
        %v2951 = vunpack.c.l.b16 %v2656
        %v2952 = vunpack.c.h.b16 %v2656
        %v2953 = vunpack.c.l.b16 %v2657
        %v2954 = vunpack.c.h.b16 %v2657
        %v2955 = vunpack.c.l.b16 %v2658
        %v2956 = vunpack.c.h.b16 %v2658
        %v2957 = vunpack.c.l.b16 %v2659
        %v2958 = vunpack.c.h.b16 %v2659
        %v2959 = vunpack.c.l.b16 %v2660
        %v2960 = vunpack.c.h.b16 %v2660
        %v2961 = vunpack.c.l.b16 %v2661
        %v2962 = vunpack.c.h.b16 %v2661
        %v2963 = vunpack.c.l.b16 %v2662
        %v2964 = vunpack.c.h.b16 %v2662
        %v2965 = vunpack.c.l.b16 %v2663
        %v2966 = vunpack.c.h.b16 %v2663
        %v2967 = vunpack.c.l.b16 %v2664
        %v2968 = vunpack.c.h.b16 %v2664
        %v2969 = vunpack.c.l.b16 %v2665
        %v2970 = vunpack.c.h.b16 %v2665
        %v2971 = vunpack.c.l.b16 %v2666
        %v2972 = vunpack.c.h.b16 %v2666
        %v2973 = vunpack.c.l.b16 %v2667
        %v2974 = vunpack.c.h.b16 %v2667
        %v2975 = vunpack.c.l.b16 %v2668
        %v2976 = vunpack.c.h.b16 %v2668
        %v2977 = vunpack.c.l.b16 %v2669
        %v2978 = vunpack.c.h.b16 %v2669
        %v2979 = vunpack.c.l.b16 %v2670
        %v2980 = vunpack.c.h.b16 %v2670
        %v2981 = vunpack.c.l.b16 %v2671
        %v2982 = vunpack.c.h.b16 %v2671
        %v2983 = vunpack.c.l.b16 %v2672
        %v2984 = vunpack.c.h.b16 %v2672
        %v2985 = vunpack.c.l.b16 %v2673
        %v2986 = vunpack.c.h.b16 %v2673
        %v2987 = vunpack.c.l.b16 %v2674
        %v2988 = vunpack.c.h.b16 %v2674
        %v2989 = vunpack.c.l.b16 %v2675
        %v2990 = vunpack.c.h.b16 %v2675
        %v2991 = vunpack.c.l.b16 %v2676
        %v2992 = vunpack.c.h.b16 %v2676
        %v2993 = vunpack.c.l.b16 %v2677
        %v2994 = vunpack.c.h.b16 %v2677
        %v2995 = vunpack.c.l.b16 %v2678
        %v2996 = vunpack.c.h.b16 %v2678
        %v2997 = vunpack.c.l.b16 %v2679
        %v2998 = vunpack.c.h.b16 %v2679
        %v2999 = vunpack.c.l.b16 %v2680
        %v3000 = vunpack.c.h.b16 %v2680
        %v3001 = vunpack.c.l.b16 %v2681
        %v3002 = vunpack.c.h.b16 %v2681
        %v3003 = vunpack.c.l.b16 %v2682
        %v3004 = vunpack.c.h.b16 %v2682
        %v3005 = vunpack.c.l.b16 %v2683
        %v3006 = vunpack.c.h.b16 %v2683
        %v3007 = vunpack.c.l.b16 %v2684
        %v3008 = vunpack.c.h.b16 %v2684
        %v3009 = vunpack.c.l.b16 %v2685
        %v3010 = vunpack.c.h.b16 %v2685
        %v3011 = vunpack.c.l.b16 %v2686
        %v3012 = vunpack.c.h.b16 %v2686
        %v3013 = vunpack.c.l.b16 %v2687
        %v3014 = vunpack.c.h.b16 %v2687
        %v3015 = vunpack.c.l.b16 %v2688
        %v3016 = vunpack.c.h.b16 %v2688
        %v3017 = vunpack.c.l.b16 %v2689
        %v3018 = vunpack.c.h.b16 %v2689
        %v3019 = vunpack.c.l.b16 %v2690
        %v3020 = vunpack.c.h.b16 %v2690
        %v3021 = vunpack.c.l.b16 %v2691
        %v3022 = vunpack.c.h.b16 %v2691
        %v3023 = vunpack.c.l.b16 %v2692
        %v3024 = vunpack.c.h.b16 %v2692
        %v3025 = vunpack.c.l.b16 %v2693
        %v3026 = vunpack.c.h.b16 %v2693
        %v3027 = vunpack.c.l.b16 %v2694
        %v3028 = vunpack.c.h.b16 %v2694
        %v3029 = vunpack.c.l.b16 %v2695
        %v3030 = vunpack.c.h.b16 %v2695
        %v3031 = vunpack.c.l.b16 %v2696
        %v3032 = vunpack.c.h.b16 %v2696
        %v3033 = vunpack.c.l.b16 %v2697
        %v3034 = vunpack.c.h.b16 %v2697
        %v3035 = vunpack.c.l.b16 %v2698
        %v3036 = vunpack.c.h.b16 %v2698
        %v3037 = vunpack.c.l.b16 %v2699
        %v3038 = vunpack.c.h.b16 %v2699
        %v3039 = vunpack.c.l.b16 %v2700
        %v3040 = vunpack.c.h.b16 %v2700
        %v3041 = vunpack.c.l.b16 %v2701
        %v3042 = vunpack.c.h.b16 %v2701
        %v3043 = vunpack.c.l.b16 %v2702
        %v3044 = vunpack.c.h.b16 %v2702
        %v3045 = vunpack.c.l.b16 %v2703
        %v3046 = vunpack.c.h.b16 %v2703
        %v3047 = vunpack.c.l.b16 %v2704
        %v3048 = vunpack.c.h.b16 %v2704
        %v3049 = vunpack.c.l.b16 %v2705
        %v3050 = vunpack.c.h.b16 %v2705
        %v3051 = vunpack.c.l.b16 %v2706
        %v3052 = vunpack.c.h.b16 %v2706
        %v3053 = vunpack.c.l.b16 %v2707
        %v3054 = vunpack.c.h.b16 %v2707
        %v3055 = vunpack.c.l.b16 %v2708
        %v3056 = vunpack.c.h.b16 %v2708
        %v3057 = vunpack.c.l.b16 %v2709
        %v3058 = vunpack.c.h.b16 %v2709
        %v3059 = vunpack.c.l.b16 %v2710
        %v3060 = vunpack.c.h.b16 %v2710
        %v3061 = vunpack.c.l.b16 %v2711
        %v3062 = vunpack.c.h.b16 %v2711
        %v3063 = vunpack.c.l.b16 %v2712
        %v3064 = vunpack.c.h.b16 %v2712
        %v3065 = vunpack.c.l.b16 %v2713
        %v3066 = vunpack.c.h.b16 %v2713
        %v3067 = vunpack.c.l.b16 %v2714
        %v3068 = vunpack.c.h.b16 %v2714
        %v3069 = vunpack.c.l.b16 %v2715
        %v3070 = vunpack.c.h.b16 %v2715
        %v3071 = vunpack.c.l.b16 %v2716
        %v3072 = vunpack.c.h.b16 %v2716
        %v3073 = vunpack.c.l.b16 %v2717
        %v3074 = vunpack.c.h.b16 %v2717
        %v3075 = vunpack.c.l.b16 %v2718
        %v3076 = vunpack.c.h.b16 %v2718
        %v3077 = vunpack.c.l.b16 %v2719
        %v3078 = vunpack.c.h.b16 %v2719
        %v3079 = vunpack.c.l.b16 %v2720
        %v3080 = vunpack.c.h.b16 %v2720
        %v3081 = vunpack.c.l.b16 %v2721
        %v3082 = vunpack.c.h.b16 %v2721
        %v3083 = vunpack.c.l.b16 %v2722
        %v3084 = vunpack.c.h.b16 %v2722
        %v3085 = vunpack.c.l.b16 %v2723
        %v3086 = vunpack.c.h.b16 %v2723
        %v3087 = vunpack.c.l.b16 %v2724
        %v3088 = vunpack.c.h.b16 %v2724
        %v3089 = vunpack.c.l.b16 %v2725
        %v3090 = vunpack.c.h.b16 %v2725
        %v3091 = vunpack.c.l.b16 %v2726
        %v3092 = vunpack.c.h.b16 %v2726
        %v3093 = vunpack.c.l.b16 %v2727
        %v3094 = vunpack.c.h.b16 %v2727
        %v3095 = vunpack.c.l.b16 %v2728
        %v3096 = vunpack.c.h.b16 %v2728
        %v3097 = vunpack.c.l.b16 %v2729
        %v3098 = vunpack.c.h.b16 %v2729
        %v3099 = vunpack.c.l.b16 %v2730
        %v3100 = vunpack.c.h.b16 %v2730
        %v3101 = vunpack.c.l.b16 %v2731
        %v3102 = vunpack.c.h.b16 %v2731
        %v3103 = vunpack.c.l.b16 %v2732
        %v3104 = vunpack.c.h.b16 %v2732
        %v3105 = vunpack.c.l.b16 %v2733
        %v3106 = vunpack.c.h.b16 %v2733
        %v3107 = vunpack.c.l.b16 %v2734
        %v3108 = vunpack.c.h.b16 %v2734
        %v3109 = vunpack.c.l.b16 %v2735
        %v3110 = vunpack.c.h.b16 %v2735
        %v3111 = vunpack.c.l.b16 %v2736
        %v3112 = vunpack.c.h.b16 %v2736
        %v3113 = vunpack.c.l.b16 %v2737
        %v3114 = vunpack.c.h.b16 %v2737
        %v3115 = vunpack.c.l.b16 %v2738
        %v3116 = vunpack.c.h.b16 %v2738
        %v3117 = vunpack.c.l.b16 %v2739
        %v3118 = vunpack.c.h.b16 %v2739
        %v3119 = vunpack.c.l.b16 %v2740
        %v3120 = vunpack.c.h.b16 %v2740
        %v3121 = vunpack.c.l.b16 %v2741
        %v3122 = vunpack.c.h.b16 %v2741
        %v3123 = vunpack.c.l.b16 %v2742
        %v3124 = vunpack.c.h.b16 %v2742
        %v3125 = vunpack.c.l.b16 %v2743
        %v3126 = vunpack.c.h.b16 %v2743
        %v3127 = vunpack.c.l.b16 %v2744
        %v3128 = vunpack.c.h.b16 %v2744
        %v3129 = vunpack.c.l.b16 %v2745
        %v3130 = vunpack.c.h.b16 %v2745
        %v3131 = vunpack.c.l.b16 %v2746
        %v3132 = vunpack.c.h.b16 %v2746
        %v3133 = vunpack.c.l.b16 %v2747
        %v3134 = vunpack.c.h.b16 %v2747
        %v3135 = vunpack.c.l.b16 %v2748
        %v3136 = vunpack.c.h.b16 %v2748
        %v3137 = vunpack.c.l.b16 %v2749
        %v3138 = vunpack.c.h.b16 %v2749
        %v3139 = vunpack.c.l.b16 %v2750
        %v3140 = vunpack.c.h.b16 %v2750
        %v3141 = vunpack.c.l.b16 %v2751
        %v3142 = vunpack.c.h.b16 %v2751
        %v3143 = vunpack.c.l.b16 %v2752
        %v3144 = vunpack.c.h.b16 %v2752
        %v3145 = vunpack.c.l.b16 %v2753
        %v3146 = vunpack.c.h.b16 %v2753
        %v3147 = vunpack.c.l.b16 %v2754
        %v3148 = vunpack.c.h.b16 %v2754
        %v3149 = vunpack.c.l.b16 %v2755
        %v3150 = vunpack.c.h.b16 %v2755
        %v3151 = vunpack.c.l.b16 %v2756
        %v3152 = vunpack.c.h.b16 %v2756
        %v3153 = vunpack.c.l.b16 %v2757
        %v3154 = vunpack.c.h.b16 %v2757
        %v3155 = vunpack.c.l.b16 %v2758
        %v3156 = vunpack.c.h.b16 %v2758
        %v3157 = vunpack.c.l.b16 %v2759
        %v3158 = vunpack.c.h.b16 %v2759
        %v3159 = vunpack.c.l.b16 %v2760
        %v3160 = vunpack.c.h.b16 %v2760
        %v3161 = vunpack.c.l.b16 %v2761
        %v3162 = vunpack.c.h.b16 %v2761
        %v3163 = vunpack.c.l.b16 %v2762
        %v3164 = vunpack.c.h.b16 %v2762
        %v3165 = vunpack.c.l.b16 %v2763
        %v3166 = vunpack.c.h.b16 %v2763
        %v3167 = vunpack.c.l.b16 %v2764
        %v3168 = vunpack.c.h.b16 %v2764
        %v3169 = vunpack.c.l.b16 %v2765
        %v3170 = vunpack.c.h.b16 %v2765
        %v3171 = vunpack.c.l.b16 %v2766
        %v3172 = vunpack.c.h.b16 %v2766
        %v3173 = vunpack.c.l.b16 %v2767
        %v3174 = vunpack.c.h.b16 %v2767
        %v3175 = vunpack.c.l.b16 %v2768
        %v3176 = vunpack.c.h.b16 %v2768
        %v3177 = vunpack.c.l.b16 %v2769
        %v3178 = vunpack.c.h.b16 %v2769
        %v3179 = vunpack.c.l.b16 %v2770
        %v3180 = vunpack.c.h.b16 %v2770
        %v3181 = vunpack.c.l.b16 %v2771
        %v3182 = vunpack.c.h.b16 %v2771
        %v3183 = vunpack.c.l.b16 %v2772
        %v3184 = vunpack.c.h.b16 %v2772
        %v3185 = vunpack.c.l.b16 %v2773
        %v3186 = vunpack.c.h.b16 %v2773
        %v3187 = vunpack.c.l.b16 %v2774
        %v3188 = vunpack.c.h.b16 %v2774
        %v3189 = vunpack.c.l.b16 %v2775
        %v3190 = vunpack.c.h.b16 %v2775
        %v3191 = vunpack.c.l.b16 %v2776
        %v3192 = vunpack.c.h.b16 %v2776
        %v3193 = vunpack.c.l.b16 %v2777
        %v3194 = vunpack.c.h.b16 %v2777
        %v3195 = vunpack.c.l.b16 %v2778
        %v3196 = vunpack.c.h.b16 %v2778
        %v3197 = vunpack.c.l.b16 %v2779
        %v3198 = vunpack.c.h.b16 %v2779
        %v3199 = vunpack.c.l.b16 %v2780
        %v3200 = vunpack.c.h.b16 %v2780
        %v3201 = vunpack.c.l.b16 %v2781
        %v3202 = vunpack.c.h.b16 %v2781
        %v3203 = vunpack.c.l.b16 %v2782
        %v3204 = vunpack.c.h.b16 %v2782
        %v3205 = vunpack.c.l.b16 %v2783
        %v3206 = vunpack.c.h.b16 %v2783
        %v3207 = vunpack.c.l.b16 %v2784
        %v3208 = vunpack.c.h.b16 %v2784
        %v3209 = vunpack.c.l.b16 %v2785
        %v3210 = vunpack.c.h.b16 %v2785
        %v3211 = vunpack.c.l.b16 %v2786
        %v3212 = vunpack.c.h.b16 %v2786
        %v3213 = vunpack.c.l.b16 %v2787
        %v3214 = vunpack.c.h.b16 %v2787
        %v3215 = vunpack.c.l.b16 %v2788
        %v3216 = vunpack.c.h.b16 %v2788
        %v3217 = vunpack.c.l.b16 %v2789
        %v3218 = vunpack.c.h.b16 %v2789
        %v3219 = vunpack.c.l.b16 %v2790
        %v3220 = vunpack.c.h.b16 %v2790
        %v3221 = vunpack.c.l.b16 %v2791
        %v3222 = vunpack.c.h.b16 %v2791
        %v3223 = vunpack.c.l.b16 %v2792
        %v3224 = vunpack.c.h.b16 %v2792
        %v3225 = vpack.c.b16 %v2943, %v2937
        %v3226 = vpack.c.b16 %v2944, %v2938
        %v3227 = vpack.c.b16 %v2945, %v2939
        %v3228 = vpack.c.b16 %v2946, %v2940
        %v3229 = vpack.c.b16 %v2947, %v2941
        %v3230 = vpack.c.b16 %v2948, %v2942
        %v3231 = vpack.c.b16 %v2955, %v2949
        %v3232 = vpack.c.b16 %v2956, %v2950
        %v3233 = vpack.c.b16 %v2957, %v2951
        %v3234 = vpack.c.b16 %v2958, %v2952
        %v3235 = vpack.c.b16 %v2959, %v2953
        %v3236 = vpack.c.b16 %v2960, %v2954
        %v3237 = vpack.c.b16 %v2967, %v2961
        %v3238 = vpack.c.b16 %v2968, %v2962
        %v3239 = vpack.c.b16 %v2969, %v2963
        %v3240 = vpack.c.b16 %v2970, %v2964
        %v3241 = vpack.c.b16 %v2971, %v2965
        %v3242 = vpack.c.b16 %v2972, %v2966
        %v3243 = vpack.c.b16 %v2979, %v2973
        %v3244 = vpack.c.b16 %v2980, %v2974
        %v3245 = vpack.c.b16 %v2981, %v2975
        %v3246 = vpack.c.b16 %v2982, %v2976
        %v3247 = vpack.c.b16 %v2983, %v2977
        %v3248 = vpack.c.b16 %v2984, %v2978
        %v3249 = vpack.c.b16 %v2991, %v2985
        %v3250 = vpack.c.b16 %v2992, %v2986
        %v3251 = vpack.c.b16 %v2993, %v2987
        %v3252 = vpack.c.b16 %v2994, %v2988
        %v3253 = vpack.c.b16 %v2995, %v2989
        %v3254 = vpack.c.b16 %v2996, %v2990
        %v3255 = vpack.c.b16 %v3003, %v2997
        %v3256 = vpack.c.b16 %v3004, %v2998
        %v3257 = vpack.c.b16 %v3005, %v2999
        %v3258 = vpack.c.b16 %v3006, %v3000
        %v3259 = vpack.c.b16 %v3007, %v3001
        %v3260 = vpack.c.b16 %v3008, %v3002
        %v3261 = vpack.c.b16 %v3015, %v3009
        %v3262 = vpack.c.b16 %v3016, %v3010
        %v3263 = vpack.c.b16 %v3017, %v3011
        %v3264 = vpack.c.b16 %v3018, %v3012
        %v3265 = vpack.c.b16 %v3019, %v3013
        %v3266 = vpack.c.b16 %v3020, %v3014
        %v3267 = vpack.c.b16 %v3027, %v3021
        %v3268 = vpack.c.b16 %v3028, %v3022
        %v3269 = vpack.c.b16 %v3029, %v3023
        %v3270 = vpack.c.b16 %v3030, %v3024
        %v3271 = vpack.c.b16 %v3031, %v3025
        %v3272 = vpack.c.b16 %v3032, %v3026
        %v3273 = vpack.c.b16 %v3039, %v3033
        %v3274 = vpack.c.b16 %v3040, %v3034
        %v3275 = vpack.c.b16 %v3041, %v3035
        %v3276 = vpack.c.b16 %v3042, %v3036
        %v3277 = vpack.c.b16 %v3043, %v3037
        %v3278 = vpack.c.b16 %v3044, %v3038
        %v3279 = vpack.c.b16 %v3051, %v3045
        %v3280 = vpack.c.b16 %v3052, %v3046
        %v3281 = vpack.c.b16 %v3053, %v3047
        %v3282 = vpack.c.b16 %v3054, %v3048
        %v3283 = vpack.c.b16 %v3055, %v3049
        %v3284 = vpack.c.b16 %v3056, %v3050
        %v3285 = vpack.c.b16 %v3063, %v3057
        %v3286 = vpack.c.b16 %v3064, %v3058
        %v3287 = vpack.c.b16 %v3065, %v3059
        %v3288 = vpack.c.b16 %v3066, %v3060
        %v3289 = vpack.c.b16 %v3067, %v3061
        %v3290 = vpack.c.b16 %v3068, %v3062
        %v3291 = vpack.c.b16 %v3075, %v3069
        %v3292 = vpack.c.b16 %v3076, %v3070
        %v3293 = vpack.c.b16 %v3077, %v3071
        %v3294 = vpack.c.b16 %v3078, %v3072
        %v3295 = vpack.c.b16 %v3079, %v3073
        %v3296 = vpack.c.b16 %v3080, %v3074
        %v3297 = vpack.c.b16 %v3087, %v3081
        %v3298 = vpack.c.b16 %v3088, %v3082
        %v3299 = vpack.c.b16 %v3089, %v3083
        %v3300 = vpack.c.b16 %v3090, %v3084
        %v3301 = vpack.c.b16 %v3091, %v3085
        %v3302 = vpack.c.b16 %v3092, %v3086
        %v3303 = vpack.c.b16 %v3099, %v3093
        %v3304 = vpack.c.b16 %v3100, %v3094
        %v3305 = vpack.c.b16 %v3101, %v3095
        %v3306 = vpack.c.b16 %v3102, %v3096
        %v3307 = vpack.c.b16 %v3103, %v3097
        %v3308 = vpack.c.b16 %v3104, %v3098
        %v3309 = vpack.c.b16 %v3111, %v3105
        %v3310 = vpack.c.b16 %v3112, %v3106
        %v3311 = vpack.c.b16 %v3113, %v3107
        %v3312 = vpack.c.b16 %v3114, %v3108
        %v3313 = vpack.c.b16 %v3115, %v3109
        %v3314 = vpack.c.b16 %v3116, %v3110
        %v3315 = vpack.c.b16 %v3123, %v3117
        %v3316 = vpack.c.b16 %v3124, %v3118
        %v3317 = vpack.c.b16 %v3125, %v3119
        %v3318 = vpack.c.b16 %v3126, %v3120
        %v3319 = vpack.c.b16 %v3127, %v3121
        %v3320 = vpack.c.b16 %v3128, %v3122
        %v3321 = vpack.c.b16 %v3135, %v3129
        %v3322 = vpack.c.b16 %v3136, %v3130
        %v3323 = vpack.c.b16 %v3137, %v3131
        %v3324 = vpack.c.b16 %v3138, %v3132
        %v3325 = vpack.c.b16 %v3139, %v3133
        %v3326 = vpack.c.b16 %v3140, %v3134
        %v3327 = vpack.c.b16 %v3147, %v3141
        %v3328 = vpack.c.b16 %v3148, %v3142
        %v3329 = vpack.c.b16 %v3149, %v3143
        %v3330 = vpack.c.b16 %v3150, %v3144
        %v3331 = vpack.c.b16 %v3151, %v3145
        %v3332 = vpack.c.b16 %v3152, %v3146
        %v3333 = vpack.c.b16 %v3159, %v3153
        %v3334 = vpack.c.b16 %v3160, %v3154
        %v3335 = vpack.c.b16 %v3161, %v3155
        %v3336 = vpack.c.b16 %v3162, %v3156
        %v3337 = vpack.c.b16 %v3163, %v3157
        %v3338 = vpack.c.b16 %v3164, %v3158
        %v3339 = vpack.c.b16 %v3171, %v3165
        %v3340 = vpack.c.b16 %v3172, %v3166
        %v3341 = vpack.c.b16 %v3173, %v3167
        %v3342 = vpack.c.b16 %v3174, %v3168
        %v3343 = vpack.c.b16 %v3175, %v3169
        %v3344 = vpack.c.b16 %v3176, %v3170
        %v3345 = vpack.c.b16 %v3183, %v3177
        %v3346 = vpack.c.b16 %v3184, %v3178
        %v3347 = vpack.c.b16 %v3185, %v3179
        %v3348 = vpack.c.b16 %v3186, %v3180
        %v3349 = vpack.c.b16 %v3187, %v3181
        %v3350 = vpack.c.b16 %v3188, %v3182
        %v3351 = vpack.c.b16 %v3195, %v3189
        %v3352 = vpack.c.b16 %v3196, %v3190
        %v3353 = vpack.c.b16 %v3197, %v3191
        %v3354 = vpack.c.b16 %v3198, %v3192
        %v3355 = vpack.c.b16 %v3199, %v3193
        %v3356 = vpack.c.b16 %v3200, %v3194
        %v3357 = vpack.c.b16 %v3207, %v3201
        %v3358 = vpack.c.b16 %v3208, %v3202
        %v3359 = vpack.c.b16 %v3209, %v3203
        %v3360 = vpack.c.b16 %v3210, %v3204
        %v3361 = vpack.c.b16 %v3211, %v3205
        %v3362 = vpack.c.b16 %v3212, %v3206
        %v3363 = vpack.c.b16 %v3219, %v3213
        %v3364 = vpack.c.b16 %v3220, %v3214
        %v3365 = vpack.c.b16 %v3221, %v3215
        %v3366 = vpack.c.b16 %v3222, %v3216
        %v3367 = vpack.c.b16 %v3223, %v3217
        %v3368 = vpack.c.b16 %v3224, %v3218
        %3513 = vmatprep.subr.bf16.mxu0 %v3268
        %3514 = vmatpush1.bf16.msra.mxu0 %v3267
        %3515 = vmatprep.subr.bf16.mxu0 %v3262
        %3516 = vmatpush1.bf16.msra.mxu0 %v3261
        %3517 = vmatprep.subr.bf16.mxu0 %v3256
        %3518 = vmatpush1.bf16.msra.mxu0 %v3255
        %3519 = vmatprep.subr.bf16.mxu0 %v3250
        %3520 = vmatpush1.bf16.msra.mxu0 %v3249
        %3521 = vmatprep.subr.bf16.mxu0 %v3244
        %3522 = vmatpush1.bf16.msra.mxu0 %v3243
        %3523 = vmatprep.subr.bf16.mxu0 %v3238
        %3524 = vmatpush1.bf16.msra.mxu0 %v3237
        %3525 = vmatprep.subr.bf16.mxu0 %v3232
        %3526 = vmatpush1.bf16.msra.mxu0 %v3231
        %3527 = vmatprep.subr.bf16.mxu0 %v3226
        %3528 = vmatpush1.bf16.msra.mxu0 %v3225
        %3529 = vmatprep.subr.bf16.mxu0 %v3316
        %3530 = vmatpush2.bf16.msra.mxu0 %v3315
        %3531 = vmatprep.subr.bf16.mxu0 %v3310
        %3532 = vmatpush2.bf16.msra.mxu0 %v3309
        %3533 = vmatprep.subr.bf16.mxu0 %v3304
        %3534 = vmatpush2.bf16.msra.mxu0 %v3303
        %3535 = vmatprep.subr.bf16.mxu0 %v3298
        %3536 = vmatpush2.bf16.msra.mxu0 %v3297
        %3537 = vmatprep.subr.bf16.mxu0 %v3292
        %3538 = vmatpush2.bf16.msra.mxu0 %v3291
        %3539 = vmatprep.subr.bf16.mxu0 %v3286
        %3540 = vmatpush2.bf16.msra.mxu0 %v3285
        %3541 = vmatprep.subr.bf16.mxu0 %v3280
        %3542 = vmatpush2.bf16.msra.mxu0 %v3279
        %3543 = vmatprep.subr.bf16.mxu0 %v3274
        %3544 = vmatpush2.bf16.msra.mxu0 %v3273
        %3545 = vmatprep.mubr.bf16.mxu0 %v1717
        %3546 = vmatmul.mubr.bf16.gmra.mxu0 %v1716
        %v3547 = vpop.f32.mrf.mxu0
        %v3548 = vadd.f32 0.0, %v3547
        %v3549 = vpop.f32.mrf.mxu0
        %v3550 = vadd.f32 0.0, %v3549
        %v3551 = vpop.f32.mrf.mxu0
        %v3552 = vadd.f32 0.0, %v3551
        %v3553 = vpop.f32.mrf.mxu0
        %v3554 = vadd.f32 0.0, %v3553
        %3555 = vdwg.mxu0
        %3556 = vmatprep.subr.bf16.mxu0 %v3364
        %3557 = vmatpush1.bf16.msra.mxu0 %v3363
        %3558 = vmatprep.subr.bf16.mxu0 %v3358
        %3559 = vmatpush1.bf16.msra.mxu0 %v3357
        %3560 = vmatprep.subr.bf16.mxu0 %v3352
        %3561 = vmatpush1.bf16.msra.mxu0 %v3351
        %3562 = vmatprep.subr.bf16.mxu0 %v3346
        %3563 = vmatpush1.bf16.msra.mxu0 %v3345
        %3564 = vmatprep.subr.bf16.mxu0 %v3340
        %3565 = vmatpush1.bf16.msra.mxu0 %v3339
        %3566 = vmatprep.subr.bf16.mxu0 %v3334
        %3567 = vmatpush1.bf16.msra.mxu0 %v3333
        %3568 = vmatprep.subr.bf16.mxu0 %v3328
        %3569 = vmatpush1.bf16.msra.mxu0 %v3327
        %3570 = vmatprep.subr.bf16.mxu0 %v3322
        %3571 = vmatpush1.bf16.msra.mxu0 %v3321
        %3572 = vmatprep.subr.bf16.mxu0 0
        %3573 = vmatpush2.bf16.msra.mxu0 0
        %3574 = vmatprep.subr.bf16.mxu0 0
        %3575 = vmatpush2.bf16.msra.mxu0 0
        %3576 = vmatprep.subr.bf16.mxu0 0
        %3577 = vmatpush2.bf16.msra.mxu0 0
        %3578 = vmatprep.subr.bf16.mxu0 0
        %3579 = vmatpush2.bf16.msra.mxu0 0
        %3580 = vmatprep.subr.bf16.mxu0 0
        %3581 = vmatpush2.bf16.msra.mxu0 0
        %3582 = vmatprep.subr.bf16.mxu0 0
        %3583 = vmatpush2.bf16.msra.mxu0 0
        %3584 = vmatprep.subr.bf16.mxu0 0
        %3585 = vmatpush2.bf16.msra.mxu0 0
        %3586 = vmatprep.subr.bf16.mxu0 0
        %3587 = vmatpush2.bf16.msra.mxu0 0
        %3588 = vmatprep.mubr.bf16.mxu0 0
        %3589 = vmatmul.mubr.bf16.gmra.mxu0 %v1718
        %v3590 = vpop.f32.mrf.mxu0
        %v3591 = vadd.f32 %v3548, %v3590
        %v3592 = vpop.f32.mrf.mxu0
        %v3593 = vadd.f32 %v3550, %v3592
        %v3594 = vpop.f32.mrf.mxu0
        %v3595 = vadd.f32 %v3552, %v3594
        %v3596 = vpop.f32.mrf.mxu0
        %v3597 = vadd.f32 %v3554, %v3596
        %3598 = vdwg.mxu0
        %3599 = vmatprep.subr.bf16.mxu0 %v3270
        %3600 = vmatpush1.bf16.msra.mxu0 %v3269
        %3601 = vmatprep.subr.bf16.mxu0 %v3264
        %3602 = vmatpush1.bf16.msra.mxu0 %v3263
        %3603 = vmatprep.subr.bf16.mxu0 %v3258
        %3604 = vmatpush1.bf16.msra.mxu0 %v3257
        %3605 = vmatprep.subr.bf16.mxu0 %v3252
        %3606 = vmatpush1.bf16.msra.mxu0 %v3251
        %3607 = vmatprep.subr.bf16.mxu0 %v3246
        %3608 = vmatpush1.bf16.msra.mxu0 %v3245
        %3609 = vmatprep.subr.bf16.mxu0 %v3240
        %3610 = vmatpush1.bf16.msra.mxu0 %v3239
        %3611 = vmatprep.subr.bf16.mxu0 %v3234
        %3612 = vmatpush1.bf16.msra.mxu0 %v3233
        %3613 = vmatprep.subr.bf16.mxu0 %v3228
        %3614 = vmatpush1.bf16.msra.mxu0 %v3227
        %3615 = vmatprep.subr.bf16.mxu0 %v3318
        %3616 = vmatpush2.bf16.msra.mxu0 %v3317
        %3617 = vmatprep.subr.bf16.mxu0 %v3312
        %3618 = vmatpush2.bf16.msra.mxu0 %v3311
        %3619 = vmatprep.subr.bf16.mxu0 %v3306
        %3620 = vmatpush2.bf16.msra.mxu0 %v3305
        %3621 = vmatprep.subr.bf16.mxu0 %v3300
        %3622 = vmatpush2.bf16.msra.mxu0 %v3299
        %3623 = vmatprep.subr.bf16.mxu0 %v3294
        %3624 = vmatpush2.bf16.msra.mxu0 %v3293
        %3625 = vmatprep.subr.bf16.mxu0 %v3288
        %3626 = vmatpush2.bf16.msra.mxu0 %v3287
        %3627 = vmatprep.subr.bf16.mxu0 %v3282
        %3628 = vmatpush2.bf16.msra.mxu0 %v3281
        %3629 = vmatprep.subr.bf16.mxu0 %v3276
        %3630 = vmatpush2.bf16.msra.mxu0 %v3275
        %3631 = vmatprep.mubr.bf16.mxu0 %v1717
        %3632 = vmatmul.mubr.bf16.gmra.mxu0 %v1716
        %v3633 = vpop.f32.mrf.mxu0
        %v3634 = vadd.f32 0.0, %v3633
        %v3635 = vpop.f32.mrf.mxu0
        %v3636 = vadd.f32 0.0, %v3635
        %v3637 = vpop.f32.mrf.mxu0
        %v3638 = vadd.f32 0.0, %v3637
        %v3639 = vpop.f32.mrf.mxu0
        %v3640 = vadd.f32 0.0, %v3639
        %3641 = vdwg.mxu0
        %3642 = vmatprep.subr.bf16.mxu0 %v3366
        %3643 = vmatpush1.bf16.msra.mxu0 %v3365
        %3644 = vmatprep.subr.bf16.mxu0 %v3360
        %3645 = vmatpush1.bf16.msra.mxu0 %v3359
        %3646 = vmatprep.subr.bf16.mxu0 %v3354
        %3647 = vmatpush1.bf16.msra.mxu0 %v3353
        %3648 = vmatprep.subr.bf16.mxu0 %v3348
        %3649 = vmatpush1.bf16.msra.mxu0 %v3347
        %3650 = vmatprep.subr.bf16.mxu0 %v3342
        %3651 = vmatpush1.bf16.msra.mxu0 %v3341
        %3652 = vmatprep.subr.bf16.mxu0 %v3336
        %3653 = vmatpush1.bf16.msra.mxu0 %v3335
        %3654 = vmatprep.subr.bf16.mxu0 %v3330
        %3655 = vmatpush1.bf16.msra.mxu0 %v3329
        %3656 = vmatprep.subr.bf16.mxu0 %v3324
        %3657 = vmatpush1.bf16.msra.mxu0 %v3323
        %3658 = vmatprep.subr.bf16.mxu0 0
        %3659 = vmatpush2.bf16.msra.mxu0 0
        %3660 = vmatprep.subr.bf16.mxu0 0
        %3661 = vmatpush2.bf16.msra.mxu0 0
        %3662 = vmatprep.subr.bf16.mxu0 0
        %3663 = vmatpush2.bf16.msra.mxu0 0
        %3664 = vmatprep.subr.bf16.mxu0 0
        %3665 = vmatpush2.bf16.msra.mxu0 0
        %3666 = vmatprep.subr.bf16.mxu0 0
        %3667 = vmatpush2.bf16.msra.mxu0 0
        %3668 = vmatprep.subr.bf16.mxu0 0
        %3669 = vmatpush2.bf16.msra.mxu0 0
        %3670 = vmatprep.subr.bf16.mxu0 0
        %3671 = vmatpush2.bf16.msra.mxu0 0
        %3672 = vmatprep.subr.bf16.mxu0 0
        %3673 = vmatpush2.bf16.msra.mxu0 0
        %3674 = vmatprep.mubr.bf16.mxu0 0
        %3675 = vmatmul.mubr.bf16.gmra.mxu0 %v1718
        %v3676 = vpop.f32.mrf.mxu0
        %v3677 = vadd.f32 %v3634, %v3676
        %v3678 = vpop.f32.mrf.mxu0
        %v3679 = vadd.f32 %v3636, %v3678
        %v3680 = vpop.f32.mrf.mxu0
        %v3681 = vadd.f32 %v3638, %v3680
        %v3682 = vpop.f32.mrf.mxu0
        %v3683 = vadd.f32 %v3640, %v3682
        %3684 = vdwg.mxu0
        %3685 = vmatprep.subr.bf16.mxu0 %v3272
        %3686 = vmatpush1.bf16.msra.mxu0 %v3271
        %3687 = vmatprep.subr.bf16.mxu0 %v3266
        %3688 = vmatpush1.bf16.msra.mxu0 %v3265
        %3689 = vmatprep.subr.bf16.mxu0 %v3260
        %3690 = vmatpush1.bf16.msra.mxu0 %v3259
        %3691 = vmatprep.subr.bf16.mxu0 %v3254
        %3692 = vmatpush1.bf16.msra.mxu0 %v3253
        %3693 = vmatprep.subr.bf16.mxu0 %v3248
        %3694 = vmatpush1.bf16.msra.mxu0 %v3247
        %3695 = vmatprep.subr.bf16.mxu0 %v3242
        %3696 = vmatpush1.bf16.msra.mxu0 %v3241
        %3697 = vmatprep.subr.bf16.mxu0 %v3236
        %3698 = vmatpush1.bf16.msra.mxu0 %v3235
        %3699 = vmatprep.subr.bf16.mxu0 %v3230
        %3700 = vmatpush1.bf16.msra.mxu0 %v3229
        %3701 = vmatprep.subr.bf16.mxu0 %v3320
        %3702 = vmatpush2.bf16.msra.mxu0 %v3319
        %3703 = vmatprep.subr.bf16.mxu0 %v3314
        %3704 = vmatpush2.bf16.msra.mxu0 %v3313
        %3705 = vmatprep.subr.bf16.mxu0 %v3308
        %3706 = vmatpush2.bf16.msra.mxu0 %v3307
        %3707 = vmatprep.subr.bf16.mxu0 %v3302
        %3708 = vmatpush2.bf16.msra.mxu0 %v3301
        %3709 = vmatprep.subr.bf16.mxu0 %v3296
        %3710 = vmatpush2.bf16.msra.mxu0 %v3295
        %3711 = vmatprep.subr.bf16.mxu0 %v3290
        %3712 = vmatpush2.bf16.msra.mxu0 %v3289
        %3713 = vmatprep.subr.bf16.mxu0 %v3284
        %3714 = vmatpush2.bf16.msra.mxu0 %v3283
        %3715 = vmatprep.subr.bf16.mxu0 %v3278
        %3716 = vmatpush2.bf16.msra.mxu0 %v3277
        %3717 = vmatprep.mubr.bf16.mxu0 %v1717
        %3718 = vmatmul.mubr.bf16.gmra.mxu0 %v1716
        %v3719 = vpop.f32.mrf.mxu0
        %v3720 = vadd.f32 0.0, %v3719
        %v3721 = vpop.f32.mrf.mxu0
        %v3722 = vadd.f32 0.0, %v3721
        %v3723 = vpop.f32.mrf.mxu0
        %v3724 = vadd.f32 0.0, %v3723
        %v3725 = vpop.f32.mrf.mxu0
        %v3726 = vadd.f32 0.0, %v3725
        %3727 = vdwg.mxu0
        %3728 = vmatprep.subr.bf16.mxu0 %v3368
        %3729 = vmatpush1.bf16.msra.mxu0 %v3367
        %3730 = vmatprep.subr.bf16.mxu0 %v3362
        %3731 = vmatpush1.bf16.msra.mxu0 %v3361
        %3732 = vmatprep.subr.bf16.mxu0 %v3356
        %3733 = vmatpush1.bf16.msra.mxu0 %v3355
        %3734 = vmatprep.subr.bf16.mxu0 %v3350
        %3735 = vmatpush1.bf16.msra.mxu0 %v3349
        %3736 = vmatprep.subr.bf16.mxu0 %v3344
        %3737 = vmatpush1.bf16.msra.mxu0 %v3343
        %3738 = vmatprep.subr.bf16.mxu0 %v3338
        %3739 = vmatpush1.bf16.msra.mxu0 %v3337
        %3740 = vmatprep.subr.bf16.mxu0 %v3332
        %3741 = vmatpush1.bf16.msra.mxu0 %v3331
        %3742 = vmatprep.subr.bf16.mxu0 %v3326
        %3743 = vmatpush1.bf16.msra.mxu0 %v3325
        %3744 = vmatprep.subr.bf16.mxu0 0
        %3745 = vmatpush2.bf16.msra.mxu0 0
        %3746 = vmatprep.subr.bf16.mxu0 0
        %3747 = vmatpush2.bf16.msra.mxu0 0
        %3748 = vmatprep.subr.bf16.mxu0 0
        %3749 = vmatpush2.bf16.msra.mxu0 0
        %3750 = vmatprep.subr.bf16.mxu0 0
        %3751 = vmatpush2.bf16.msra.mxu0 0
        %3752 = vmatprep.subr.bf16.mxu0 0
        %3753 = vmatpush2.bf16.msra.mxu0 0
        %3754 = vmatprep.subr.bf16.mxu0 0
        %3755 = vmatpush2.bf16.msra.mxu0 0
        %3756 = vmatprep.subr.bf16.mxu0 0
        %3757 = vmatpush2.bf16.msra.mxu0 0
        %3758 = vmatprep.subr.bf16.mxu0 0
        %3759 = vmatpush2.bf16.msra.mxu0 0
        %3760 = vmatprep.mubr.bf16.mxu0 0
        %3761 = vmatmul.mubr.bf16.gmra.mxu0 %v1718
        %v3762 = vpop.f32.mrf.mxu0
        %v3763 = vadd.f32 %v3720, %v3762
        %v3764 = vpop.f32.mrf.mxu0
        %v3765 = vadd.f32 %v3722, %v3764
        %v3766 = vpop.f32.mrf.mxu0
        %v3767 = vadd.f32 %v3724, %v3766
        %v3768 = vpop.f32.mrf.mxu0
        %v3769 = vadd.f32 %v3726, %v3768
        %3770 = vdwg.mxu0
        %v3771 = vpack.c.bf16 %v3595, %v3591
        %v3772 = vpack.c.bf16 %v3597, %v3593
        %v3773 = vpack.c.bf16 %v3681, %v3677
        %v3774 = vpack.c.bf16 %v3683, %v3679
        %v3775 = vpack.c.bf16 %v3767, %v3763
        %v3776 = vpack.c.bf16 %v3769, %v3765
        %v3777 = vld [vmem:[#allocation27] sm:$0xf]
        %v3778 = vld [vmem:[#allocation27 + $0x4] sm:$0xf]
        %v3779 = vld [vmem:[#allocation27 + $0x8] sm:$0xf]
        %v3780 = vld [vmem:[#allocation27 + $0xc] sm:$0xf]
        %v3781 = vld [vmem:[#allocation27 + $0x10] sm:$0xf]
        %v3782 = vld [vmem:[#allocation27 + $0x14] sm:$0xf]
        %v3783 = vld [vmem:[#allocation27 + $0x18] sm:$0xf]
        %v3784 = vld [vmem:[#allocation27 + $0x1c] sm:$0xf]
        %v3785 = vld [vmem:[#allocation27 + $0x20] sm:$0xf]
        %v3786 = vld [vmem:[#allocation27 + $0x24] sm:$0xf]
        %v3787 = vld [vmem:[#allocation27 + $0x28] sm:$0xf]
        %v3788 = vld [vmem:[#allocation27 + $0x2c] sm:$0xf]
        %v3789 = vld [vmem:[#allocation27 + $0x30] sm:$0xf]
        %v3790 = vld [vmem:[#allocation27 + $0x34] sm:$0xf]
        %v3791 = vld [vmem:[#allocation27 + $0x38] sm:$0xf]
        %v3792 = vld [vmem:[#allocation27 + $0x3c] sm:$0xf]
        %v3793 = vld [vmem:[#allocation27 + $0x40] sm:$0xf]
        %v3794 = vld [vmem:[#allocation27 + $0x44] sm:$0xf]
        %v3795 = vld [vmem:[#allocation27 + $0x48] sm:$0xf]
        %v3796 = vld [vmem:[#allocation27 + $0x4c] sm:$0xf]
        %v3797 = vld [vmem:[#allocation27 + $0x50] sm:$0xf]
        %v3798 = vld [vmem:[#allocation27 + $0x54] sm:$0xf]
        %v3799 = vld [vmem:[#allocation27 + $0x58] sm:$0xf]
        %v3800 = vld [vmem:[#allocation27 + $0x5c] sm:$0xf]
        %v3801 = vld [vmem:[#allocation27 + $0x60] sm:$0xf]
        %v3802 = vld [vmem:[#allocation27 + $0x64] sm:$0xf]
        %v3803 = vld [vmem:[#allocation27 + $0x68] sm:$0xf]
        %v3804 = vld [vmem:[#allocation27 + $0x6c] sm:$0xf]
        %v3805 = vld [vmem:[#allocation27 + $0x70] sm:$0xf]
        %v3806 = vld [vmem:[#allocation27 + $0x74] sm:$0xf]
        %v3807 = vld [vmem:[#allocation27 + $0x78] sm:$0xf]
        %v3808 = vld [vmem:[#allocation27 + $0x7c] sm:$0xf]
        %v3809 = vld [vmem:[#allocation27 + $0x80] sm:$0xf]
        %v3810 = vld [vmem:[#allocation27 + $0x84] sm:$0xf]
        %v3811 = vld [vmem:[#allocation27 + $0x88] sm:$0xf]
        %v3812 = vld [vmem:[#allocation27 + $0x8c] sm:$0xf]
        %v3813 = vld [vmem:[#allocation27 + $0x90] sm:$0xf]
        %v3814 = vld [vmem:[#allocation27 + $0x94] sm:$0xf]
        %v3815 = vld [vmem:[#allocation27 + $0x98] sm:$0xf]
        %v3816 = vld [vmem:[#allocation27 + $0x9c] sm:$0xf]
        %v3817 = vld [vmem:[#allocation27 + $0xa0] sm:$0xf]
        %v3818 = vld [vmem:[#allocation27 + $0xa4] sm:$0xf]
        %v3819 = vld [vmem:[#allocation27 + $0xa8] sm:$0xf]
        %v3820 = vld [vmem:[#allocation27 + $0xac] sm:$0xf]
        %v3821 = vld [vmem:[#allocation27 + $0xb0] sm:$0xf]
        %v3822 = vld [vmem:[#allocation27 + $0xb4] sm:$0xf]
        %v3823 = vld [vmem:[#allocation27 + $0xb8] sm:$0xf]
        %v3824 = vld [vmem:[#allocation27 + $0xbc] sm:$0xf]
        %v3825 = vld [vmem:[#allocation27 + $0xc0] sm:$0xf]
        %v3826 = vld [vmem:[#allocation27 + $0xc4] sm:$0xf]
        %v3827 = vld [vmem:[#allocation27 + $0xc8] sm:$0xf]
        %v3828 = vld [vmem:[#allocation27 + $0xcc] sm:$0xf]
        %v3829 = vld [vmem:[#allocation27 + $0xd0] sm:$0xf]
        %v3830 = vld [vmem:[#allocation27 + $0xd4] sm:$0xf]
        %v3831 = vld [vmem:[#allocation27 + $0xd8] sm:$0xf]
        %v3832 = vld [vmem:[#allocation27 + $0xdc] sm:$0xf]
        %v3833 = vld [vmem:[#allocation27 + $0xe0] sm:$0xf]
        %v3834 = vld [vmem:[#allocation27 + $0xe4] sm:$0xf]
        %v3835 = vld [vmem:[#allocation27 + $0xe8] sm:$0xf]
        %v3836 = vld [vmem:[#allocation27 + $0xec] sm:$0xf]
        %v3837 = vld [vmem:[#allocation27 + $0xf0] sm:$0xf]
        %v3838 = vld [vmem:[#allocation27 + $0xf4] sm:$0xf]
        %v3839 = vld [vmem:[#allocation27 + $0xf8] sm:$0xf]
        %v3840 = vld [vmem:[#allocation27 + $0xfc] sm:$0xf]
        %v3841 = vld [vmem:[#allocation27 + $0x100] sm:$0xf]
        %v3842 = vld [vmem:[#allocation27 + $0x104] sm:$0xf]
        %v3843 = vld [vmem:[#allocation27 + $0x108] sm:$0xf]
        %v3844 = vld [vmem:[#allocation27 + $0x10c] sm:$0xf]
        %v3845 = vld [vmem:[#allocation27 + $0x110] sm:$0xf]
        %v3846 = vld [vmem:[#allocation27 + $0x114] sm:$0xf]
        %v3847 = vld [vmem:[#allocation27 + $0x118] sm:$0xf]
        %v3848 = vld [vmem:[#allocation27 + $0x11c] sm:$0xf]
        %v3849 = vld [vmem:[#allocation27 + $0x120] sm:$0xf]
        %v3850 = vld [vmem:[#allocation27 + $0x124] sm:$0xf]
        %v3851 = vld [vmem:[#allocation27 + $0x128] sm:$0xf]
        %v3852 = vld [vmem:[#allocation27 + $0x12c] sm:$0xf]
        %v3853 = vld [vmem:[#allocation27 + $0x130] sm:$0xf]
        %v3854 = vld [vmem:[#allocation27 + $0x134] sm:$0xf]
        %v3855 = vld [vmem:[#allocation27 + $0x138] sm:$0xf]
        %v3856 = vld [vmem:[#allocation27 + $0x13c] sm:$0xf]
        %v3857 = vld [vmem:[#allocation27 + $0x140] sm:$0xf]
        %v3858 = vld [vmem:[#allocation27 + $0x144] sm:$0xf]
        %v3859 = vld [vmem:[#allocation27 + $0x148] sm:$0xf]
        %v3860 = vld [vmem:[#allocation27 + $0x14c] sm:$0xf]
        %v3861 = vld [vmem:[#allocation27 + $0x150] sm:$0xf]
        %v3862 = vld [vmem:[#allocation27 + $0x154] sm:$0xf]
        %v3863 = vld [vmem:[#allocation27 + $0x158] sm:$0xf]
        %v3864 = vld [vmem:[#allocation27 + $0x15c] sm:$0xf]
        %v3865 = vld [vmem:[#allocation27 + $0x160] sm:$0xf]
        %v3866 = vld [vmem:[#allocation27 + $0x164] sm:$0xf]
        %v3867 = vld [vmem:[#allocation27 + $0x168] sm:$0xf]
        %v3868 = vld [vmem:[#allocation27 + $0x16c] sm:$0xf]
        %v3869 = vld [vmem:[#allocation27 + $0x170] sm:$0xf]
        %v3870 = vld [vmem:[#allocation27 + $0x174] sm:$0xf]
        %v3871 = vld [vmem:[#allocation27 + $0x178] sm:$0xf]
        %v3872 = vld [vmem:[#allocation27 + $0x17c] sm:$0xf]
        %v3969 = vunpack.c.l.b16 %v3777
        %v3970 = vunpack.c.l.b16 %v3778
        %v3971 = vunpack.c.l.b16 %v3779
        %v3972 = vunpack.c.l.b16 %v3780
        %v3973 = vunpack.c.l.b16 %v3781
        %v3974 = vunpack.c.l.b16 %v3782
        %v3975 = vunpack.c.l.b16 %v3783
        %v3976 = vunpack.c.l.b16 %v3784
        %v3977 = vunpack.c.l.b16 %v3785
        %v3978 = vunpack.c.l.b16 %v3786
        %v3979 = vunpack.c.l.b16 %v3787
        %v3980 = vunpack.c.l.b16 %v3788
        %v3981 = vunpack.c.l.b16 %v3789
        %v3982 = vunpack.c.l.b16 %v3790
        %v3983 = vunpack.c.l.b16 %v3791
        %v3984 = vunpack.c.l.b16 %v3792
        %v3985 = vunpack.c.l.b16 %v3793
        %v3986 = vunpack.c.l.b16 %v3794
        %v3987 = vunpack.c.l.b16 %v3795
        %v3988 = vunpack.c.l.b16 %v3796
        %v3989 = vunpack.c.l.b16 %v3797
        %v3990 = vunpack.c.l.b16 %v3798
        %v3991 = vunpack.c.l.b16 %v3799
        %v3992 = vunpack.c.l.b16 %v3800
        %v3993 = vunpack.c.l.b16 %v3801
        %v3994 = vunpack.c.l.b16 %v3802
        %v3995 = vunpack.c.l.b16 %v3803
        %v3996 = vunpack.c.l.b16 %v3804
        %v3997 = vunpack.c.l.b16 %v3805
        %v3998 = vunpack.c.l.b16 %v3806
        %v3999 = vunpack.c.l.b16 %v3807
        %v4000 = vunpack.c.l.b16 %v3808
        %v4001 = vunpack.c.l.b16 %v3809
        %v4002 = vunpack.c.l.b16 %v3810
        %v4003 = vunpack.c.l.b16 %v3811
        %v4004 = vunpack.c.l.b16 %v3812
        %v4005 = vunpack.c.l.b16 %v3813
        %v4006 = vunpack.c.l.b16 %v3814
        %v4007 = vunpack.c.l.b16 %v3815
        %v4008 = vunpack.c.l.b16 %v3816
        %v4009 = vunpack.c.l.b16 %v3817
        %v4010 = vunpack.c.l.b16 %v3818
        %v4011 = vunpack.c.l.b16 %v3819
        %v4012 = vunpack.c.l.b16 %v3820
        %v4013 = vunpack.c.l.b16 %v3821
        %v4014 = vunpack.c.l.b16 %v3822
        %v4015 = vunpack.c.l.b16 %v3823
        %v4016 = vunpack.c.l.b16 %v3824
        %v4017 = vunpack.c.l.b16 %v3825
        %v4018 = vunpack.c.l.b16 %v3826
        %v4019 = vunpack.c.l.b16 %v3827
        %v4020 = vunpack.c.l.b16 %v3828
        %v4021 = vunpack.c.l.b16 %v3829
        %v4022 = vunpack.c.l.b16 %v3830
        %v4023 = vunpack.c.l.b16 %v3831
        %v4024 = vunpack.c.l.b16 %v3832
        %v4025 = vunpack.c.l.b16 %v3833
        %v4026 = vunpack.c.l.b16 %v3834
        %v4027 = vunpack.c.l.b16 %v3835
        %v4028 = vunpack.c.l.b16 %v3836
        %v4029 = vunpack.c.l.b16 %v3837
        %v4030 = vunpack.c.l.b16 %v3838
        %v4031 = vunpack.c.l.b16 %v3839
        %v4032 = vunpack.c.l.b16 %v3840
        %v4033 = vunpack.c.l.b16 %v3841
        %v4034 = vunpack.c.l.b16 %v3842
        %v4035 = vunpack.c.l.b16 %v3843
        %v4036 = vunpack.c.l.b16 %v3844
        %v4037 = vunpack.c.l.b16 %v3845
        %v4038 = vunpack.c.l.b16 %v3846
        %v4039 = vunpack.c.l.b16 %v3847
        %v4040 = vunpack.c.l.b16 %v3848
        %v4041 = vunpack.c.l.b16 %v3849
        %v4042 = vunpack.c.l.b16 %v3850
        %v4043 = vunpack.c.l.b16 %v3851
        %v4044 = vunpack.c.l.b16 %v3852
        %v4045 = vunpack.c.l.b16 %v3853
        %v4046 = vunpack.c.l.b16 %v3854
        %v4047 = vunpack.c.l.b16 %v3855
        %v4048 = vunpack.c.l.b16 %v3856
        %v4049 = vunpack.c.l.b16 %v3857
        %v4050 = vunpack.c.l.b16 %v3858
        %v4051 = vunpack.c.l.b16 %v3859
        %v4052 = vunpack.c.l.b16 %v3860
        %v4053 = vunpack.c.l.b16 %v3861
        %v4054 = vunpack.c.l.b16 %v3862
        %v4055 = vunpack.c.l.b16 %v3863
        %v4056 = vunpack.c.l.b16 %v3864
        %v4057 = vunpack.c.l.b16 %v3865
        %v4058 = vunpack.c.l.b16 %v3866
        %v4059 = vunpack.c.l.b16 %v3867
        %v4060 = vunpack.c.l.b16 %v3868
        %v4061 = vunpack.c.l.b16 %v3869
        %v4062 = vunpack.c.l.b16 %v3870
        %v4063 = vunpack.c.l.b16 %v3871
        %v4064 = vunpack.c.l.b16 %v3872
        %v4065 = vpack.c.b16 %v3970, %v3969
        %v4066 = vpack.c.b16 %v3972, %v3971
        %v4067 = vpack.c.b16 %v3974, %v3973
        %v4068 = vpack.c.b16 %v3976, %v3975
        %v4069 = vpack.c.b16 %v3978, %v3977
        %v4070 = vpack.c.b16 %v3980, %v3979
        %v4071 = vpack.c.b16 %v3982, %v3981
        %v4072 = vpack.c.b16 %v3984, %v3983
        %v4073 = vpack.c.b16 %v3986, %v3985
        %v4074 = vpack.c.b16 %v3988, %v3987
        %v4075 = vpack.c.b16 %v3990, %v3989
        %v4076 = vpack.c.b16 %v3992, %v3991
        %v4077 = vpack.c.b16 %v3994, %v3993
        %v4078 = vpack.c.b16 %v3996, %v3995
        %v4079 = vpack.c.b16 %v3998, %v3997
        %v4080 = vpack.c.b16 %v4000, %v3999
        %v4081 = vpack.c.b16 %v4002, %v4001
        %v4082 = vpack.c.b16 %v4004, %v4003
        %v4083 = vpack.c.b16 %v4006, %v4005
        %v4084 = vpack.c.b16 %v4008, %v4007
        %v4085 = vpack.c.b16 %v4010, %v4009
        %v4086 = vpack.c.b16 %v4012, %v4011
        %v4087 = vpack.c.b16 %v4014, %v4013
        %v4088 = vpack.c.b16 %v4016, %v4015
        %v4089 = vpack.c.b16 %v4018, %v4017
        %v4090 = vpack.c.b16 %v4020, %v4019
        %v4091 = vpack.c.b16 %v4022, %v4021
        %v4092 = vpack.c.b16 %v4024, %v4023
        %v4093 = vpack.c.b16 %v4026, %v4025
        %v4094 = vpack.c.b16 %v4028, %v4027
        %v4095 = vpack.c.b16 %v4030, %v4029
        %v4096 = vpack.c.b16 %v4032, %v4031
        %v4097 = vpack.c.b16 %v4034, %v4033
        %v4098 = vpack.c.b16 %v4036, %v4035
        %v4099 = vpack.c.b16 %v4038, %v4037
        %v4100 = vpack.c.b16 %v4040, %v4039
        %v4101 = vpack.c.b16 %v4042, %v4041
        %v4102 = vpack.c.b16 %v4044, %v4043
        %v4103 = vpack.c.b16 %v4046, %v4045
        %v4104 = vpack.c.b16 %v4048, %v4047
        %v4105 = vpack.c.b16 %v4050, %v4049
        %v4106 = vpack.c.b16 %v4052, %v4051
        %v4107 = vpack.c.b16 %v4054, %v4053
        %v4108 = vpack.c.b16 %v4056, %v4055
        %v4109 = vpack.c.b16 %v4058, %v4057
        %v4110 = vpack.c.b16 %v4060, %v4059
        %v4111 = vpack.c.b16 %v4062, %v4061
        %v4112 = vpack.c.b16 %v4064, %v4063
        %4161 = vmatprep.subr.bf16.mxu0 0
        %4162 = vmatpush1.bf16.msra.mxu0 %v4072
        %4163 = vmatprep.subr.bf16.mxu0 0
        %4164 = vmatpush1.bf16.msra.mxu0 %v4071
        %4165 = vmatprep.subr.bf16.mxu0 0
        %4166 = vmatpush1.bf16.msra.mxu0 %v4070
        %4167 = vmatprep.subr.bf16.mxu0 0
        %4168 = vmatpush1.bf16.msra.mxu0 %v4069
        %4169 = vmatprep.subr.bf16.mxu0 0
        %4170 = vmatpush1.bf16.msra.mxu0 %v4068
        %4171 = vmatprep.subr.bf16.mxu0 0
        %4172 = vmatpush1.bf16.msra.mxu0 %v4067
        %4173 = vmatprep.subr.bf16.mxu0 0
        %4174 = vmatpush1.bf16.msra.mxu0 %v4066
        %4175 = vmatprep.subr.bf16.mxu0 0
        %4176 = vmatpush1.bf16.msra.mxu0 %v4065
        %4177 = vmatprep.subr.bf16.mxu0 0
        %4178 = vmatpush2.bf16.msra.mxu0 %v4080
        %4179 = vmatprep.subr.bf16.mxu0 0
        %4180 = vmatpush2.bf16.msra.mxu0 %v4079
        %4181 = vmatprep.subr.bf16.mxu0 0
        %4182 = vmatpush2.bf16.msra.mxu0 %v4078
        %4183 = vmatprep.subr.bf16.mxu0 0
        %4184 = vmatpush2.bf16.msra.mxu0 %v4077
        %4185 = vmatprep.subr.bf16.mxu0 0
        %4186 = vmatpush2.bf16.msra.mxu0 %v4076
        %4187 = vmatprep.subr.bf16.mxu0 0
        %4188 = vmatpush2.bf16.msra.mxu0 %v4075
        %4189 = vmatprep.subr.bf16.mxu0 0
        %4190 = vmatpush2.bf16.msra.mxu0 %v4074
        %4191 = vmatprep.subr.bf16.mxu0 0
        %4192 = vmatpush2.bf16.msra.mxu0 %v4073
        %4193 = vmatprep.mubr.bf16.mxu0 %v3772
        %4194 = vmatmul.mubr.bf16.gmra.mxu0 %v3771
        %v4195 = vpop.f32.mrf.mxu0
        %v4196 = vadd.f32 0.0, %v4195
        %v4197 = vpop.f32.mrf.mxu0
        %v4198 = vpop.f32.mrf.mxu0
        %v4199 = vadd.f32 0.0, %v4198
        %v4200 = vpop.f32.mrf.mxu0
        %4201 = vdwg.mxu0
        %4202 = vmatprep.subr.bf16.mxu0 0
        %4203 = vmatpush1.bf16.msra.mxu0 %v4088
        %4204 = vmatprep.subr.bf16.mxu0 0
        %4205 = vmatpush1.bf16.msra.mxu0 %v4087
        %4206 = vmatprep.subr.bf16.mxu0 0
        %4207 = vmatpush1.bf16.msra.mxu0 %v4086
        %4208 = vmatprep.subr.bf16.mxu0 0
        %4209 = vmatpush1.bf16.msra.mxu0 %v4085
        %4210 = vmatprep.subr.bf16.mxu0 0
        %4211 = vmatpush1.bf16.msra.mxu0 %v4084
        %4212 = vmatprep.subr.bf16.mxu0 0
        %4213 = vmatpush1.bf16.msra.mxu0 %v4083
        %4214 = vmatprep.subr.bf16.mxu0 0
        %4215 = vmatpush1.bf16.msra.mxu0 %v4082
        %4216 = vmatprep.subr.bf16.mxu0 0
        %4217 = vmatpush1.bf16.msra.mxu0 %v4081
        %4218 = vmatprep.subr.bf16.mxu0 0
        %4219 = vmatpush2.bf16.msra.mxu0 %v4096
        %4220 = vmatprep.subr.bf16.mxu0 0
        %4221 = vmatpush2.bf16.msra.mxu0 %v4095
        %4222 = vmatprep.subr.bf16.mxu0 0
        %4223 = vmatpush2.bf16.msra.mxu0 %v4094
        %4224 = vmatprep.subr.bf16.mxu0 0
        %4225 = vmatpush2.bf16.msra.mxu0 %v4093
        %4226 = vmatprep.subr.bf16.mxu0 0
        %4227 = vmatpush2.bf16.msra.mxu0 %v4092
        %4228 = vmatprep.subr.bf16.mxu0 0
        %4229 = vmatpush2.bf16.msra.mxu0 %v4091
        %4230 = vmatprep.subr.bf16.mxu0 0
        %4231 = vmatpush2.bf16.msra.mxu0 %v4090
        %4232 = vmatprep.subr.bf16.mxu0 0
        %4233 = vmatpush2.bf16.msra.mxu0 %v4089
        %4234 = vmatprep.mubr.bf16.mxu0 %v3774
        %4235 = vmatmul.mubr.bf16.gmra.mxu0 %v3773
        %v4236 = vpop.f32.mrf.mxu0
        %v4237 = vadd.f32 %v4196, %v4236
        %v4238 = vpop.f32.mrf.mxu0
        %v4239 = vpop.f32.mrf.mxu0
        %v4240 = vadd.f32 %v4199, %v4239
        %v4241 = vpop.f32.mrf.mxu0
        %4242 = vdwg.mxu0
        %4243 = vmatprep.subr.bf16.mxu0 0
        %4244 = vmatpush1.bf16.msra.mxu0 %v4104
        %4245 = vmatprep.subr.bf16.mxu0 0
        %4246 = vmatpush1.bf16.msra.mxu0 %v4103
        %4247 = vmatprep.subr.bf16.mxu0 0
        %4248 = vmatpush1.bf16.msra.mxu0 %v4102
        %4249 = vmatprep.subr.bf16.mxu0 0
        %4250 = vmatpush1.bf16.msra.mxu0 %v4101
        %4251 = vmatprep.subr.bf16.mxu0 0
        %4252 = vmatpush1.bf16.msra.mxu0 %v4100
        %4253 = vmatprep.subr.bf16.mxu0 0
        %4254 = vmatpush1.bf16.msra.mxu0 %v4099
        %4255 = vmatprep.subr.bf16.mxu0 0
        %4256 = vmatpush1.bf16.msra.mxu0 %v4098
        %4257 = vmatprep.subr.bf16.mxu0 0
        %4258 = vmatpush1.bf16.msra.mxu0 %v4097
        %4259 = vmatprep.subr.bf16.mxu0 0
        %4260 = vmatpush2.bf16.msra.mxu0 %v4112
        %4261 = vmatprep.subr.bf16.mxu0 0
        %4262 = vmatpush2.bf16.msra.mxu0 %v4111
        %4263 = vmatprep.subr.bf16.mxu0 0
        %4264 = vmatpush2.bf16.msra.mxu0 %v4110
        %4265 = vmatprep.subr.bf16.mxu0 0
        %4266 = vmatpush2.bf16.msra.mxu0 %v4109
        %4267 = vmatprep.subr.bf16.mxu0 0
        %4268 = vmatpush2.bf16.msra.mxu0 %v4108
        %4269 = vmatprep.subr.bf16.mxu0 0
        %4270 = vmatpush2.bf16.msra.mxu0 %v4107
        %4271 = vmatprep.subr.bf16.mxu0 0
        %4272 = vmatpush2.bf16.msra.mxu0 %v4106
        %4273 = vmatprep.subr.bf16.mxu0 0
        %4274 = vmatpush2.bf16.msra.mxu0 %v4105
        %4275 = vmatprep.mubr.bf16.mxu0 %v3776
        %4276 = vmatmul.mubr.bf16.gmra.mxu0 %v3775
        %v4277 = vpop.f32.mrf.mxu0
        %v4278 = vadd.f32 %v4237, %v4277
        %v4279 = vpop.f32.mrf.mxu0
        %v4280 = vpop.f32.mrf.mxu0
        %v4281 = vadd.f32 %v4240, %v4280
        %v4282 = vpop.f32.mrf.mxu0
        %4283 = vdwg.mxu0
        %4284 = vxpose.xlu0.b32.start [1/16] %v4278, 128
        %4285 = vxpose.xlu0.b32.cont [2/16] %v4281, 128
        %4286 = vxpose.xlu0.b32.cont [3/16] 0.0, 128
        %4287 = vxpose.xlu0.b32.cont [4/16] 0.0, 128
        %4288 = vxpose.xlu0.b32.cont [5/16] 0.0, 128
        %4289 = vxpose.xlu0.b32.cont [6/16] 0.0, 128
        %4290 = vxpose.xlu0.b32.cont [7/16] 0.0, 128
        %4291 = vxpose.xlu0.b32.cont [8/16] 0.0, 128
        %4292 = vxpose.xlu0.b32.cont [9/16] 0.0, 128
        %4293 = vxpose.xlu0.b32.cont [10/16] 0.0, 128
        %4294 = vxpose.xlu0.b32.cont [11/16] 0.0, 128
        %4295 = vxpose.xlu0.b32.cont [12/16] 0.0, 128
        %4296 = vxpose.xlu0.b32.cont [13/16] 0.0, 128
        %4297 = vxpose.xlu0.b32.cont [14/16] 0.0, 128
        %4298 = vxpose.xlu0.b32.cont [15/16] 0.0, 128
        %4299 = vxpose.xlu0.b32.end [16/16] 0.0, 128
        %v4300 = vpop.trf.xlu0
        %v4301 = vpop.trf.xlu0
        %v4302 = vpop.trf.xlu0
        %v4303 = vpop.trf.xlu0
        %v4304 = vpop.trf.xlu0
        %v4305 = vpop.trf.xlu0
        %v4306 = vpop.trf.xlu0
        %v4307 = vpop.trf.xlu0
        %v4308 = vpop.trf.xlu0
        %v4309 = vpop.trf.xlu0
        %v4310 = vpop.trf.xlu0
        %v4311 = vpop.trf.xlu0
        %v4312 = vpop.trf.xlu0
        %v4313 = vpop.trf.xlu0
        %v4314 = vpop.trf.xlu0
        %v4315 = vpop.trf.xlu0
        %4317 = vset.pattern.permute.xlu0 3
        %4318 = vperm.xlu0 %4317, %v4278
        %v4319 = vpop.permute.xlu0 %4318
        %4322 = vset.pattern.permute.xlu0 3
        %4323 = vperm.xlu0 %4322, %v4281
        %v4324 = vpop.permute.xlu0 %4323
        %v4326 = vlaneseq
        %v4327 = vshrl.u32 %v4326, 7
        %v4328 = vsub.s32 0, %v4327
        %v4329 = vrot.slane %v4300, %v4328
        %v4330 = vadd.f32 %v4319, %v4329
        %v4331 = vadd.f32 %v4324, %v4329
        %v4332 = vmul.f32 %v4330, 0.2
        %v4333 = vmul.f32 %v4331, 0.2
        %v4334 = vmax.f32 %v4330, %v4332
        %v4335 = vmax.f32 %v4331, %v4333
        %v4336 = vadd.f32 %v4334, %v1714
        %v4337 = vadd.f32 %v4335, %v1715
        %v4338 = vsel %vm2107, %v4336, -inf
        %4339 = vmax.xlane.f32.xlu0 %v4338
        %v4340 = vpop.xlane.xlu0 %4339
        %v4341 = vsel %vm2107, %v4337, -inf
        %4342 = vmax.xlane.f32.xlu0 %v4341
        %v4343 = vpop.xlane.xlu0 %4342
        %v4344 = vsub.f32 %v4336, %v4340
        %v4345 = vsub.f32 %v4337, %v4343
        %v4346 = vmul.f32 %v4344, 1.442695
        %v4347 = vpow.pop %v4346
        %v4348 = vmul.f32 %v4345, 1.442695
        %v4349 = vpow.pop %v4348
        %v4350 = vsel %vm2107, %v4347, 0.0
        %4351 = vadd.xlane.f32.xlu0 %v4350
        %v4352 = vpop.xlane.xlu0 %4351
        %v4353 = vsel %vm2107, %v4349, 0.0
        %4354 = vadd.xlane.f32.xlu0 %v4353
        %v4355 = vpop.xlane.xlu0 %4354
        %v4356 = vrcp.pop %v4352
        %v4357 = vrcp.pop %v4355
        %v4358 = vmul.f32 %v4347, %v4356
        %v4359 = vmul.f32 %v4349, %v4357
        %v4360 = vpack.c.bf16 %v4359, %v4358
        %v4362 = vsel %vm2107, %v4360, 0
        %4364 = vmatprep.subr.bf16.mxu0 0
        %4365 = vmatpush1.bf16.msra.mxu0 0
        %4366 = vmatprep.subr.bf16.mxu0 0
        %4367 = vmatpush1.bf16.msra.mxu0 0
        %4368 = vmatprep.subr.bf16.mxu0 0
        %4369 = vmatpush1.bf16.msra.mxu0 0
        %4370 = vmatprep.subr.bf16.mxu0 0
        %4371 = vmatpush1.bf16.msra.mxu0 0
        %4372 = vmatprep.subr.bf16.mxu0 0
        %4373 = vmatpush1.bf16.msra.mxu0 0
        %4374 = vmatprep.subr.bf16.mxu0 0
        %4375 = vmatpush1.bf16.msra.mxu0 0
        %4376 = vmatprep.subr.bf16.mxu0 0
        %4377 = vmatpush1.bf16.msra.mxu0 0
        %4378 = vmatprep.subr.bf16.mxu0 %v3772
        %4379 = vmatpush1.bf16.msra.mxu0 %v3771
        %4380 = vmatprep.subr.bf16.mxu0 0
        %4381 = vmatpush2.bf16.msra.mxu0 0
        %4382 = vmatprep.subr.bf16.mxu0 0
        %4383 = vmatpush2.bf16.msra.mxu0 0
        %4384 = vmatprep.subr.bf16.mxu0 0
        %4385 = vmatpush2.bf16.msra.mxu0 0
        %4386 = vmatprep.subr.bf16.mxu0 0
        %4387 = vmatpush2.bf16.msra.mxu0 0
        %4388 = vmatprep.subr.bf16.mxu0 0
        %4389 = vmatpush2.bf16.msra.mxu0 0
        %4390 = vmatprep.subr.bf16.mxu0 0
        %4391 = vmatpush2.bf16.msra.mxu0 0
        %4392 = vmatprep.subr.bf16.mxu0 0
        %4393 = vmatpush2.bf16.msra.mxu0 0
        %4394 = vmatprep.subr.bf16.mxu0 0
        %4395 = vmatpush2.bf16.msra.mxu0 0
        %4396 = vmatprep.mubr.bf16.mxu0 0
        %4397 = vmatmul.mubr.bf16.gmra.mxu0 %v4362
        %v4398 = vpop.f32.mrf.mxu0
        %v4399 = vadd.f32 0.0, %v4398
        %v4400 = vpop.f32.mrf.mxu0
        %v4401 = vadd.f32 0.0, %v4400
        %v4402 = vpop.f32.mrf.mxu0
        %v4403 = vadd.f32 0.0, %v4402
        %v4404 = vpop.f32.mrf.mxu0
        %v4405 = vadd.f32 0.0, %v4404
        %4406 = vdwg.mxu0
        %4407 = vset.pattern.permute.xlu0 4
        %4408 = vperm.xlu0 %4407, %v4278
        %v4409 = vpop.permute.xlu0 %4408
        %4411 = vset.pattern.permute.xlu0 4
        %4412 = vperm.xlu0 %4411, %v4281
        %v4413 = vpop.permute.xlu0 %4412
        %v4415 = vlaneseq
        %v4416 = vshrl.u32 %v4415, 7
        %v4417 = vsub.s32 1, %v4416
        %v4418 = vrot.slane %v4300, %v4417
        %v4419 = vadd.f32 %v4409, %v4418
        %v4420 = vadd.f32 %v4413, %v4418
        %v4421 = vmul.f32 %v4419, 0.2
        %v4422 = vmul.f32 %v4420, 0.2
        %v4423 = vmax.f32 %v4419, %v4421
        %v4424 = vmax.f32 %v4420, %v4422
        %v4425 = vadd.f32 %v4423, %v1714
        %v4426 = vadd.f32 %v4424, %v1715
        %v4427 = vsel %vm2107, %v4425, -inf
        %4428 = vmax.xlane.f32.xlu0 %v4427
        %v4429 = vpop.xlane.xlu0 %4428
        %v4430 = vsel %vm2107, %v4426, -inf
        %4431 = vmax.xlane.f32.xlu0 %v4430
        %v4432 = vpop.xlane.xlu0 %4431
        %v4433 = vsub.f32 %v4425, %v4429
        %v4434 = vsub.f32 %v4426, %v4432
        %v4435 = vmul.f32 %v4433, 1.442695
        %v4436 = vpow.pop %v4435
        %v4437 = vmul.f32 %v4434, 1.442695
        %v4438 = vpow.pop %v4437
        %v4439 = vsel %vm2107, %v4436, 0.0
        %4440 = vadd.xlane.f32.xlu0 %v4439
        %v4441 = vpop.xlane.xlu0 %4440
        %v4442 = vsel %vm2107, %v4438, 0.0
        %4443 = vadd.xlane.f32.xlu0 %v4442
        %v4444 = vpop.xlane.xlu0 %4443
        %v4445 = vrcp.pop %v4441
        %v4446 = vrcp.pop %v4444
        %v4447 = vmul.f32 %v4436, %v4445
        %v4448 = vmul.f32 %v4438, %v4446
        %v4449 = vpack.c.bf16 %v4448, %v4447
        %v4451 = vsel %vm2107, %v4449, 0
        %4453 = vmatprep.subr.bf16.mxu0 0
        %4454 = vmatpush1.bf16.msra.mxu0 0
        %4455 = vmatprep.subr.bf16.mxu0 0
        %4456 = vmatpush1.bf16.msra.mxu0 0
        %4457 = vmatprep.subr.bf16.mxu0 0
        %4458 = vmatpush1.bf16.msra.mxu0 0
        %4459 = vmatprep.subr.bf16.mxu0 0
        %4460 = vmatpush1.bf16.msra.mxu0 0
        %4461 = vmatprep.subr.bf16.mxu0 0
        %4462 = vmatpush1.bf16.msra.mxu0 0
        %4463 = vmatprep.subr.bf16.mxu0 0
        %4464 = vmatpush1.bf16.msra.mxu0 0
        %4465 = vmatprep.subr.bf16.mxu0 0
        %4466 = vmatpush1.bf16.msra.mxu0 0
        %4467 = vmatprep.subr.bf16.mxu0 %v3774
        %4468 = vmatpush1.bf16.msra.mxu0 %v3773
        %4469 = vmatprep.subr.bf16.mxu0 0
        %4470 = vmatpush2.bf16.msra.mxu0 0
        %4471 = vmatprep.subr.bf16.mxu0 0
        %4472 = vmatpush2.bf16.msra.mxu0 0
        %4473 = vmatprep.subr.bf16.mxu0 0
        %4474 = vmatpush2.bf16.msra.mxu0 0
        %4475 = vmatprep.subr.bf16.mxu0 0
        %4476 = vmatpush2.bf16.msra.mxu0 0
        %4477 = vmatprep.subr.bf16.mxu0 0
        %4478 = vmatpush2.bf16.msra.mxu0 0
        %4479 = vmatprep.subr.bf16.mxu0 0
        %4480 = vmatpush2.bf16.msra.mxu0 0
        %4481 = vmatprep.subr.bf16.mxu0 0
        %4482 = vmatpush2.bf16.msra.mxu0 0
        %4483 = vmatprep.subr.bf16.mxu0 0
        %4484 = vmatpush2.bf16.msra.mxu0 0
        %4485 = vmatprep.mubr.bf16.mxu0 0
        %4486 = vmatmul.mubr.bf16.gmra.mxu0 %v4451
        %v4487 = vpop.f32.mrf.mxu0
        %v4488 = vadd.f32 0.0, %v4487
        %v4489 = vpop.f32.mrf.mxu0
        %v4490 = vadd.f32 0.0, %v4489
        %v4491 = vpop.f32.mrf.mxu0
        %v4492 = vadd.f32 0.0, %v4491
        %v4493 = vpop.f32.mrf.mxu0
        %v4494 = vadd.f32 0.0, %v4493
        %4495 = vdwg.mxu0
        %4496 = vset.pattern.permute.xlu0 5
        %4497 = vperm.xlu0 %4496, %v4278
        %v4498 = vpop.permute.xlu0 %4497
        %4500 = vset.pattern.permute.xlu0 5
        %4501 = vperm.xlu0 %4500, %v4281
        %v4502 = vpop.permute.xlu0 %4501
        %v4504 = vlaneseq
        %v4505 = vshrl.u32 %v4504, 7
        %v4506 = vsub.s32 2, %v4505
        %v4507 = vrot.slane %v4300, %v4506
        %v4508 = vadd.f32 %v4498, %v4507
        %v4509 = vadd.f32 %v4502, %v4507
        %v4510 = vmul.f32 %v4508, 0.2
        %v4511 = vmul.f32 %v4509, 0.2
        %v4512 = vmax.f32 %v4508, %v4510
        %v4513 = vmax.f32 %v4509, %v4511
        %v4514 = vadd.f32 %v4512, %v1714
        %v4515 = vadd.f32 %v4513, %v1715
        %v4516 = vsel %vm2107, %v4514, -inf
        %4517 = vmax.xlane.f32.xlu0 %v4516
        %v4518 = vpop.xlane.xlu0 %4517
        %v4519 = vsel %vm2107, %v4515, -inf
        %4520 = vmax.xlane.f32.xlu0 %v4519
        %v4521 = vpop.xlane.xlu0 %4520
        %v4522 = vsub.f32 %v4514, %v4518
        %v4523 = vsub.f32 %v4515, %v4521
        %v4524 = vmul.f32 %v4522, 1.442695
        %v4525 = vpow.pop %v4524
        %v4526 = vmul.f32 %v4523, 1.442695
        %v4527 = vpow.pop %v4526
        %v4528 = vsel %vm2107, %v4525, 0.0
        %4529 = vadd.xlane.f32.xlu0 %v4528
        %v4530 = vpop.xlane.xlu0 %4529
        %v4531 = vsel %vm2107, %v4527, 0.0
        %4532 = vadd.xlane.f32.xlu0 %v4531
        %v4533 = vpop.xlane.xlu0 %4532
        %v4534 = vrcp.pop %v4530
        %v4535 = vrcp.pop %v4533
        %v4536 = vmul.f32 %v4525, %v4534
        %v4537 = vmul.f32 %v4527, %v4535
        %v4538 = vpack.c.bf16 %v4537, %v4536
        %v4540 = vsel %vm2107, %v4538, 0
        %4542 = vmatprep.subr.bf16.mxu0 0
        %4543 = vmatpush1.bf16.msra.mxu0 0
        %4544 = vmatprep.subr.bf16.mxu0 0
        %4545 = vmatpush1.bf16.msra.mxu0 0
        %4546 = vmatprep.subr.bf16.mxu0 0
        %4547 = vmatpush1.bf16.msra.mxu0 0
        %4548 = vmatprep.subr.bf16.mxu0 0
        %4549 = vmatpush1.bf16.msra.mxu0 0
        %4550 = vmatprep.subr.bf16.mxu0 0
        %4551 = vmatpush1.bf16.msra.mxu0 0
        %4552 = vmatprep.subr.bf16.mxu0 0
        %4553 = vmatpush1.bf16.msra.mxu0 0
        %4554 = vmatprep.subr.bf16.mxu0 0
        %4555 = vmatpush1.bf16.msra.mxu0 0
        %4556 = vmatprep.subr.bf16.mxu0 %v3776
        %4557 = vmatpush1.bf16.msra.mxu0 %v3775
        %4558 = vmatprep.subr.bf16.mxu0 0
        %4559 = vmatpush2.bf16.msra.mxu0 0
        %4560 = vmatprep.subr.bf16.mxu0 0
        %4561 = vmatpush2.bf16.msra.mxu0 0
        %4562 = vmatprep.subr.bf16.mxu0 0
        %4563 = vmatpush2.bf16.msra.mxu0 0
        %4564 = vmatprep.subr.bf16.mxu0 0
        %4565 = vmatpush2.bf16.msra.mxu0 0
        %4566 = vmatprep.subr.bf16.mxu0 0
        %4567 = vmatpush2.bf16.msra.mxu0 0
        %4568 = vmatprep.subr.bf16.mxu0 0
        %4569 = vmatpush2.bf16.msra.mxu0 0
        %4570 = vmatprep.subr.bf16.mxu0 0
        %4571 = vmatpush2.bf16.msra.mxu0 0
        %4572 = vmatprep.subr.bf16.mxu0 0
        %4573 = vmatpush2.bf16.msra.mxu0 0
        %4574 = vmatprep.mubr.bf16.mxu0 0
        %4575 = vmatmul.mubr.bf16.gmra.mxu0 %v4540
        %v4576 = vpop.f32.mrf.mxu0
        %v4577 = vadd.f32 0.0, %v4576
        %v4578 = vpop.f32.mrf.mxu0
        %v4579 = vadd.f32 0.0, %v4578
        %v4580 = vpop.f32.mrf.mxu0
        %v4581 = vadd.f32 0.0, %v4580
        %v4582 = vpop.f32.mrf.mxu0
        %v4583 = vadd.f32 0.0, %v4582
        %4584 = vdwg.mxu0
        %v4585 = vld [vmem:[#allocation28] sm:$0x3f]
        %v4587 = vlaneseq
        %v4588 = vshrl.u32 %v4587, 7
        %v4589 = vsub.s32 0, %v4588
        %v4590 = vrot.slane %v4585, %v4589
        %v4591 = vlaneseq
        %v4592 = vshrl.u32 %v4591, 7
        %v4593 = vsub.s32 1, %v4592
        %v4594 = vrot.slane %v4585, %v4593
        %v4595 = vlaneseq
        %v4596 = vshrl.u32 %v4595, 7
        %v4597 = vsub.s32 2, %v4596
        %v4598 = vrot.slane %v4585, %v4597
        %v4599 = vlaneseq
        %v4600 = vshrl.u32 %v4599, 7
        %v4601 = vsub.s32 3, %v4600
        %v4602 = vrot.slane %v4585, %v4601
        %v4603 = vlaneseq
        %v4604 = vshrl.u32 %v4603, 7
        %v4605 = vsub.s32 4, %v4604
        %v4606 = vrot.slane %v4585, %v4605
        %v4607 = vlaneseq
        %v4608 = vshrl.u32 %v4607, 7
        %v4609 = vsub.s32 5, %v4608
        %v4610 = vrot.slane %v4585, %v4609
        %v4617 = vadd.f32 %v4399, %v4590
        %v4618 = vadd.f32 %v4401, %v4594
        %v4619 = vadd.f32 %v4488, %v4598
        %v4620 = vadd.f32 %v4490, %v4602
        %v4621 = vadd.f32 %v4577, %v4606
        %v4622 = vadd.f32 %v4579, %v4610
        %v4623 = vadd.f32 %v4403, %v4590
        %v4624 = vadd.f32 %v4405, %v4594
        %v4625 = vadd.f32 %v4492, %v4598
        %v4626 = vadd.f32 %v4494, %v4602
        %v4627 = vadd.f32 %v4581, %v4606
        %v4628 = vadd.f32 %v4583, %v4610
        %v4629 = vmax.f32 %v4617, 0.0
        %v4630 = vmax.f32 %v4618, 0.0
        %v4631 = vmax.f32 %v4619, 0.0
        %v4632 = vmax.f32 %v4620, 0.0
        %v4633 = vmax.f32 %v4621, 0.0
        %v4634 = vmax.f32 %v4622, 0.0
        %v4635 = vmax.f32 %v4623, 0.0
        %v4636 = vmax.f32 %v4624, 0.0
        %v4637 = vmax.f32 %v4625, 0.0
        %v4638 = vmax.f32 %v4626, 0.0
        %v4639 = vmax.f32 %v4627, 0.0
        %v4640 = vmax.f32 %v4628, 0.0
        %v4641 = vld [vmem:[#allocation30] sm:$0x3f]
        %v4643 = vlaneseq
        %v4644 = vshrl.u32 %v4643, 7
        %v4645 = vsub.s32 0, %v4644
        %v4646 = vrot.slane %v4641, %v4645
        %v4647 = vlaneseq
        %v4648 = vshrl.u32 %v4647, 7
        %v4649 = vsub.s32 1, %v4648
        %v4650 = vrot.slane %v4641, %v4649
        %v4651 = vlaneseq
        %v4652 = vshrl.u32 %v4651, 7
        %v4653 = vsub.s32 2, %v4652
        %v4654 = vrot.slane %v4641, %v4653
        %v4655 = vlaneseq
        %v4656 = vshrl.u32 %v4655, 7
        %v4657 = vsub.s32 3, %v4656
        %v4658 = vrot.slane %v4641, %v4657
        %v4659 = vlaneseq
        %v4660 = vshrl.u32 %v4659, 7
        %v4661 = vsub.s32 4, %v4660
        %v4662 = vrot.slane %v4641, %v4661
        %v4663 = vlaneseq
        %v4664 = vshrl.u32 %v4663, 7
        %v4665 = vsub.s32 5, %v4664
        %v4666 = vrot.slane %v4641, %v4665
        %v4673 = vmul.f32 %v4629, %v4646
        %v4674 = vmul.f32 %v4630, %v4650
        %v4675 = vmul.f32 %v4631, %v4654
        %v4676 = vmul.f32 %v4632, %v4658
        %v4677 = vmul.f32 %v4633, %v4662
        %v4678 = vmul.f32 %v4634, %v4666
        %v4679 = vmul.f32 %v4635, %v4646
        %v4680 = vmul.f32 %v4636, %v4650
        %v4681 = vmul.f32 %v4637, %v4654
        %v4682 = vmul.f32 %v4638, %v4658
        %v4683 = vmul.f32 %v4639, %v4662
        %v4684 = vmul.f32 %v4640, %v4666
        %v4685 = vld [vmem:[#allocation31] sm:$0x3f]
        %v4687 = vlaneseq
        %v4688 = vshrl.u32 %v4687, 7
        %v4689 = vsub.s32 0, %v4688
        %v4690 = vrot.slane %v4685, %v4689
        %v4691 = vlaneseq
        %v4692 = vshrl.u32 %v4691, 7
        %v4693 = vsub.s32 1, %v4692
        %v4694 = vrot.slane %v4685, %v4693
        %v4695 = vlaneseq
        %v4696 = vshrl.u32 %v4695, 7
        %v4697 = vsub.s32 2, %v4696
        %v4698 = vrot.slane %v4685, %v4697
        %v4699 = vlaneseq
        %v4700 = vshrl.u32 %v4699, 7
        %v4701 = vsub.s32 3, %v4700
        %v4702 = vrot.slane %v4685, %v4701
        %v4703 = vlaneseq
        %v4704 = vshrl.u32 %v4703, 7
        %v4705 = vsub.s32 4, %v4704
        %v4706 = vrot.slane %v4685, %v4705
        %v4707 = vlaneseq
        %v4708 = vshrl.u32 %v4707, 7
        %v4709 = vsub.s32 5, %v4708
        %v4710 = vrot.slane %v4685, %v4709
        %v4717 = vadd.f32 %v4673, %v4690
        %v4718 = vadd.f32 %v4674, %v4694
        %v4719 = vadd.f32 %v4675, %v4698
        %v4720 = vadd.f32 %v4676, %v4702
        %v4721 = vadd.f32 %v4677, %v4706
        %v4722 = vadd.f32 %v4678, %v4710
        %v4723 = vadd.f32 %v4679, %v4690
        %v4724 = vadd.f32 %v4680, %v4694
        %v4725 = vadd.f32 %v4681, %v4698
        %v4726 = vadd.f32 %v4682, %v4702
        %v4727 = vadd.f32 %v4683, %v4706
        %v4728 = vadd.f32 %v4684, %v4710
        %v4729 = vpack.c.bf16 %v4723, %v4717
        %v4730 = vpack.c.bf16 %v4724, %v4718
        %v4731 = vpack.c.bf16 %v4725, %v4719
        %v4732 = vpack.c.bf16 %v4726, %v4720
        %v4733 = vpack.c.bf16 %v4727, %v4721
        %v4734 = vpack.c.bf16 %v4728, %v4722
        %v4735 = vld [vmem:[#allocation33] sm:$0xff]
        %v4736 = vld [vmem:[#allocation33 + $0x8] sm:$0xf]
        %v4737 = vld [vmem:[#allocation33 + $0xc] sm:$0xff]
        %v4738 = vld [vmem:[#allocation33 + $0x14] sm:$0xf]
        %v4739 = vld [vmem:[#allocation33 + $0x18] sm:$0xff]
        %v4740 = vld [vmem:[#allocation33 + $0x20] sm:$0xf]
        %v4741 = vld [vmem:[#allocation33 + $0x24] sm:$0xff]
        %v4742 = vld [vmem:[#allocation33 + $0x2c] sm:$0xf]
        %v4743 = vld [vmem:[#allocation33 + $0x30] sm:$0xff]
        %v4744 = vld [vmem:[#allocation33 + $0x38] sm:$0xf]
        %v4745 = vld [vmem:[#allocation33 + $0x3c] sm:$0xff]
        %v4746 = vld [vmem:[#allocation33 + $0x44] sm:$0xf]
        %v4747 = vld [vmem:[#allocation33 + $0x48] sm:$0xff]
        %v4748 = vld [vmem:[#allocation33 + $0x50] sm:$0xf]
        %v4749 = vld [vmem:[#allocation33 + $0x54] sm:$0xff]
        %v4750 = vld [vmem:[#allocation33 + $0x5c] sm:$0xf]
        %v4751 = vld [vmem:[#allocation33 + $0x60] sm:$0xff]
        %v4752 = vld [vmem:[#allocation33 + $0x68] sm:$0xf]
        %v4753 = vld [vmem:[#allocation33 + $0x6c] sm:$0xff]
        %v4754 = vld [vmem:[#allocation33 + $0x74] sm:$0xf]
        %v4755 = vld [vmem:[#allocation33 + $0x78] sm:$0xff]
        %v4756 = vld [vmem:[#allocation33 + $0x80] sm:$0xf]
        %v4757 = vld [vmem:[#allocation33 + $0x84] sm:$0xff]
        %v4758 = vld [vmem:[#allocation33 + $0x8c] sm:$0xf]
        %v4759 = vld [vmem:[#allocation33 + $0x90] sm:$0xff]
        %v4760 = vld [vmem:[#allocation33 + $0x98] sm:$0xf]
        %v4761 = vld [vmem:[#allocation33 + $0x9c] sm:$0xff]
        %v4762 = vld [vmem:[#allocation33 + $0xa4] sm:$0xf]
        %v4763 = vld [vmem:[#allocation33 + $0xa8] sm:$0xff]
        %v4764 = vld [vmem:[#allocation33 + $0xb0] sm:$0xf]
        %v4765 = vld [vmem:[#allocation33 + $0xb4] sm:$0xff]
        %v4766 = vld [vmem:[#allocation33 + $0xbc] sm:$0xf]
        %v4767 = vld [vmem:[#allocation33 + $0xc0] sm:$0xff]
        %v4768 = vld [vmem:[#allocation33 + $0xc8] sm:$0xf]
        %v4769 = vld [vmem:[#allocation33 + $0xcc] sm:$0xff]
        %v4770 = vld [vmem:[#allocation33 + $0xd4] sm:$0xf]
        %v4771 = vld [vmem:[#allocation33 + $0xd8] sm:$0xff]
        %v4772 = vld [vmem:[#allocation33 + $0xe0] sm:$0xf]
        %v4773 = vld [vmem:[#allocation33 + $0xe4] sm:$0xff]
        %v4774 = vld [vmem:[#allocation33 + $0xec] sm:$0xf]
        %v4775 = vld [vmem:[#allocation33 + $0xf0] sm:$0xff]
        %v4776 = vld [vmem:[#allocation33 + $0xf8] sm:$0xf]
        %v4777 = vld [vmem:[#allocation33 + $0xfc] sm:$0xff]
        %v4778 = vld [vmem:[#allocation33 + $0x104] sm:$0xf]
        %v4779 = vld [vmem:[#allocation33 + $0x108] sm:$0xff]
        %v4780 = vld [vmem:[#allocation33 + $0x110] sm:$0xf]
        %v4781 = vld [vmem:[#allocation33 + $0x114] sm:$0xff]
        %v4782 = vld [vmem:[#allocation33 + $0x11c] sm:$0xf]
        %v4783 = vld [vmem:[#allocation33 + $0x120] sm:$0xff]
        %v4784 = vld [vmem:[#allocation33 + $0x128] sm:$0xf]
        %v4785 = vld [vmem:[#allocation33 + $0x12c] sm:$0xff]
        %v4786 = vld [vmem:[#allocation33 + $0x134] sm:$0xf]
        %v4787 = vld [vmem:[#allocation33 + $0x138] sm:$0xff]
        %v4788 = vld [vmem:[#allocation33 + $0x140] sm:$0xf]
        %v4789 = vld [vmem:[#allocation33 + $0x144] sm:$0xff]
        %v4790 = vld [vmem:[#allocation33 + $0x14c] sm:$0xf]
        %v4791 = vld [vmem:[#allocation33 + $0x150] sm:$0xff]
        %v4792 = vld [vmem:[#allocation33 + $0x158] sm:$0xf]
        %v4793 = vld [vmem:[#allocation33 + $0x15c] sm:$0xff]
        %v4794 = vld [vmem:[#allocation33 + $0x164] sm:$0xf]
        %v4795 = vld [vmem:[#allocation33 + $0x168] sm:$0xff]
        %v4796 = vld [vmem:[#allocation33 + $0x170] sm:$0xf]
        %v4797 = vld [vmem:[#allocation33 + $0x174] sm:$0xff]
        %v4798 = vld [vmem:[#allocation33 + $0x17c] sm:$0xf]
        %v4799 = vld [vmem:[#allocation33 + $0x180] sm:$0xff]
        %v4800 = vld [vmem:[#allocation33 + $0x188] sm:$0xf]
        %v4801 = vld [vmem:[#allocation33 + $0x18c] sm:$0xff]
        %v4802 = vld [vmem:[#allocation33 + $0x194] sm:$0xf]
        %v4803 = vld [vmem:[#allocation33 + $0x198] sm:$0xff]
        %v4804 = vld [vmem:[#allocation33 + $0x1a0] sm:$0xf]
        %v4805 = vld [vmem:[#allocation33 + $0x1a4] sm:$0xff]
        %v4806 = vld [vmem:[#allocation33 + $0x1ac] sm:$0xf]
        %v4807 = vld [vmem:[#allocation33 + $0x1b0] sm:$0xff]
        %v4808 = vld [vmem:[#allocation33 + $0x1b8] sm:$0xf]
        %v4809 = vld [vmem:[#allocation33 + $0x1bc] sm:$0xff]
        %v4810 = vld [vmem:[#allocation33 + $0x1c4] sm:$0xf]
        %v4811 = vld [vmem:[#allocation33 + $0x1c8] sm:$0xff]
        %v4812 = vld [vmem:[#allocation33 + $0x1d0] sm:$0xf]
        %v4813 = vld [vmem:[#allocation33 + $0x1d4] sm:$0xff]
        %v4814 = vld [vmem:[#allocation33 + $0x1dc] sm:$0xf]
        %v4815 = vld [vmem:[#allocation33 + $0x1e0] sm:$0xff]
        %v4816 = vld [vmem:[#allocation33 + $0x1e8] sm:$0xf]
        %v4817 = vld [vmem:[#allocation33 + $0x1ec] sm:$0xff]
        %v4818 = vld [vmem:[#allocation33 + $0x1f4] sm:$0xf]
        %v4819 = vld [vmem:[#allocation33 + $0x1f8] sm:$0xff]
        %v4820 = vld [vmem:[#allocation33 + $0x200] sm:$0xf]
        %v4821 = vld [vmem:[#allocation33 + $0x204] sm:$0xff]
        %v4822 = vld [vmem:[#allocation33 + $0x20c] sm:$0xf]
        %v4823 = vld [vmem:[#allocation33 + $0x210] sm:$0xff]
        %v4824 = vld [vmem:[#allocation33 + $0x218] sm:$0xf]
        %v4825 = vld [vmem:[#allocation33 + $0x21c] sm:$0xff]
        %v4826 = vld [vmem:[#allocation33 + $0x224] sm:$0xf]
        %v4827 = vld [vmem:[#allocation33 + $0x228] sm:$0xff]
        %v4828 = vld [vmem:[#allocation33 + $0x230] sm:$0xf]
        %v4829 = vld [vmem:[#allocation33 + $0x234] sm:$0xff]
        %v4830 = vld [vmem:[#allocation33 + $0x23c] sm:$0xf]
        %v4831 = vld [vmem:[#allocation33 + $0x240] sm:$0xff]
        %v4832 = vld [vmem:[#allocation33 + $0x248] sm:$0xf]
        %v4833 = vld [vmem:[#allocation33 + $0x24c] sm:$0xff]
        %v4834 = vld [vmem:[#allocation33 + $0x254] sm:$0xf]
        %v4835 = vld [vmem:[#allocation33 + $0x258] sm:$0xff]
        %v4836 = vld [vmem:[#allocation33 + $0x260] sm:$0xf]
        %v4837 = vld [vmem:[#allocation33 + $0x264] sm:$0xff]
        %v4838 = vld [vmem:[#allocation33 + $0x26c] sm:$0xf]
        %v4839 = vld [vmem:[#allocation33 + $0x270] sm:$0xff]
        %v4840 = vld [vmem:[#allocation33 + $0x278] sm:$0xf]
        %v4841 = vld [vmem:[#allocation33 + $0x27c] sm:$0xff]
        %v4842 = vld [vmem:[#allocation33 + $0x284] sm:$0xf]
        %v4843 = vld [vmem:[#allocation33 + $0x288] sm:$0xff]
        %v4844 = vld [vmem:[#allocation33 + $0x290] sm:$0xf]
        %v4845 = vld [vmem:[#allocation33 + $0x294] sm:$0xff]
        %v4846 = vld [vmem:[#allocation33 + $0x29c] sm:$0xf]
        %v4847 = vld [vmem:[#allocation33 + $0x2a0] sm:$0xff]
        %v4848 = vld [vmem:[#allocation33 + $0x2a8] sm:$0xf]
        %v4849 = vld [vmem:[#allocation33 + $0x2ac] sm:$0xff]
        %v4850 = vld [vmem:[#allocation33 + $0x2b4] sm:$0xf]
        %v4851 = vld [vmem:[#allocation33 + $0x2b8] sm:$0xff]
        %v4852 = vld [vmem:[#allocation33 + $0x2c0] sm:$0xf]
        %v4853 = vld [vmem:[#allocation33 + $0x2c4] sm:$0xff]
        %v4854 = vld [vmem:[#allocation33 + $0x2cc] sm:$0xf]
        %v4855 = vld [vmem:[#allocation33 + $0x2d0] sm:$0xff]
        %v4856 = vld [vmem:[#allocation33 + $0x2d8] sm:$0xf]
        %v4857 = vld [vmem:[#allocation33 + $0x2dc] sm:$0xff]
        %v4858 = vld [vmem:[#allocation33 + $0x2e4] sm:$0xf]
        %v4859 = vld [vmem:[#allocation33 + $0x2e8] sm:$0xff]
        %v4860 = vld [vmem:[#allocation33 + $0x2f0] sm:$0xf]
        %v4861 = vld [vmem:[#allocation33 + $0x2f4] sm:$0xff]
        %v4862 = vld [vmem:[#allocation33 + $0x2fc] sm:$0xf]
        %v4863 = vld [vmem:[#allocation33 + $0x300] sm:$0xff]
        %v4864 = vld [vmem:[#allocation33 + $0x308] sm:$0xf]
        %v4865 = vld [vmem:[#allocation33 + $0x30c] sm:$0xff]
        %v4866 = vld [vmem:[#allocation33 + $0x314] sm:$0xf]
        %v4867 = vld [vmem:[#allocation33 + $0x318] sm:$0xff]
        %v4868 = vld [vmem:[#allocation33 + $0x320] sm:$0xf]
        %v4869 = vld [vmem:[#allocation33 + $0x324] sm:$0xff]
        %v4870 = vld [vmem:[#allocation33 + $0x32c] sm:$0xf]
        %v4871 = vld [vmem:[#allocation33 + $0x330] sm:$0xff]
        %v4872 = vld [vmem:[#allocation33 + $0x338] sm:$0xf]
        %v4873 = vld [vmem:[#allocation33 + $0x33c] sm:$0xff]
        %v4874 = vld [vmem:[#allocation33 + $0x344] sm:$0xf]
        %v4875 = vld [vmem:[#allocation33 + $0x348] sm:$0xff]
        %v4876 = vld [vmem:[#allocation33 + $0x350] sm:$0xf]
        %v4877 = vld [vmem:[#allocation33 + $0x354] sm:$0xff]
        %v4878 = vld [vmem:[#allocation33 + $0x35c] sm:$0xf]
        %v4879 = vld [vmem:[#allocation33 + $0x360] sm:$0xff]
        %v4880 = vld [vmem:[#allocation33 + $0x368] sm:$0xf]
        %v4881 = vld [vmem:[#allocation33 + $0x36c] sm:$0xff]
        %v4882 = vld [vmem:[#allocation33 + $0x374] sm:$0xf]
        %v4883 = vld [vmem:[#allocation33 + $0x378] sm:$0xff]
        %v4884 = vld [vmem:[#allocation33 + $0x380] sm:$0xf]
        %v4885 = vld [vmem:[#allocation33 + $0x384] sm:$0xff]
        %v4886 = vld [vmem:[#allocation33 + $0x38c] sm:$0xf]
        %v4887 = vld [vmem:[#allocation33 + $0x390] sm:$0xff]
        %v4888 = vld [vmem:[#allocation33 + $0x398] sm:$0xf]
        %v4889 = vld [vmem:[#allocation33 + $0x39c] sm:$0xff]
        %v4890 = vld [vmem:[#allocation33 + $0x3a4] sm:$0xf]
        %v4891 = vld [vmem:[#allocation33 + $0x3a8] sm:$0xff]
        %v4892 = vld [vmem:[#allocation33 + $0x3b0] sm:$0xf]
        %v4893 = vld [vmem:[#allocation33 + $0x3b4] sm:$0xff]
        %v4894 = vld [vmem:[#allocation33 + $0x3bc] sm:$0xf]
        %v4895 = vld [vmem:[#allocation33 + $0x3c0] sm:$0xff]
        %v4896 = vld [vmem:[#allocation33 + $0x3c8] sm:$0xf]
        %v4897 = vld [vmem:[#allocation33 + $0x3cc] sm:$0xff]
        %v4898 = vld [vmem:[#allocation33 + $0x3d4] sm:$0xf]
        %v4899 = vld [vmem:[#allocation33 + $0x3d8] sm:$0xff]
        %v4900 = vld [vmem:[#allocation33 + $0x3e0] sm:$0xf]
        %v4901 = vld [vmem:[#allocation33 + $0x3e4] sm:$0xff]
        %v4902 = vld [vmem:[#allocation33 + $0x3ec] sm:$0xf]
        %v4903 = vld [vmem:[#allocation33 + $0x3f0] sm:$0xff]
        %v4904 = vld [vmem:[#allocation33 + $0x3f8] sm:$0xf]
        %v4905 = vld [vmem:[#allocation33 + $0x3fc] sm:$0xff]
        %v4906 = vld [vmem:[#allocation33 + $0x404] sm:$0xf]
        %v4907 = vld [vmem:[#allocation33 + $0x408] sm:$0xff]
        %v4908 = vld [vmem:[#allocation33 + $0x410] sm:$0xf]
        %v4909 = vld [vmem:[#allocation33 + $0x414] sm:$0xff]
        %v4910 = vld [vmem:[#allocation33 + $0x41c] sm:$0xf]
        %v4911 = vld [vmem:[#allocation33 + $0x420] sm:$0xff]
        %v4912 = vld [vmem:[#allocation33 + $0x428] sm:$0xf]
        %v4913 = vld [vmem:[#allocation33 + $0x42c] sm:$0xff]
        %v4914 = vld [vmem:[#allocation33 + $0x434] sm:$0xf]
        %v4915 = vld [vmem:[#allocation33 + $0x438] sm:$0xff]
        %v4916 = vld [vmem:[#allocation33 + $0x440] sm:$0xf]
        %v4917 = vld [vmem:[#allocation33 + $0x444] sm:$0xff]
        %v4918 = vld [vmem:[#allocation33 + $0x44c] sm:$0xf]
        %v4919 = vld [vmem:[#allocation33 + $0x450] sm:$0xff]
        %v4920 = vld [vmem:[#allocation33 + $0x458] sm:$0xf]
        %v4921 = vld [vmem:[#allocation33 + $0x45c] sm:$0xff]
        %v4922 = vld [vmem:[#allocation33 + $0x464] sm:$0xf]
        %v4923 = vld [vmem:[#allocation33 + $0x468] sm:$0xff]
        %v4924 = vld [vmem:[#allocation33 + $0x470] sm:$0xf]
        %v4925 = vld [vmem:[#allocation33 + $0x474] sm:$0xff]
        %v4926 = vld [vmem:[#allocation33 + $0x47c] sm:$0xf]
        %v5119 = vunpack.c.l.b16 %v4735
        %v5120 = vunpack.c.h.b16 %v4735
        %v5121 = vunpack.c.l.b16 %v4736
        %v5122 = vunpack.c.l.b16 %v4737
        %v5123 = vunpack.c.h.b16 %v4737
        %v5124 = vunpack.c.l.b16 %v4738
        %v5125 = vunpack.c.l.b16 %v4739
        %v5126 = vunpack.c.h.b16 %v4739
        %v5127 = vunpack.c.l.b16 %v4740
        %v5128 = vunpack.c.l.b16 %v4741
        %v5129 = vunpack.c.h.b16 %v4741
        %v5130 = vunpack.c.l.b16 %v4742
        %v5131 = vunpack.c.l.b16 %v4743
        %v5132 = vunpack.c.h.b16 %v4743
        %v5133 = vunpack.c.l.b16 %v4744
        %v5134 = vunpack.c.l.b16 %v4745
        %v5135 = vunpack.c.h.b16 %v4745
        %v5136 = vunpack.c.l.b16 %v4746
        %v5137 = vunpack.c.l.b16 %v4747
        %v5138 = vunpack.c.h.b16 %v4747
        %v5139 = vunpack.c.l.b16 %v4748
        %v5140 = vunpack.c.l.b16 %v4749
        %v5141 = vunpack.c.h.b16 %v4749
        %v5142 = vunpack.c.l.b16 %v4750
        %v5143 = vunpack.c.l.b16 %v4751
        %v5144 = vunpack.c.h.b16 %v4751
        %v5145 = vunpack.c.l.b16 %v4752
        %v5146 = vunpack.c.l.b16 %v4753
        %v5147 = vunpack.c.h.b16 %v4753
        %v5148 = vunpack.c.l.b16 %v4754
        %v5149 = vunpack.c.l.b16 %v4755
        %v5150 = vunpack.c.h.b16 %v4755
        %v5151 = vunpack.c.l.b16 %v4756
        %v5152 = vunpack.c.l.b16 %v4757
        %v5153 = vunpack.c.h.b16 %v4757
        %v5154 = vunpack.c.l.b16 %v4758
        %v5155 = vunpack.c.l.b16 %v4759
        %v5156 = vunpack.c.h.b16 %v4759
        %v5157 = vunpack.c.l.b16 %v4760
        %v5158 = vunpack.c.l.b16 %v4761
        %v5159 = vunpack.c.h.b16 %v4761
        %v5160 = vunpack.c.l.b16 %v4762
        %v5161 = vunpack.c.l.b16 %v4763
        %v5162 = vunpack.c.h.b16 %v4763
        %v5163 = vunpack.c.l.b16 %v4764
        %v5164 = vunpack.c.l.b16 %v4765
        %v5165 = vunpack.c.h.b16 %v4765
        %v5166 = vunpack.c.l.b16 %v4766
        %v5167 = vunpack.c.l.b16 %v4767
        %v5168 = vunpack.c.h.b16 %v4767
        %v5169 = vunpack.c.l.b16 %v4768
        %v5170 = vunpack.c.l.b16 %v4769
        %v5171 = vunpack.c.h.b16 %v4769
        %v5172 = vunpack.c.l.b16 %v4770
        %v5173 = vunpack.c.l.b16 %v4771
        %v5174 = vunpack.c.h.b16 %v4771
        %v5175 = vunpack.c.l.b16 %v4772
        %v5176 = vunpack.c.l.b16 %v4773
        %v5177 = vunpack.c.h.b16 %v4773
        %v5178 = vunpack.c.l.b16 %v4774
        %v5179 = vunpack.c.l.b16 %v4775
        %v5180 = vunpack.c.h.b16 %v4775
        %v5181 = vunpack.c.l.b16 %v4776
        %v5182 = vunpack.c.l.b16 %v4777
        %v5183 = vunpack.c.h.b16 %v4777
        %v5184 = vunpack.c.l.b16 %v4778
        %v5185 = vunpack.c.l.b16 %v4779
        %v5186 = vunpack.c.h.b16 %v4779
        %v5187 = vunpack.c.l.b16 %v4780
        %v5188 = vunpack.c.l.b16 %v4781
        %v5189 = vunpack.c.h.b16 %v4781
        %v5190 = vunpack.c.l.b16 %v4782
        %v5191 = vunpack.c.l.b16 %v4783
        %v5192 = vunpack.c.h.b16 %v4783
        %v5193 = vunpack.c.l.b16 %v4784
        %v5194 = vunpack.c.l.b16 %v4785
        %v5195 = vunpack.c.h.b16 %v4785
        %v5196 = vunpack.c.l.b16 %v4786
        %v5197 = vunpack.c.l.b16 %v4787
        %v5198 = vunpack.c.h.b16 %v4787
        %v5199 = vunpack.c.l.b16 %v4788
        %v5200 = vunpack.c.l.b16 %v4789
        %v5201 = vunpack.c.h.b16 %v4789
        %v5202 = vunpack.c.l.b16 %v4790
        %v5203 = vunpack.c.l.b16 %v4791
        %v5204 = vunpack.c.h.b16 %v4791
        %v5205 = vunpack.c.l.b16 %v4792
        %v5206 = vunpack.c.l.b16 %v4793
        %v5207 = vunpack.c.h.b16 %v4793
        %v5208 = vunpack.c.l.b16 %v4794
        %v5209 = vunpack.c.l.b16 %v4795
        %v5210 = vunpack.c.h.b16 %v4795
        %v5211 = vunpack.c.l.b16 %v4796
        %v5212 = vunpack.c.l.b16 %v4797
        %v5213 = vunpack.c.h.b16 %v4797
        %v5214 = vunpack.c.l.b16 %v4798
        %v5215 = vunpack.c.l.b16 %v4799
        %v5216 = vunpack.c.h.b16 %v4799
        %v5217 = vunpack.c.l.b16 %v4800
        %v5218 = vunpack.c.l.b16 %v4801
        %v5219 = vunpack.c.h.b16 %v4801
        %v5220 = vunpack.c.l.b16 %v4802
        %v5221 = vunpack.c.l.b16 %v4803
        %v5222 = vunpack.c.h.b16 %v4803
        %v5223 = vunpack.c.l.b16 %v4804
        %v5224 = vunpack.c.l.b16 %v4805
        %v5225 = vunpack.c.h.b16 %v4805
        %v5226 = vunpack.c.l.b16 %v4806
        %v5227 = vunpack.c.l.b16 %v4807
        %v5228 = vunpack.c.h.b16 %v4807
        %v5229 = vunpack.c.l.b16 %v4808
        %v5230 = vunpack.c.l.b16 %v4809
        %v5231 = vunpack.c.h.b16 %v4809
        %v5232 = vunpack.c.l.b16 %v4810
        %v5233 = vunpack.c.l.b16 %v4811
        %v5234 = vunpack.c.h.b16 %v4811
        %v5235 = vunpack.c.l.b16 %v4812
        %v5236 = vunpack.c.l.b16 %v4813
        %v5237 = vunpack.c.h.b16 %v4813
        %v5238 = vunpack.c.l.b16 %v4814
        %v5239 = vunpack.c.l.b16 %v4815
        %v5240 = vunpack.c.h.b16 %v4815
        %v5241 = vunpack.c.l.b16 %v4816
        %v5242 = vunpack.c.l.b16 %v4817
        %v5243 = vunpack.c.h.b16 %v4817
        %v5244 = vunpack.c.l.b16 %v4818
        %v5245 = vunpack.c.l.b16 %v4819
        %v5246 = vunpack.c.h.b16 %v4819
        %v5247 = vunpack.c.l.b16 %v4820
        %v5248 = vunpack.c.l.b16 %v4821
        %v5249 = vunpack.c.h.b16 %v4821
        %v5250 = vunpack.c.l.b16 %v4822
        %v5251 = vunpack.c.l.b16 %v4823
        %v5252 = vunpack.c.h.b16 %v4823
        %v5253 = vunpack.c.l.b16 %v4824
        %v5254 = vunpack.c.l.b16 %v4825
        %v5255 = vunpack.c.h.b16 %v4825
        %v5256 = vunpack.c.l.b16 %v4826
        %v5257 = vunpack.c.l.b16 %v4827
        %v5258 = vunpack.c.h.b16 %v4827
        %v5259 = vunpack.c.l.b16 %v4828
        %v5260 = vunpack.c.l.b16 %v4829
        %v5261 = vunpack.c.h.b16 %v4829
        %v5262 = vunpack.c.l.b16 %v4830
        %v5263 = vunpack.c.l.b16 %v4831
        %v5264 = vunpack.c.h.b16 %v4831
        %v5265 = vunpack.c.l.b16 %v4832
        %v5266 = vunpack.c.l.b16 %v4833
        %v5267 = vunpack.c.h.b16 %v4833
        %v5268 = vunpack.c.l.b16 %v4834
        %v5269 = vunpack.c.l.b16 %v4835
        %v5270 = vunpack.c.h.b16 %v4835
        %v5271 = vunpack.c.l.b16 %v4836
        %v5272 = vunpack.c.l.b16 %v4837
        %v5273 = vunpack.c.h.b16 %v4837
        %v5274 = vunpack.c.l.b16 %v4838
        %v5275 = vunpack.c.l.b16 %v4839
        %v5276 = vunpack.c.h.b16 %v4839
        %v5277 = vunpack.c.l.b16 %v4840
        %v5278 = vunpack.c.l.b16 %v4841
        %v5279 = vunpack.c.h.b16 %v4841
        %v5280 = vunpack.c.l.b16 %v4842
        %v5281 = vunpack.c.l.b16 %v4843
        %v5282 = vunpack.c.h.b16 %v4843
        %v5283 = vunpack.c.l.b16 %v4844
        %v5284 = vunpack.c.l.b16 %v4845
        %v5285 = vunpack.c.h.b16 %v4845
        %v5286 = vunpack.c.l.b16 %v4846
        %v5287 = vunpack.c.l.b16 %v4847
        %v5288 = vunpack.c.h.b16 %v4847
        %v5289 = vunpack.c.l.b16 %v4848
        %v5290 = vunpack.c.l.b16 %v4849
        %v5291 = vunpack.c.h.b16 %v4849
        %v5292 = vunpack.c.l.b16 %v4850
        %v5293 = vunpack.c.l.b16 %v4851
        %v5294 = vunpack.c.h.b16 %v4851
        %v5295 = vunpack.c.l.b16 %v4852
        %v5296 = vunpack.c.l.b16 %v4853
        %v5297 = vunpack.c.h.b16 %v4853
        %v5298 = vunpack.c.l.b16 %v4854
        %v5299 = vunpack.c.l.b16 %v4855
        %v5300 = vunpack.c.h.b16 %v4855
        %v5301 = vunpack.c.l.b16 %v4856
        %v5302 = vunpack.c.l.b16 %v4857
        %v5303 = vunpack.c.h.b16 %v4857
        %v5304 = vunpack.c.l.b16 %v4858
        %v5305 = vunpack.c.l.b16 %v4859
        %v5306 = vunpack.c.h.b16 %v4859
        %v5307 = vunpack.c.l.b16 %v4860
        %v5308 = vunpack.c.l.b16 %v4861
        %v5309 = vunpack.c.h.b16 %v4861
        %v5310 = vunpack.c.l.b16 %v4862
        %v5311 = vunpack.c.l.b16 %v4863
        %v5312 = vunpack.c.h.b16 %v4863
        %v5313 = vunpack.c.l.b16 %v4864
        %v5314 = vunpack.c.l.b16 %v4865
        %v5315 = vunpack.c.h.b16 %v4865
        %v5316 = vunpack.c.l.b16 %v4866
        %v5317 = vunpack.c.l.b16 %v4867
        %v5318 = vunpack.c.h.b16 %v4867
        %v5319 = vunpack.c.l.b16 %v4868
        %v5320 = vunpack.c.l.b16 %v4869
        %v5321 = vunpack.c.h.b16 %v4869
        %v5322 = vunpack.c.l.b16 %v4870
        %v5323 = vunpack.c.l.b16 %v4871
        %v5324 = vunpack.c.h.b16 %v4871
        %v5325 = vunpack.c.l.b16 %v4872
        %v5326 = vunpack.c.l.b16 %v4873
        %v5327 = vunpack.c.h.b16 %v4873
        %v5328 = vunpack.c.l.b16 %v4874
        %v5329 = vunpack.c.l.b16 %v4875
        %v5330 = vunpack.c.h.b16 %v4875
        %v5331 = vunpack.c.l.b16 %v4876
        %v5332 = vunpack.c.l.b16 %v4877
        %v5333 = vunpack.c.h.b16 %v4877
        %v5334 = vunpack.c.l.b16 %v4878
        %v5335 = vunpack.c.l.b16 %v4879
        %v5336 = vunpack.c.h.b16 %v4879
        %v5337 = vunpack.c.l.b16 %v4880
        %v5338 = vunpack.c.l.b16 %v4881
        %v5339 = vunpack.c.h.b16 %v4881
        %v5340 = vunpack.c.l.b16 %v4882
        %v5341 = vunpack.c.l.b16 %v4883
        %v5342 = vunpack.c.h.b16 %v4883
        %v5343 = vunpack.c.l.b16 %v4884
        %v5344 = vunpack.c.l.b16 %v4885
        %v5345 = vunpack.c.h.b16 %v4885
        %v5346 = vunpack.c.l.b16 %v4886
        %v5347 = vunpack.c.l.b16 %v4887
        %v5348 = vunpack.c.h.b16 %v4887
        %v5349 = vunpack.c.l.b16 %v4888
        %v5350 = vunpack.c.l.b16 %v4889
        %v5351 = vunpack.c.h.b16 %v4889
        %v5352 = vunpack.c.l.b16 %v4890
        %v5353 = vunpack.c.l.b16 %v4891
        %v5354 = vunpack.c.h.b16 %v4891
        %v5355 = vunpack.c.l.b16 %v4892
        %v5356 = vunpack.c.l.b16 %v4893
        %v5357 = vunpack.c.h.b16 %v4893
        %v5358 = vunpack.c.l.b16 %v4894
        %v5359 = vunpack.c.l.b16 %v4895
        %v5360 = vunpack.c.h.b16 %v4895
        %v5361 = vunpack.c.l.b16 %v4896
        %v5362 = vunpack.c.l.b16 %v4897
        %v5363 = vunpack.c.h.b16 %v4897
        %v5364 = vunpack.c.l.b16 %v4898
        %v5365 = vunpack.c.l.b16 %v4899
        %v5366 = vunpack.c.h.b16 %v4899
        %v5367 = vunpack.c.l.b16 %v4900
        %v5368 = vunpack.c.l.b16 %v4901
        %v5369 = vunpack.c.h.b16 %v4901
        %v5370 = vunpack.c.l.b16 %v4902
        %v5371 = vunpack.c.l.b16 %v4903
        %v5372 = vunpack.c.h.b16 %v4903
        %v5373 = vunpack.c.l.b16 %v4904
        %v5374 = vunpack.c.l.b16 %v4905
        %v5375 = vunpack.c.h.b16 %v4905
        %v5376 = vunpack.c.l.b16 %v4906
        %v5377 = vunpack.c.l.b16 %v4907
        %v5378 = vunpack.c.h.b16 %v4907
        %v5379 = vunpack.c.l.b16 %v4908
        %v5380 = vunpack.c.l.b16 %v4909
        %v5381 = vunpack.c.h.b16 %v4909
        %v5382 = vunpack.c.l.b16 %v4910
        %v5383 = vunpack.c.l.b16 %v4911
        %v5384 = vunpack.c.h.b16 %v4911
        %v5385 = vunpack.c.l.b16 %v4912
        %v5386 = vunpack.c.l.b16 %v4913
        %v5387 = vunpack.c.h.b16 %v4913
        %v5388 = vunpack.c.l.b16 %v4914
        %v5389 = vunpack.c.l.b16 %v4915
        %v5390 = vunpack.c.h.b16 %v4915
        %v5391 = vunpack.c.l.b16 %v4916
        %v5392 = vunpack.c.l.b16 %v4917
        %v5393 = vunpack.c.h.b16 %v4917
        %v5394 = vunpack.c.l.b16 %v4918
        %v5395 = vunpack.c.l.b16 %v4919
        %v5396 = vunpack.c.h.b16 %v4919
        %v5397 = vunpack.c.l.b16 %v4920
        %v5398 = vunpack.c.l.b16 %v4921
        %v5399 = vunpack.c.h.b16 %v4921
        %v5400 = vunpack.c.l.b16 %v4922
        %v5401 = vunpack.c.l.b16 %v4923
        %v5402 = vunpack.c.h.b16 %v4923
        %v5403 = vunpack.c.l.b16 %v4924
        %v5404 = vunpack.c.l.b16 %v4925
        %v5405 = vunpack.c.h.b16 %v4925
        %v5406 = vunpack.c.l.b16 %v4926
        %v5407 = vpack.c.b16 %v5122, %v5119
        %v5408 = vpack.c.b16 %v5123, %v5120
        %v5409 = vpack.c.b16 %v5124, %v5121
        %v5410 = vpack.c.b16 %v5128, %v5125
        %v5411 = vpack.c.b16 %v5129, %v5126
        %v5412 = vpack.c.b16 %v5130, %v5127
        %v5413 = vpack.c.b16 %v5134, %v5131
        %v5414 = vpack.c.b16 %v5135, %v5132
        %v5415 = vpack.c.b16 %v5136, %v5133
        %v5416 = vpack.c.b16 %v5140, %v5137
        %v5417 = vpack.c.b16 %v5141, %v5138
        %v5418 = vpack.c.b16 %v5142, %v5139
        %v5419 = vpack.c.b16 %v5146, %v5143
        %v5420 = vpack.c.b16 %v5147, %v5144
        %v5421 = vpack.c.b16 %v5148, %v5145
        %v5422 = vpack.c.b16 %v5152, %v5149
        %v5423 = vpack.c.b16 %v5153, %v5150
        %v5424 = vpack.c.b16 %v5154, %v5151
        %v5425 = vpack.c.b16 %v5158, %v5155
        %v5426 = vpack.c.b16 %v5159, %v5156
        %v5427 = vpack.c.b16 %v5160, %v5157
        %v5428 = vpack.c.b16 %v5164, %v5161
        %v5429 = vpack.c.b16 %v5165, %v5162
        %v5430 = vpack.c.b16 %v5166, %v5163
        %v5431 = vpack.c.b16 %v5170, %v5167
        %v5432 = vpack.c.b16 %v5171, %v5168
        %v5433 = vpack.c.b16 %v5172, %v5169
        %v5434 = vpack.c.b16 %v5176, %v5173
        %v5435 = vpack.c.b16 %v5177, %v5174
        %v5436 = vpack.c.b16 %v5178, %v5175
        %v5437 = vpack.c.b16 %v5182, %v5179
        %v5438 = vpack.c.b16 %v5183, %v5180
        %v5439 = vpack.c.b16 %v5184, %v5181
        %v5440 = vpack.c.b16 %v5188, %v5185
        %v5441 = vpack.c.b16 %v5189, %v5186
        %v5442 = vpack.c.b16 %v5190, %v5187
        %v5443 = vpack.c.b16 %v5194, %v5191
        %v5444 = vpack.c.b16 %v5195, %v5192
        %v5445 = vpack.c.b16 %v5196, %v5193
        %v5446 = vpack.c.b16 %v5200, %v5197
        %v5447 = vpack.c.b16 %v5201, %v5198
        %v5448 = vpack.c.b16 %v5202, %v5199
        %v5449 = vpack.c.b16 %v5206, %v5203
        %v5450 = vpack.c.b16 %v5207, %v5204
        %v5451 = vpack.c.b16 %v5208, %v5205
        %v5452 = vpack.c.b16 %v5212, %v5209
        %v5453 = vpack.c.b16 %v5213, %v5210
        %v5454 = vpack.c.b16 %v5214, %v5211
        %v5455 = vpack.c.b16 %v5218, %v5215
        %v5456 = vpack.c.b16 %v5219, %v5216
        %v5457 = vpack.c.b16 %v5220, %v5217
        %v5458 = vpack.c.b16 %v5224, %v5221
        %v5459 = vpack.c.b16 %v5225, %v5222
        %v5460 = vpack.c.b16 %v5226, %v5223
        %v5461 = vpack.c.b16 %v5230, %v5227
        %v5462 = vpack.c.b16 %v5231, %v5228
        %v5463 = vpack.c.b16 %v5232, %v5229
        %v5464 = vpack.c.b16 %v5236, %v5233
        %v5465 = vpack.c.b16 %v5237, %v5234
        %v5466 = vpack.c.b16 %v5238, %v5235
        %v5467 = vpack.c.b16 %v5242, %v5239
        %v5468 = vpack.c.b16 %v5243, %v5240
        %v5469 = vpack.c.b16 %v5244, %v5241
        %v5470 = vpack.c.b16 %v5248, %v5245
        %v5471 = vpack.c.b16 %v5249, %v5246
        %v5472 = vpack.c.b16 %v5250, %v5247
        %v5473 = vpack.c.b16 %v5254, %v5251
        %v5474 = vpack.c.b16 %v5255, %v5252
        %v5475 = vpack.c.b16 %v5256, %v5253
        %v5476 = vpack.c.b16 %v5260, %v5257
        %v5477 = vpack.c.b16 %v5261, %v5258
        %v5478 = vpack.c.b16 %v5262, %v5259
        %v5479 = vpack.c.b16 %v5266, %v5263
        %v5480 = vpack.c.b16 %v5267, %v5264
        %v5481 = vpack.c.b16 %v5268, %v5265
        %v5482 = vpack.c.b16 %v5272, %v5269
        %v5483 = vpack.c.b16 %v5273, %v5270
        %v5484 = vpack.c.b16 %v5274, %v5271
        %v5485 = vpack.c.b16 %v5278, %v5275
        %v5486 = vpack.c.b16 %v5279, %v5276
        %v5487 = vpack.c.b16 %v5280, %v5277
        %v5488 = vpack.c.b16 %v5284, %v5281
        %v5489 = vpack.c.b16 %v5285, %v5282
        %v5490 = vpack.c.b16 %v5286, %v5283
        %v5491 = vpack.c.b16 %v5290, %v5287
        %v5492 = vpack.c.b16 %v5291, %v5288
        %v5493 = vpack.c.b16 %v5292, %v5289
        %v5494 = vpack.c.b16 %v5296, %v5293
        %v5495 = vpack.c.b16 %v5297, %v5294
        %v5496 = vpack.c.b16 %v5298, %v5295
        %v5497 = vpack.c.b16 %v5302, %v5299
        %v5498 = vpack.c.b16 %v5303, %v5300
        %v5499 = vpack.c.b16 %v5304, %v5301
        %v5500 = vpack.c.b16 %v5308, %v5305
        %v5501 = vpack.c.b16 %v5309, %v5306
        %v5502 = vpack.c.b16 %v5310, %v5307
        %v5503 = vpack.c.b16 %v5314, %v5311
        %v5504 = vpack.c.b16 %v5315, %v5312
        %v5505 = vpack.c.b16 %v5316, %v5313
        %v5506 = vpack.c.b16 %v5320, %v5317
        %v5507 = vpack.c.b16 %v5321, %v5318
        %v5508 = vpack.c.b16 %v5322, %v5319
        %v5509 = vpack.c.b16 %v5326, %v5323
        %v5510 = vpack.c.b16 %v5327, %v5324
        %v5511 = vpack.c.b16 %v5328, %v5325
        %v5512 = vpack.c.b16 %v5332, %v5329
        %v5513 = vpack.c.b16 %v5333, %v5330
        %v5514 = vpack.c.b16 %v5334, %v5331
        %v5515 = vpack.c.b16 %v5338, %v5335
        %v5516 = vpack.c.b16 %v5339, %v5336
        %v5517 = vpack.c.b16 %v5340, %v5337
        %v5518 = vpack.c.b16 %v5344, %v5341
        %v5519 = vpack.c.b16 %v5345, %v5342
        %v5520 = vpack.c.b16 %v5346, %v5343
        %v5521 = vpack.c.b16 %v5350, %v5347
        %v5522 = vpack.c.b16 %v5351, %v5348
        %v5523 = vpack.c.b16 %v5352, %v5349
        %v5524 = vpack.c.b16 %v5356, %v5353
        %v5525 = vpack.c.b16 %v5357, %v5354
        %v5526 = vpack.c.b16 %v5358, %v5355
        %v5527 = vpack.c.b16 %v5362, %v5359
        %v5528 = vpack.c.b16 %v5363, %v5360
        %v5529 = vpack.c.b16 %v5364, %v5361
        %v5530 = vpack.c.b16 %v5368, %v5365
        %v5531 = vpack.c.b16 %v5369, %v5366
        %v5532 = vpack.c.b16 %v5370, %v5367
        %v5533 = vpack.c.b16 %v5374, %v5371
        %v5534 = vpack.c.b16 %v5375, %v5372
        %v5535 = vpack.c.b16 %v5376, %v5373
        %v5536 = vpack.c.b16 %v5380, %v5377
        %v5537 = vpack.c.b16 %v5381, %v5378
        %v5538 = vpack.c.b16 %v5382, %v5379
        %v5539 = vpack.c.b16 %v5386, %v5383
        %v5540 = vpack.c.b16 %v5387, %v5384
        %v5541 = vpack.c.b16 %v5388, %v5385
        %v5542 = vpack.c.b16 %v5392, %v5389
        %v5543 = vpack.c.b16 %v5393, %v5390
        %v5544 = vpack.c.b16 %v5394, %v5391
        %v5545 = vpack.c.b16 %v5398, %v5395
        %v5546 = vpack.c.b16 %v5399, %v5396
        %v5547 = vpack.c.b16 %v5400, %v5397
        %v5548 = vpack.c.b16 %v5404, %v5401
        %v5549 = vpack.c.b16 %v5405, %v5402
        %v5550 = vpack.c.b16 %v5406, %v5403
        %5695 = vmatprep.subr.bf16.mxu0 %v5429
        %5696 = vmatpush1.bf16.msra.mxu0 %v5428
        %5697 = vmatprep.subr.bf16.mxu0 %v5426
        %5698 = vmatpush1.bf16.msra.mxu0 %v5425
        %5699 = vmatprep.subr.bf16.mxu0 %v5423
        %5700 = vmatpush1.bf16.msra.mxu0 %v5422
        %5701 = vmatprep.subr.bf16.mxu0 %v5420
        %5702 = vmatpush1.bf16.msra.mxu0 %v5419
        %5703 = vmatprep.subr.bf16.mxu0 %v5417
        %5704 = vmatpush1.bf16.msra.mxu0 %v5416
        %5705 = vmatprep.subr.bf16.mxu0 %v5414
        %5706 = vmatpush1.bf16.msra.mxu0 %v5413
        %5707 = vmatprep.subr.bf16.mxu0 %v5411
        %5708 = vmatpush1.bf16.msra.mxu0 %v5410
        %5709 = vmatprep.subr.bf16.mxu0 %v5408
        %5710 = vmatpush1.bf16.msra.mxu0 %v5407
        %5711 = vmatprep.subr.bf16.mxu0 %v5453
        %5712 = vmatpush2.bf16.msra.mxu0 %v5452
        %5713 = vmatprep.subr.bf16.mxu0 %v5450
        %5714 = vmatpush2.bf16.msra.mxu0 %v5449
        %5715 = vmatprep.subr.bf16.mxu0 %v5447
        %5716 = vmatpush2.bf16.msra.mxu0 %v5446
        %5717 = vmatprep.subr.bf16.mxu0 %v5444
        %5718 = vmatpush2.bf16.msra.mxu0 %v5443
        %5719 = vmatprep.subr.bf16.mxu0 %v5441
        %5720 = vmatpush2.bf16.msra.mxu0 %v5440
        %5721 = vmatprep.subr.bf16.mxu0 %v5438
        %5722 = vmatpush2.bf16.msra.mxu0 %v5437
        %5723 = vmatprep.subr.bf16.mxu0 %v5435
        %5724 = vmatpush2.bf16.msra.mxu0 %v5434
        %5725 = vmatprep.subr.bf16.mxu0 %v5432
        %5726 = vmatpush2.bf16.msra.mxu0 %v5431
        %5727 = vmatprep.mubr.bf16.mxu0 %v4730
        %5728 = vmatmul.mubr.bf16.gmra.mxu0 %v4729
        %v5729 = vpop.f32.mrf.mxu0
        %v5730 = vadd.f32 0.0, %v5729
        %v5731 = vpop.f32.mrf.mxu0
        %v5732 = vadd.f32 0.0, %v5731
        %v5733 = vpop.f32.mrf.mxu0
        %v5734 = vadd.f32 0.0, %v5733
        %v5735 = vpop.f32.mrf.mxu0
        %v5736 = vadd.f32 0.0, %v5735
        %5737 = vdwg.mxu0
        %5738 = vmatprep.subr.bf16.mxu0 %v5477
        %5739 = vmatpush1.bf16.msra.mxu0 %v5476
        %5740 = vmatprep.subr.bf16.mxu0 %v5474
        %5741 = vmatpush1.bf16.msra.mxu0 %v5473
        %5742 = vmatprep.subr.bf16.mxu0 %v5471
        %5743 = vmatpush1.bf16.msra.mxu0 %v5470
        %5744 = vmatprep.subr.bf16.mxu0 %v5468
        %5745 = vmatpush1.bf16.msra.mxu0 %v5467
        %5746 = vmatprep.subr.bf16.mxu0 %v5465
        %5747 = vmatpush1.bf16.msra.mxu0 %v5464
        %5748 = vmatprep.subr.bf16.mxu0 %v5462
        %5749 = vmatpush1.bf16.msra.mxu0 %v5461
        %5750 = vmatprep.subr.bf16.mxu0 %v5459
        %5751 = vmatpush1.bf16.msra.mxu0 %v5458
        %5752 = vmatprep.subr.bf16.mxu0 %v5456
        %5753 = vmatpush1.bf16.msra.mxu0 %v5455
        %5754 = vmatprep.subr.bf16.mxu0 %v5501
        %5755 = vmatpush2.bf16.msra.mxu0 %v5500
        %5756 = vmatprep.subr.bf16.mxu0 %v5498
        %5757 = vmatpush2.bf16.msra.mxu0 %v5497
        %5758 = vmatprep.subr.bf16.mxu0 %v5495
        %5759 = vmatpush2.bf16.msra.mxu0 %v5494
        %5760 = vmatprep.subr.bf16.mxu0 %v5492
        %5761 = vmatpush2.bf16.msra.mxu0 %v5491
        %5762 = vmatprep.subr.bf16.mxu0 %v5489
        %5763 = vmatpush2.bf16.msra.mxu0 %v5488
        %5764 = vmatprep.subr.bf16.mxu0 %v5486
        %5765 = vmatpush2.bf16.msra.mxu0 %v5485
        %5766 = vmatprep.subr.bf16.mxu0 %v5483
        %5767 = vmatpush2.bf16.msra.mxu0 %v5482
        %5768 = vmatprep.subr.bf16.mxu0 %v5480
        %5769 = vmatpush2.bf16.msra.mxu0 %v5479
        %5770 = vmatprep.mubr.bf16.mxu0 %v4732
        %5771 = vmatmul.mubr.bf16.gmra.mxu0 %v4731
        %v5772 = vpop.f32.mrf.mxu0
        %v5773 = vadd.f32 %v5730, %v5772
        %v5774 = vpop.f32.mrf.mxu0
        %v5775 = vadd.f32 %v5732, %v5774
        %v5776 = vpop.f32.mrf.mxu0
        %v5777 = vadd.f32 %v5734, %v5776
        %v5778 = vpop.f32.mrf.mxu0
        %v5779 = vadd.f32 %v5736, %v5778
        %5780 = vdwg.mxu0
        %5781 = vmatprep.subr.bf16.mxu0 %v5525
        %5782 = vmatpush1.bf16.msra.mxu0 %v5524
        %5783 = vmatprep.subr.bf16.mxu0 %v5522
        %5784 = vmatpush1.bf16.msra.mxu0 %v5521
        %5785 = vmatprep.subr.bf16.mxu0 %v5519
        %5786 = vmatpush1.bf16.msra.mxu0 %v5518
        %5787 = vmatprep.subr.bf16.mxu0 %v5516
        %5788 = vmatpush1.bf16.msra.mxu0 %v5515
        %5789 = vmatprep.subr.bf16.mxu0 %v5513
        %5790 = vmatpush1.bf16.msra.mxu0 %v5512
        %5791 = vmatprep.subr.bf16.mxu0 %v5510
        %5792 = vmatpush1.bf16.msra.mxu0 %v5509
        %5793 = vmatprep.subr.bf16.mxu0 %v5507
        %5794 = vmatpush1.bf16.msra.mxu0 %v5506
        %5795 = vmatprep.subr.bf16.mxu0 %v5504
        %5796 = vmatpush1.bf16.msra.mxu0 %v5503
        %5797 = vmatprep.subr.bf16.mxu0 %v5549
        %5798 = vmatpush2.bf16.msra.mxu0 %v5548
        %5799 = vmatprep.subr.bf16.mxu0 %v5546
        %5800 = vmatpush2.bf16.msra.mxu0 %v5545
        %5801 = vmatprep.subr.bf16.mxu0 %v5543
        %5802 = vmatpush2.bf16.msra.mxu0 %v5542
        %5803 = vmatprep.subr.bf16.mxu0 %v5540
        %5804 = vmatpush2.bf16.msra.mxu0 %v5539
        %5805 = vmatprep.subr.bf16.mxu0 %v5537
        %5806 = vmatpush2.bf16.msra.mxu0 %v5536
        %5807 = vmatprep.subr.bf16.mxu0 %v5534
        %5808 = vmatpush2.bf16.msra.mxu0 %v5533
        %5809 = vmatprep.subr.bf16.mxu0 %v5531
        %5810 = vmatpush2.bf16.msra.mxu0 %v5530
        %5811 = vmatprep.subr.bf16.mxu0 %v5528
        %5812 = vmatpush2.bf16.msra.mxu0 %v5527
        %5813 = vmatprep.mubr.bf16.mxu0 %v4734
        %5814 = vmatmul.mubr.bf16.gmra.mxu0 %v4733
        %v5815 = vpop.f32.mrf.mxu0
        %v5816 = vadd.f32 %v5773, %v5815
        %v5817 = vpop.f32.mrf.mxu0
        %v5818 = vadd.f32 %v5775, %v5817
        %v5819 = vpop.f32.mrf.mxu0
        %v5820 = vadd.f32 %v5777, %v5819
        %v5821 = vpop.f32.mrf.mxu0
        %v5822 = vadd.f32 %v5779, %v5821
        %5823 = vdwg.mxu0
        %5824 = vmatprep.subr.bf16.mxu0 0
        %5825 = vmatpush1.bf16.msra.mxu0 %v5430
        %5826 = vmatprep.subr.bf16.mxu0 0
        %5827 = vmatpush1.bf16.msra.mxu0 %v5427
        %5828 = vmatprep.subr.bf16.mxu0 0
        %5829 = vmatpush1.bf16.msra.mxu0 %v5424
        %5830 = vmatprep.subr.bf16.mxu0 0
        %5831 = vmatpush1.bf16.msra.mxu0 %v5421
        %5832 = vmatprep.subr.bf16.mxu0 0
        %5833 = vmatpush1.bf16.msra.mxu0 %v5418
        %5834 = vmatprep.subr.bf16.mxu0 0
        %5835 = vmatpush1.bf16.msra.mxu0 %v5415
        %5836 = vmatprep.subr.bf16.mxu0 0
        %5837 = vmatpush1.bf16.msra.mxu0 %v5412
        %5838 = vmatprep.subr.bf16.mxu0 0
        %5839 = vmatpush1.bf16.msra.mxu0 %v5409
        %5840 = vmatprep.subr.bf16.mxu0 0
        %5841 = vmatpush2.bf16.msra.mxu0 %v5454
        %5842 = vmatprep.subr.bf16.mxu0 0
        %5843 = vmatpush2.bf16.msra.mxu0 %v5451
        %5844 = vmatprep.subr.bf16.mxu0 0
        %5845 = vmatpush2.bf16.msra.mxu0 %v5448
        %5846 = vmatprep.subr.bf16.mxu0 0
        %5847 = vmatpush2.bf16.msra.mxu0 %v5445
        %5848 = vmatprep.subr.bf16.mxu0 0
        %5849 = vmatpush2.bf16.msra.mxu0 %v5442
        %5850 = vmatprep.subr.bf16.mxu0 0
        %5851 = vmatpush2.bf16.msra.mxu0 %v5439
        %5852 = vmatprep.subr.bf16.mxu0 0
        %5853 = vmatpush2.bf16.msra.mxu0 %v5436
        %5854 = vmatprep.subr.bf16.mxu0 0
        %5855 = vmatpush2.bf16.msra.mxu0 %v5433
        %5856 = vmatprep.mubr.bf16.mxu0 %v4730
        %5857 = vmatmul.mubr.bf16.gmra.mxu0 %v4729
        %v5858 = vpop.f32.mrf.mxu0
        %v5859 = vadd.f32 0.0, %v5858
        %v5860 = vpop.f32.mrf.mxu0
        %v5861 = vpop.f32.mrf.mxu0
        %v5862 = vadd.f32 0.0, %v5861
        %v5863 = vpop.f32.mrf.mxu0
        %5864 = vdwg.mxu0
        %5865 = vmatprep.subr.bf16.mxu0 0
        %5866 = vmatpush1.bf16.msra.mxu0 %v5478
        %5867 = vmatprep.subr.bf16.mxu0 0
        %5868 = vmatpush1.bf16.msra.mxu0 %v5475
        %5869 = vmatprep.subr.bf16.mxu0 0
        %5870 = vmatpush1.bf16.msra.mxu0 %v5472
        %5871 = vmatprep.subr.bf16.mxu0 0
        %5872 = vmatpush1.bf16.msra.mxu0 %v5469
        %5873 = vmatprep.subr.bf16.mxu0 0
        %5874 = vmatpush1.bf16.msra.mxu0 %v5466
        %5875 = vmatprep.subr.bf16.mxu0 0
        %5876 = vmatpush1.bf16.msra.mxu0 %v5463
        %5877 = vmatprep.subr.bf16.mxu0 0
        %5878 = vmatpush1.bf16.msra.mxu0 %v5460
        %5879 = vmatprep.subr.bf16.mxu0 0
        %5880 = vmatpush1.bf16.msra.mxu0 %v5457
        %5881 = vmatprep.subr.bf16.mxu0 0
        %5882 = vmatpush2.bf16.msra.mxu0 %v5502
        %5883 = vmatprep.subr.bf16.mxu0 0
        %5884 = vmatpush2.bf16.msra.mxu0 %v5499
        %5885 = vmatprep.subr.bf16.mxu0 0
        %5886 = vmatpush2.bf16.msra.mxu0 %v5496
        %5887 = vmatprep.subr.bf16.mxu0 0
        %5888 = vmatpush2.bf16.msra.mxu0 %v5493
        %5889 = vmatprep.subr.bf16.mxu0 0
        %5890 = vmatpush2.bf16.msra.mxu0 %v5490
        %5891 = vmatprep.subr.bf16.mxu0 0
        %5892 = vmatpush2.bf16.msra.mxu0 %v5487
        %5893 = vmatprep.subr.bf16.mxu0 0
        %5894 = vmatpush2.bf16.msra.mxu0 %v5484
        %5895 = vmatprep.subr.bf16.mxu0 0
        %5896 = vmatpush2.bf16.msra.mxu0 %v5481
        %5897 = vmatprep.mubr.bf16.mxu0 %v4732
        %5898 = vmatmul.mubr.bf16.gmra.mxu0 %v4731
        %v5899 = vpop.f32.mrf.mxu0
        %v5900 = vadd.f32 %v5859, %v5899
        %v5901 = vpop.f32.mrf.mxu0
        %v5902 = vpop.f32.mrf.mxu0
        %v5903 = vadd.f32 %v5862, %v5902
        %v5904 = vpop.f32.mrf.mxu0
        %5905 = vdwg.mxu0
        %5906 = vmatprep.subr.bf16.mxu0 0
        %5907 = vmatpush1.bf16.msra.mxu0 %v5526
        %5908 = vmatprep.subr.bf16.mxu0 0
        %5909 = vmatpush1.bf16.msra.mxu0 %v5523
        %5910 = vmatprep.subr.bf16.mxu0 0
        %5911 = vmatpush1.bf16.msra.mxu0 %v5520
        %5912 = vmatprep.subr.bf16.mxu0 0
        %5913 = vmatpush1.bf16.msra.mxu0 %v5517
        %5914 = vmatprep.subr.bf16.mxu0 0
        %5915 = vmatpush1.bf16.msra.mxu0 %v5514
        %5916 = vmatprep.subr.bf16.mxu0 0
        %5917 = vmatpush1.bf16.msra.mxu0 %v5511
        %5918 = vmatprep.subr.bf16.mxu0 0
        %5919 = vmatpush1.bf16.msra.mxu0 %v5508
        %5920 = vmatprep.subr.bf16.mxu0 0
        %5921 = vmatpush1.bf16.msra.mxu0 %v5505
        %5922 = vmatprep.subr.bf16.mxu0 0
        %5923 = vmatpush2.bf16.msra.mxu0 %v5550
        %5924 = vmatprep.subr.bf16.mxu0 0
        %5925 = vmatpush2.bf16.msra.mxu0 %v5547
        %5926 = vmatprep.subr.bf16.mxu0 0
        %5927 = vmatpush2.bf16.msra.mxu0 %v5544
        %5928 = vmatprep.subr.bf16.mxu0 0
        %5929 = vmatpush2.bf16.msra.mxu0 %v5541
        %5930 = vmatprep.subr.bf16.mxu0 0
        %5931 = vmatpush2.bf16.msra.mxu0 %v5538
        %5932 = vmatprep.subr.bf16.mxu0 0
        %5933 = vmatpush2.bf16.msra.mxu0 %v5535
        %5934 = vmatprep.subr.bf16.mxu0 0
        %5935 = vmatpush2.bf16.msra.mxu0 %v5532
        %5936 = vmatprep.subr.bf16.mxu0 0
        %5937 = vmatpush2.bf16.msra.mxu0 %v5529
        %5938 = vmatprep.mubr.bf16.mxu0 %v4734
        %5939 = vmatmul.mubr.bf16.gmra.mxu0 %v4733
        %v5940 = vpop.f32.mrf.mxu0
        %v5941 = vadd.f32 %v5900, %v5940
        %v5942 = vpop.f32.mrf.mxu0
        %v5943 = vpop.f32.mrf.mxu0
        %v5944 = vadd.f32 %v5903, %v5943
        %v5945 = vpop.f32.mrf.mxu0
        %5946 = vdwg.mxu0
        %v5947 = vpack.c.bf16 %v5820, %v5816
        %v5948 = vpack.c.bf16 %v5822, %v5818
        %v5949 = vpack.c.bf16 %v5944, %v5941
        %v5950 = vld [vmem:[#allocation34] sm:$0xf]
        %v5951 = vld [vmem:[#allocation34 + $0x4] sm:$0xf]
        %v5952 = vld [vmem:[#allocation34 + $0x8] sm:$0xf]
        %v5953 = vld [vmem:[#allocation34 + $0xc] sm:$0xf]
        %v5954 = vld [vmem:[#allocation34 + $0x10] sm:$0xf]
        %v5955 = vld [vmem:[#allocation34 + $0x14] sm:$0xf]
        %v5956 = vld [vmem:[#allocation34 + $0x18] sm:$0xf]
        %v5957 = vld [vmem:[#allocation34 + $0x1c] sm:$0xf]
        %v5958 = vld [vmem:[#allocation34 + $0x20] sm:$0xf]
        %v5959 = vld [vmem:[#allocation34 + $0x24] sm:$0xf]
        %v5960 = vld [vmem:[#allocation34 + $0x28] sm:$0xf]
        %v5961 = vld [vmem:[#allocation34 + $0x2c] sm:$0xf]
        %v5962 = vld [vmem:[#allocation34 + $0x30] sm:$0xf]
        %v5963 = vld [vmem:[#allocation34 + $0x34] sm:$0xf]
        %v5964 = vld [vmem:[#allocation34 + $0x38] sm:$0xf]
        %v5965 = vld [vmem:[#allocation34 + $0x3c] sm:$0xf]
        %v5966 = vld [vmem:[#allocation34 + $0x40] sm:$0xf]
        %v5967 = vld [vmem:[#allocation34 + $0x44] sm:$0xf]
        %v5968 = vld [vmem:[#allocation34 + $0x48] sm:$0xf]
        %v5969 = vld [vmem:[#allocation34 + $0x4c] sm:$0xf]
        %v5970 = vld [vmem:[#allocation34 + $0x50] sm:$0xf]
        %v5971 = vld [vmem:[#allocation34 + $0x54] sm:$0xf]
        %v5972 = vld [vmem:[#allocation34 + $0x58] sm:$0xf]
        %v5973 = vld [vmem:[#allocation34 + $0x5c] sm:$0xf]
        %v5974 = vld [vmem:[#allocation34 + $0x60] sm:$0xf]
        %v5975 = vld [vmem:[#allocation34 + $0x64] sm:$0xf]
        %v5976 = vld [vmem:[#allocation34 + $0x68] sm:$0xf]
        %v5977 = vld [vmem:[#allocation34 + $0x6c] sm:$0xf]
        %v5978 = vld [vmem:[#allocation34 + $0x70] sm:$0xf]
        %v5979 = vld [vmem:[#allocation34 + $0x74] sm:$0xf]
        %v5980 = vld [vmem:[#allocation34 + $0x78] sm:$0xf]
        %v5981 = vld [vmem:[#allocation34 + $0x7c] sm:$0xf]
        %v5982 = vld [vmem:[#allocation34 + $0x80] sm:$0xf]
        %v5983 = vld [vmem:[#allocation34 + $0x84] sm:$0xf]
        %v5984 = vld [vmem:[#allocation34 + $0x88] sm:$0xf]
        %v5985 = vld [vmem:[#allocation34 + $0x8c] sm:$0xf]
        %v5986 = vld [vmem:[#allocation34 + $0x90] sm:$0xf]
        %v5987 = vld [vmem:[#allocation34 + $0x94] sm:$0xf]
        %v5988 = vld [vmem:[#allocation34 + $0x98] sm:$0xf]
        %v5989 = vld [vmem:[#allocation34 + $0x9c] sm:$0xf]
        %v5990 = vld [vmem:[#allocation34 + $0xa0] sm:$0xf]
        %v5991 = vld [vmem:[#allocation34 + $0xa4] sm:$0xf]
        %v5992 = vld [vmem:[#allocation34 + $0xa8] sm:$0xf]
        %v5993 = vld [vmem:[#allocation34 + $0xac] sm:$0xf]
        %v5994 = vld [vmem:[#allocation34 + $0xb0] sm:$0xf]
        %v5995 = vld [vmem:[#allocation34 + $0xb4] sm:$0xf]
        %v5996 = vld [vmem:[#allocation34 + $0xb8] sm:$0xf]
        %v5997 = vld [vmem:[#allocation34 + $0xbc] sm:$0xf]
        %v6046 = vunpack.c.l.b16 %v5950
        %v6047 = vunpack.c.l.b16 %v5951
        %v6048 = vunpack.c.l.b16 %v5952
        %v6049 = vunpack.c.l.b16 %v5953
        %v6050 = vunpack.c.l.b16 %v5954
        %v6051 = vunpack.c.l.b16 %v5955
        %v6052 = vunpack.c.l.b16 %v5956
        %v6053 = vunpack.c.l.b16 %v5957
        %v6054 = vunpack.c.l.b16 %v5958
        %v6055 = vunpack.c.l.b16 %v5959
        %v6056 = vunpack.c.l.b16 %v5960
        %v6057 = vunpack.c.l.b16 %v5961
        %v6058 = vunpack.c.l.b16 %v5962
        %v6059 = vunpack.c.l.b16 %v5963
        %v6060 = vunpack.c.l.b16 %v5964
        %v6061 = vunpack.c.l.b16 %v5965
        %v6062 = vunpack.c.l.b16 %v5966
        %v6063 = vunpack.c.l.b16 %v5967
        %v6064 = vunpack.c.l.b16 %v5968
        %v6065 = vunpack.c.l.b16 %v5969
        %v6066 = vunpack.c.l.b16 %v5970
        %v6067 = vunpack.c.l.b16 %v5971
        %v6068 = vunpack.c.l.b16 %v5972
        %v6069 = vunpack.c.l.b16 %v5973
        %v6070 = vunpack.c.l.b16 %v5974
        %v6071 = vunpack.c.l.b16 %v5975
        %v6072 = vunpack.c.l.b16 %v5976
        %v6073 = vunpack.c.l.b16 %v5977
        %v6074 = vunpack.c.l.b16 %v5978
        %v6075 = vunpack.c.l.b16 %v5979
        %v6076 = vunpack.c.l.b16 %v5980
        %v6077 = vunpack.c.l.b16 %v5981
        %v6078 = vunpack.c.l.b16 %v5982
        %v6079 = vunpack.c.l.b16 %v5983
        %v6080 = vunpack.c.l.b16 %v5984
        %v6081 = vunpack.c.l.b16 %v5985
        %v6082 = vunpack.c.l.b16 %v5986
        %v6083 = vunpack.c.l.b16 %v5987
        %v6084 = vunpack.c.l.b16 %v5988
        %v6085 = vunpack.c.l.b16 %v5989
        %v6086 = vunpack.c.l.b16 %v5990
        %v6087 = vunpack.c.l.b16 %v5991
        %v6088 = vunpack.c.l.b16 %v5992
        %v6089 = vunpack.c.l.b16 %v5993
        %v6090 = vunpack.c.l.b16 %v5994
        %v6091 = vunpack.c.l.b16 %v5995
        %v6092 = vunpack.c.l.b16 %v5996
        %v6093 = vunpack.c.l.b16 %v5997
        %v6094 = vpack.c.b16 %v6047, %v6046
        %v6095 = vpack.c.b16 %v6049, %v6048
        %v6096 = vpack.c.b16 %v6051, %v6050
        %v6097 = vpack.c.b16 %v6053, %v6052
        %v6098 = vpack.c.b16 %v6055, %v6054
        %v6099 = vpack.c.b16 %v6057, %v6056
        %v6100 = vpack.c.b16 %v6059, %v6058
        %v6101 = vpack.c.b16 %v6061, %v6060
        %v6102 = vpack.c.b16 %v6063, %v6062
        %v6103 = vpack.c.b16 %v6065, %v6064
        %v6104 = vpack.c.b16 %v6067, %v6066
        %v6105 = vpack.c.b16 %v6069, %v6068
        %v6106 = vpack.c.b16 %v6071, %v6070
        %v6107 = vpack.c.b16 %v6073, %v6072
        %v6108 = vpack.c.b16 %v6075, %v6074
        %v6109 = vpack.c.b16 %v6077, %v6076
        %v6110 = vpack.c.b16 %v6079, %v6078
        %v6111 = vpack.c.b16 %v6081, %v6080
        %v6112 = vpack.c.b16 %v6083, %v6082
        %v6113 = vpack.c.b16 %v6085, %v6084
        %v6114 = vpack.c.b16 %v6087, %v6086
        %v6115 = vpack.c.b16 %v6089, %v6088
        %v6116 = vpack.c.b16 %v6091, %v6090
        %v6117 = vpack.c.b16 %v6093, %v6092
        %6142 = vmatprep.subr.bf16.mxu0 0
        %6143 = vmatpush1.bf16.msra.mxu0 %v6101
        %6144 = vmatprep.subr.bf16.mxu0 0
        %6145 = vmatpush1.bf16.msra.mxu0 %v6100
        %6146 = vmatprep.subr.bf16.mxu0 0
        %6147 = vmatpush1.bf16.msra.mxu0 %v6099
        %6148 = vmatprep.subr.bf16.mxu0 0
        %6149 = vmatpush1.bf16.msra.mxu0 %v6098
        %6150 = vmatprep.subr.bf16.mxu0 0
        %6151 = vmatpush1.bf16.msra.mxu0 %v6097
        %6152 = vmatprep.subr.bf16.mxu0 0
        %6153 = vmatpush1.bf16.msra.mxu0 %v6096
        %6154 = vmatprep.subr.bf16.mxu0 0
        %6155 = vmatpush1.bf16.msra.mxu0 %v6095
        %6156 = vmatprep.subr.bf16.mxu0 0
        %6157 = vmatpush1.bf16.msra.mxu0 %v6094
        %6158 = vmatprep.subr.bf16.mxu0 0
        %6159 = vmatpush2.bf16.msra.mxu0 %v6109
        %6160 = vmatprep.subr.bf16.mxu0 0
        %6161 = vmatpush2.bf16.msra.mxu0 %v6108
        %6162 = vmatprep.subr.bf16.mxu0 0
        %6163 = vmatpush2.bf16.msra.mxu0 %v6107
        %6164 = vmatprep.subr.bf16.mxu0 0
        %6165 = vmatpush2.bf16.msra.mxu0 %v6106
        %6166 = vmatprep.subr.bf16.mxu0 0
        %6167 = vmatpush2.bf16.msra.mxu0 %v6105
        %6168 = vmatprep.subr.bf16.mxu0 0
        %6169 = vmatpush2.bf16.msra.mxu0 %v6104
        %6170 = vmatprep.subr.bf16.mxu0 0
        %6171 = vmatpush2.bf16.msra.mxu0 %v6103
        %6172 = vmatprep.subr.bf16.mxu0 0
        %6173 = vmatpush2.bf16.msra.mxu0 %v6102
        %6174 = vmatprep.mubr.bf16.mxu0 %v5948
        %6175 = vmatmul.mubr.bf16.gmra.mxu0 %v5947
        %v6176 = vpop.f32.mrf.mxu0
        %v6177 = vadd.f32 0.0, %v6176
        %v6178 = vpop.f32.mrf.mxu0
        %v6179 = vpop.f32.mrf.mxu0
        %v6180 = vadd.f32 0.0, %v6179
        %v6181 = vpop.f32.mrf.mxu0
        %6182 = vdwg.mxu0
        %6183 = vmatprep.subr.bf16.mxu0 0
        %6184 = vmatpush1.bf16.msra.mxu0 %v6117
        %6185 = vmatprep.subr.bf16.mxu0 0
        %6186 = vmatpush1.bf16.msra.mxu0 %v6116
        %6187 = vmatprep.subr.bf16.mxu0 0
        %6188 = vmatpush1.bf16.msra.mxu0 %v6115
        %6189 = vmatprep.subr.bf16.mxu0 0
        %6190 = vmatpush1.bf16.msra.mxu0 %v6114
        %6191 = vmatprep.subr.bf16.mxu0 0
        %6192 = vmatpush1.bf16.msra.mxu0 %v6113
        %6193 = vmatprep.subr.bf16.mxu0 0
        %6194 = vmatpush1.bf16.msra.mxu0 %v6112
        %6195 = vmatprep.subr.bf16.mxu0 0
        %6196 = vmatpush1.bf16.msra.mxu0 %v6111
        %6197 = vmatprep.subr.bf16.mxu0 0
        %6198 = vmatpush1.bf16.msra.mxu0 %v6110
        %6199 = vmatprep.subr.bf16.mxu0 0
        %6200 = vmatpush2.bf16.msra.mxu0 0
        %6201 = vmatprep.subr.bf16.mxu0 0
        %6202 = vmatpush2.bf16.msra.mxu0 0
        %6203 = vmatprep.subr.bf16.mxu0 0
        %6204 = vmatpush2.bf16.msra.mxu0 0
        %6205 = vmatprep.subr.bf16.mxu0 0
        %6206 = vmatpush2.bf16.msra.mxu0 0
        %6207 = vmatprep.subr.bf16.mxu0 0
        %6208 = vmatpush2.bf16.msra.mxu0 0
        %6209 = vmatprep.subr.bf16.mxu0 0
        %6210 = vmatpush2.bf16.msra.mxu0 0
        %6211 = vmatprep.subr.bf16.mxu0 0
        %6212 = vmatpush2.bf16.msra.mxu0 0
        %6213 = vmatprep.subr.bf16.mxu0 0
        %6214 = vmatpush2.bf16.msra.mxu0 0
        %6215 = vmatprep.mubr.bf16.mxu0 0
        %6216 = vmatmul.mubr.bf16.gmra.mxu0 %v5949
        %v6217 = vpop.f32.mrf.mxu0
        %v6218 = vadd.f32 %v6177, %v6217
        %v6219 = vpop.f32.mrf.mxu0
        %v6220 = vpop.f32.mrf.mxu0
        %v6221 = vadd.f32 %v6180, %v6220
        %v6222 = vpop.f32.mrf.mxu0
        %6223 = vdwg.mxu0
        %6224 = vxpose.xlu0.b32.start [1/16] %v6218, 128
        %6225 = vxpose.xlu0.b32.cont [2/16] %v6221, 128
        %6226 = vxpose.xlu0.b32.cont [3/16] 0.0, 128
        %6227 = vxpose.xlu0.b32.cont [4/16] 0.0, 128
        %6228 = vxpose.xlu0.b32.cont [5/16] 0.0, 128
        %6229 = vxpose.xlu0.b32.cont [6/16] 0.0, 128
        %6230 = vxpose.xlu0.b32.cont [7/16] 0.0, 128
        %6231 = vxpose.xlu0.b32.cont [8/16] 0.0, 128
        %6232 = vxpose.xlu0.b32.cont [9/16] 0.0, 128
        %6233 = vxpose.xlu0.b32.cont [10/16] 0.0, 128
        %6234 = vxpose.xlu0.b32.cont [11/16] 0.0, 128
        %6235 = vxpose.xlu0.b32.cont [12/16] 0.0, 128
        %6236 = vxpose.xlu0.b32.cont [13/16] 0.0, 128
        %6237 = vxpose.xlu0.b32.cont [14/16] 0.0, 128
        %6238 = vxpose.xlu0.b32.cont [15/16] 0.0, 128
        %6239 = vxpose.xlu0.b32.end [16/16] 0.0, 128
        %v6240 = vpop.trf.xlu0
        %v6241 = vpop.trf.xlu0
        %v6242 = vpop.trf.xlu0
        %v6243 = vpop.trf.xlu0
        %v6244 = vpop.trf.xlu0
        %v6245 = vpop.trf.xlu0
        %v6246 = vpop.trf.xlu0
        %v6247 = vpop.trf.xlu0
        %v6248 = vpop.trf.xlu0
        %v6249 = vpop.trf.xlu0
        %v6250 = vpop.trf.xlu0
        %v6251 = vpop.trf.xlu0
        %v6252 = vpop.trf.xlu0
        %v6253 = vpop.trf.xlu0
        %v6254 = vpop.trf.xlu0
        %v6255 = vpop.trf.xlu0
        %6257 = vset.pattern.permute.xlu0 3
        %6258 = vperm.xlu0 %6257, %v6218
        %v6259 = vpop.permute.xlu0 %6258
        %6262 = vset.pattern.permute.xlu0 3
        %6263 = vperm.xlu0 %6262, %v6221
        %v6264 = vpop.permute.xlu0 %6263
        %v6266 = vlaneseq
        %v6267 = vshrl.u32 %v6266, 7
        %v6268 = vsub.s32 0, %v6267
        %v6269 = vrot.slane %v6240, %v6268
        %v6270 = vadd.f32 %v6259, %v6269
        %v6271 = vadd.f32 %v6264, %v6269
        %v6272 = vmul.f32 %v6270, 0.2
        %v6273 = vmul.f32 %v6271, 0.2
        %v6274 = vmax.f32 %v6270, %v6272
        %v6275 = vmax.f32 %v6271, %v6273
        %v6276 = vadd.f32 %v6274, %v1714
        %v6277 = vadd.f32 %v6275, %v1715
        %v6278 = vsel %vm2107, %v6276, -inf
        %6279 = vmax.xlane.f32.xlu0 %v6278
        %v6280 = vpop.xlane.xlu0 %6279
        %v6281 = vsel %vm2107, %v6277, -inf
        %6282 = vmax.xlane.f32.xlu0 %v6281
        %v6283 = vpop.xlane.xlu0 %6282
        %v6284 = vsub.f32 %v6276, %v6280
        %v6285 = vsub.f32 %v6277, %v6283
        %v6286 = vmul.f32 %v6284, 1.442695
        %v6287 = vpow.pop %v6286
        %v6288 = vmul.f32 %v6285, 1.442695
        %v6289 = vpow.pop %v6288
        %v6290 = vsel %vm2107, %v6287, 0.0
        %6291 = vadd.xlane.f32.xlu0 %v6290
        %v6292 = vpop.xlane.xlu0 %6291
        %v6293 = vsel %vm2107, %v6289, 0.0
        %6294 = vadd.xlane.f32.xlu0 %v6293
        %v6295 = vpop.xlane.xlu0 %6294
        %v6296 = vrcp.pop %v6292
        %v6297 = vrcp.pop %v6295
        %v6298 = vmul.f32 %v6287, %v6296
        %v6299 = vmul.f32 %v6289, %v6297
        %v6300 = vpack.c.bf16 %v6299, %v6298
        %v6302 = vsel %vm2107, %v6300, 0
        %6304 = vmatprep.subr.bf16.mxu0 0
        %6305 = vmatpush1.bf16.msra.mxu0 0
        %6306 = vmatprep.subr.bf16.mxu0 0
        %6307 = vmatpush1.bf16.msra.mxu0 0
        %6308 = vmatprep.subr.bf16.mxu0 0
        %6309 = vmatpush1.bf16.msra.mxu0 0
        %6310 = vmatprep.subr.bf16.mxu0 0
        %6311 = vmatpush1.bf16.msra.mxu0 0
        %6312 = vmatprep.subr.bf16.mxu0 0
        %6313 = vmatpush1.bf16.msra.mxu0 0
        %6314 = vmatprep.subr.bf16.mxu0 0
        %6315 = vmatpush1.bf16.msra.mxu0 0
        %6316 = vmatprep.subr.bf16.mxu0 0
        %6317 = vmatpush1.bf16.msra.mxu0 0
        %6318 = vmatprep.subr.bf16.mxu0 0
        %6319 = vmatpush1.bf16.msra.mxu0 %v5947
        %6320 = vmatprep.subr.bf16.mxu0 0
        %6321 = vmatpush2.bf16.msra.mxu0 0
        %6322 = vmatprep.subr.bf16.mxu0 0
        %6323 = vmatpush2.bf16.msra.mxu0 0
        %6324 = vmatprep.subr.bf16.mxu0 0
        %6325 = vmatpush2.bf16.msra.mxu0 0
        %6326 = vmatprep.subr.bf16.mxu0 0
        %6327 = vmatpush2.bf16.msra.mxu0 0
        %6328 = vmatprep.subr.bf16.mxu0 0
        %6329 = vmatpush2.bf16.msra.mxu0 0
        %6330 = vmatprep.subr.bf16.mxu0 0
        %6331 = vmatpush2.bf16.msra.mxu0 0
        %6332 = vmatprep.subr.bf16.mxu0 0
        %6333 = vmatpush2.bf16.msra.mxu0 0
        %6334 = vmatprep.subr.bf16.mxu0 0
        %6335 = vmatpush2.bf16.msra.mxu0 0
        %6336 = vmatprep.mubr.bf16.mxu0 0
        %6337 = vmatmul.mubr.bf16.gmra.mxu0 %v6302
        %v6338 = vpop.f32.mrf.mxu0
        %v6339 = vadd.f32 0.0, %v6338
        %v6340 = vpop.f32.mrf.mxu0
        %v6341 = vpop.f32.mrf.mxu0
        %v6342 = vadd.f32 0.0, %v6341
        %v6343 = vpop.f32.mrf.mxu0
        %6344 = vdwg.mxu0
        %6345 = vset.pattern.permute.xlu0 4
        %6346 = vperm.xlu0 %6345, %v6218
        %v6347 = vpop.permute.xlu0 %6346
        %6349 = vset.pattern.permute.xlu0 4
        %6350 = vperm.xlu0 %6349, %v6221
        %v6351 = vpop.permute.xlu0 %6350
        %v6353 = vlaneseq
        %v6354 = vshrl.u32 %v6353, 7
        %v6355 = vsub.s32 1, %v6354
        %v6356 = vrot.slane %v6240, %v6355
        %v6357 = vadd.f32 %v6347, %v6356
        %v6358 = vadd.f32 %v6351, %v6356
        %v6359 = vmul.f32 %v6357, 0.2
        %v6360 = vmul.f32 %v6358, 0.2
        %v6361 = vmax.f32 %v6357, %v6359
        %v6362 = vmax.f32 %v6358, %v6360
        %v6363 = vadd.f32 %v6361, %v1714
        %v6364 = vadd.f32 %v6362, %v1715
        %v6365 = vsel %vm2107, %v6363, -inf
        %6366 = vmax.xlane.f32.xlu0 %v6365
        %v6367 = vpop.xlane.xlu0 %6366
        %v6368 = vsel %vm2107, %v6364, -inf
        %6369 = vmax.xlane.f32.xlu0 %v6368
        %v6370 = vpop.xlane.xlu0 %6369
        %v6371 = vsub.f32 %v6363, %v6367
        %v6372 = vsub.f32 %v6364, %v6370
        %v6373 = vmul.f32 %v6371, 1.442695
        %v6374 = vpow.pop %v6373
        %v6375 = vmul.f32 %v6372, 1.442695
        %v6376 = vpow.pop %v6375
        %v6377 = vsel %vm2107, %v6374, 0.0
        %6378 = vadd.xlane.f32.xlu0 %v6377
        %v6379 = vpop.xlane.xlu0 %6378
        %v6380 = vsel %vm2107, %v6376, 0.0
        %6381 = vadd.xlane.f32.xlu0 %v6380
        %v6382 = vpop.xlane.xlu0 %6381
        %v6383 = vrcp.pop %v6379
        %v6384 = vrcp.pop %v6382
        %v6385 = vmul.f32 %v6374, %v6383
        %v6386 = vmul.f32 %v6376, %v6384
        %v6387 = vpack.c.bf16 %v6386, %v6385
        %v6389 = vsel %vm2107, %v6387, 0
        %6391 = vmatprep.subr.bf16.mxu0 0
        %6392 = vmatpush1.bf16.msra.mxu0 0
        %6393 = vmatprep.subr.bf16.mxu0 0
        %6394 = vmatpush1.bf16.msra.mxu0 0
        %6395 = vmatprep.subr.bf16.mxu0 0
        %6396 = vmatpush1.bf16.msra.mxu0 0
        %6397 = vmatprep.subr.bf16.mxu0 0
        %6398 = vmatpush1.bf16.msra.mxu0 0
        %6399 = vmatprep.subr.bf16.mxu0 0
        %6400 = vmatpush1.bf16.msra.mxu0 0
        %6401 = vmatprep.subr.bf16.mxu0 0
        %6402 = vmatpush1.bf16.msra.mxu0 0
        %6403 = vmatprep.subr.bf16.mxu0 0
        %6404 = vmatpush1.bf16.msra.mxu0 0
        %6405 = vmatprep.subr.bf16.mxu0 0
        %6406 = vmatpush1.bf16.msra.mxu0 %v5948
        %6407 = vmatprep.subr.bf16.mxu0 0
        %6408 = vmatpush2.bf16.msra.mxu0 0
        %6409 = vmatprep.subr.bf16.mxu0 0
        %6410 = vmatpush2.bf16.msra.mxu0 0
        %6411 = vmatprep.subr.bf16.mxu0 0
        %6412 = vmatpush2.bf16.msra.mxu0 0
        %6413 = vmatprep.subr.bf16.mxu0 0
        %6414 = vmatpush2.bf16.msra.mxu0 0
        %6415 = vmatprep.subr.bf16.mxu0 0
        %6416 = vmatpush2.bf16.msra.mxu0 0
        %6417 = vmatprep.subr.bf16.mxu0 0
        %6418 = vmatpush2.bf16.msra.mxu0 0
        %6419 = vmatprep.subr.bf16.mxu0 0
        %6420 = vmatpush2.bf16.msra.mxu0 0
        %6421 = vmatprep.subr.bf16.mxu0 0
        %6422 = vmatpush2.bf16.msra.mxu0 0
        %6423 = vmatprep.mubr.bf16.mxu0 0
        %6424 = vmatmul.mubr.bf16.gmra.mxu0 %v6389
        %v6425 = vpop.f32.mrf.mxu0
        %v6426 = vadd.f32 0.0, %v6425
        %v6427 = vpop.f32.mrf.mxu0
        %v6428 = vpop.f32.mrf.mxu0
        %v6429 = vadd.f32 0.0, %v6428
        %v6430 = vpop.f32.mrf.mxu0
        %6431 = vdwg.mxu0
        %6432 = vset.pattern.permute.xlu0 5
        %6433 = vperm.xlu0 %6432, %v6218
        %v6434 = vpop.permute.xlu0 %6433
        %6436 = vset.pattern.permute.xlu0 5
        %6437 = vperm.xlu0 %6436, %v6221
        %v6438 = vpop.permute.xlu0 %6437
        %v6440 = vlaneseq
        %v6441 = vshrl.u32 %v6440, 7
        %v6442 = vsub.s32 2, %v6441
        %v6443 = vrot.slane %v6240, %v6442
        %v6444 = vadd.f32 %v6434, %v6443
        %v6445 = vadd.f32 %v6438, %v6443
        %v6446 = vmul.f32 %v6444, 0.2
        %v6447 = vmul.f32 %v6445, 0.2
        %v6448 = vmax.f32 %v6444, %v6446
        %v6449 = vmax.f32 %v6445, %v6447
        %v6450 = vadd.f32 %v6448, %v1714
        %v6451 = vadd.f32 %v6449, %v1715
        %v6452 = vsel %vm2107, %v6450, -inf
        %6453 = vmax.xlane.f32.xlu0 %v6452
        %v6454 = vpop.xlane.xlu0 %6453
        %v6455 = vsel %vm2107, %v6451, -inf
        %6456 = vmax.xlane.f32.xlu0 %v6455
        %v6457 = vpop.xlane.xlu0 %6456
        %v6458 = vsub.f32 %v6450, %v6454
        %v6459 = vsub.f32 %v6451, %v6457
        %v6460 = vmul.f32 %v6458, 1.442695
        %v6461 = vpow.pop %v6460
        %v6462 = vmul.f32 %v6459, 1.442695
        %v6463 = vpow.pop %v6462
        %v6464 = vsel %vm2107, %v6461, 0.0
        %6465 = vadd.xlane.f32.xlu0 %v6464
        %v6466 = vpop.xlane.xlu0 %6465
        %v6467 = vsel %vm2107, %v6463, 0.0
        %6468 = vadd.xlane.f32.xlu0 %v6467
        %v6469 = vpop.xlane.xlu0 %6468
        %v6470 = vrcp.pop %v6466
        %v6471 = vrcp.pop %v6469
        %v6472 = vmul.f32 %v6461, %v6470
        %v6473 = vmul.f32 %v6463, %v6471
        %v6474 = vpack.c.bf16 %v6473, %v6472
        %v6476 = vsel %vm2107, %v6474, 0
        %6478 = vmatprep.subr.bf16.mxu0 0
        %6479 = vmatpush1.bf16.msra.mxu0 0
        %6480 = vmatprep.subr.bf16.mxu0 0
        %6481 = vmatpush1.bf16.msra.mxu0 0
        %6482 = vmatprep.subr.bf16.mxu0 0
        %6483 = vmatpush1.bf16.msra.mxu0 0
        %6484 = vmatprep.subr.bf16.mxu0 0
        %6485 = vmatpush1.bf16.msra.mxu0 0
        %6486 = vmatprep.subr.bf16.mxu0 0
        %6487 = vmatpush1.bf16.msra.mxu0 0
        %6488 = vmatprep.subr.bf16.mxu0 0
        %6489 = vmatpush1.bf16.msra.mxu0 0
        %6490 = vmatprep.subr.bf16.mxu0 0
        %6491 = vmatpush1.bf16.msra.mxu0 0
        %6492 = vmatprep.subr.bf16.mxu0 0
        %6493 = vmatpush1.bf16.msra.mxu0 %v5949
        %6494 = vmatprep.subr.bf16.mxu0 0
        %6495 = vmatpush2.bf16.msra.mxu0 0
        %6496 = vmatprep.subr.bf16.mxu0 0
        %6497 = vmatpush2.bf16.msra.mxu0 0
        %6498 = vmatprep.subr.bf16.mxu0 0
        %6499 = vmatpush2.bf16.msra.mxu0 0
        %6500 = vmatprep.subr.bf16.mxu0 0
        %6501 = vmatpush2.bf16.msra.mxu0 0
        %6502 = vmatprep.subr.bf16.mxu0 0
        %6503 = vmatpush2.bf16.msra.mxu0 0
        %6504 = vmatprep.subr.bf16.mxu0 0
        %6505 = vmatpush2.bf16.msra.mxu0 0
        %6506 = vmatprep.subr.bf16.mxu0 0
        %6507 = vmatpush2.bf16.msra.mxu0 0
        %6508 = vmatprep.subr.bf16.mxu0 0
        %6509 = vmatpush2.bf16.msra.mxu0 0
        %6510 = vmatprep.mubr.bf16.mxu0 0
        %6511 = vmatmul.mubr.bf16.gmra.mxu0 %v6476
        %v6512 = vpop.f32.mrf.mxu0
        %v6513 = vadd.f32 0.0, %v6512
        %v6514 = vpop.f32.mrf.mxu0
        %v6515 = vpop.f32.mrf.mxu0
        %v6516 = vadd.f32 0.0, %v6515
        %v6517 = vpop.f32.mrf.mxu0
        %6518 = vdwg.mxu0
        %v6519 = vld [vmem:[#allocation36] sm:$0x7]
        %v6521 = vlaneseq
        %v6522 = vshrl.u32 %v6521, 7
        %v6523 = vsub.s32 0, %v6522
        %v6524 = vrot.slane %v6519, %v6523
        %v6525 = vlaneseq
        %v6526 = vshrl.u32 %v6525, 7
        %v6527 = vsub.s32 1, %v6526
        %v6528 = vrot.slane %v6519, %v6527
        %v6529 = vlaneseq
        %v6530 = vshrl.u32 %v6529, 7
        %v6531 = vsub.s32 2, %v6530
        %v6532 = vrot.slane %v6519, %v6531
        %v6536 = vadd.f32 %v6339, %v6524
        %v6537 = vadd.f32 %v6426, %v6528
        %v6538 = vadd.f32 %v6513, %v6532
        %v6539 = vadd.f32 %v6342, %v6524
        %v6540 = vadd.f32 %v6429, %v6528
        %v6541 = vadd.f32 %v6516, %v6532
        %v6542 = vmax.f32 %v6536, 0.0
        %v6543 = vmax.f32 %v6537, 0.0
        %v6544 = vmax.f32 %v6538, 0.0
        %v6545 = vmax.f32 %v6539, 0.0
        %v6546 = vmax.f32 %v6540, 0.0
        %v6547 = vmax.f32 %v6541, 0.0
        %v6548 = vld [vmem:[#allocation37] sm:$0x7]
        %v6550 = vlaneseq
        %v6551 = vshrl.u32 %v6550, 7
        %v6552 = vsub.s32 0, %v6551
        %v6553 = vrot.slane %v6548, %v6552
        %v6554 = vlaneseq
        %v6555 = vshrl.u32 %v6554, 7
        %v6556 = vsub.s32 1, %v6555
        %v6557 = vrot.slane %v6548, %v6556
        %v6558 = vlaneseq
        %v6559 = vshrl.u32 %v6558, 7
        %v6560 = vsub.s32 2, %v6559
        %v6561 = vrot.slane %v6548, %v6560
        %v6565 = vmul.f32 %v6542, %v6553
        %v6566 = vmul.f32 %v6543, %v6557
        %v6567 = vmul.f32 %v6544, %v6561
        %v6568 = vmul.f32 %v6545, %v6553
        %v6569 = vmul.f32 %v6546, %v6557
        %v6570 = vmul.f32 %v6547, %v6561
        %v6571 = vld [vmem:[#allocation39] sm:$0x7]
        %v6573 = vlaneseq
        %v6574 = vshrl.u32 %v6573, 7
        %v6575 = vsub.s32 0, %v6574
        %v6576 = vrot.slane %v6571, %v6575
        %v6577 = vlaneseq
        %v6578 = vshrl.u32 %v6577, 7
        %v6579 = vsub.s32 1, %v6578
        %v6580 = vrot.slane %v6571, %v6579
        %v6581 = vlaneseq
        %v6582 = vshrl.u32 %v6581, 7
        %v6583 = vsub.s32 2, %v6582
        %v6584 = vrot.slane %v6571, %v6583
        %v6588 = vadd.f32 %v6565, %v6576
        %v6589 = vadd.f32 %v6566, %v6580
        %v6590 = vadd.f32 %v6567, %v6584
        %v6591 = vadd.f32 %v6568, %v6576
        %v6592 = vadd.f32 %v6569, %v6580
        %v6593 = vadd.f32 %v6570, %v6584
        %v6594 = vpack.c.bf16 %v6591, %v6588
        %v6595 = vpack.c.bf16 %v6592, %v6589
        %v6596 = vpack.c.bf16 %v6593, %v6590
        %v6597 = vld [vmem:[#allocation40] sm:$0xff]
        %v6598 = vld [vmem:[#allocation40 + $0x8] sm:$0xf]
        %v6599 = vld [vmem:[#allocation40 + $0xc] sm:$0xff]
        %v6600 = vld [vmem:[#allocation40 + $0x14] sm:$0xf]
        %v6601 = vld [vmem:[#allocation40 + $0x18] sm:$0xff]
        %v6602 = vld [vmem:[#allocation40 + $0x20] sm:$0xf]
        %v6603 = vld [vmem:[#allocation40 + $0x24] sm:$0xff]
        %v6604 = vld [vmem:[#allocation40 + $0x2c] sm:$0xf]
        %v6605 = vld [vmem:[#allocation40 + $0x30] sm:$0xff]
        %v6606 = vld [vmem:[#allocation40 + $0x38] sm:$0xf]
        %v6607 = vld [vmem:[#allocation40 + $0x3c] sm:$0xff]
        %v6608 = vld [vmem:[#allocation40 + $0x44] sm:$0xf]
        %v6609 = vld [vmem:[#allocation40 + $0x48] sm:$0xff]
        %v6610 = vld [vmem:[#allocation40 + $0x50] sm:$0xf]
        %v6611 = vld [vmem:[#allocation40 + $0x54] sm:$0xff]
        %v6612 = vld [vmem:[#allocation40 + $0x5c] sm:$0xf]
        %v6613 = vld [vmem:[#allocation40 + $0x60] sm:$0xff]
        %v6614 = vld [vmem:[#allocation40 + $0x68] sm:$0xf]
        %v6615 = vld [vmem:[#allocation40 + $0x6c] sm:$0xff]
        %v6616 = vld [vmem:[#allocation40 + $0x74] sm:$0xf]
        %v6617 = vld [vmem:[#allocation40 + $0x78] sm:$0xff]
        %v6618 = vld [vmem:[#allocation40 + $0x80] sm:$0xf]
        %v6619 = vld [vmem:[#allocation40 + $0x84] sm:$0xff]
        %v6620 = vld [vmem:[#allocation40 + $0x8c] sm:$0xf]
        %v6621 = vld [vmem:[#allocation40 + $0x90] sm:$0xff]
        %v6622 = vld [vmem:[#allocation40 + $0x98] sm:$0xf]
        %v6623 = vld [vmem:[#allocation40 + $0x9c] sm:$0xff]
        %v6624 = vld [vmem:[#allocation40 + $0xa4] sm:$0xf]
        %v6625 = vld [vmem:[#allocation40 + $0xa8] sm:$0xff]
        %v6626 = vld [vmem:[#allocation40 + $0xb0] sm:$0xf]
        %v6627 = vld [vmem:[#allocation40 + $0xb4] sm:$0xff]
        %v6628 = vld [vmem:[#allocation40 + $0xbc] sm:$0xf]
        %v6629 = vld [vmem:[#allocation40 + $0xc0] sm:$0xff]
        %v6630 = vld [vmem:[#allocation40 + $0xc8] sm:$0xf]
        %v6631 = vld [vmem:[#allocation40 + $0xcc] sm:$0xff]
        %v6632 = vld [vmem:[#allocation40 + $0xd4] sm:$0xf]
        %v6633 = vld [vmem:[#allocation40 + $0xd8] sm:$0xff]
        %v6634 = vld [vmem:[#allocation40 + $0xe0] sm:$0xf]
        %v6635 = vld [vmem:[#allocation40 + $0xe4] sm:$0xff]
        %v6636 = vld [vmem:[#allocation40 + $0xec] sm:$0xf]
        %v6637 = vld [vmem:[#allocation40 + $0xf0] sm:$0xff]
        %v6638 = vld [vmem:[#allocation40 + $0xf8] sm:$0xf]
        %v6639 = vld [vmem:[#allocation40 + $0xfc] sm:$0xff]
        %v6640 = vld [vmem:[#allocation40 + $0x104] sm:$0xf]
        %v6641 = vld [vmem:[#allocation40 + $0x108] sm:$0xff]
        %v6642 = vld [vmem:[#allocation40 + $0x110] sm:$0xf]
        %v6643 = vld [vmem:[#allocation40 + $0x114] sm:$0xff]
        %v6644 = vld [vmem:[#allocation40 + $0x11c] sm:$0xf]
        %v6645 = vld [vmem:[#allocation40 + $0x120] sm:$0xff]
        %v6646 = vld [vmem:[#allocation40 + $0x128] sm:$0xf]
        %v6647 = vld [vmem:[#allocation40 + $0x12c] sm:$0xff]
        %v6648 = vld [vmem:[#allocation40 + $0x134] sm:$0xf]
        %v6649 = vld [vmem:[#allocation40 + $0x138] sm:$0xff]
        %v6650 = vld [vmem:[#allocation40 + $0x140] sm:$0xf]
        %v6651 = vld [vmem:[#allocation40 + $0x144] sm:$0xff]
        %v6652 = vld [vmem:[#allocation40 + $0x14c] sm:$0xf]
        %v6653 = vld [vmem:[#allocation40 + $0x150] sm:$0xff]
        %v6654 = vld [vmem:[#allocation40 + $0x158] sm:$0xf]
        %v6655 = vld [vmem:[#allocation40 + $0x15c] sm:$0xff]
        %v6656 = vld [vmem:[#allocation40 + $0x164] sm:$0xf]
        %v6657 = vld [vmem:[#allocation40 + $0x168] sm:$0xff]
        %v6658 = vld [vmem:[#allocation40 + $0x170] sm:$0xf]
        %v6659 = vld [vmem:[#allocation40 + $0x174] sm:$0xff]
        %v6660 = vld [vmem:[#allocation40 + $0x17c] sm:$0xf]
        %v6661 = vld [vmem:[#allocation40 + $0x180] sm:$0xff]
        %v6662 = vld [vmem:[#allocation40 + $0x188] sm:$0xf]
        %v6663 = vld [vmem:[#allocation40 + $0x18c] sm:$0xff]
        %v6664 = vld [vmem:[#allocation40 + $0x194] sm:$0xf]
        %v6665 = vld [vmem:[#allocation40 + $0x198] sm:$0xff]
        %v6666 = vld [vmem:[#allocation40 + $0x1a0] sm:$0xf]
        %v6667 = vld [vmem:[#allocation40 + $0x1a4] sm:$0xff]
        %v6668 = vld [vmem:[#allocation40 + $0x1ac] sm:$0xf]
        %v6669 = vld [vmem:[#allocation40 + $0x1b0] sm:$0xff]
        %v6670 = vld [vmem:[#allocation40 + $0x1b8] sm:$0xf]
        %v6671 = vld [vmem:[#allocation40 + $0x1bc] sm:$0xff]
        %v6672 = vld [vmem:[#allocation40 + $0x1c4] sm:$0xf]
        %v6673 = vld [vmem:[#allocation40 + $0x1c8] sm:$0xff]
        %v6674 = vld [vmem:[#allocation40 + $0x1d0] sm:$0xf]
        %v6675 = vld [vmem:[#allocation40 + $0x1d4] sm:$0xff]
        %v6676 = vld [vmem:[#allocation40 + $0x1dc] sm:$0xf]
        %v6677 = vld [vmem:[#allocation40 + $0x1e0] sm:$0xff]
        %v6678 = vld [vmem:[#allocation40 + $0x1e8] sm:$0xf]
        %v6679 = vld [vmem:[#allocation40 + $0x1ec] sm:$0xff]
        %v6680 = vld [vmem:[#allocation40 + $0x1f4] sm:$0xf]
        %v6681 = vld [vmem:[#allocation40 + $0x1f8] sm:$0xff]
        %v6682 = vld [vmem:[#allocation40 + $0x200] sm:$0xf]
        %v6683 = vld [vmem:[#allocation40 + $0x204] sm:$0xff]
        %v6684 = vld [vmem:[#allocation40 + $0x20c] sm:$0xf]
        %v6685 = vld [vmem:[#allocation40 + $0x210] sm:$0xff]
        %v6686 = vld [vmem:[#allocation40 + $0x218] sm:$0xf]
        %v6687 = vld [vmem:[#allocation40 + $0x21c] sm:$0xff]
        %v6688 = vld [vmem:[#allocation40 + $0x224] sm:$0xf]
        %v6689 = vld [vmem:[#allocation40 + $0x228] sm:$0xff]
        %v6690 = vld [vmem:[#allocation40 + $0x230] sm:$0xf]
        %v6691 = vld [vmem:[#allocation40 + $0x234] sm:$0xff]
        %v6692 = vld [vmem:[#allocation40 + $0x23c] sm:$0xf]
        %v6789 = vunpack.c.l.b16 %v6597
        %v6790 = vunpack.c.h.b16 %v6597
        %v6791 = vunpack.c.l.b16 %v6598
        %v6792 = vunpack.c.l.b16 %v6599
        %v6793 = vunpack.c.h.b16 %v6599
        %v6794 = vunpack.c.l.b16 %v6600
        %v6795 = vunpack.c.l.b16 %v6601
        %v6796 = vunpack.c.h.b16 %v6601
        %v6797 = vunpack.c.l.b16 %v6602
        %v6798 = vunpack.c.l.b16 %v6603
        %v6799 = vunpack.c.h.b16 %v6603
        %v6800 = vunpack.c.l.b16 %v6604
        %v6801 = vunpack.c.l.b16 %v6605
        %v6802 = vunpack.c.h.b16 %v6605
        %v6803 = vunpack.c.l.b16 %v6606
        %v6804 = vunpack.c.l.b16 %v6607
        %v6805 = vunpack.c.h.b16 %v6607
        %v6806 = vunpack.c.l.b16 %v6608
        %v6807 = vunpack.c.l.b16 %v6609
        %v6808 = vunpack.c.h.b16 %v6609
        %v6809 = vunpack.c.l.b16 %v6610
        %v6810 = vunpack.c.l.b16 %v6611
        %v6811 = vunpack.c.h.b16 %v6611
        %v6812 = vunpack.c.l.b16 %v6612
        %v6813 = vunpack.c.l.b16 %v6613
        %v6814 = vunpack.c.h.b16 %v6613
        %v6815 = vunpack.c.l.b16 %v6614
        %v6816 = vunpack.c.l.b16 %v6615
        %v6817 = vunpack.c.h.b16 %v6615
        %v6818 = vunpack.c.l.b16 %v6616
        %v6819 = vunpack.c.l.b16 %v6617
        %v6820 = vunpack.c.h.b16 %v6617
        %v6821 = vunpack.c.l.b16 %v6618
        %v6822 = vunpack.c.l.b16 %v6619
        %v6823 = vunpack.c.h.b16 %v6619
        %v6824 = vunpack.c.l.b16 %v6620
        %v6825 = vunpack.c.l.b16 %v6621
        %v6826 = vunpack.c.h.b16 %v6621
        %v6827 = vunpack.c.l.b16 %v6622
        %v6828 = vunpack.c.l.b16 %v6623
        %v6829 = vunpack.c.h.b16 %v6623
        %v6830 = vunpack.c.l.b16 %v6624
        %v6831 = vunpack.c.l.b16 %v6625
        %v6832 = vunpack.c.h.b16 %v6625
        %v6833 = vunpack.c.l.b16 %v6626
        %v6834 = vunpack.c.l.b16 %v6627
        %v6835 = vunpack.c.h.b16 %v6627
        %v6836 = vunpack.c.l.b16 %v6628
        %v6837 = vunpack.c.l.b16 %v6629
        %v6838 = vunpack.c.h.b16 %v6629
        %v6839 = vunpack.c.l.b16 %v6630
        %v6840 = vunpack.c.l.b16 %v6631
        %v6841 = vunpack.c.h.b16 %v6631
        %v6842 = vunpack.c.l.b16 %v6632
        %v6843 = vunpack.c.l.b16 %v6633
        %v6844 = vunpack.c.h.b16 %v6633
        %v6845 = vunpack.c.l.b16 %v6634
        %v6846 = vunpack.c.l.b16 %v6635
        %v6847 = vunpack.c.h.b16 %v6635
        %v6848 = vunpack.c.l.b16 %v6636
        %v6849 = vunpack.c.l.b16 %v6637
        %v6850 = vunpack.c.h.b16 %v6637
        %v6851 = vunpack.c.l.b16 %v6638
        %v6852 = vunpack.c.l.b16 %v6639
        %v6853 = vunpack.c.h.b16 %v6639
        %v6854 = vunpack.c.l.b16 %v6640
        %v6855 = vunpack.c.l.b16 %v6641
        %v6856 = vunpack.c.h.b16 %v6641
        %v6857 = vunpack.c.l.b16 %v6642
        %v6858 = vunpack.c.l.b16 %v6643
        %v6859 = vunpack.c.h.b16 %v6643
        %v6860 = vunpack.c.l.b16 %v6644
        %v6861 = vunpack.c.l.b16 %v6645
        %v6862 = vunpack.c.h.b16 %v6645
        %v6863 = vunpack.c.l.b16 %v6646
        %v6864 = vunpack.c.l.b16 %v6647
        %v6865 = vunpack.c.h.b16 %v6647
        %v6866 = vunpack.c.l.b16 %v6648
        %v6867 = vunpack.c.l.b16 %v6649
        %v6868 = vunpack.c.h.b16 %v6649
        %v6869 = vunpack.c.l.b16 %v6650
        %v6870 = vunpack.c.l.b16 %v6651
        %v6871 = vunpack.c.h.b16 %v6651
        %v6872 = vunpack.c.l.b16 %v6652
        %v6873 = vunpack.c.l.b16 %v6653
        %v6874 = vunpack.c.h.b16 %v6653
        %v6875 = vunpack.c.l.b16 %v6654
        %v6876 = vunpack.c.l.b16 %v6655
        %v6877 = vunpack.c.h.b16 %v6655
        %v6878 = vunpack.c.l.b16 %v6656
        %v6879 = vunpack.c.l.b16 %v6657
        %v6880 = vunpack.c.h.b16 %v6657
        %v6881 = vunpack.c.l.b16 %v6658
        %v6882 = vunpack.c.l.b16 %v6659
        %v6883 = vunpack.c.h.b16 %v6659
        %v6884 = vunpack.c.l.b16 %v6660
        %v6885 = vunpack.c.l.b16 %v6661
        %v6886 = vunpack.c.h.b16 %v6661
        %v6887 = vunpack.c.l.b16 %v6662
        %v6888 = vunpack.c.l.b16 %v6663
        %v6889 = vunpack.c.h.b16 %v6663
        %v6890 = vunpack.c.l.b16 %v6664
        %v6891 = vunpack.c.l.b16 %v6665
        %v6892 = vunpack.c.h.b16 %v6665
        %v6893 = vunpack.c.l.b16 %v6666
        %v6894 = vunpack.c.l.b16 %v6667
        %v6895 = vunpack.c.h.b16 %v6667
        %v6896 = vunpack.c.l.b16 %v6668
        %v6897 = vunpack.c.l.b16 %v6669
        %v6898 = vunpack.c.h.b16 %v6669
        %v6899 = vunpack.c.l.b16 %v6670
        %v6900 = vunpack.c.l.b16 %v6671
        %v6901 = vunpack.c.h.b16 %v6671
        %v6902 = vunpack.c.l.b16 %v6672
        %v6903 = vunpack.c.l.b16 %v6673
        %v6904 = vunpack.c.h.b16 %v6673
        %v6905 = vunpack.c.l.b16 %v6674
        %v6906 = vunpack.c.l.b16 %v6675
        %v6907 = vunpack.c.h.b16 %v6675
        %v6908 = vunpack.c.l.b16 %v6676
        %v6909 = vunpack.c.l.b16 %v6677
        %v6910 = vunpack.c.h.b16 %v6677
        %v6911 = vunpack.c.l.b16 %v6678
        %v6912 = vunpack.c.l.b16 %v6679
        %v6913 = vunpack.c.h.b16 %v6679
        %v6914 = vunpack.c.l.b16 %v6680
        %v6915 = vunpack.c.l.b16 %v6681
        %v6916 = vunpack.c.h.b16 %v6681
        %v6917 = vunpack.c.l.b16 %v6682
        %v6918 = vunpack.c.l.b16 %v6683
        %v6919 = vunpack.c.h.b16 %v6683
        %v6920 = vunpack.c.l.b16 %v6684
        %v6921 = vunpack.c.l.b16 %v6685
        %v6922 = vunpack.c.h.b16 %v6685
        %v6923 = vunpack.c.l.b16 %v6686
        %v6924 = vunpack.c.l.b16 %v6687
        %v6925 = vunpack.c.h.b16 %v6687
        %v6926 = vunpack.c.l.b16 %v6688
        %v6927 = vunpack.c.l.b16 %v6689
        %v6928 = vunpack.c.h.b16 %v6689
        %v6929 = vunpack.c.l.b16 %v6690
        %v6930 = vunpack.c.l.b16 %v6691
        %v6931 = vunpack.c.h.b16 %v6691
        %v6932 = vunpack.c.l.b16 %v6692
        %v6933 = vpack.c.b16 %v6792, %v6789
        %v6934 = vpack.c.b16 %v6793, %v6790
        %v6935 = vpack.c.b16 %v6794, %v6791
        %v6936 = vpack.c.b16 %v6798, %v6795
        %v6937 = vpack.c.b16 %v6799, %v6796
        %v6938 = vpack.c.b16 %v6800, %v6797
        %v6939 = vpack.c.b16 %v6804, %v6801
        %v6940 = vpack.c.b16 %v6805, %v6802
        %v6941 = vpack.c.b16 %v6806, %v6803
        %v6942 = vpack.c.b16 %v6810, %v6807
        %v6943 = vpack.c.b16 %v6811, %v6808
        %v6944 = vpack.c.b16 %v6812, %v6809
        %v6945 = vpack.c.b16 %v6816, %v6813
        %v6946 = vpack.c.b16 %v6817, %v6814
        %v6947 = vpack.c.b16 %v6818, %v6815
        %v6948 = vpack.c.b16 %v6822, %v6819
        %v6949 = vpack.c.b16 %v6823, %v6820
        %v6950 = vpack.c.b16 %v6824, %v6821
        %v6951 = vpack.c.b16 %v6828, %v6825
        %v6952 = vpack.c.b16 %v6829, %v6826
        %v6953 = vpack.c.b16 %v6830, %v6827
        %v6954 = vpack.c.b16 %v6834, %v6831
        %v6955 = vpack.c.b16 %v6835, %v6832
        %v6956 = vpack.c.b16 %v6836, %v6833
        %v6957 = vpack.c.b16 %v6840, %v6837
        %v6958 = vpack.c.b16 %v6841, %v6838
        %v6959 = vpack.c.b16 %v6842, %v6839
        %v6960 = vpack.c.b16 %v6846, %v6843
        %v6961 = vpack.c.b16 %v6847, %v6844
        %v6962 = vpack.c.b16 %v6848, %v6845
        %v6963 = vpack.c.b16 %v6852, %v6849
        %v6964 = vpack.c.b16 %v6853, %v6850
        %v6965 = vpack.c.b16 %v6854, %v6851
        %v6966 = vpack.c.b16 %v6858, %v6855
        %v6967 = vpack.c.b16 %v6859, %v6856
        %v6968 = vpack.c.b16 %v6860, %v6857
        %v6969 = vpack.c.b16 %v6864, %v6861
        %v6970 = vpack.c.b16 %v6865, %v6862
        %v6971 = vpack.c.b16 %v6866, %v6863
        %v6972 = vpack.c.b16 %v6870, %v6867
        %v6973 = vpack.c.b16 %v6871, %v6868
        %v6974 = vpack.c.b16 %v6872, %v6869
        %v6975 = vpack.c.b16 %v6876, %v6873
        %v6976 = vpack.c.b16 %v6877, %v6874
        %v6977 = vpack.c.b16 %v6878, %v6875
        %v6978 = vpack.c.b16 %v6882, %v6879
        %v6979 = vpack.c.b16 %v6883, %v6880
        %v6980 = vpack.c.b16 %v6884, %v6881
        %v6981 = vpack.c.b16 %v6888, %v6885
        %v6982 = vpack.c.b16 %v6889, %v6886
        %v6983 = vpack.c.b16 %v6890, %v6887
        %v6984 = vpack.c.b16 %v6894, %v6891
        %v6985 = vpack.c.b16 %v6895, %v6892
        %v6986 = vpack.c.b16 %v6896, %v6893
        %v6987 = vpack.c.b16 %v6900, %v6897
        %v6988 = vpack.c.b16 %v6901, %v6898
        %v6989 = vpack.c.b16 %v6902, %v6899
        %v6990 = vpack.c.b16 %v6906, %v6903
        %v6991 = vpack.c.b16 %v6907, %v6904
        %v6992 = vpack.c.b16 %v6908, %v6905
        %v6993 = vpack.c.b16 %v6912, %v6909
        %v6994 = vpack.c.b16 %v6913, %v6910
        %v6995 = vpack.c.b16 %v6914, %v6911
        %v6996 = vpack.c.b16 %v6918, %v6915
        %v6997 = vpack.c.b16 %v6919, %v6916
        %v6998 = vpack.c.b16 %v6920, %v6917
        %v6999 = vpack.c.b16 %v6924, %v6921
        %v7000 = vpack.c.b16 %v6925, %v6922
        %v7001 = vpack.c.b16 %v6926, %v6923
        %v7002 = vpack.c.b16 %v6930, %v6927
        %v7003 = vpack.c.b16 %v6931, %v6928
        %v7004 = vpack.c.b16 %v6932, %v6929
        %7077 = vmatprep.subr.bf16.mxu0 %v6955
        %7078 = vmatpush1.bf16.msra.mxu0 %v6954
        %7079 = vmatprep.subr.bf16.mxu0 %v6952
        %7080 = vmatpush1.bf16.msra.mxu0 %v6951
        %7081 = vmatprep.subr.bf16.mxu0 %v6949
        %7082 = vmatpush1.bf16.msra.mxu0 %v6948
        %7083 = vmatprep.subr.bf16.mxu0 %v6946
        %7084 = vmatpush1.bf16.msra.mxu0 %v6945
        %7085 = vmatprep.subr.bf16.mxu0 %v6943
        %7086 = vmatpush1.bf16.msra.mxu0 %v6942
        %7087 = vmatprep.subr.bf16.mxu0 %v6940
        %7088 = vmatpush1.bf16.msra.mxu0 %v6939
        %7089 = vmatprep.subr.bf16.mxu0 %v6937
        %7090 = vmatpush1.bf16.msra.mxu0 %v6936
        %7091 = vmatprep.subr.bf16.mxu0 %v6934
        %7092 = vmatpush1.bf16.msra.mxu0 %v6933
        %7093 = vmatprep.subr.bf16.mxu0 %v6979
        %7094 = vmatpush2.bf16.msra.mxu0 %v6978
        %7095 = vmatprep.subr.bf16.mxu0 %v6976
        %7096 = vmatpush2.bf16.msra.mxu0 %v6975
        %7097 = vmatprep.subr.bf16.mxu0 %v6973
        %7098 = vmatpush2.bf16.msra.mxu0 %v6972
        %7099 = vmatprep.subr.bf16.mxu0 %v6970
        %7100 = vmatpush2.bf16.msra.mxu0 %v6969
        %7101 = vmatprep.subr.bf16.mxu0 %v6967
        %7102 = vmatpush2.bf16.msra.mxu0 %v6966
        %7103 = vmatprep.subr.bf16.mxu0 %v6964
        %7104 = vmatpush2.bf16.msra.mxu0 %v6963
        %7105 = vmatprep.subr.bf16.mxu0 %v6961
        %7106 = vmatpush2.bf16.msra.mxu0 %v6960
        %7107 = vmatprep.subr.bf16.mxu0 %v6958
        %7108 = vmatpush2.bf16.msra.mxu0 %v6957
        %7109 = vmatprep.mubr.bf16.mxu0 %v6595
        %7110 = vmatmul.mubr.bf16.gmra.mxu0 %v6594
        %v7111 = vpop.f32.mrf.mxu0
        %v7112 = vadd.f32 0.0, %v7111
        %v7113 = vpop.f32.mrf.mxu0
        %v7114 = vadd.f32 0.0, %v7113
        %v7115 = vpop.f32.mrf.mxu0
        %v7116 = vadd.f32 0.0, %v7115
        %v7117 = vpop.f32.mrf.mxu0
        %v7118 = vadd.f32 0.0, %v7117
        %7119 = vdwg.mxu0
        %7120 = vmatprep.subr.bf16.mxu0 %v7003
        %7121 = vmatpush1.bf16.msra.mxu0 %v7002
        %7122 = vmatprep.subr.bf16.mxu0 %v7000
        %7123 = vmatpush1.bf16.msra.mxu0 %v6999
        %7124 = vmatprep.subr.bf16.mxu0 %v6997
        %7125 = vmatpush1.bf16.msra.mxu0 %v6996
        %7126 = vmatprep.subr.bf16.mxu0 %v6994
        %7127 = vmatpush1.bf16.msra.mxu0 %v6993
        %7128 = vmatprep.subr.bf16.mxu0 %v6991
        %7129 = vmatpush1.bf16.msra.mxu0 %v6990
        %7130 = vmatprep.subr.bf16.mxu0 %v6988
        %7131 = vmatpush1.bf16.msra.mxu0 %v6987
        %7132 = vmatprep.subr.bf16.mxu0 %v6985
        %7133 = vmatpush1.bf16.msra.mxu0 %v6984
        %7134 = vmatprep.subr.bf16.mxu0 %v6982
        %7135 = vmatpush1.bf16.msra.mxu0 %v6981
        %7136 = vmatprep.subr.bf16.mxu0 0
        %7137 = vmatpush2.bf16.msra.mxu0 0
        %7138 = vmatprep.subr.bf16.mxu0 0
        %7139 = vmatpush2.bf16.msra.mxu0 0
        %7140 = vmatprep.subr.bf16.mxu0 0
        %7141 = vmatpush2.bf16.msra.mxu0 0
        %7142 = vmatprep.subr.bf16.mxu0 0
        %7143 = vmatpush2.bf16.msra.mxu0 0
        %7144 = vmatprep.subr.bf16.mxu0 0
        %7145 = vmatpush2.bf16.msra.mxu0 0
        %7146 = vmatprep.subr.bf16.mxu0 0
        %7147 = vmatpush2.bf16.msra.mxu0 0
        %7148 = vmatprep.subr.bf16.mxu0 0
        %7149 = vmatpush2.bf16.msra.mxu0 0
        %7150 = vmatprep.subr.bf16.mxu0 0
        %7151 = vmatpush2.bf16.msra.mxu0 0
        %7152 = vmatprep.mubr.bf16.mxu0 0
        %7153 = vmatmul.mubr.bf16.gmra.mxu0 %v6596
        %v7154 = vpop.f32.mrf.mxu0
        %v7155 = vadd.f32 %v7112, %v7154
        %v7156 = vpop.f32.mrf.mxu0
        %v7157 = vadd.f32 %v7114, %v7156
        %v7158 = vpop.f32.mrf.mxu0
        %v7159 = vadd.f32 %v7116, %v7158
        %v7160 = vpop.f32.mrf.mxu0
        %v7161 = vadd.f32 %v7118, %v7160
        %7162 = vdwg.mxu0
        %7163 = vmatprep.subr.bf16.mxu0 0
        %7164 = vmatpush1.bf16.msra.mxu0 %v6956
        %7165 = vmatprep.subr.bf16.mxu0 0
        %7166 = vmatpush1.bf16.msra.mxu0 %v6953
        %7167 = vmatprep.subr.bf16.mxu0 0
        %7168 = vmatpush1.bf16.msra.mxu0 %v6950
        %7169 = vmatprep.subr.bf16.mxu0 0
        %7170 = vmatpush1.bf16.msra.mxu0 %v6947
        %7171 = vmatprep.subr.bf16.mxu0 0
        %7172 = vmatpush1.bf16.msra.mxu0 %v6944
        %7173 = vmatprep.subr.bf16.mxu0 0
        %7174 = vmatpush1.bf16.msra.mxu0 %v6941
        %7175 = vmatprep.subr.bf16.mxu0 0
        %7176 = vmatpush1.bf16.msra.mxu0 %v6938
        %7177 = vmatprep.subr.bf16.mxu0 0
        %7178 = vmatpush1.bf16.msra.mxu0 %v6935
        %7179 = vmatprep.subr.bf16.mxu0 0
        %7180 = vmatpush2.bf16.msra.mxu0 %v6980
        %7181 = vmatprep.subr.bf16.mxu0 0
        %7182 = vmatpush2.bf16.msra.mxu0 %v6977
        %7183 = vmatprep.subr.bf16.mxu0 0
        %7184 = vmatpush2.bf16.msra.mxu0 %v6974
        %7185 = vmatprep.subr.bf16.mxu0 0
        %7186 = vmatpush2.bf16.msra.mxu0 %v6971
        %7187 = vmatprep.subr.bf16.mxu0 0
        %7188 = vmatpush2.bf16.msra.mxu0 %v6968
        %7189 = vmatprep.subr.bf16.mxu0 0
        %7190 = vmatpush2.bf16.msra.mxu0 %v6965
        %7191 = vmatprep.subr.bf16.mxu0 0
        %7192 = vmatpush2.bf16.msra.mxu0 %v6962
        %7193 = vmatprep.subr.bf16.mxu0 0
        %7194 = vmatpush2.bf16.msra.mxu0 %v6959
        %7195 = vmatprep.mubr.bf16.mxu0 %v6595
        %7196 = vmatmul.mubr.bf16.gmra.mxu0 %v6594
        %v7197 = vpop.f32.mrf.mxu0
        %v7198 = vadd.f32 0.0, %v7197
        %v7199 = vpop.f32.mrf.mxu0
        %v7200 = vpop.f32.mrf.mxu0
        %v7201 = vadd.f32 0.0, %v7200
        %v7202 = vpop.f32.mrf.mxu0
        %7203 = vdwg.mxu0
        %7204 = vmatprep.subr.bf16.mxu0 0
        %7205 = vmatpush1.bf16.msra.mxu0 %v7004
        %7206 = vmatprep.subr.bf16.mxu0 0
        %7207 = vmatpush1.bf16.msra.mxu0 %v7001
        %7208 = vmatprep.subr.bf16.mxu0 0
        %7209 = vmatpush1.bf16.msra.mxu0 %v6998
        %7210 = vmatprep.subr.bf16.mxu0 0
        %7211 = vmatpush1.bf16.msra.mxu0 %v6995
        %7212 = vmatprep.subr.bf16.mxu0 0
        %7213 = vmatpush1.bf16.msra.mxu0 %v6992
        %7214 = vmatprep.subr.bf16.mxu0 0
        %7215 = vmatpush1.bf16.msra.mxu0 %v6989
        %7216 = vmatprep.subr.bf16.mxu0 0
        %7217 = vmatpush1.bf16.msra.mxu0 %v6986
        %7218 = vmatprep.subr.bf16.mxu0 0
        %7219 = vmatpush1.bf16.msra.mxu0 %v6983
        %7220 = vmatprep.subr.bf16.mxu0 0
        %7221 = vmatpush2.bf16.msra.mxu0 0
        %7222 = vmatprep.subr.bf16.mxu0 0
        %7223 = vmatpush2.bf16.msra.mxu0 0
        %7224 = vmatprep.subr.bf16.mxu0 0
        %7225 = vmatpush2.bf16.msra.mxu0 0
        %7226 = vmatprep.subr.bf16.mxu0 0
        %7227 = vmatpush2.bf16.msra.mxu0 0
        %7228 = vmatprep.subr.bf16.mxu0 0
        %7229 = vmatpush2.bf16.msra.mxu0 0
        %7230 = vmatprep.subr.bf16.mxu0 0
        %7231 = vmatpush2.bf16.msra.mxu0 0
        %7232 = vmatprep.subr.bf16.mxu0 0
        %7233 = vmatpush2.bf16.msra.mxu0 0
        %7234 = vmatprep.subr.bf16.mxu0 0
        %7235 = vmatpush2.bf16.msra.mxu0 0
        %7236 = vmatprep.mubr.bf16.mxu0 0
        %7237 = vmatmul.mubr.bf16.gmra.mxu0 %v6596
        %v7238 = vpop.f32.mrf.mxu0
        %v7239 = vadd.f32 %v7198, %v7238
        %v7240 = vpop.f32.mrf.mxu0
        %v7241 = vpop.f32.mrf.mxu0
        %v7242 = vadd.f32 %v7201, %v7241
        %v7243 = vpop.f32.mrf.mxu0
        %7244 = vdwg.mxu0
        %v7245 = vpack.c.bf16 %v7159, %v7155
        %v7246 = vpack.c.bf16 %v7161, %v7157
        %v7247 = vpack.c.bf16 %v7242, %v7239
        %v7248 = vld [vmem:[#allocation42] sm:$0xf]
        %v7249 = vld [vmem:[#allocation42 + $0x4] sm:$0xf]
        %v7250 = vld [vmem:[#allocation42 + $0x8] sm:$0xf]
        %v7251 = vld [vmem:[#allocation42 + $0xc] sm:$0xf]
        %v7252 = vld [vmem:[#allocation42 + $0x10] sm:$0xf]
        %v7253 = vld [vmem:[#allocation42 + $0x14] sm:$0xf]
        %v7254 = vld [vmem:[#allocation42 + $0x18] sm:$0xf]
        %v7255 = vld [vmem:[#allocation42 + $0x1c] sm:$0xf]
        %v7256 = vld [vmem:[#allocation42 + $0x20] sm:$0xf]
        %v7257 = vld [vmem:[#allocation42 + $0x24] sm:$0xf]
        %v7258 = vld [vmem:[#allocation42 + $0x28] sm:$0xf]
        %v7259 = vld [vmem:[#allocation42 + $0x2c] sm:$0xf]
        %v7260 = vld [vmem:[#allocation42 + $0x30] sm:$0xf]
        %v7261 = vld [vmem:[#allocation42 + $0x34] sm:$0xf]
        %v7262 = vld [vmem:[#allocation42 + $0x38] sm:$0xf]
        %v7263 = vld [vmem:[#allocation42 + $0x3c] sm:$0xf]
        %v7264 = vld [vmem:[#allocation42 + $0x40] sm:$0xf]
        %v7265 = vld [vmem:[#allocation42 + $0x44] sm:$0xf]
        %v7266 = vld [vmem:[#allocation42 + $0x48] sm:$0xf]
        %v7267 = vld [vmem:[#allocation42 + $0x4c] sm:$0xf]
        %v7268 = vld [vmem:[#allocation42 + $0x50] sm:$0xf]
        %v7269 = vld [vmem:[#allocation42 + $0x54] sm:$0xf]
        %v7270 = vld [vmem:[#allocation42 + $0x58] sm:$0xf]
        %v7271 = vld [vmem:[#allocation42 + $0x5c] sm:$0xf]
        %v7272 = vld [vmem:[#allocation42 + $0x60] sm:$0xf]
        %v7273 = vld [vmem:[#allocation42 + $0x64] sm:$0xf]
        %v7274 = vld [vmem:[#allocation42 + $0x68] sm:$0xf]
        %v7275 = vld [vmem:[#allocation42 + $0x6c] sm:$0xf]
        %v7276 = vld [vmem:[#allocation42 + $0x70] sm:$0xf]
        %v7277 = vld [vmem:[#allocation42 + $0x74] sm:$0xf]
        %v7278 = vld [vmem:[#allocation42 + $0x78] sm:$0xf]
        %v7279 = vld [vmem:[#allocation42 + $0x7c] sm:$0xf]
        %v7280 = vld [vmem:[#allocation42 + $0x80] sm:$0xf]
        %v7281 = vld [vmem:[#allocation42 + $0x84] sm:$0xf]
        %v7282 = vld [vmem:[#allocation42 + $0x88] sm:$0xf]
        %v7283 = vld [vmem:[#allocation42 + $0x8c] sm:$0xf]
        %v7284 = vld [vmem:[#allocation42 + $0x90] sm:$0xf]
        %v7285 = vld [vmem:[#allocation42 + $0x94] sm:$0xf]
        %v7286 = vld [vmem:[#allocation42 + $0x98] sm:$0xf]
        %v7287 = vld [vmem:[#allocation42 + $0x9c] sm:$0xf]
        %v7288 = vld [vmem:[#allocation42 + $0xa0] sm:$0xf]
        %v7289 = vld [vmem:[#allocation42 + $0xa4] sm:$0xf]
        %v7290 = vld [vmem:[#allocation42 + $0xa8] sm:$0xf]
        %v7291 = vld [vmem:[#allocation42 + $0xac] sm:$0xf]
        %v7292 = vld [vmem:[#allocation42 + $0xb0] sm:$0xf]
        %v7293 = vld [vmem:[#allocation42 + $0xb4] sm:$0xf]
        %v7294 = vld [vmem:[#allocation42 + $0xb8] sm:$0xf]
        %v7295 = vld [vmem:[#allocation42 + $0xbc] sm:$0xf]
        %v7344 = vunpack.c.l.b16 %v7248
        %v7345 = vunpack.c.l.b16 %v7249
        %v7346 = vunpack.c.l.b16 %v7250
        %v7347 = vunpack.c.l.b16 %v7251
        %v7348 = vunpack.c.l.b16 %v7252
        %v7349 = vunpack.c.l.b16 %v7253
        %v7350 = vunpack.c.l.b16 %v7254
        %v7351 = vunpack.c.l.b16 %v7255
        %v7352 = vunpack.c.l.b16 %v7256
        %v7353 = vunpack.c.l.b16 %v7257
        %v7354 = vunpack.c.l.b16 %v7258
        %v7355 = vunpack.c.l.b16 %v7259
        %v7356 = vunpack.c.l.b16 %v7260
        %v7357 = vunpack.c.l.b16 %v7261
        %v7358 = vunpack.c.l.b16 %v7262
        %v7359 = vunpack.c.l.b16 %v7263
        %v7360 = vunpack.c.l.b16 %v7264
        %v7361 = vunpack.c.l.b16 %v7265
        %v7362 = vunpack.c.l.b16 %v7266
        %v7363 = vunpack.c.l.b16 %v7267
        %v7364 = vunpack.c.l.b16 %v7268
        %v7365 = vunpack.c.l.b16 %v7269
        %v7366 = vunpack.c.l.b16 %v7270
        %v7367 = vunpack.c.l.b16 %v7271
        %v7368 = vunpack.c.l.b16 %v7272
        %v7369 = vunpack.c.l.b16 %v7273
        %v7370 = vunpack.c.l.b16 %v7274
        %v7371 = vunpack.c.l.b16 %v7275
        %v7372 = vunpack.c.l.b16 %v7276
        %v7373 = vunpack.c.l.b16 %v7277
        %v7374 = vunpack.c.l.b16 %v7278
        %v7375 = vunpack.c.l.b16 %v7279
        %v7376 = vunpack.c.l.b16 %v7280
        %v7377 = vunpack.c.l.b16 %v7281
        %v7378 = vunpack.c.l.b16 %v7282
        %v7379 = vunpack.c.l.b16 %v7283
        %v7380 = vunpack.c.l.b16 %v7284
        %v7381 = vunpack.c.l.b16 %v7285
        %v7382 = vunpack.c.l.b16 %v7286
        %v7383 = vunpack.c.l.b16 %v7287
        %v7384 = vunpack.c.l.b16 %v7288
        %v7385 = vunpack.c.l.b16 %v7289
        %v7386 = vunpack.c.l.b16 %v7290
        %v7387 = vunpack.c.l.b16 %v7291
        %v7388 = vunpack.c.l.b16 %v7292
        %v7389 = vunpack.c.l.b16 %v7293
        %v7390 = vunpack.c.l.b16 %v7294
        %v7391 = vunpack.c.l.b16 %v7295
        %v7392 = vpack.c.b16 %v7345, %v7344
        %v7393 = vpack.c.b16 %v7347, %v7346
        %v7394 = vpack.c.b16 %v7349, %v7348
        %v7395 = vpack.c.b16 %v7351, %v7350
        %v7396 = vpack.c.b16 %v7353, %v7352
        %v7397 = vpack.c.b16 %v7355, %v7354
        %v7398 = vpack.c.b16 %v7357, %v7356
        %v7399 = vpack.c.b16 %v7359, %v7358
        %v7400 = vpack.c.b16 %v7361, %v7360
        %v7401 = vpack.c.b16 %v7363, %v7362
        %v7402 = vpack.c.b16 %v7365, %v7364
        %v7403 = vpack.c.b16 %v7367, %v7366
        %v7404 = vpack.c.b16 %v7369, %v7368
        %v7405 = vpack.c.b16 %v7371, %v7370
        %v7406 = vpack.c.b16 %v7373, %v7372
        %v7407 = vpack.c.b16 %v7375, %v7374
        %v7408 = vpack.c.b16 %v7377, %v7376
        %v7409 = vpack.c.b16 %v7379, %v7378
        %v7410 = vpack.c.b16 %v7381, %v7380
        %v7411 = vpack.c.b16 %v7383, %v7382
        %v7412 = vpack.c.b16 %v7385, %v7384
        %v7413 = vpack.c.b16 %v7387, %v7386
        %v7414 = vpack.c.b16 %v7389, %v7388
        %v7415 = vpack.c.b16 %v7391, %v7390
        %7440 = vmatprep.subr.bf16.mxu0 0
        %7441 = vmatpush1.bf16.msra.mxu0 %v7399
        %7442 = vmatprep.subr.bf16.mxu0 0
        %7443 = vmatpush1.bf16.msra.mxu0 %v7398
        %7444 = vmatprep.subr.bf16.mxu0 0
        %7445 = vmatpush1.bf16.msra.mxu0 %v7397
        %7446 = vmatprep.subr.bf16.mxu0 0
        %7447 = vmatpush1.bf16.msra.mxu0 %v7396
        %7448 = vmatprep.subr.bf16.mxu0 0
        %7449 = vmatpush1.bf16.msra.mxu0 %v7395
        %7450 = vmatprep.subr.bf16.mxu0 0
        %7451 = vmatpush1.bf16.msra.mxu0 %v7394
        %7452 = vmatprep.subr.bf16.mxu0 0
        %7453 = vmatpush1.bf16.msra.mxu0 %v7393
        %7454 = vmatprep.subr.bf16.mxu0 0
        %7455 = vmatpush1.bf16.msra.mxu0 %v7392
        %7456 = vmatprep.subr.bf16.mxu0 0
        %7457 = vmatpush2.bf16.msra.mxu0 %v7407
        %7458 = vmatprep.subr.bf16.mxu0 0
        %7459 = vmatpush2.bf16.msra.mxu0 %v7406
        %7460 = vmatprep.subr.bf16.mxu0 0
        %7461 = vmatpush2.bf16.msra.mxu0 %v7405
        %7462 = vmatprep.subr.bf16.mxu0 0
        %7463 = vmatpush2.bf16.msra.mxu0 %v7404
        %7464 = vmatprep.subr.bf16.mxu0 0
        %7465 = vmatpush2.bf16.msra.mxu0 %v7403
        %7466 = vmatprep.subr.bf16.mxu0 0
        %7467 = vmatpush2.bf16.msra.mxu0 %v7402
        %7468 = vmatprep.subr.bf16.mxu0 0
        %7469 = vmatpush2.bf16.msra.mxu0 %v7401
        %7470 = vmatprep.subr.bf16.mxu0 0
        %7471 = vmatpush2.bf16.msra.mxu0 %v7400
        %7472 = vmatprep.mubr.bf16.mxu0 %v7246
        %7473 = vmatmul.mubr.bf16.gmra.mxu0 %v7245
        %v7474 = vpop.f32.mrf.mxu0
        %v7475 = vadd.f32 0.0, %v7474
        %v7476 = vpop.f32.mrf.mxu0
        %v7477 = vpop.f32.mrf.mxu0
        %v7478 = vadd.f32 0.0, %v7477
        %v7479 = vpop.f32.mrf.mxu0
        %7480 = vdwg.mxu0
        %7481 = vmatprep.subr.bf16.mxu0 0
        %7482 = vmatpush1.bf16.msra.mxu0 %v7415
        %7483 = vmatprep.subr.bf16.mxu0 0
        %7484 = vmatpush1.bf16.msra.mxu0 %v7414
        %7485 = vmatprep.subr.bf16.mxu0 0
        %7486 = vmatpush1.bf16.msra.mxu0 %v7413
        %7487 = vmatprep.subr.bf16.mxu0 0
        %7488 = vmatpush1.bf16.msra.mxu0 %v7412
        %7489 = vmatprep.subr.bf16.mxu0 0
        %7490 = vmatpush1.bf16.msra.mxu0 %v7411
        %7491 = vmatprep.subr.bf16.mxu0 0
        %7492 = vmatpush1.bf16.msra.mxu0 %v7410
        %7493 = vmatprep.subr.bf16.mxu0 0
        %7494 = vmatpush1.bf16.msra.mxu0 %v7409
        %7495 = vmatprep.subr.bf16.mxu0 0
        %7496 = vmatpush1.bf16.msra.mxu0 %v7408
        %7497 = vmatprep.subr.bf16.mxu0 0
        %7498 = vmatpush2.bf16.msra.mxu0 0
        %7499 = vmatprep.subr.bf16.mxu0 0
        %7500 = vmatpush2.bf16.msra.mxu0 0
        %7501 = vmatprep.subr.bf16.mxu0 0
        %7502 = vmatpush2.bf16.msra.mxu0 0
        %7503 = vmatprep.subr.bf16.mxu0 0
        %7504 = vmatpush2.bf16.msra.mxu0 0
        %7505 = vmatprep.subr.bf16.mxu0 0
        %7506 = vmatpush2.bf16.msra.mxu0 0
        %7507 = vmatprep.subr.bf16.mxu0 0
        %7508 = vmatpush2.bf16.msra.mxu0 0
        %7509 = vmatprep.subr.bf16.mxu0 0
        %7510 = vmatpush2.bf16.msra.mxu0 0
        %7511 = vmatprep.subr.bf16.mxu0 0
        %7512 = vmatpush2.bf16.msra.mxu0 0
        %7513 = vmatprep.mubr.bf16.mxu0 0
        %7514 = vmatmul.mubr.bf16.gmra.mxu0 %v7247
        %v7515 = vpop.f32.mrf.mxu0
        %v7516 = vadd.f32 %v7475, %v7515
        %v7517 = vpop.f32.mrf.mxu0
        %v7518 = vpop.f32.mrf.mxu0
        %v7519 = vadd.f32 %v7478, %v7518
        %v7520 = vpop.f32.mrf.mxu0
        %7521 = vdwg.mxu0
        %7522 = vxpose.xlu0.b32.start [1/16] %v7516, 128
        %7523 = vxpose.xlu0.b32.cont [2/16] %v7519, 128
        %7524 = vxpose.xlu0.b32.cont [3/16] 0.0, 128
        %7525 = vxpose.xlu0.b32.cont [4/16] 0.0, 128
        %7526 = vxpose.xlu0.b32.cont [5/16] 0.0, 128
        %7527 = vxpose.xlu0.b32.cont [6/16] 0.0, 128
        %7528 = vxpose.xlu0.b32.cont [7/16] 0.0, 128
        %7529 = vxpose.xlu0.b32.cont [8/16] 0.0, 128
        %7530 = vxpose.xlu0.b32.cont [9/16] 0.0, 128
        %7531 = vxpose.xlu0.b32.cont [10/16] 0.0, 128
        %7532 = vxpose.xlu0.b32.cont [11/16] 0.0, 128
        %7533 = vxpose.xlu0.b32.cont [12/16] 0.0, 128
        %7534 = vxpose.xlu0.b32.cont [13/16] 0.0, 128
        %7535 = vxpose.xlu0.b32.cont [14/16] 0.0, 128
        %7536 = vxpose.xlu0.b32.cont [15/16] 0.0, 128
        %7537 = vxpose.xlu0.b32.end [16/16] 0.0, 128
        %v7538 = vpop.trf.xlu0
        %v7539 = vpop.trf.xlu0
        %v7540 = vpop.trf.xlu0
        %v7541 = vpop.trf.xlu0
        %v7542 = vpop.trf.xlu0
        %v7543 = vpop.trf.xlu0
        %v7544 = vpop.trf.xlu0
        %v7545 = vpop.trf.xlu0
        %v7546 = vpop.trf.xlu0
        %v7547 = vpop.trf.xlu0
        %v7548 = vpop.trf.xlu0
        %v7549 = vpop.trf.xlu0
        %v7550 = vpop.trf.xlu0
        %v7551 = vpop.trf.xlu0
        %v7552 = vpop.trf.xlu0
        %v7553 = vpop.trf.xlu0
        %7555 = vset.pattern.permute.xlu0 3
        %7556 = vperm.xlu0 %7555, %v7516
        %v7557 = vpop.permute.xlu0 %7556
        %7560 = vset.pattern.permute.xlu0 3
        %7561 = vperm.xlu0 %7560, %v7519
        %v7562 = vpop.permute.xlu0 %7561
        %v7564 = vlaneseq
        %v7565 = vshrl.u32 %v7564, 7
        %v7566 = vsub.s32 0, %v7565
        %v7567 = vrot.slane %v7538, %v7566
        %v7568 = vadd.f32 %v7557, %v7567
        %v7569 = vadd.f32 %v7562, %v7567
        %v7570 = vmul.f32 %v7568, 0.2
        %v7571 = vmul.f32 %v7569, 0.2
        %v7572 = vmax.f32 %v7568, %v7570
        %v7573 = vmax.f32 %v7569, %v7571
        %v7574 = vadd.f32 %v7572, %v1714
        %v7575 = vadd.f32 %v7573, %v1715
        %v7576 = vsel %vm2107, %v7574, -inf
        %7577 = vmax.xlane.f32.xlu0 %v7576
        %v7578 = vpop.xlane.xlu0 %7577
        %v7579 = vsel %vm2107, %v7575, -inf
        %7580 = vmax.xlane.f32.xlu0 %v7579
        %v7581 = vpop.xlane.xlu0 %7580
        %v7582 = vsub.f32 %v7574, %v7578
        %v7583 = vsub.f32 %v7575, %v7581
        %v7584 = vmul.f32 %v7582, 1.442695
        %v7585 = vpow.pop %v7584
        %v7586 = vmul.f32 %v7583, 1.442695
        %v7587 = vpow.pop %v7586
        %v7588 = vsel %vm2107, %v7585, 0.0
        %7589 = vadd.xlane.f32.xlu0 %v7588
        %v7590 = vpop.xlane.xlu0 %7589
        %v7591 = vsel %vm2107, %v7587, 0.0
        %7592 = vadd.xlane.f32.xlu0 %v7591
        %v7593 = vpop.xlane.xlu0 %7592
        %v7594 = vrcp.pop %v7590
        %v7595 = vrcp.pop %v7593
        %v7596 = vmul.f32 %v7585, %v7594
        %v7597 = vmul.f32 %v7587, %v7595
        %v7598 = vpack.c.bf16 %v7597, %v7596
        %v7600 = vsel %vm2107, %v7598, 0
        %7602 = vmatprep.subr.bf16.mxu0 0
        %7603 = vmatpush1.bf16.msra.mxu0 0
        %7604 = vmatprep.subr.bf16.mxu0 0
        %7605 = vmatpush1.bf16.msra.mxu0 0
        %7606 = vmatprep.subr.bf16.mxu0 0
        %7607 = vmatpush1.bf16.msra.mxu0 0
        %7608 = vmatprep.subr.bf16.mxu0 0
        %7609 = vmatpush1.bf16.msra.mxu0 0
        %7610 = vmatprep.subr.bf16.mxu0 0
        %7611 = vmatpush1.bf16.msra.mxu0 0
        %7612 = vmatprep.subr.bf16.mxu0 0
        %7613 = vmatpush1.bf16.msra.mxu0 0
        %7614 = vmatprep.subr.bf16.mxu0 0
        %7615 = vmatpush1.bf16.msra.mxu0 0
        %7616 = vmatprep.subr.bf16.mxu0 0
        %7617 = vmatpush1.bf16.msra.mxu0 %v7245
        %7618 = vmatprep.subr.bf16.mxu0 0
        %7619 = vmatpush2.bf16.msra.mxu0 0
        %7620 = vmatprep.subr.bf16.mxu0 0
        %7621 = vmatpush2.bf16.msra.mxu0 0
        %7622 = vmatprep.subr.bf16.mxu0 0
        %7623 = vmatpush2.bf16.msra.mxu0 0
        %7624 = vmatprep.subr.bf16.mxu0 0
        %7625 = vmatpush2.bf16.msra.mxu0 0
        %7626 = vmatprep.subr.bf16.mxu0 0
        %7627 = vmatpush2.bf16.msra.mxu0 0
        %7628 = vmatprep.subr.bf16.mxu0 0
        %7629 = vmatpush2.bf16.msra.mxu0 0
        %7630 = vmatprep.subr.bf16.mxu0 0
        %7631 = vmatpush2.bf16.msra.mxu0 0
        %7632 = vmatprep.subr.bf16.mxu0 0
        %7633 = vmatpush2.bf16.msra.mxu0 0
        %7634 = vmatprep.mubr.bf16.mxu0 0
        %7635 = vmatmul.mubr.bf16.gmra.mxu0 %v7600
        %v7636 = vpop.f32.mrf.mxu0
        %v7637 = vadd.f32 0.0, %v7636
        %v7638 = vpop.f32.mrf.mxu0
        %v7639 = vpop.f32.mrf.mxu0
        %v7640 = vadd.f32 0.0, %v7639
        %v7641 = vpop.f32.mrf.mxu0
        %7642 = vdwg.mxu0
        %7643 = vset.pattern.permute.xlu0 4
        %7644 = vperm.xlu0 %7643, %v7516
        %v7645 = vpop.permute.xlu0 %7644
        %7647 = vset.pattern.permute.xlu0 4
        %7648 = vperm.xlu0 %7647, %v7519
        %v7649 = vpop.permute.xlu0 %7648
        %v7651 = vlaneseq
        %v7652 = vshrl.u32 %v7651, 7
        %v7653 = vsub.s32 1, %v7652
        %v7654 = vrot.slane %v7538, %v7653
        %v7655 = vadd.f32 %v7645, %v7654
        %v7656 = vadd.f32 %v7649, %v7654
        %v7657 = vmul.f32 %v7655, 0.2
        %v7658 = vmul.f32 %v7656, 0.2
        %v7659 = vmax.f32 %v7655, %v7657
        %v7660 = vmax.f32 %v7656, %v7658
        %v7661 = vadd.f32 %v7659, %v1714
        %v7662 = vadd.f32 %v7660, %v1715
        %v7663 = vsel %vm2107, %v7661, -inf
        %7664 = vmax.xlane.f32.xlu0 %v7663
        %v7665 = vpop.xlane.xlu0 %7664
        %v7666 = vsel %vm2107, %v7662, -inf
        %7667 = vmax.xlane.f32.xlu0 %v7666
        %v7668 = vpop.xlane.xlu0 %7667
        %v7669 = vsub.f32 %v7661, %v7665
        %v7670 = vsub.f32 %v7662, %v7668
        %v7671 = vmul.f32 %v7669, 1.442695
        %v7672 = vpow.pop %v7671
        %v7673 = vmul.f32 %v7670, 1.442695
        %v7674 = vpow.pop %v7673
        %v7675 = vsel %vm2107, %v7672, 0.0
        %7676 = vadd.xlane.f32.xlu0 %v7675
        %v7677 = vpop.xlane.xlu0 %7676
        %v7678 = vsel %vm2107, %v7674, 0.0
        %7679 = vadd.xlane.f32.xlu0 %v7678
        %v7680 = vpop.xlane.xlu0 %7679
        %v7681 = vrcp.pop %v7677
        %v7682 = vrcp.pop %v7680
        %v7683 = vmul.f32 %v7672, %v7681
        %v7684 = vmul.f32 %v7674, %v7682
        %v7685 = vpack.c.bf16 %v7684, %v7683
        %v7687 = vsel %vm2107, %v7685, 0
        %7689 = vmatprep.subr.bf16.mxu0 0
        %7690 = vmatpush1.bf16.msra.mxu0 0
        %7691 = vmatprep.subr.bf16.mxu0 0
        %7692 = vmatpush1.bf16.msra.mxu0 0
        %7693 = vmatprep.subr.bf16.mxu0 0
        %7694 = vmatpush1.bf16.msra.mxu0 0
        %7695 = vmatprep.subr.bf16.mxu0 0
        %7696 = vmatpush1.bf16.msra.mxu0 0
        %7697 = vmatprep.subr.bf16.mxu0 0
        %7698 = vmatpush1.bf16.msra.mxu0 0
        %7699 = vmatprep.subr.bf16.mxu0 0
        %7700 = vmatpush1.bf16.msra.mxu0 0
        %7701 = vmatprep.subr.bf16.mxu0 0
        %7702 = vmatpush1.bf16.msra.mxu0 0
        %7703 = vmatprep.subr.bf16.mxu0 0
        %7704 = vmatpush1.bf16.msra.mxu0 %v7246
        %7705 = vmatprep.subr.bf16.mxu0 0
        %7706 = vmatpush2.bf16.msra.mxu0 0
        %7707 = vmatprep.subr.bf16.mxu0 0
        %7708 = vmatpush2.bf16.msra.mxu0 0
        %7709 = vmatprep.subr.bf16.mxu0 0
        %7710 = vmatpush2.bf16.msra.mxu0 0
        %7711 = vmatprep.subr.bf16.mxu0 0
        %7712 = vmatpush2.bf16.msra.mxu0 0
        %7713 = vmatprep.subr.bf16.mxu0 0
        %7714 = vmatpush2.bf16.msra.mxu0 0
        %7715 = vmatprep.subr.bf16.mxu0 0
        %7716 = vmatpush2.bf16.msra.mxu0 0
        %7717 = vmatprep.subr.bf16.mxu0 0
        %7718 = vmatpush2.bf16.msra.mxu0 0
        %7719 = vmatprep.subr.bf16.mxu0 0
        %7720 = vmatpush2.bf16.msra.mxu0 0
        %7721 = vmatprep.mubr.bf16.mxu0 0
        %7722 = vmatmul.mubr.bf16.gmra.mxu0 %v7687
        %v7723 = vpop.f32.mrf.mxu0
        %v7724 = vadd.f32 0.0, %v7723
        %v7725 = vpop.f32.mrf.mxu0
        %v7726 = vpop.f32.mrf.mxu0
        %v7727 = vadd.f32 0.0, %v7726
        %v7728 = vpop.f32.mrf.mxu0
        %7729 = vdwg.mxu0
        %7730 = vset.pattern.permute.xlu0 5
        %7731 = vperm.xlu0 %7730, %v7516
        %v7732 = vpop.permute.xlu0 %7731
        %7734 = vset.pattern.permute.xlu0 5
        %7735 = vperm.xlu0 %7734, %v7519
        %v7736 = vpop.permute.xlu0 %7735
        %v7738 = vlaneseq
        %v7739 = vshrl.u32 %v7738, 7
        %v7740 = vsub.s32 2, %v7739
        %v7741 = vrot.slane %v7538, %v7740
        %v7742 = vadd.f32 %v7732, %v7741
        %v7743 = vadd.f32 %v7736, %v7741
        %v7744 = vmul.f32 %v7742, 0.2
        %v7745 = vmul.f32 %v7743, 0.2
        %v7746 = vmax.f32 %v7742, %v7744
        %v7747 = vmax.f32 %v7743, %v7745
        %v7748 = vadd.f32 %v7746, %v1714
        %v7749 = vadd.f32 %v7747, %v1715
        %v7750 = vsel %vm2107, %v7748, -inf
        %7751 = vmax.xlane.f32.xlu0 %v7750
        %v7752 = vpop.xlane.xlu0 %7751
        %v7753 = vsel %vm2107, %v7749, -inf
        %7754 = vmax.xlane.f32.xlu0 %v7753
        %v7755 = vpop.xlane.xlu0 %7754
        %v7756 = vsub.f32 %v7748, %v7752
        %v7757 = vsub.f32 %v7749, %v7755
        %v7758 = vmul.f32 %v7756, 1.442695
        %v7759 = vpow.pop %v7758
        %v7760 = vmul.f32 %v7757, 1.442695
        %v7761 = vpow.pop %v7760
        %v7762 = vsel %vm2107, %v7759, 0.0
        %7763 = vadd.xlane.f32.xlu0 %v7762
        %v7764 = vpop.xlane.xlu0 %7763
        %v7765 = vsel %vm2107, %v7761, 0.0
        %7766 = vadd.xlane.f32.xlu0 %v7765
        %v7767 = vpop.xlane.xlu0 %7766
        %v7768 = vrcp.pop %v7764
        %v7769 = vrcp.pop %v7767
        %v7770 = vmul.f32 %v7759, %v7768
        %v7771 = vmul.f32 %v7761, %v7769
        %v7772 = vpack.c.bf16 %v7771, %v7770
        %v7774 = vsel %vm2107, %v7772, 0
        %7776 = vmatprep.subr.bf16.mxu0 0
        %7777 = vmatpush1.bf16.msra.mxu0 0
        %7778 = vmatprep.subr.bf16.mxu0 0
        %7779 = vmatpush1.bf16.msra.mxu0 0
        %7780 = vmatprep.subr.bf16.mxu0 0
        %7781 = vmatpush1.bf16.msra.mxu0 0
        %7782 = vmatprep.subr.bf16.mxu0 0
        %7783 = vmatpush1.bf16.msra.mxu0 0
        %7784 = vmatprep.subr.bf16.mxu0 0
        %7785 = vmatpush1.bf16.msra.mxu0 0
        %7786 = vmatprep.subr.bf16.mxu0 0
        %7787 = vmatpush1.bf16.msra.mxu0 0
        %7788 = vmatprep.subr.bf16.mxu0 0
        %7789 = vmatpush1.bf16.msra.mxu0 0
        %7790 = vmatprep.subr.bf16.mxu0 0
        %7791 = vmatpush1.bf16.msra.mxu0 %v7247
        %7792 = vmatprep.subr.bf16.mxu0 0
        %7793 = vmatpush2.bf16.msra.mxu0 0
        %7794 = vmatprep.subr.bf16.mxu0 0
        %7795 = vmatpush2.bf16.msra.mxu0 0
        %7796 = vmatprep.subr.bf16.mxu0 0
        %7797 = vmatpush2.bf16.msra.mxu0 0
        %7798 = vmatprep.subr.bf16.mxu0 0
        %7799 = vmatpush2.bf16.msra.mxu0 0
        %7800 = vmatprep.subr.bf16.mxu0 0
        %7801 = vmatpush2.bf16.msra.mxu0 0
        %7802 = vmatprep.subr.bf16.mxu0 0
        %7803 = vmatpush2.bf16.msra.mxu0 0
        %7804 = vmatprep.subr.bf16.mxu0 0
        %7805 = vmatpush2.bf16.msra.mxu0 0
        %7806 = vmatprep.subr.bf16.mxu0 0
        %7807 = vmatpush2.bf16.msra.mxu0 0
        %7808 = vmatprep.mubr.bf16.mxu0 0
        %7809 = vmatmul.mubr.bf16.gmra.mxu0 %v7774
        %v7810 = vpop.f32.mrf.mxu0
        %v7811 = vadd.f32 0.0, %v7810
        %v7812 = vpop.f32.mrf.mxu0
        %v7813 = vpop.f32.mrf.mxu0
        %v7814 = vadd.f32 0.0, %v7813
        %v7815 = vpop.f32.mrf.mxu0
        %7816 = vdwg.mxu0
        %v7817 = vld [vmem:[#allocation43] sm:$0x7]
        %v7819 = vlaneseq
        %v7820 = vshrl.u32 %v7819, 7
        %v7821 = vsub.s32 0, %v7820
        %v7822 = vrot.slane %v7817, %v7821
        %v7823 = vlaneseq
        %v7824 = vshrl.u32 %v7823, 7
        %v7825 = vsub.s32 1, %v7824
        %v7826 = vrot.slane %v7817, %v7825
        %v7827 = vlaneseq
        %v7828 = vshrl.u32 %v7827, 7
        %v7829 = vsub.s32 2, %v7828
        %v7830 = vrot.slane %v7817, %v7829
        %v7834 = vadd.f32 %v7637, %v7822
        %v7835 = vadd.f32 %v7724, %v7826
        %v7836 = vadd.f32 %v7811, %v7830
        %v7837 = vadd.f32 %v7640, %v7822
        %v7838 = vadd.f32 %v7727, %v7826
        %v7839 = vadd.f32 %v7814, %v7830
        %v7840 = vmax.f32 %v7834, 0.0
        %v7841 = vmax.f32 %v7835, 0.0
        %v7842 = vmax.f32 %v7836, 0.0
        %v7843 = vmax.f32 %v7837, 0.0
        %v7844 = vmax.f32 %v7838, 0.0
        %v7845 = vmax.f32 %v7839, 0.0
        %v7846 = vld [vmem:[#allocation45] sm:$0x7]
        %v7848 = vlaneseq
        %v7849 = vshrl.u32 %v7848, 7
        %v7850 = vsub.s32 0, %v7849
        %v7851 = vrot.slane %v7846, %v7850
        %v7852 = vlaneseq
        %v7853 = vshrl.u32 %v7852, 7
        %v7854 = vsub.s32 1, %v7853
        %v7855 = vrot.slane %v7846, %v7854
        %v7856 = vlaneseq
        %v7857 = vshrl.u32 %v7856, 7
        %v7858 = vsub.s32 2, %v7857
        %v7859 = vrot.slane %v7846, %v7858
        %v7863 = vmul.f32 %v7840, %v7851
        %v7864 = vmul.f32 %v7841, %v7855
        %v7865 = vmul.f32 %v7842, %v7859
        %v7866 = vmul.f32 %v7843, %v7851
        %v7867 = vmul.f32 %v7844, %v7855
        %v7868 = vmul.f32 %v7845, %v7859
        %v7869 = vld [vmem:[#allocation46] sm:$0x7]
        %v7871 = vlaneseq
        %v7872 = vshrl.u32 %v7871, 7
        %v7873 = vsub.s32 0, %v7872
        %v7874 = vrot.slane %v7869, %v7873
        %v7875 = vlaneseq
        %v7876 = vshrl.u32 %v7875, 7
        %v7877 = vsub.s32 1, %v7876
        %v7878 = vrot.slane %v7869, %v7877
        %v7879 = vlaneseq
        %v7880 = vshrl.u32 %v7879, 7
        %v7881 = vsub.s32 2, %v7880
        %v7882 = vrot.slane %v7869, %v7881
        %v7886 = vadd.f32 %v7863, %v7874
        %v7887 = vadd.f32 %v7864, %v7878
        %v7888 = vadd.f32 %v7865, %v7882
        %v7889 = vadd.f32 %v7866, %v7874
        %v7890 = vadd.f32 %v7867, %v7878
        %v7891 = vadd.f32 %v7868, %v7882
        %v7892 = vpack.c.bf16 %v7889, %v7886
        %v7893 = vpack.c.bf16 %v7890, %v7887
        %v7894 = vpack.c.bf16 %v7891, %v7888
        %7895 = vmatprep.subr.bf16.mxu0 0
        %7896 = vmatpush1.bf16.msra.mxu0 0
        %7897 = vmatprep.subr.bf16.mxu0 0
        %7898 = vmatpush1.bf16.msra.mxu0 0
        %7899 = vmatprep.subr.bf16.mxu0 0
        %7900 = vmatpush1.bf16.msra.mxu0 0
        %7901 = vmatprep.subr.bf16.mxu0 0
        %7902 = vmatpush1.bf16.msra.mxu0 0
        %7903 = vmatprep.subr.bf16.mxu0 0
        %7904 = vmatpush1.bf16.msra.mxu0 0
        %7905 = vmatprep.subr.bf16.mxu0 0
        %7906 = vmatpush1.bf16.msra.mxu0 0
        %7907 = vmatprep.subr.bf16.mxu0 0
        %7908 = vmatpush1.bf16.msra.mxu0 0
        %7909 = vmatprep.subr.bf16.mxu0 %v7893
        %7910 = vmatpush1.bf16.msra.mxu0 %v7892
        %7911 = vmatprep.subr.bf16.mxu0 0
        %7912 = vmatpush2.bf16.msra.mxu0 0
        %7913 = vmatprep.subr.bf16.mxu0 0
        %7914 = vmatpush2.bf16.msra.mxu0 0
        %7915 = vmatprep.subr.bf16.mxu0 0
        %7916 = vmatpush2.bf16.msra.mxu0 0
        %7917 = vmatprep.subr.bf16.mxu0 0
        %7918 = vmatpush2.bf16.msra.mxu0 0
        %7919 = vmatprep.subr.bf16.mxu0 0
        %7920 = vmatpush2.bf16.msra.mxu0 0
        %7921 = vmatprep.subr.bf16.mxu0 0
        %7922 = vmatpush2.bf16.msra.mxu0 0
        %7923 = vmatprep.subr.bf16.mxu0 0
        %7924 = vmatpush2.bf16.msra.mxu0 0
        %7925 = vmatprep.subr.bf16.mxu0 0
        %7926 = vmatpush2.bf16.msra.mxu0 0
        %7927 = vmatprep.mubr.bf16.mxu0 0
        %7928 = vmatmul.mubr.bf16.gmra.mxu0 %v2607
        %v7929 = vpop.f32.mrf.mxu0
        %v7930 = vadd.f32 0.0, %v7929
        %v7931 = vpop.f32.mrf.mxu0
        %v7932 = vadd.f32 0.0, %v7931
        %v7933 = vpop.f32.mrf.mxu0
        %v7934 = vpop.f32.mrf.mxu0
        %7935 = vdwg.mxu0
        %7936 = vmatprep.subr.bf16.mxu0 0
        %7937 = vmatpush1.bf16.msra.mxu0 0
        %7938 = vmatprep.subr.bf16.mxu0 0
        %7939 = vmatpush1.bf16.msra.mxu0 0
        %7940 = vmatprep.subr.bf16.mxu0 0
        %7941 = vmatpush1.bf16.msra.mxu0 0
        %7942 = vmatprep.subr.bf16.mxu0 0
        %7943 = vmatpush1.bf16.msra.mxu0 0
        %7944 = vmatprep.subr.bf16.mxu0 0
        %7945 = vmatpush1.bf16.msra.mxu0 0
        %7946 = vmatprep.subr.bf16.mxu0 0
        %7947 = vmatpush1.bf16.msra.mxu0 0
        %7948 = vmatprep.subr.bf16.mxu0 0
        %7949 = vmatpush1.bf16.msra.mxu0 0
        %7950 = vmatprep.subr.bf16.mxu0 0
        %7951 = vmatpush1.bf16.msra.mxu0 %v7894
        %7952 = vmatprep.subr.bf16.mxu0 0
        %7953 = vmatpush2.bf16.msra.mxu0 0
        %7954 = vmatprep.subr.bf16.mxu0 0
        %7955 = vmatpush2.bf16.msra.mxu0 0
        %7956 = vmatprep.subr.bf16.mxu0 0
        %7957 = vmatpush2.bf16.msra.mxu0 0
        %7958 = vmatprep.subr.bf16.mxu0 0
        %7959 = vmatpush2.bf16.msra.mxu0 0
        %7960 = vmatprep.subr.bf16.mxu0 0
        %7961 = vmatpush2.bf16.msra.mxu0 0
        %7962 = vmatprep.subr.bf16.mxu0 0
        %7963 = vmatpush2.bf16.msra.mxu0 0
        %7964 = vmatprep.subr.bf16.mxu0 0
        %7965 = vmatpush2.bf16.msra.mxu0 0
        %7966 = vmatprep.subr.bf16.mxu0 0
        %7967 = vmatpush2.bf16.msra.mxu0 0
        %7968 = vmatprep.mubr.bf16.mxu0 0
        %7969 = vmatmul.mubr.bf16.gmra.mxu0 %v2607
        %v7970 = vpop.f32.mrf.mxu0
        %v7971 = vadd.f32 0.0, %v7970
        %v7972 = vpop.f32.mrf.mxu0
        %v7973 = vpop.f32.mrf.mxu0
        %v7974 = vpop.f32.mrf.mxu0
        %7975 = vdwg.mxu0
        %v7976 = vpack.c.bf16 %v2644, %v2644
        %v7977 = vld [vmem:[#allocation48] sm:$0xff]
        %v7978 = vld [vmem:[#allocation48 + $0x8] sm:$0xff]
        %v7979 = vld [vmem:[#allocation48 + $0x10] sm:$0xff]
        %v7980 = vld [vmem:[#allocation48 + $0x18] sm:$0xff]
        %v7981 = vld [vmem:[#allocation48 + $0x20] sm:$0xff]
        %v7982 = vld [vmem:[#allocation48 + $0x28] sm:$0xff]
        %v7983 = vld [vmem:[#allocation48 + $0x30] sm:$0xff]
        %v7984 = vld [vmem:[#allocation48 + $0x38] sm:$0xff]
        %v7985 = vld [vmem:[#allocation48 + $0x40] sm:$0xff]
        %v7986 = vld [vmem:[#allocation48 + $0x48] sm:$0xff]
        %v7987 = vld [vmem:[#allocation48 + $0x50] sm:$0xff]
        %v7988 = vld [vmem:[#allocation48 + $0x58] sm:$0xff]
        %v7989 = vld [vmem:[#allocation48 + $0x60] sm:$0xff]
        %v7990 = vld [vmem:[#allocation48 + $0x68] sm:$0xff]
        %v7991 = vld [vmem:[#allocation48 + $0x70] sm:$0xff]
        %v7992 = vld [vmem:[#allocation48 + $0x78] sm:$0xff]
        %v7993 = vpack.c.bf16 %v7930, %v7930
        %v7994 = vpack.c.bf16 %v7932, %v7932
        %v7995 = vpack.c.bf16 %v7971, %v7971
        %v7996 = vld [vmem:[#allocation49] sm:$0xff]
        %v7997 = vld [vmem:[#allocation49 + $0x8] sm:$0xff]
        %v7998 = vld [vmem:[#allocation49 + $0x10] sm:$0xff]
        %v7999 = vld [vmem:[#allocation49 + $0x18] sm:$0xff]
        %v8000 = vld [vmem:[#allocation49 + $0x20] sm:$0xff]
        %v8001 = vld [vmem:[#allocation49 + $0x28] sm:$0xff]
        %v8002 = vld [vmem:[#allocation49 + $0x30] sm:$0xff]
        %v8003 = vld [vmem:[#allocation49 + $0x38] sm:$0xff]
        %v8004 = vld [vmem:[#allocation49 + $0x40] sm:$0xff]
        %v8005 = vld [vmem:[#allocation49 + $0x48] sm:$0xff]
        %v8006 = vld [vmem:[#allocation49 + $0x50] sm:$0xff]
        %v8007 = vld [vmem:[#allocation49 + $0x58] sm:$0xff]
        %v8008 = vld [vmem:[#allocation49 + $0x60] sm:$0xff]
        %v8009 = vld [vmem:[#allocation49 + $0x68] sm:$0xff]
        %v8010 = vld [vmem:[#allocation49 + $0x70] sm:$0xff]
        %v8011 = vld [vmem:[#allocation49 + $0x78] sm:$0xff]
        %v8012 = vld [vmem:[#allocation49 + $0x80] sm:$0xff]
        %v8013 = vld [vmem:[#allocation49 + $0x88] sm:$0xff]
        %v8014 = vld [vmem:[#allocation49 + $0x90] sm:$0xff]
        %v8015 = vld [vmem:[#allocation49 + $0x98] sm:$0xff]
        %v8016 = vld [vmem:[#allocation49 + $0xa0] sm:$0xff]
        %v8017 = vld [vmem:[#allocation49 + $0xa8] sm:$0xff]
        %v8018 = vld [vmem:[#allocation49 + $0xb0] sm:$0xff]
        %v8019 = vld [vmem:[#allocation49 + $0xb8] sm:$0xff]
        %v8020 = vld [vmem:[#allocation49 + $0xc0] sm:$0xff]
        %v8021 = vld [vmem:[#allocation49 + $0xc8] sm:$0xff]
        %v8022 = vld [vmem:[#allocation49 + $0xd0] sm:$0xff]
        %v8023 = vld [vmem:[#allocation49 + $0xd8] sm:$0xff]
        %v8024 = vld [vmem:[#allocation49 + $0xe0] sm:$0xff]
        %v8025 = vld [vmem:[#allocation49 + $0xe8] sm:$0xff]
        %v8026 = vld [vmem:[#allocation49 + $0xf0] sm:$0xff]
        %v8027 = vld [vmem:[#allocation49 + $0xf8] sm:$0xff]
        %v8028 = vld [vmem:[#allocation49 + $0x100] sm:$0xff]
        %v8029 = vld [vmem:[#allocation49 + $0x108] sm:$0xff]
        %v8030 = vld [vmem:[#allocation49 + $0x110] sm:$0xff]
        %v8031 = vld [vmem:[#allocation49 + $0x118] sm:$0xff]
        %v8032 = vld [vmem:[#allocation49 + $0x120] sm:$0xff]
        %v8033 = vld [vmem:[#allocation49 + $0x128] sm:$0xff]
        %v8034 = vld [vmem:[#allocation49 + $0x130] sm:$0xff]
        %v8035 = vld [vmem:[#allocation49 + $0x138] sm:$0xff]
        %v8036 = vld [vmem:[#allocation49 + $0x140] sm:$0xff]
        %v8037 = vld [vmem:[#allocation49 + $0x148] sm:$0xff]
        %v8038 = vld [vmem:[#allocation49 + $0x150] sm:$0xff]
        %v8039 = vld [vmem:[#allocation49 + $0x158] sm:$0xff]
        %v8040 = vld [vmem:[#allocation49 + $0x160] sm:$0xff]
        %v8041 = vld [vmem:[#allocation49 + $0x168] sm:$0xff]
        %v8042 = vld [vmem:[#allocation49 + $0x170] sm:$0xff]
        %v8043 = vld [vmem:[#allocation49 + $0x178] sm:$0xff]
        %v8092 = vunpack.c.l.b16 %v7996
        %v8093 = vunpack.c.h.b16 %v7996
        %v8094 = vunpack.c.l.b16 %v7997
        %v8095 = vunpack.c.h.b16 %v7997
        %v8096 = vunpack.c.l.b16 %v7998
        %v8097 = vunpack.c.h.b16 %v7998
        %v8098 = vunpack.c.l.b16 %v7999
        %v8099 = vunpack.c.h.b16 %v7999
        %v8100 = vunpack.c.l.b16 %v8000
        %v8101 = vunpack.c.h.b16 %v8000
        %v8102 = vunpack.c.l.b16 %v8001
        %v8103 = vunpack.c.h.b16 %v8001
        %v8104 = vunpack.c.l.b16 %v8002
        %v8105 = vunpack.c.h.b16 %v8002
        %v8106 = vunpack.c.l.b16 %v8003
        %v8107 = vunpack.c.h.b16 %v8003
        %v8108 = vunpack.c.l.b16 %v8004
        %v8109 = vunpack.c.h.b16 %v8004
        %v8110 = vunpack.c.l.b16 %v8005
        %v8111 = vunpack.c.h.b16 %v8005
        %v8112 = vunpack.c.l.b16 %v8006
        %v8113 = vunpack.c.h.b16 %v8006
        %v8114 = vunpack.c.l.b16 %v8007
        %v8115 = vunpack.c.h.b16 %v8007
        %v8116 = vunpack.c.l.b16 %v8008
        %v8117 = vunpack.c.h.b16 %v8008
        %v8118 = vunpack.c.l.b16 %v8009
        %v8119 = vunpack.c.h.b16 %v8009
        %v8120 = vunpack.c.l.b16 %v8010
        %v8121 = vunpack.c.h.b16 %v8010
        %v8122 = vunpack.c.l.b16 %v8011
        %v8123 = vunpack.c.h.b16 %v8011
        %v8124 = vunpack.c.l.b16 %v8012
        %v8125 = vunpack.c.h.b16 %v8012
        %v8126 = vunpack.c.l.b16 %v8013
        %v8127 = vunpack.c.h.b16 %v8013
        %v8128 = vunpack.c.l.b16 %v8014
        %v8129 = vunpack.c.h.b16 %v8014
        %v8130 = vunpack.c.l.b16 %v8015
        %v8131 = vunpack.c.h.b16 %v8015
        %v8132 = vunpack.c.l.b16 %v8016
        %v8133 = vunpack.c.h.b16 %v8016
        %v8134 = vunpack.c.l.b16 %v8017
        %v8135 = vunpack.c.h.b16 %v8017
        %v8136 = vunpack.c.l.b16 %v8018
        %v8137 = vunpack.c.h.b16 %v8018
        %v8138 = vunpack.c.l.b16 %v8019
        %v8139 = vunpack.c.h.b16 %v8019
        %v8140 = vunpack.c.l.b16 %v8020
        %v8141 = vunpack.c.h.b16 %v8020
        %v8142 = vunpack.c.l.b16 %v8021
        %v8143 = vunpack.c.h.b16 %v8021
        %v8144 = vunpack.c.l.b16 %v8022
        %v8145 = vunpack.c.h.b16 %v8022
        %v8146 = vunpack.c.l.b16 %v8023
        %v8147 = vunpack.c.h.b16 %v8023
        %v8148 = vunpack.c.l.b16 %v8024
        %v8149 = vunpack.c.h.b16 %v8024
        %v8150 = vunpack.c.l.b16 %v8025
        %v8151 = vunpack.c.h.b16 %v8025
        %v8152 = vunpack.c.l.b16 %v8026
        %v8153 = vunpack.c.h.b16 %v8026
        %v8154 = vunpack.c.l.b16 %v8027
        %v8155 = vunpack.c.h.b16 %v8027
        %v8156 = vunpack.c.l.b16 %v8028
        %v8157 = vunpack.c.h.b16 %v8028
        %v8158 = vunpack.c.l.b16 %v8029
        %v8159 = vunpack.c.h.b16 %v8029
        %v8160 = vunpack.c.l.b16 %v8030
        %v8161 = vunpack.c.h.b16 %v8030
        %v8162 = vunpack.c.l.b16 %v8031
        %v8163 = vunpack.c.h.b16 %v8031
        %v8164 = vunpack.c.l.b16 %v8032
        %v8165 = vunpack.c.h.b16 %v8032
        %v8166 = vunpack.c.l.b16 %v8033
        %v8167 = vunpack.c.h.b16 %v8033
        %v8168 = vunpack.c.l.b16 %v8034
        %v8169 = vunpack.c.h.b16 %v8034
        %v8170 = vunpack.c.l.b16 %v8035
        %v8171 = vunpack.c.h.b16 %v8035
        %v8172 = vunpack.c.l.b16 %v8036
        %v8173 = vunpack.c.h.b16 %v8036
        %v8174 = vunpack.c.l.b16 %v8037
        %v8175 = vunpack.c.h.b16 %v8037
        %v8176 = vunpack.c.l.b16 %v8038
        %v8177 = vunpack.c.h.b16 %v8038
        %v8178 = vunpack.c.l.b16 %v8039
        %v8179 = vunpack.c.h.b16 %v8039
        %v8180 = vunpack.c.l.b16 %v8040
        %v8181 = vunpack.c.h.b16 %v8040
        %v8182 = vunpack.c.l.b16 %v8041
        %v8183 = vunpack.c.h.b16 %v8041
        %v8184 = vunpack.c.l.b16 %v8042
        %v8185 = vunpack.c.h.b16 %v8042
        %v8186 = vunpack.c.l.b16 %v8043
        %v8187 = vunpack.c.h.b16 %v8043
        %v8188 = vpack.c.b16 %v8094, %v8092
        %v8189 = vpack.c.b16 %v8095, %v8093
        %v8190 = vpack.c.b16 %v8098, %v8096
        %v8191 = vpack.c.b16 %v8099, %v8097
        %v8192 = vpack.c.b16 %v8102, %v8100
        %v8193 = vpack.c.b16 %v8103, %v8101
        %v8194 = vpack.c.b16 %v8106, %v8104
        %v8195 = vpack.c.b16 %v8107, %v8105
        %v8196 = vpack.c.b16 %v8110, %v8108
        %v8197 = vpack.c.b16 %v8111, %v8109
        %v8198 = vpack.c.b16 %v8114, %v8112
        %v8199 = vpack.c.b16 %v8115, %v8113
        %v8200 = vpack.c.b16 %v8118, %v8116
        %v8201 = vpack.c.b16 %v8119, %v8117
        %v8202 = vpack.c.b16 %v8122, %v8120
        %v8203 = vpack.c.b16 %v8123, %v8121
        %v8204 = vpack.c.b16 %v8126, %v8124
        %v8205 = vpack.c.b16 %v8127, %v8125
        %v8206 = vpack.c.b16 %v8130, %v8128
        %v8207 = vpack.c.b16 %v8131, %v8129
        %v8208 = vpack.c.b16 %v8134, %v8132
        %v8209 = vpack.c.b16 %v8135, %v8133
        %v8210 = vpack.c.b16 %v8138, %v8136
        %v8211 = vpack.c.b16 %v8139, %v8137
        %v8212 = vpack.c.b16 %v8142, %v8140
        %v8213 = vpack.c.b16 %v8143, %v8141
        %v8214 = vpack.c.b16 %v8146, %v8144
        %v8215 = vpack.c.b16 %v8147, %v8145
        %v8216 = vpack.c.b16 %v8150, %v8148
        %v8217 = vpack.c.b16 %v8151, %v8149
        %v8218 = vpack.c.b16 %v8154, %v8152
        %v8219 = vpack.c.b16 %v8155, %v8153
        %v8220 = vpack.c.b16 %v8158, %v8156
        %v8221 = vpack.c.b16 %v8159, %v8157
        %v8222 = vpack.c.b16 %v8162, %v8160
        %v8223 = vpack.c.b16 %v8163, %v8161
        %v8224 = vpack.c.b16 %v8166, %v8164
        %v8225 = vpack.c.b16 %v8167, %v8165
        %v8226 = vpack.c.b16 %v8170, %v8168
        %v8227 = vpack.c.b16 %v8171, %v8169
        %v8228 = vpack.c.b16 %v8174, %v8172
        %v8229 = vpack.c.b16 %v8175, %v8173
        %v8230 = vpack.c.b16 %v8178, %v8176
        %v8231 = vpack.c.b16 %v8179, %v8177
        %v8232 = vpack.c.b16 %v8182, %v8180
        %v8233 = vpack.c.b16 %v8183, %v8181
        %v8234 = vpack.c.b16 %v8186, %v8184
        %v8235 = vpack.c.b16 %v8187, %v8185
        %8284 = vmatprep.subr.bf16.mxu0 %v8203
        %8285 = vmatpush1.bf16.msra.mxu0 %v8202
        %8286 = vmatprep.subr.bf16.mxu0 %v8201
        %8287 = vmatpush1.bf16.msra.mxu0 %v8200
        %8288 = vmatprep.subr.bf16.mxu0 %v8199
        %8289 = vmatpush1.bf16.msra.mxu0 %v8198
        %8290 = vmatprep.subr.bf16.mxu0 %v8197
        %8291 = vmatpush1.bf16.msra.mxu0 %v8196
        %8292 = vmatprep.subr.bf16.mxu0 %v8195
        %8293 = vmatpush1.bf16.msra.mxu0 %v8194
        %8294 = vmatprep.subr.bf16.mxu0 %v8193
        %8295 = vmatpush1.bf16.msra.mxu0 %v8192
        %8296 = vmatprep.subr.bf16.mxu0 %v8191
        %8297 = vmatpush1.bf16.msra.mxu0 %v8190
        %8298 = vmatprep.subr.bf16.mxu0 %v8189
        %8299 = vmatpush1.bf16.msra.mxu0 %v8188
        %8300 = vmatprep.subr.bf16.mxu0 %v8219
        %8301 = vmatpush2.bf16.msra.mxu0 %v8218
        %8302 = vmatprep.subr.bf16.mxu0 %v8217
        %8303 = vmatpush2.bf16.msra.mxu0 %v8216
        %8304 = vmatprep.subr.bf16.mxu0 %v8215
        %8305 = vmatpush2.bf16.msra.mxu0 %v8214
        %8306 = vmatprep.subr.bf16.mxu0 %v8213
        %8307 = vmatpush2.bf16.msra.mxu0 %v8212
        %8308 = vmatprep.subr.bf16.mxu0 %v8211
        %8309 = vmatpush2.bf16.msra.mxu0 %v8210
        %8310 = vmatprep.subr.bf16.mxu0 %v8209
        %8311 = vmatpush2.bf16.msra.mxu0 %v8208
        %8312 = vmatprep.subr.bf16.mxu0 %v8207
        %8313 = vmatpush2.bf16.msra.mxu0 %v8206
        %8314 = vmatprep.subr.bf16.mxu0 %v8205
        %8315 = vmatpush2.bf16.msra.mxu0 %v8204
        %8316 = vmatprep.mubr.bf16.mxu0 %v7994
        %8317 = vmatmul.mubr.bf16.gmra.mxu0 %v7993
        %v8318 = vpop.f32.mrf.mxu0
        %v8319 = vadd.f32 0.0, %v8318
        %v8320 = vpop.f32.mrf.mxu0
        %v8321 = vadd.f32 0.0, %v8320
        %v8322 = vpop.f32.mrf.mxu0
        %v8323 = vpop.f32.mrf.mxu0
        %8324 = vdwg.mxu0
        %8325 = vmatprep.subr.bf16.mxu0 %v8235
        %8326 = vmatpush1.bf16.msra.mxu0 %v8234
        %8327 = vmatprep.subr.bf16.mxu0 %v8233
        %8328 = vmatpush1.bf16.msra.mxu0 %v8232
        %8329 = vmatprep.subr.bf16.mxu0 %v8231
        %8330 = vmatpush1.bf16.msra.mxu0 %v8230
        %8331 = vmatprep.subr.bf16.mxu0 %v8229
        %8332 = vmatpush1.bf16.msra.mxu0 %v8228
        %8333 = vmatprep.subr.bf16.mxu0 %v8227
        %8334 = vmatpush1.bf16.msra.mxu0 %v8226
        %8335 = vmatprep.subr.bf16.mxu0 %v8225
        %8336 = vmatpush1.bf16.msra.mxu0 %v8224
        %8337 = vmatprep.subr.bf16.mxu0 %v8223
        %8338 = vmatpush1.bf16.msra.mxu0 %v8222
        %8339 = vmatprep.subr.bf16.mxu0 %v8221
        %8340 = vmatpush1.bf16.msra.mxu0 %v8220
        %8341 = vmatprep.subr.bf16.mxu0 0
        %8342 = vmatpush2.bf16.msra.mxu0 0
        %8343 = vmatprep.subr.bf16.mxu0 0
        %8344 = vmatpush2.bf16.msra.mxu0 0
        %8345 = vmatprep.subr.bf16.mxu0 0
        %8346 = vmatpush2.bf16.msra.mxu0 0
        %8347 = vmatprep.subr.bf16.mxu0 0
        %8348 = vmatpush2.bf16.msra.mxu0 0
        %8349 = vmatprep.subr.bf16.mxu0 0
        %8350 = vmatpush2.bf16.msra.mxu0 0
        %8351 = vmatprep.subr.bf16.mxu0 0
        %8352 = vmatpush2.bf16.msra.mxu0 0
        %8353 = vmatprep.subr.bf16.mxu0 0
        %8354 = vmatpush2.bf16.msra.mxu0 0
        %8355 = vmatprep.subr.bf16.mxu0 0
        %8356 = vmatpush2.bf16.msra.mxu0 0
        %8357 = vmatprep.mubr.bf16.mxu0 0
        %8358 = vmatmul.mubr.bf16.gmra.mxu0 %v7995
        %v8359 = vpop.f32.mrf.mxu0
        %v8360 = vadd.f32 %v8319, %v8359
        %v8361 = vpop.f32.mrf.mxu0
        %v8362 = vadd.f32 %v8321, %v8361
        %v8363 = vpop.f32.mrf.mxu0
        %v8364 = vpop.f32.mrf.mxu0
        %8365 = vdwg.mxu0
        %v8382 = vunpack.c.l.b16 %v7977
        %v8383 = vunpack.c.h.b16 %v7977
        %v8384 = vunpack.c.l.b16 %v7978
        %v8385 = vunpack.c.h.b16 %v7978
        %v8386 = vunpack.c.l.b16 %v7979
        %v8387 = vunpack.c.h.b16 %v7979
        %v8388 = vunpack.c.l.b16 %v7980
        %v8389 = vunpack.c.h.b16 %v7980
        %v8390 = vunpack.c.l.b16 %v7981
        %v8391 = vunpack.c.h.b16 %v7981
        %v8392 = vunpack.c.l.b16 %v7982
        %v8393 = vunpack.c.h.b16 %v7982
        %v8394 = vunpack.c.l.b16 %v7983
        %v8395 = vunpack.c.h.b16 %v7983
        %v8396 = vunpack.c.l.b16 %v7984
        %v8397 = vunpack.c.h.b16 %v7984
        %v8398 = vunpack.c.l.b16 %v7985
        %v8399 = vunpack.c.h.b16 %v7985
        %v8400 = vunpack.c.l.b16 %v7986
        %v8401 = vunpack.c.h.b16 %v7986
        %v8402 = vunpack.c.l.b16 %v7987
        %v8403 = vunpack.c.h.b16 %v7987
        %v8404 = vunpack.c.l.b16 %v7988
        %v8405 = vunpack.c.h.b16 %v7988
        %v8406 = vunpack.c.l.b16 %v7989
        %v8407 = vunpack.c.h.b16 %v7989
        %v8408 = vunpack.c.l.b16 %v7990
        %v8409 = vunpack.c.h.b16 %v7990
        %v8410 = vunpack.c.l.b16 %v7991
        %v8411 = vunpack.c.h.b16 %v7991
        %v8412 = vunpack.c.l.b16 %v7992
        %v8413 = vunpack.c.h.b16 %v7992
        %v8414 = vpack.c.b16 %v8384, %v8382
        %v8415 = vpack.c.b16 %v8385, %v8383
        %v8416 = vpack.c.b16 %v8388, %v8386
        %v8417 = vpack.c.b16 %v8389, %v8387
        %v8418 = vpack.c.b16 %v8392, %v8390
        %v8419 = vpack.c.b16 %v8393, %v8391
        %v8420 = vpack.c.b16 %v8396, %v8394
        %v8421 = vpack.c.b16 %v8397, %v8395
        %v8422 = vpack.c.b16 %v8400, %v8398
        %v8423 = vpack.c.b16 %v8401, %v8399
        %v8424 = vpack.c.b16 %v8404, %v8402
        %v8425 = vpack.c.b16 %v8405, %v8403
        %v8426 = vpack.c.b16 %v8408, %v8406
        %v8427 = vpack.c.b16 %v8409, %v8407
        %v8428 = vpack.c.b16 %v8412, %v8410
        %v8429 = vpack.c.b16 %v8413, %v8411
        %8446 = vmatprep.subr.bf16.mxu0 %v8429
        %8447 = vmatpush1.bf16.msra.mxu0 %v8428
        %8448 = vmatprep.subr.bf16.mxu0 %v8427
        %8449 = vmatpush1.bf16.msra.mxu0 %v8426
        %8450 = vmatprep.subr.bf16.mxu0 %v8425
        %8451 = vmatpush1.bf16.msra.mxu0 %v8424
        %8452 = vmatprep.subr.bf16.mxu0 %v8423
        %8453 = vmatpush1.bf16.msra.mxu0 %v8422
        %8454 = vmatprep.subr.bf16.mxu0 %v8421
        %8455 = vmatpush1.bf16.msra.mxu0 %v8420
        %8456 = vmatprep.subr.bf16.mxu0 %v8419
        %8457 = vmatpush1.bf16.msra.mxu0 %v8418
        %8458 = vmatprep.subr.bf16.mxu0 %v8417
        %8459 = vmatpush1.bf16.msra.mxu0 %v8416
        %8460 = vmatprep.subr.bf16.mxu0 %v8415
        %8461 = vmatpush1.bf16.msra.mxu0 %v8414
        %8462 = vmatprep.subr.bf16.mxu0 0
        %8463 = vmatpush2.bf16.msra.mxu0 0
        %8464 = vmatprep.subr.bf16.mxu0 0
        %8465 = vmatpush2.bf16.msra.mxu0 0
        %8466 = vmatprep.subr.bf16.mxu0 0
        %8467 = vmatpush2.bf16.msra.mxu0 0
        %8468 = vmatprep.subr.bf16.mxu0 0
        %8469 = vmatpush2.bf16.msra.mxu0 0
        %8470 = vmatprep.subr.bf16.mxu0 0
        %8471 = vmatpush2.bf16.msra.mxu0 0
        %8472 = vmatprep.subr.bf16.mxu0 0
        %8473 = vmatpush2.bf16.msra.mxu0 0
        %8474 = vmatprep.subr.bf16.mxu0 0
        %8475 = vmatpush2.bf16.msra.mxu0 0
        %8476 = vmatprep.subr.bf16.mxu0 0
        %8477 = vmatpush2.bf16.msra.mxu0 0
        %8478 = vmatprep.mubr.bf16.mxu0 0
        %8479 = vmatmul.mubr.bf16.gmra.mxu0 %v7976
        %v8480 = vpop.f32.mrf.mxu0
        %v8481 = vadd.f32 %v8360, %v8480
        %v8482 = vpop.f32.mrf.mxu0
        %v8483 = vadd.f32 %v8362, %v8482
        %v8484 = vpop.f32.mrf.mxu0
        %v8485 = vpop.f32.mrf.mxu0
        %8486 = vdwg.mxu0
        %v8487 = vld [vmem:[#allocation51] sm:$0x3]
        %v8489 = vlaneseq
        %v8490 = vshrl.u32 %v8489, 7
        %v8491 = vsub.s32 0, %v8490
        %v8492 = vrot.slane %v8487, %v8491
        %v8493 = vlaneseq
        %v8494 = vshrl.u32 %v8493, 7
        %v8495 = vsub.s32 1, %v8494
        %v8496 = vrot.slane %v8487, %v8495
        %v8499 = vadd.f32 %v8481, %v8492
        %v8500 = vadd.f32 %v8483, %v8496
        %v8501 = vmax.f32 %v8499, 0.0
        %v8502 = vmax.f32 %v8500, 0.0
        %v8503 = vpack.c.bf16 %v8501, %v8501
        %v8504 = vpack.c.bf16 %v8502, %v8502
        %v8505 = vld [vmem:[#allocation52] sm:$0xf]
        %v8506 = vld [vmem:[#allocation52 + $0x4] sm:$0xf]
        %v8507 = vld [vmem:[#allocation52 + $0x8] sm:$0xf]
        %v8508 = vld [vmem:[#allocation52 + $0xc] sm:$0xf]
        %v8509 = vld [vmem:[#allocation52 + $0x10] sm:$0xf]
        %v8510 = vld [vmem:[#allocation52 + $0x14] sm:$0xf]
        %v8511 = vld [vmem:[#allocation52 + $0x18] sm:$0xf]
        %v8512 = vld [vmem:[#allocation52 + $0x1c] sm:$0xf]
        %v8513 = vld [vmem:[#allocation52 + $0x20] sm:$0xf]
        %v8514 = vld [vmem:[#allocation52 + $0x24] sm:$0xf]
        %v8515 = vld [vmem:[#allocation52 + $0x28] sm:$0xf]
        %v8516 = vld [vmem:[#allocation52 + $0x2c] sm:$0xf]
        %v8517 = vld [vmem:[#allocation52 + $0x30] sm:$0xf]
        %v8518 = vld [vmem:[#allocation52 + $0x34] sm:$0xf]
        %v8519 = vld [vmem:[#allocation52 + $0x38] sm:$0xf]
        %v8520 = vld [vmem:[#allocation52 + $0x3c] sm:$0xf]
        %v8521 = vld [vmem:[#allocation52 + $0x40] sm:$0xf]
        %v8522 = vld [vmem:[#allocation52 + $0x44] sm:$0xf]
        %v8523 = vld [vmem:[#allocation52 + $0x48] sm:$0xf]
        %v8524 = vld [vmem:[#allocation52 + $0x4c] sm:$0xf]
        %v8525 = vld [vmem:[#allocation52 + $0x50] sm:$0xf]
        %v8526 = vld [vmem:[#allocation52 + $0x54] sm:$0xf]
        %v8527 = vld [vmem:[#allocation52 + $0x58] sm:$0xf]
        %v8528 = vld [vmem:[#allocation52 + $0x5c] sm:$0xf]
        %v8529 = vld [vmem:[#allocation52 + $0x60] sm:$0xf]
        %v8530 = vld [vmem:[#allocation52 + $0x64] sm:$0xf]
        %v8531 = vld [vmem:[#allocation52 + $0x68] sm:$0xf]
        %v8532 = vld [vmem:[#allocation52 + $0x6c] sm:$0xf]
        %v8533 = vld [vmem:[#allocation52 + $0x70] sm:$0xf]
        %v8534 = vld [vmem:[#allocation52 + $0x74] sm:$0xf]
        %v8535 = vld [vmem:[#allocation52 + $0x78] sm:$0xf]
        %v8536 = vld [vmem:[#allocation52 + $0x7c] sm:$0xf]
        %v8537 = vld [vmem:[#allocation54] sm:$0x1]
        %v8539 = vlaneseq
        %v8540 = vshrl.u32 %v8539, 7
        %v8541 = vsub.s32 0, %v8540
        %v8542 = vrot.slane %v8537, %v8541
        %v8576 = vunpack.c.l.b16 %v8505
        %v8577 = vunpack.c.l.b16 %v8506
        %v8578 = vunpack.c.l.b16 %v8507
        %v8579 = vunpack.c.l.b16 %v8508
        %v8580 = vunpack.c.l.b16 %v8509
        %v8581 = vunpack.c.l.b16 %v8510
        %v8582 = vunpack.c.l.b16 %v8511
        %v8583 = vunpack.c.l.b16 %v8512
        %v8584 = vunpack.c.l.b16 %v8513
        %v8585 = vunpack.c.l.b16 %v8514
        %v8586 = vunpack.c.l.b16 %v8515
        %v8587 = vunpack.c.l.b16 %v8516
        %v8588 = vunpack.c.l.b16 %v8517
        %v8589 = vunpack.c.l.b16 %v8518
        %v8590 = vunpack.c.l.b16 %v8519
        %v8591 = vunpack.c.l.b16 %v8520
        %v8592 = vunpack.c.l.b16 %v8521
        %v8593 = vunpack.c.l.b16 %v8522
        %v8594 = vunpack.c.l.b16 %v8523
        %v8595 = vunpack.c.l.b16 %v8524
        %v8596 = vunpack.c.l.b16 %v8525
        %v8597 = vunpack.c.l.b16 %v8526
        %v8598 = vunpack.c.l.b16 %v8527
        %v8599 = vunpack.c.l.b16 %v8528
        %v8600 = vunpack.c.l.b16 %v8529
        %v8601 = vunpack.c.l.b16 %v8530
        %v8602 = vunpack.c.l.b16 %v8531
        %v8603 = vunpack.c.l.b16 %v8532
        %v8604 = vunpack.c.l.b16 %v8533
        %v8605 = vunpack.c.l.b16 %v8534
        %v8606 = vunpack.c.l.b16 %v8535
        %v8607 = vunpack.c.l.b16 %v8536
        %v8608 = vpack.c.b16 %v8577, %v8576
        %v8609 = vpack.c.b16 %v8579, %v8578
        %v8610 = vpack.c.b16 %v8581, %v8580
        %v8611 = vpack.c.b16 %v8583, %v8582
        %v8612 = vpack.c.b16 %v8585, %v8584
        %v8613 = vpack.c.b16 %v8587, %v8586
        %v8614 = vpack.c.b16 %v8589, %v8588
        %v8615 = vpack.c.b16 %v8591, %v8590
        %v8616 = vpack.c.b16 %v8593, %v8592
        %v8617 = vpack.c.b16 %v8595, %v8594
        %v8618 = vpack.c.b16 %v8597, %v8596
        %v8619 = vpack.c.b16 %v8599, %v8598
        %v8620 = vpack.c.b16 %v8601, %v8600
        %v8621 = vpack.c.b16 %v8603, %v8602
        %v8622 = vpack.c.b16 %v8605, %v8604
        %v8623 = vpack.c.b16 %v8607, %v8606
        %8640 = vmatprep.subr.bf16.mxu0 0
        %8641 = vmatpush1.bf16.msra.mxu0 %v8615
        %8642 = vmatprep.subr.bf16.mxu0 0
        %8643 = vmatpush1.bf16.msra.mxu0 %v8614
        %8644 = vmatprep.subr.bf16.mxu0 0
        %8645 = vmatpush1.bf16.msra.mxu0 %v8613
        %8646 = vmatprep.subr.bf16.mxu0 0
        %8647 = vmatpush1.bf16.msra.mxu0 %v8612
        %8648 = vmatprep.subr.bf16.mxu0 0
        %8649 = vmatpush1.bf16.msra.mxu0 %v8611
        %8650 = vmatprep.subr.bf16.mxu0 0
        %8651 = vmatpush1.bf16.msra.mxu0 %v8610
        %8652 = vmatprep.subr.bf16.mxu0 0
        %8653 = vmatpush1.bf16.msra.mxu0 %v8609
        %8654 = vmatprep.subr.bf16.mxu0 0
        %8655 = vmatpush1.bf16.msra.mxu0 %v8608
        %8656 = vmatprep.subr.bf16.mxu0 0
        %8657 = vmatpush2.bf16.msra.mxu0 %v8623
        %8658 = vmatprep.subr.bf16.mxu0 0
        %8659 = vmatpush2.bf16.msra.mxu0 %v8622
        %8660 = vmatprep.subr.bf16.mxu0 0
        %8661 = vmatpush2.bf16.msra.mxu0 %v8621
        %8662 = vmatprep.subr.bf16.mxu0 0
        %8663 = vmatpush2.bf16.msra.mxu0 %v8620
        %8664 = vmatprep.subr.bf16.mxu0 0
        %8665 = vmatpush2.bf16.msra.mxu0 %v8619
        %8666 = vmatprep.subr.bf16.mxu0 0
        %8667 = vmatpush2.bf16.msra.mxu0 %v8618
        %8668 = vmatprep.subr.bf16.mxu0 0
        %8669 = vmatpush2.bf16.msra.mxu0 %v8617
        %8670 = vmatprep.subr.bf16.mxu0 0
        %8671 = vmatpush2.bf16.msra.mxu0 %v8616
        %8672 = vmatprep.mubr.bf16.mxu0 %v8504
        %8673 = vmatmul.mubr.bf16.gmra.mxu0 %v8503
        %v8674 = vpop.f32.mrf.mxu0
        %v8675 = vadd.f32 %v8542, %v8674
        %v8676 = vpop.f32.mrf.mxu0
        %v8677 = vpop.f32.mrf.mxu0
        %v8678 = vpop.f32.mrf.mxu0
        %8679 = vdwg.mxu0
        %v8680 = vmax.f32 %v8675, 0.0
        %v8681 = vpack.c.bf16 %v8680, %v8680
        %v8682 = vld [vmem:[%s73] sm:$0xf]
        %v8683 = vld [vmem:[%s73 + $0x4] sm:$0xf]
        %v8684 = vld [vmem:[%s73 + $0x8] sm:$0xf]
        %v8685 = vld [vmem:[%s73 + $0xc] sm:$0xf]
        %v8686 = vld [vmem:[%s73 + $0x10] sm:$0xf]
        %v8687 = vld [vmem:[%s73 + $0x14] sm:$0xf]
        %v8688 = vld [vmem:[%s73 + $0x18] sm:$0xf]
        %v8689 = vld [vmem:[%s73 + $0x1c] sm:$0xf]
        %v8690 = vld [vmem:[%s73 + $0x20] sm:$0xf]
        %v8691 = vld [vmem:[%s73 + $0x24] sm:$0xf]
        %v8692 = vld [vmem:[%s73 + $0x28] sm:$0xf]
        %v8693 = vld [vmem:[%s73 + $0x2c] sm:$0xf]
        %v8694 = vld [vmem:[%s73 + $0x30] sm:$0xf]
        %v8695 = vld [vmem:[%s73 + $0x34] sm:$0xf]
        %v8696 = vld [vmem:[%s73 + $0x38] sm:$0xf]
        %v8697 = vld [vmem:[%s73 + $0x3c] sm:$0xf]
        %v8698 = vld [vmem:[%s75] sm:$0x1]
        %v8700 = vlaneseq
        %v8701 = vshrl.u32 %v8700, 7
        %v8702 = vsub.s32 0, %v8701
        %v8703 = vrot.slane %v8698, %v8702
        %v8721 = vunpack.c.l.b16 %v8682
        %v8722 = vunpack.c.l.b16 %v8683
        %v8723 = vunpack.c.l.b16 %v8684
        %v8724 = vunpack.c.l.b16 %v8685
        %v8725 = vunpack.c.l.b16 %v8686
        %v8726 = vunpack.c.l.b16 %v8687
        %v8727 = vunpack.c.l.b16 %v8688
        %v8728 = vunpack.c.l.b16 %v8689
        %v8729 = vunpack.c.l.b16 %v8690
        %v8730 = vunpack.c.l.b16 %v8691
        %v8731 = vunpack.c.l.b16 %v8692
        %v8732 = vunpack.c.l.b16 %v8693
        %v8733 = vunpack.c.l.b16 %v8694
        %v8734 = vunpack.c.l.b16 %v8695
        %v8735 = vunpack.c.l.b16 %v8696
        %v8736 = vunpack.c.l.b16 %v8697
        %v8737 = vpack.c.b16 %v8722, %v8721
        %v8738 = vpack.c.b16 %v8724, %v8723
        %v8739 = vpack.c.b16 %v8726, %v8725
        %v8740 = vpack.c.b16 %v8728, %v8727
        %v8741 = vpack.c.b16 %v8730, %v8729
        %v8742 = vpack.c.b16 %v8732, %v8731
        %v8743 = vpack.c.b16 %v8734, %v8733
        %v8744 = vpack.c.b16 %v8736, %v8735
        %8753 = vmatprep.subr.bf16.mxu0 0
        %8754 = vmatpush1.bf16.msra.mxu0 %v8744
        %8755 = vmatprep.subr.bf16.mxu0 0
        %8756 = vmatpush1.bf16.msra.mxu0 %v8743
        %8757 = vmatprep.subr.bf16.mxu0 0
        %8758 = vmatpush1.bf16.msra.mxu0 %v8742
        %8759 = vmatprep.subr.bf16.mxu0 0
        %8760 = vmatpush1.bf16.msra.mxu0 %v8741
        %8761 = vmatprep.subr.bf16.mxu0 0
        %8762 = vmatpush1.bf16.msra.mxu0 %v8740
        %8763 = vmatprep.subr.bf16.mxu0 0
        %8764 = vmatpush1.bf16.msra.mxu0 %v8739
        %8765 = vmatprep.subr.bf16.mxu0 0
        %8766 = vmatpush1.bf16.msra.mxu0 %v8738
        %8767 = vmatprep.subr.bf16.mxu0 0
        %8768 = vmatpush1.bf16.msra.mxu0 %v8737
        %8769 = vmatprep.subr.bf16.mxu0 0
        %8770 = vmatpush2.bf16.msra.mxu0 0
        %8771 = vmatprep.subr.bf16.mxu0 0
        %8772 = vmatpush2.bf16.msra.mxu0 0
        %8773 = vmatprep.subr.bf16.mxu0 0
        %8774 = vmatpush2.bf16.msra.mxu0 0
        %8775 = vmatprep.subr.bf16.mxu0 0
        %8776 = vmatpush2.bf16.msra.mxu0 0
        %8777 = vmatprep.subr.bf16.mxu0 0
        %8778 = vmatpush2.bf16.msra.mxu0 0
        %8779 = vmatprep.subr.bf16.mxu0 0
        %8780 = vmatpush2.bf16.msra.mxu0 0
        %8781 = vmatprep.subr.bf16.mxu0 0
        %8782 = vmatpush2.bf16.msra.mxu0 0
        %8783 = vmatprep.subr.bf16.mxu0 0
        %8784 = vmatpush2.bf16.msra.mxu0 0
        %8785 = vmatprep.mubr.bf16.mxu0 0
        %8786 = vmatmul.mubr.bf16.gmra.mxu0 %v8681
        %v8787 = vpop.f32.mrf.mxu0
        %v8788 = vadd.f32 %v8703, %v8787
        %v8789 = vpop.f32.mrf.mxu0
        %v8790 = vpop.f32.mrf.mxu0
        %v8791 = vpop.f32.mrf.mxu0
        %8792 = vdwg.mxu0
        %v8793 = vmax.f32 %v8788, 0.0
        %8794 = vst [vmem:[%s1697] sm:$0x3] %v8793
        %p8795 = scmp.lt.s32.totalorder %s112, 3
        %s8796 = scalar_select %p8795, %s112, 3
        %s8797 = smul.addr %s8796, 2
        %s8798 = scalar_lea.vmem %s77, %s8797
        // Predicated region
        $region313: #{forward_pallas.1} parent=171 // pred_check
          %p8799 = pneg %p948
        $region314: #{forward_pallas.1} parent=171 // pred_check_branch
          %8801 = sbr.rel (%p8799) target = $region316
        $region315: #{forward_pallas.1} parent=171 // pred_region
          _
        $region316: #{forward_pallas.1} parent=171 // pred_fallthru
          _
      $region172: #{forward_pallas.1} parent=5 // pred_fallthru
        _
      %p8802 = scmp.le.s32.totalorder 2, %s107
      // Predicated region
      $region317: #{forward_pallas.1} parent=5 // pred_check
        %p8803 = pneg %p8802
      $region318: #{forward_pallas.1} parent=5 // pred_check_branch
        %8805 = sbr.rel (%p8803) target = $region320
      $region319: #{forward_pallas.1} parent=5 // pred_region
        %s8806 = ssub.s32 %s107, 2
        // Predicated region
        $region321: #{forward_pallas.1} parent=319 // pred_check
          %p8807 = pneg %p954
        $region322: #{forward_pallas.1} parent=319 // pred_check_branch
          %8809 = sbr.rel (%p8807) target = $region324
        $region323: #{forward_pallas.1} parent=319 // pred_region
          %p8810 = scmp.lt.s32.totalorder %s113, 3
          %s8811 = scalar_select %p8810, %s113, 3
          %s8812 = smul.addr %s8811, 2
          %s8813 = scalar_lea.vmem %s77, %s8812
        $region324: #{forward_pallas.1} parent=319 // pred_fallthru
          _
      $region320: #{forward_pallas.1} parent=5 // pred_fallthru
        _
    $region6: #{forward_pallas.1} parent=1 // loop_footer
      %s111 = sadd.s32 1, %s107
    $region7: #{forward_pallas.1} parent=1 // loop_footer_branch
      %106 = sbr.rel target = $region3
    $region8: #{forward_pallas.1} parent=1 // loop_exit
      _
    %8814 = vsyncpa [#allocation3], 1
    %s8815 = scalar_lea.sflag [#allocation3], 1
    %8816 = vsyncpa %s8815, 1
    %8817 = vsyncpa [#allocation5], 1
    %s8818 = scalar_lea.sflag [#allocation5], 1
    %8819 = vsyncpa %s8818, 1
    %8820 = vsyncpa [#allocation8], 1
    %s8821 = scalar_lea.sflag [#allocation8], 1
    %8822 = vsyncpa %s8821, 1
    %8823 = vsyncpa [#allocation11], 1
    %8824 = vsyncpa [#allocation14], 1
    %8825 = vsyncpa [#allocation17], 1
    %8826 = vsyncpa [#allocation20], 1
    %8827 = vsyncpa [#allocation23], 1
    %8828 = vsyncpa [#allocation26], 1
    %8829 = vsyncpa [#allocation29], 1
    %8830 = vsyncpa [#allocation32], 1
    %8831 = vsyncpa [#allocation35], 1
    %8832 = vsyncpa [#allocation38], 1
    %8833 = vsyncpa [#allocation41], 1
    %8834 = vsyncpa [#allocation44], 1
    %8835 = vsyncpa [#allocation47], 1
    %8836 = vsyncpa [#allocation50], 1
    %8837 = vsyncpa [#allocation53], 1

</llo_original>
